<compile_context>
chip_gen: v7x
topology: tpu7x:2x2x1
jax: 0.10.0
libtpu: 0.0.40
codegen_flags: <defaults>
</compile_context>

<pallas_src>
import functools

import jax
import jax.numpy as jnp
from jax import lax
from jax.experimental import pallas as pl
from jax.experimental.pallas import tpu as pltpu

NIN = 21            # amino-acid vocab / one-hot width
HIDDEN = 128        # per-direction LSTM hidden size (1024 in the real model)
NUM_LAYERS = 3
NOUT = 100          # Linear(proj_in, 100) in ProSEMT.load_pretrained
LANE = 128
TIME_CHUNK = 4      # time-chunk length for the recurrence grid (must divide L)

PROJ_IN = NIN + NUM_LAYERS * 2 * HIDDEN                  # 789
PROJ_IN_PAD = ((PROJ_IN + LANE - 1) // LANE) * LANE      # 896
NOUT_PAD = ((NOUT + LANE - 1) // LANE) * LANE            # 128

ROW_TILE = 256      # row tile for the matmul calls (review: 256-512)
VMEM_LIMIT = 40 * 1024 * 1024   # derived for v7x's 64 MiB physical VMEM:
                                # resident per-direction W_hh (8 MiB bf16 at
                                # H=1024) + double-buffered chunk blocks stays
                                # well under 40 MiB, leaving pipeline headroom.


def _round_up(x, m):
    return ((x + m - 1) // m) * m


# ---------------------------------------------------------------------------
# Kernels
# ---------------------------------------------------------------------------
def _rowmm_bias_kernel(x_ref, w_ref, b_ref, o_ref):
    """o = x @ w + b on one row tile (bias folded in, f32 MXU accumulation)."""
    o_ref[...] = (jnp.dot(x_ref[...], w_ref[...],
                          preferred_element_type=jnp.float32)
                  + b_ref[...]).astype(o_ref.dtype)


def _lstm_recurrence_kernel(gx_ref, whh_ref, out_ref, h_ref, c_ref,
                            *, chunk, hidden):
    """One direction x one time chunk of the LSTM recurrence.

    grid = (direction, chunk_idx): direction is 'parallel' (independent
    state; maps to separate TensorCores on v7x), chunk_idx is 'arbitrary'
    (h/c scratch carried across chunks).  The backward direction receives its
    chunks in reverse order via the BlockSpec index_map; inside a chunk the
    step index is mirrored so one body serves both directions.

    gx_ref:  (chunk, B, 4H) bf16  precomputed input gates (x @ W_ih + b)
    whh_ref: (1, H, 4H)     bf16  this direction's hidden->gate weights
    out_ref: (chunk, B, H)  bf16  this direction's half of the (L,B,2H) output
    h_ref, c_ref: (B, H)    f32   carried recurrent state
    Gate order follows PyTorch: [i, f, g, o].
    """
    H = hidden
    d = pl.program_id(0)

    @pl.when(pl.program_id(1) == 0)
    def _():
        h_ref[...] = jnp.zeros_like(h_ref)
        c_ref[...] = jnp.zeros_like(c_ref)

    def step(i, carry):
        # forward walks 0..chunk-1 inside the chunk, backward chunk-1..0
        t = i + d * (chunk - 1 - 2 * i)
        gates = gx_ref[t].astype(jnp.float32) + jnp.dot(
            h_ref[...].astype(whh_ref.dtype), whh_ref[0],
            preferred_element_type=jnp.float32)               # (B, 4H) f32
        i_g = jax.nn.sigmoid(gates[:, 0 * H:1 * H])
        f_g = jax.nn.sigmoid(gates[:, 1 * H:2 * H])
        g_g = jnp.tanh(gates[:, 2 * H:3 * H])
        o_g = jax.nn.sigmoid(gates[:, 3 * H:4 * H])
        c_new = f_g * c_ref[...] + i_g * g_g
        h_new = o_g * jnp.tanh(c_new)
        h_ref[...] = h_new
        c_ref[...] = c_new
        out_ref[t] = h_new.astype(out_ref.dtype)
        return carry

    lax.fori_loop(0, chunk, step, 0, unroll=4)


# ---------------------------------------------------------------------------
# Wrappers
# ---------------------------------------------------------------------------
def _row_matmul_bias(x, w, b, out_dtype):
    """Row-tiled x @ w + b.  x: (N, K) bf16, w: (K, M) bf16, b: (1, M) f32."""
    n, k = x.shape
    m = w.shape[1]
    n_pad = _round_up(n, 8)
    rb = min(ROW_TILE, n_pad)
    n_pad = _round_up(n_pad, rb)
    if n_pad != n:
        x = jnp.pad(x, ((0, n_pad - n), (0, 0)))
    out = pl.pallas_call(
        _rowmm_bias_kernel,
        out_shape=jax.ShapeDtypeStruct((n_pad, m), out_dtype),
        grid=(n_pad // rb,),
        in_specs=[
            pl.BlockSpec((rb, k), lambda i: (i, 0)),
            # TODO(synk): at real scale (D_in=2048 -> W_ih is 32 MiB bf16)
            # K-tile / stream the weight with a second grid axis instead of
            # keeping it resident.
            pl.BlockSpec((k, m), lambda i: (0, 0)),
            pl.BlockSpec((1, m), lambda i: (0, 0)),
        ],
        out_specs=pl.BlockSpec((rb, m), lambda i: (i, 0)),
        compiler_params=pltpu.CompilerParams(
            dimension_semantics=("parallel",),
            vmem_limit_bytes=VMEM_LIMIT),
    )(x, w, b)
    return out[:n] if n_pad != n else out


def _run_bilstm_layer(gx, whh, *, seq_len, batch):
    """Both directions of one LSTM layer.

    gx:  (L, B, 8H) bf16 precomputed gates [fwd 4H | bwd 4H]
    whh: (2, H, 4H) bf16 hidden->gate weights [fwd, bwd]
    Returns (L, B, 2H) bf16 with fwd in [..., :H] and bwd in [..., H:].
    """
    H = HIDDEN
    assert seq_len % TIME_CHUNK == 0  # TODO(synk): ragged final time chunk
    n_chunks = seq_len // TIME_CHUNK

    def time_block(d, c):
        # forward visits chunks 0..C-1, backward visits C-1..0
        return c + d * (n_chunks - 1 - 2 * c)

    # TODO(synk): on v6e/v5e an int8-quantized W_hh (scale applied after the
    # f32-accumulated dot) would halve per-step weight traffic; not applicable
    # on v7x (fp8-only MXU).
    return pl.pallas_call(
        functools.partial(_lstm_recurrence_kernel, chunk=TIME_CHUNK, hidden=H),
        out_shape=jax.ShapeDtypeStruct((seq_len, batch, 2 * H), jnp.bfloat16),
        grid=(2, n_chunks),
        in_specs=[
            pl.BlockSpec((TIME_CHUNK, batch, 4 * H),
                         lambda d, c: (time_block(d, c), 0, d)),
            pl.BlockSpec((1, H, 4 * H), lambda d, c: (d, 0, 0)),
        ],
        out_specs=pl.BlockSpec((TIME_CHUNK, batch, H),
                               lambda d, c: (time_block(d, c), 0, d)),
        scratch_shapes=[pltpu.VMEM((batch, H), jnp.float32),
                        pltpu.VMEM((batch, H), jnp.float32)],
        compiler_params=pltpu.CompilerParams(
            dimension_semantics=("parallel", "arbitrary"),
            vmem_limit_bytes=VMEM_LIMIT),
    )(gx, whh)


# ---------------------------------------------------------------------------
# Parameters (synthetic, PyTorch-LSTM-style uniform init)
# ---------------------------------------------------------------------------
def make_params(key):
    """bf16 weights (fwd|bwd input-gate weights fused to (D_in, 8H), W_hh
    stacked to (2, H, 4H)); f32 combined biases (b_ih + b_hh, fwd|bwd)."""
    params = {"layers": []}
    dim = NIN
    bound = 1.0 / jnp.sqrt(jnp.float32(HIDDEN))
    for _ in range(NUM_LAYERS):
        dir_w = {}
        for direction in ("fwd", "bwd"):
            key, k1, k2, k3, k4 = jax.random.split(key, 5)
            wih_t = jax.random.uniform(k1, (dim, 4 * HIDDEN), jnp.float32,
                                       -bound, bound)
            whh_t = jax.random.uniform(k2, (HIDDEN, 4 * HIDDEN), jnp.float32,
                                       -bound, bound)
            b_ih = jax.random.uniform(k3, (1, 4 * HIDDEN), jnp.float32,
                                      -bound, bound)
            b_hh = jax.random.uniform(k4, (1, 4 * HIDDEN), jnp.float32,
                                      -bound, bound)
            dir_w[direction] = (wih_t, whh_t, b_ih + b_hh)
        layer = {
            "wih": jnp.concatenate([dir_w["fwd"][0], dir_w["bwd"][0]],
                                   axis=1).astype(jnp.bfloat16),
            "whh": jnp.stack([dir_w["fwd"][1], dir_w["bwd"][1]],
                             axis=0).astype(jnp.bfloat16),
            "b": jnp.concatenate([dir_w["fwd"][2], dir_w["bwd"][2]], axis=1),
        }
        params["layers"].append(layer)
        dim = 2 * HIDDEN

    key, kw, kb = jax.random.split(key, 3)
    pb = 1.0 / jnp.sqrt(jnp.float32(PROJ_IN))
    w = jax.random.uniform(kw, (PROJ_IN, NOUT), jnp.float32, -pb, pb)
    b = jax.random.uniform(kb, (1, NOUT), jnp.float32, -pb, pb)
    # Lane-dense padding: proj_in 789 -> 896, nout 100 -> 128 (zero rows/cols).
    params["proj_w"] = jnp.pad(
        w, ((0, PROJ_IN_PAD - PROJ_IN), (0, NOUT_PAD - NOUT))
    ).astype(jnp.bfloat16)
    params["proj_b"] = jnp.pad(b, ((0, 0), (0, NOUT_PAD - NOUT)))
    return params


# ---------------------------------------------------------------------------
# Forward pass (Pallas) and pure-JAX reference
# ---------------------------------------------------------------------------
def prose_mt_forward(tokens, params):
    """ProSEMT.forward == SkipLSTM embedding forward. tokens: (B, L) int32."""
    B, L = tokens.shape
    # Time-major bf16 one-hot (transpose the tiny int matrix, never the
    # activations): (L, B, NIN).
    oh_tm = jax.nn.one_hot(tokens.T, NIN, dtype=jnp.bfloat16)

    x_flat = oh_tm.reshape(L * B, NIN)
    skip_feats = [oh_tm]
    for layer in params["layers"]:
        # Hoisted input/gate projection: one row-tiled MXU call (fwd|bwd
        # fused, bias folded), bf16 gate storage; no in-kernel scatter loop.
        gx = _row_matmul_bias(x_flat, layer["wih"], layer["b"], jnp.bfloat16)
        gx = gx.reshape(L, B, 8 * HIDDEN)
        h_bi = _run_bilstm_layer(gx, layer["whh"], seq_len=L, batch=B)
        skip_feats.append(h_bi)
        x_flat = h_bi.reshape(L * B, 2 * HIDDEN)

    # Skip-concat of [one_hot, layer1, layer2, layer3] + lane-dense pad.
    # TODO(synk): write each layer's slice directly into this padded slab via
    # input_output_aliases to eliminate the concat+pad HBM round-trip.
    h_cat = jnp.concatenate(skip_feats, axis=-1)              # (L, B, 789)
    h_cat = jnp.pad(h_cat, ((0, 0), (0, 0), (0, PROJ_IN_PAD - PROJ_IN)))
    z = _row_matmul_bias(h_cat.reshape(L * B, PROJ_IN_PAD),
                         params["proj_w"], params["proj_b"], jnp.float32)
    z = z[:, :NOUT].reshape(L, B, NOUT)
    return jnp.transpose(z, (1, 0, 2))                        # (B, L, 100)


def prose_mt_reference(tokens, params):
    """Pure-JAX f32 reference (same bf16-quantized weights, f32 math)."""
    B, L = tokens.shape
    H = HIDDEN
    oh = jax.nn.one_hot(tokens.T, NIN, dtype=jnp.float32)     # (L, B, 21)
    x = oh
    feats = [oh]

    def cell(carry, g, whh_d):
        h, c = carry
        gates = g + h @ whh_d
        i = jax.nn.sigmoid(gates[:, 0 * H:1 * H])
        f = jax.nn.sigmoid(gates[:, 1 * H:2 * H])
        gg = jnp.tanh(gates[:, 2 * H:3 * H])
        o = jax.nn.sigmoid(gates[:, 3 * H:4 * H])
        c = f * c + i * gg
        h = o * jnp.tanh(c)
        return (h, c), h

    for layer in params["layers"]:
        wih = layer["wih"].astype(jnp.float32)                # (D_in, 8H)
        whh = layer["whh"].astype(jnp.float32)                # (2, H, 4H)
        d_in = wih.shape[0]
        gx = (x.reshape(L * B, d_in) @ wih + layer["b"]).reshape(L, B, 8 * H)
        h0 = jnp.zeros((B, H), jnp.float32)
        _, hs_f = lax.scan(lambda c_, g: cell(c_, g[:, :4 * H], whh[0]),
                           (h0, h0), gx)
        _, hs_b = lax.scan(lambda c_, g: cell(c_, g[:, 4 * H:], whh[1]),
                           (h0, h0), gx, reverse=True)
        h_bi = jnp.concatenate([hs_f, hs_b], axis=-1)         # (L, B, 2H)
        feats.append(h_bi)
        x = h_bi

    h_cat = jnp.concatenate(feats, axis=-1)                   # (L, B, 789)
    w = params["proj_w"].astype(jnp.float32)[:PROJ_IN, :NOUT]
    b = params["proj_b"][:, :NOUT]
    z = h_cat.reshape(L * B, PROJ_IN) @ w + b
    return jnp.transpose(z.reshape(L, B, NOUT), (1, 0, 2))


if __name__ == "__main__":
    key = jax.random.PRNGKey(0)
    key, k_tok, k_par = jax.random.split(key, 3)

    B, L = 2, 8
    tokens = jax.random.randint(k_tok, (B, L), 0, NIN, dtype=jnp.int32)
    params = make_params(k_par)

    z = jax.jit(prose_mt_forward)(tokens, params)
    z = jax.block_until_ready(z)
    assert z.shape == (B, L, NOUT) and z.dtype == jnp.float32

    z_ref = prose_mt_reference(tokens, params)
    err = float(jnp.max(jnp.abs(z - z_ref)))
    assert err < 5e-2, f"max abs error vs pure-JAX reference: {err}"
    print("KERNEL_OK")
</pallas_src>

<mosaic_0001>
module attributes {stable_mosaic.version = 11 : i64} {
  func.func @_rowmm_bias_kernel(%arg0: i32, %arg1: memref<16x21xbf16, #tpu.memory_space<vmem>>, %arg2: memref<21x1024xbf16, #tpu.memory_space<vmem>>, %arg3: memref<1x1024xf32, #tpu.memory_space<vmem>>, %arg4: memref<16x1024xbf16, #tpu.memory_space<vmem>>) attributes {dimension_semantics = [#tpu.dimension_semantics<parallel>], iteration_bounds = array<i64: 1>, scalar_prefetch = 0 : i64, scratch_operands = 0 : i64, tpu.core_type = #tpu.core_type<tc>, window_params = [{transform_indices = @transform_0, window_bounds = array<i64: 16, 21>}, {pipeline_mode = #tpu.pipeline_mode<synchronous>, transform_indices = @transform_1, window_bounds = array<i64: 21, 1024>}, {pipeline_mode = #tpu.pipeline_mode<synchronous>, transform_indices = @transform_2, window_bounds = array<i64: 1, 1024>}, {transform_indices = @transform_3, window_bounds = array<i64: 16, 1024>}]} {
    %c0 = arith.constant 0 : index
    %c0_0 = arith.constant 0 : index
    %0 = vector.load %arg1[%c0, %c0_0] : memref<16x21xbf16, #tpu.memory_space<vmem>>, vector<16x21xbf16>
    %c0_1 = arith.constant 0 : index
    %c0_2 = arith.constant 0 : index
    %1 = vector.load %arg2[%c0_1, %c0_2] : memref<21x1024xbf16, #tpu.memory_space<vmem>>, vector<21x1024xbf16>
    %cst = arith.constant dense<0.000000e+00> : vector<16x1024xf32>
    %2 = tpu.matmul %0, %1, %cst {dimension_numbers = #tpu.dot_dimension_numbers<[1], [0], [0], [1], [0, 0, 1, 1], [], []>} : vector<16x21xbf16>, vector<21x1024xbf16>, vector<16x1024xf32> -> vector<16x1024xf32>
    %c0_3 = arith.constant 0 : index
    %c0_4 = arith.constant 0 : index
    %3 = vector.load %arg3[%c0_3, %c0_4] : memref<1x1024xf32, #tpu.memory_space<vmem>>, vector<1x1024xf32>
    %4 = vector.broadcast %3 : vector<1x1024xf32> to vector<16x1024xf32>
    %5 = arith.addf %2, %4 : vector<16x1024xf32>
    %6 = arith.truncf %5 : vector<16x1024xf32> to vector<16x1024xbf16>
    %c0_5 = arith.constant 0 : index
    %c0_6 = arith.constant 0 : index
    %7 = vector.load %arg4[%c0_5, %c0_6] : memref<16x1024xbf16, #tpu.memory_space<vmem>>, vector<16x1024xbf16>
    tpu.vector_store %arg4[%c0_5, %c0_6], %6 {strides = array<i32>} : memref<16x1024xbf16, #tpu.memory_space<vmem>>, vector<16x1024xbf16>,
    return
  }
  func.func @transform_0(%arg0: i32) -> (i32, i32) {
    %c0_i32 = arith.constant 0 : i32
    %c0_i32_0 = arith.constant 0 : i32
    return %arg0, %c0_i32 : i32, i32
  }
  func.func @transform_1(%arg0: i32) -> (i32, i32) {
    %c0_i32 = arith.constant 0 : i32
    %c0_i32_0 = arith.constant 0 : i32
    %c0_i32_1 = arith.constant 0 : i32
    return %c0_i32, %c0_i32_0 : i32, i32
  }
  func.func @transform_2(%arg0: i32) -> (i32, i32) {
    %c0_i32 = arith.constant 0 : i32
    %c0_i32_0 = arith.constant 0 : i32
    %c0_i32_1 = arith.constant 0 : i32
    return %c0_i32, %c0_i32_0 : i32, i32
  }
  func.func @transform_3(%arg0: i32) -> (i32, i32) {
    %c0_i32 = arith.constant 0 : i32
    %c0_i32_0 = arith.constant 0 : i32
    return %arg0, %c0_i32 : i32, i32
  }
}

module attributes {stable_mosaic.version = 11 : i64} {
  func.func @_lstm_recurrence_kernel(%arg0: i32, %arg1: i32, %arg2: memref<4x2x512xbf16, #tpu.memory_space<vmem>>, %arg3: memref<1x128x512xbf16, #tpu.memory_space<vmem>>, %arg4: memref<4x2x128xbf16, #tpu.memory_space<vmem>>, %arg5: memref<2x128xf32, #tpu.memory_space<vmem>>, %arg6: memref<2x128xf32, #tpu.memory_space<vmem>>) attributes {dimension_semantics = [#tpu.dimension_semantics<parallel>, #tpu.dimension_semantics<arbitrary>], iteration_bounds = array<i64: 2, 2>, scalar_prefetch = 0 : i64, scratch_operands = 2 : i64, tpu.core_type = #tpu.core_type<tc>, window_params = [{transform_indices = @transform_0, window_bounds = array<i64: 4, 2, 512>}, {transform_indices = @transform_1, window_bounds = array<i64: 1, 128, 512>}, {transform_indices = @transform_2, window_bounds = array<i64: 4, 2, 128>}]} {
    %c0_i32 = arith.constant 0 : i32
    %0 = arith.cmpi eq, %arg1, %c0_i32 : i32
    %1 = arith.extui %0 : i1 to i32
    %c0_i32_0 = arith.constant 0 : i32
    %2 = arith.cmpi ne, %1, %c0_i32_0 : i32
    scf.if %2 {
      %cst_84 = arith.constant 0.000000e+00 : f32
      %191 = vector.broadcast %cst_84 : f32 to vector<2x128xf32>
      %c0_85 = arith.constant 0 : index
      %c0_86 = arith.constant 0 : index
      %192 = vector.load %arg5[%c0_85, %c0_86] : memref<2x128xf32, #tpu.memory_space<vmem>>, vector<2x128xf32>
      tpu.vector_store %arg5[%c0_85, %c0_86], %191 {strides = array<i32>} : memref<2x128xf32, #tpu.memory_space<vmem>>, vector<2x128xf32>,
      %cst_87 = arith.constant 0.000000e+00 : f32
      %193 = vector.broadcast %cst_87 : f32 to vector<2x128xf32>
      %c0_88 = arith.constant 0 : index
      %c0_89 = arith.constant 0 : index
      %194 = vector.load %arg6[%c0_88, %c0_89] : memref<2x128xf32, #tpu.memory_space<vmem>>, vector<2x128xf32>
      tpu.vector_store %arg6[%c0_88, %c0_89], %193 {strides = array<i32>} : memref<2x128xf32, #tpu.memory_space<vmem>>, vector<2x128xf32>,
    } else {
    }
    %c0_i32_1 = arith.constant 0 : i32
    %c2_i32 = arith.constant 2 : i32
    %3 = arith.muli %c2_i32, %c0_i32_1 : i32
    %c3_i32 = arith.constant 3 : i32
    %4 = arith.subi %c3_i32, %3 : i32
    %5 = arith.muli %arg0, %4 : i32
    %6 = arith.addi %c0_i32_1, %5 : i32
    %7 = arith.index_cast %6 : i32 to index
    %c0 = arith.constant 0 : index
    %c0_2 = arith.constant 0 : index
    %8 = vector.load %arg2[%7, %c0, %c0_2] : memref<4x2x512xbf16, #tpu.memory_space<vmem>>, vector<1x2x512xbf16>
    %9 = vector.shape_cast %8 : vector<1x2x512xbf16> to vector<2x512xbf16>
    %10 = arith.extf %9 : vector<2x512xbf16> to vector<2x512xf32>
    %c0_3 = arith.constant 0 : index
    %c0_4 = arith.constant 0 : index
    %11 = vector.load %arg5[%c0_3, %c0_4] : memref<2x128xf32, #tpu.memory_space<vmem>>, vector<2x128xf32>
    %12 = arith.truncf %11 : vector<2x128xf32> to vector<2x128xbf16>
    %c0_5 = arith.constant 0 : index
    %c0_6 = arith.constant 0 : index
    %c0_7 = arith.constant 0 : index
    %13 = vector.load %arg3[%c0_5, %c0_6, %c0_7] : memref<1x128x512xbf16, #tpu.memory_space<vmem>>, vector<1x128x512xbf16>
    %14 = vector.shape_cast %13 : vector<1x128x512xbf16> to vector<128x512xbf16>
    %cst = arith.constant dense<0.000000e+00> : vector<2x512xf32>
    %15 = tpu.matmul %12, %14, %cst {dimension_numbers = #tpu.dot_dimension_numbers<[1], [0], [0], [1], [0, 0, 1, 1], [], []>} : vector<2x128xbf16>, vector<128x512xbf16>, vector<2x512xf32> -> vector<2x512xf32>
    %16 = arith.addf %10, %15 : vector<2x512xf32>
    %17 = vector.extract_strided_slice %16 {offsets = [0, 0], sizes = [2, 128], strides = [1, 1]} : vector<2x512xf32> to vector<2x128xf32>
    %18 = arith.negf %17 : vector<2x128xf32>
    %19 = math.exp %18 : vector<2x128xf32>
    %cst_8 = arith.constant 1.000000e+00 : f32
    %20 = vector.broadcast %cst_8 : f32 to vector<2x128xf32>
    %21 = arith.addf %20, %19 : vector<2x128xf32>
    %22 = arith.divf %20, %21 : vector<2x128xf32>
    %23 = vector.extract_strided_slice %16 {offsets = [0, 128], sizes = [2, 128], strides = [1, 1]} : vector<2x512xf32> to vector<2x128xf32>
    %24 = arith.negf %23 : vector<2x128xf32>
    %25 = math.exp %24 : vector<2x128xf32>
    %cst_9 = arith.constant 1.000000e+00 : f32
    %26 = vector.broadcast %cst_9 : f32 to vector<2x128xf32>
    %27 = arith.addf %26, %25 : vector<2x128xf32>
    %28 = arith.divf %26, %27 : vector<2x128xf32>
    %29 = vector.extract_strided_slice %16 {offsets = [0, 256], sizes = [2, 128], strides = [1, 1]} : vector<2x512xf32> to vector<2x128xf32>
    %30 = math.tanh %29 : vector<2x128xf32>
    %31 = vector.extract_strided_slice %16 {offsets = [0, 384], sizes = [2, 128], strides = [1, 1]} : vector<2x512xf32> to vector<2x128xf32>
    %32 = arith.negf %31 : vector<2x128xf32>
    %33 = math.exp %32 : vector<2x128xf32>
    %cst_10 = arith.constant 1.000000e+00 : f32
    %34 = vector.broadcast %cst_10 : f32 to vector<2x128xf32>
    %35 = arith.addf %34, %33 : vector<2x128xf32>
    %36 = arith.divf %34, %35 : vector<2x128xf32>
    %c0_11 = arith.constant 0 : index
    %c0_12 = arith.constant 0 : index
    %37 = vector.load %arg6[%c0_11, %c0_12] : memref<2x128xf32, #tpu.memory_space<vmem>>, vector<2x128xf32>
    %38 = arith.mulf %28, %37 : vector<2x128xf32>
    %39 = arith.mulf %22, %30 : vector<2x128xf32>
    %40 = arith.addf %38, %39 : vector<2x128xf32>
    %41 = math.tanh %40 : vector<2x128xf32>
    %42 = arith.mulf %36, %41 : vector<2x128xf32>
    %c0_13 = arith.constant 0 : index
    %c0_14 = arith.constant 0 : index
    %43 = vector.load %arg5[%c0_13, %c0_14] : memref<2x128xf32, #tpu.memory_space<vmem>>, vector<2x128xf32>
    tpu.vector_store %arg5[%c0_13, %c0_14], %42 {strides = array<i32>} : memref<2x128xf32, #tpu.memory_space<vmem>>, vector<2x128xf32>,
    %c0_15 = arith.constant 0 : index
    %c0_16 = arith.constant 0 : index
    %44 = vector.load %arg6[%c0_15, %c0_16] : memref<2x128xf32, #tpu.memory_space<vmem>>, vector<2x128xf32>
    tpu.vector_store %arg6[%c0_15, %c0_16], %40 {strides = array<i32>} : memref<2x128xf32, #tpu.memory_space<vmem>>, vector<2x128xf32>,
    %45 = arith.truncf %42 : vector<2x128xf32> to vector<2x128xbf16>
    %46 = arith.index_cast %6 : i32 to index
    %c0_17 = arith.constant 0 : index
    %c0_18 = arith.constant 0 : index
    %47 = vector.load %arg4[%46, %c0_17, %c0_18] : memref<4x2x128xbf16, #tpu.memory_space<vmem>>, vector<1x2x128xbf16>
    %48 = vector.shape_cast %47 : vector<1x2x128xbf16> to vector<2x128xbf16>
    %49 = vector.shape_cast %45 : vector<2x128xbf16> to vector<1x2x128xbf16>
    tpu.vector_store %arg4[%46, %c0_17, %c0_18], %49 {strides = array<i32>} : memref<4x2x128xbf16, #tpu.memory_space<vmem>>, vector<1x2x128xbf16>,
    %c1_i32 = arith.constant 1 : i32
    %c2_i32_19 = arith.constant 2 : i32
    %50 = arith.muli %c2_i32_19, %c1_i32 : i32
    %c3_i32_20 = arith.constant 3 : i32
    %51 = arith.subi %c3_i32_20, %50 : i32
    %52 = arith.muli %arg0, %51 : i32
    %53 = arith.addi %c1_i32, %52 : i32
    %54 = arith.index_cast %53 : i32 to index
    %c0_21 = arith.constant 0 : index
    %c0_22 = arith.constant 0 : index
    %55 = vector.load %arg2[%54, %c0_21, %c0_22] : memref<4x2x512xbf16, #tpu.memory_space<vmem>>, vector<1x2x512xbf16>
    %56 = vector.shape_cast %55 : vector<1x2x512xbf16> to vector<2x512xbf16>
    %57 = arith.extf %56 : vector<2x512xbf16> to vector<2x512xf32>
    %c0_23 = arith.constant 0 : index
    %c0_24 = arith.constant 0 : index
    %58 = vector.load %arg5[%c0_23, %c0_24] : memref<2x128xf32, #tpu.memory_space<vmem>>, vector<2x128xf32>
    %59 = arith.truncf %58 : vector<2x128xf32> to vector<2x128xbf16>
    %c0_25 = arith.constant 0 : index
    %c0_26 = arith.constant 0 : index
    %c0_27 = arith.constant 0 : index
    %60 = vector.load %arg3[%c0_25, %c0_26, %c0_27] : memref<1x128x512xbf16, #tpu.memory_space<vmem>>, vector<1x128x512xbf16>
    %61 = vector.shape_cast %60 : vector<1x128x512xbf16> to vector<128x512xbf16>
    %cst_28 = arith.constant dense<0.000000e+00> : vector<2x512xf32>
    %62 = tpu.matmul %59, %61, %cst_28 {dimension_numbers = #tpu.dot_dimension_numbers<[1], [0], [0], [1], [0, 0, 1, 1], [], []>} : vector<2x128xbf16>, vector<128x512xbf16>, vector<2x512xf32> -> vector<2x512xf32>
    %63 = arith.addf %57, %62 : vector<2x512xf32>
    %64 = vector.extract_strided_slice %63 {offsets = [0, 0], sizes = [2, 128], strides = [1, 1]} : vector<2x512xf32> to vector<2x128xf32>
    %65 = arith.negf %64 : vector<2x128xf32>
    %66 = math.exp %65 : vector<2x128xf32>
    %cst_29 = arith.constant 1.000000e+00 : f32
    %67 = vector.broadcast %cst_29 : f32 to vector<2x128xf32>
    %68 = arith.addf %67, %66 : vector<2x128xf32>
    %69 = arith.divf %67, %68 : vector<2x128xf32>
    %70 = vector.extract_strided_slice %63 {offsets = [0, 128], sizes = [2, 128], strides = [1, 1]} : vector<2x512xf32> to vector<2x128xf32>
    %71 = arith.negf %70 : vector<2x128xf32>
    %72 = math.exp %71 : vector<2x128xf32>
    %cst_30 = arith.constant 1.000000e+00 : f32
    %73 = vector.broadcast %cst_30 : f32 to vector<2x128xf32>
    %74 = arith.addf %73, %72 : vector<2x128xf32>
    %75 = arith.divf %73, %74 : vector<2x128xf32>
    %76 = vector.extract_strided_slice %63 {offsets = [0, 256], sizes = [2, 128], strides = [1, 1]} : vector<2x512xf32> to vector<2x128xf32>
    %77 = math.tanh %76 : vector<2x128xf32>
    %78 = vector.extract_strided_slice %63 {offsets = [0, 384], sizes = [2, 128], strides = [1, 1]} : vector<2x512xf32> to vector<2x128xf32>
    %79 = arith.negf %78 : vector<2x128xf32>
    %80 = math.exp %79 : vector<2x128xf32>
    %cst_31 = arith.constant 1.000000e+00 : f32
    %81 = vector.broadcast %cst_31 : f32 to vector<2x128xf32>
    %82 = arith.addf %81, %80 : vector<2x128xf32>
    %83 = arith.divf %81, %82 : vector<2x128xf32>
    %c0_32 = arith.constant 0 : index
    %c0_33 = arith.constant 0 : index
    %84 = vector.load %arg6[%c0_32, %c0_33] : memref<2x128xf32, #tpu.memory_space<vmem>>, vector<2x128xf32>
    %85 = arith.mulf %75, %84 : vector<2x128xf32>
    %86 = arith.mulf %69, %77 : vector<2x128xf32>
    %87 = arith.addf %85, %86 : vector<2x128xf32>
    %88 = math.tanh %87 : vector<2x128xf32>
    %89 = arith.mulf %83, %88 : vector<2x128xf32>
    %c0_34 = arith.constant 0 : index
    %c0_35 = arith.constant 0 : index
    %90 = vector.load %arg5[%c0_34, %c0_35] : memref<2x128xf32, #tpu.memory_space<vmem>>, vector<2x128xf32>
    tpu.vector_store %arg5[%c0_34, %c0_35], %89 {strides = array<i32>} : memref<2x128xf32, #tpu.memory_space<vmem>>, vector<2x128xf32>,
    %c0_36 = arith.constant 0 : index
    %c0_37 = arith.constant 0 : index
    %91 = vector.load %arg6[%c0_36, %c0_37] : memref<2x128xf32, #tpu.memory_space<vmem>>, vector<2x128xf32>
    tpu.vector_store %arg6[%c0_36, %c0_37], %87 {strides = array<i32>} : memref<2x128xf32, #tpu.memory_space<vmem>>, vector<2x128xf32>,
    %92 = arith.truncf %89 : vector<2x128xf32> to vector<2x128xbf16>
    %93 = arith.index_cast %53 : i32 to index
    %c0_38 = arith.constant 0 : index
    %c0_39 = arith.constant 0 : index
    %94 = vector.load %arg4[%93, %c0_38, %c0_39] : memref<4x2x128xbf16, #tpu.memory_space<vmem>>, vector<1x2x128xbf16>
    %95 = vector.shape_cast %94 : vector<1x2x128xbf16> to vector<2x128xbf16>
    %96 = vector.shape_cast %92 : vector<2x128xbf16> to vector<1x2x128xbf16>
    tpu.vector_store %arg4[%93, %c0_38, %c0_39], %96 {strides = array<i32>} : memref<4x2x128xbf16, #tpu.memory_space<vmem>>, vector<1x2x128xbf16>,
    %c2_i32_40 = arith.constant 2 : i32
    %c2_i32_41 = arith.constant 2 : i32
    %97 = arith.muli %c2_i32_41, %c2_i32_40 : i32
    %c3_i32_42 = arith.constant 3 : i32
    %98 = arith.subi %c3_i32_42, %97 : i32
    %99 = arith.muli %arg0, %98 : i32
    %100 = arith.addi %c2_i32_40, %99 : i32
    %101 = arith.index_cast %100 : i32 to index
    %c0_43 = arith.constant 0 : index
    %c0_44 = arith.constant 0 : index
    %102 = vector.load %arg2[%101, %c0_43, %c0_44] : memref<4x2x512xbf16, #tpu.memory_space<vmem>>, vector<1x2x512xbf16>
    %103 = vector.shape_cast %102 : vector<1x2x512xbf16> to vector<2x512xbf16>
    %104 = arith.extf %103 : vector<2x512xbf16> to vector<2x512xf32>
    %c0_45 = arith.constant 0 : index
    %c0_46 = arith.constant 0 : index
    %105 = vector.load %arg5[%c0_45, %c0_46] : memref<2x128xf32, #tpu.memory_space<vmem>>, vector<2x128xf32>
    %106 = arith.truncf %105 : vector<2x128xf32> to vector<2x128xbf16>
    %c0_47 = arith.constant 0 : index
    %c0_48 = arith.constant 0 : index
    %c0_49 = arith.constant 0 : index
    %107 = vector.load %arg3[%c0_47, %c0_48, %c0_49] : memref<1x128x512xbf16, #tpu.memory_space<vmem>>, vector<1x128x512xbf16>
    %108 = vector.shape_cast %107 : vector<1x128x512xbf16> to vector<128x512xbf16>
    %cst_50 = arith.constant dense<0.000000e+00> : vector<2x512xf32>
    %109 = tpu.matmul %106, %108, %cst_50 {dimension_numbers = #tpu.dot_dimension_numbers<[1], [0], [0], [1], [0, 0, 1, 1], [], []>} : vector<2x128xbf16>, vector<128x512xbf16>, vector<2x512xf32> -> vector<2x512xf32>
    %110 = arith.addf %104, %109 : vector<2x512xf32>
    %111 = vector.extract_strided_slice %110 {offsets = [0, 0], sizes = [2, 128], strides = [1, 1]} : vector<2x512xf32> to vector<2x128xf32>
    %112 = arith.negf %111 : vector<2x128xf32>
    %113 = math.exp %112 : vector<2x128xf32>
    %cst_51 = arith.constant 1.000000e+00 : f32
    %114 = vector.broadcast %cst_51 : f32 to vector<2x128xf32>
    %115 = arith.addf %114, %113 : vector<2x128xf32>
    %116 = arith.divf %114, %115 : vector<2x128xf32>
    %117 = vector.extract_strided_slice %110 {offsets = [0, 128], sizes = [2, 128], strides = [1, 1]} : vector<2x512xf32> to vector<2x128xf32>
    %118 = arith.negf %117 : vector<2x128xf32>
    %119 = math.exp %118 : vector<2x128xf32>
    %cst_52 = arith.constant 1.000000e+00 : f32
    %120 = vector.broadcast %cst_52 : f32 to vector<2x128xf32>
    %121 = arith.addf %120, %119 : vector<2x128xf32>
    %122 = arith.divf %120, %121 : vector<2x128xf32>
    %123 = vector.extract_strided_slice %110 {offsets = [0, 256], sizes = [2, 128], strides = [1, 1]} : vector<2x512xf32> to vector<2x128xf32>
    %124 = math.tanh %123 : vector<2x128xf32>
    %125 = vector.extract_strided_slice %110 {offsets = [0, 384], sizes = [2, 128], strides = [1, 1]} : vector<2x512xf32> to vector<2x128xf32>
    %126 = arith.negf %125 : vector<2x128xf32>
    %127 = math.exp %126 : vector<2x128xf32>
    %cst_53 = arith.constant 1.000000e+00 : f32
    %128 = vector.broadcast %cst_53 : f32 to vector<2x128xf32>
    %129 = arith.addf %128, %127 : vector<2x128xf32>
    %130 = arith.divf %128, %129 : vector<2x128xf32>
    %c0_54 = arith.constant 0 : index
    %c0_55 = arith.constant 0 : index
    %131 = vector.load %arg6[%c0_54, %c0_55] : memref<2x128xf32, #tpu.memory_space<vmem>>, vector<2x128xf32>
    %132 = arith.mulf %122, %131 : vector<2x128xf32>
    %133 = arith.mulf %116, %124 : vector<2x128xf32>
    %134 = arith.addf %132, %133 : vector<2x128xf32>
    %135 = math.tanh %134 : vector<2x128xf32>
    %136 = arith.mulf %130, %135 : vector<2x128xf32>
    %c0_56 = arith.constant 0 : index
    %c0_57 = arith.constant 0 : index
    %137 = vector.load %arg5[%c0_56, %c0_57] : memref<2x128xf32, #tpu.memory_space<vmem>>, vector<2x128xf32>
    tpu.vector_store %arg5[%c0_56, %c0_57], %136 {strides = array<i32>} : memref<2x128xf32, #tpu.memory_space<vmem>>, vector<2x128xf32>,
    %c0_58 = arith.constant 0 : index
    %c0_59 = arith.constant 0 : index
    %138 = vector.load %arg6[%c0_58, %c0_59] : memref<2x128xf32, #tpu.memory_space<vmem>>, vector<2x128xf32>
    tpu.vector_store %arg6[%c0_58, %c0_59], %134 {strides = array<i32>} : memref<2x128xf32, #tpu.memory_space<vmem>>, vector<2x128xf32>,
    %139 = arith.truncf %136 : vector<2x128xf32> to vector<2x128xbf16>
    %140 = arith.index_cast %100 : i32 to index
    %c0_60 = arith.constant 0 : index
    %c0_61 = arith.constant 0 : index
    %141 = vector.load %arg4[%140, %c0_60, %c0_61] : memref<4x2x128xbf16, #tpu.memory_space<vmem>>, vector<1x2x128xbf16>
    %142 = vector.shape_cast %141 : vector<1x2x128xbf16> to vector<2x128xbf16>
    %143 = vector.shape_cast %139 : vector<2x128xbf16> to vector<1x2x128xbf16>
    tpu.vector_store %arg4[%140, %c0_60, %c0_61], %143 {strides = array<i32>} : memref<4x2x128xbf16, #tpu.memory_space<vmem>>, vector<1x2x128xbf16>,
    %c3_i32_62 = arith.constant 3 : i32
    %c2_i32_63 = arith.constant 2 : i32
    %144 = arith.muli %c2_i32_63, %c3_i32_62 : i32
    %c3_i32_64 = arith.constant 3 : i32
    %145 = arith.subi %c3_i32_64, %144 : i32
    %146 = arith.muli %arg0, %145 : i32
    %147 = arith.addi %c3_i32_62, %146 : i32
    %148 = arith.index_cast %147 : i32 to index
    %c0_65 = arith.constant 0 : index
    %c0_66 = arith.constant 0 : index
    %149 = vector.load %arg2[%148, %c0_65, %c0_66] : memref<4x2x512xbf16, #tpu.memory_space<vmem>>, vector<1x2x512xbf16>
    %150 = vector.shape_cast %149 : vector<1x2x512xbf16> to vector<2x512xbf16>
    %151 = arith.extf %150 : vector<2x512xbf16> to vector<2x512xf32>
    %c0_67 = arith.constant 0 : index
    %c0_68 = arith.constant 0 : index
    %152 = vector.load %arg5[%c0_67, %c0_68] : memref<2x128xf32, #tpu.memory_space<vmem>>, vector<2x128xf32>
    %153 = arith.truncf %152 : vector<2x128xf32> to vector<2x128xbf16>
    %c0_69 = arith.constant 0 : index
    %c0_70 = arith.constant 0 : index
    %c0_71 = arith.constant 0 : index
    %154 = vector.load %arg3[%c0_69, %c0_70, %c0_71] : memref<1x128x512xbf16, #tpu.memory_space<vmem>>, vector<1x128x512xbf16>
    %155 = vector.shape_cast %154 : vector<1x128x512xbf16> to vector<128x512xbf16>
    %cst_72 = arith.constant dense<0.000000e+00> : vector<2x512xf32>
    %156 = tpu.matmul %153, %155, %cst_72 {dimension_numbers = #tpu.dot_dimension_numbers<[1], [0], [0], [1], [0, 0, 1, 1], [], []>} : vector<2x128xbf16>, vector<128x512xbf16>, vector<2x512xf32> -> vector<2x512xf32>
    %157 = arith.addf %151, %156 : vector<2x512xf32>
    %158 = vector.extract_strided_slice %157 {offsets = [0, 0], sizes = [2, 128], strides = [1, 1]} : vector<2x512xf32> to vector<2x128xf32>
    %159 = arith.negf %158 : vector<2x128xf32>
    %160 = math.exp %159 : vector<2x128xf32>
    %cst_73 = arith.constant 1.000000e+00 : f32
    %161 = vector.broadcast %cst_73 : f32 to vector<2x128xf32>
    %162 = arith.addf %161, %160 : vector<2x128xf32>
    %163 = arith.divf %161, %162 : vector<2x128xf32>
    %164 = vector.extract_strided_slice %157 {offsets = [0, 128], sizes = [2, 128], strides = [1, 1]} : vector<2x512xf32> to vector<2x128xf32>
    %165 = arith.negf %164 : vector<2x128xf32>
    %166 = math.exp %165 : vector<2x128xf32>
    %cst_74 = arith.constant 1.000000e+00 : f32
    %167 = vector.broadcast %cst_74 : f32 to vector<2x128xf32>
    %168 = arith.addf %167, %166 : vector<2x128xf32>
    %169 = arith.divf %167, %168 : vector<2x128xf32>
    %170 = vector.extract_strided_slice %157 {offsets = [0, 256], sizes = [2, 128], strides = [1, 1]} : vector<2x512xf32> to vector<2x128xf32>
    %171 = math.tanh %170 : vector<2x128xf32>
    %172 = vector.extract_strided_slice %157 {offsets = [0, 384], sizes = [2, 128], strides = [1, 1]} : vector<2x512xf32> to vector<2x128xf32>
    %173 = arith.negf %172 : vector<2x128xf32>
    %174 = math.exp %173 : vector<2x128xf32>
    %cst_75 = arith.constant 1.000000e+00 : f32
    %175 = vector.broadcast %cst_75 : f32 to vector<2x128xf32>
    %176 = arith.addf %175, %174 : vector<2x128xf32>
    %177 = arith.divf %175, %176 : vector<2x128xf32>
    %c0_76 = arith.constant 0 : index
    %c0_77 = arith.constant 0 : index
    %178 = vector.load %arg6[%c0_76, %c0_77] : memref<2x128xf32, #tpu.memory_space<vmem>>, vector<2x128xf32>
    %179 = arith.mulf %169, %178 : vector<2x128xf32>
    %180 = arith.mulf %163, %171 : vector<2x128xf32>
    %181 = arith.addf %179, %180 : vector<2x128xf32>
    %182 = math.tanh %181 : vector<2x128xf32>
    %183 = arith.mulf %177, %182 : vector<2x128xf32>
    %c0_78 = arith.constant 0 : index
    %c0_79 = arith.constant 0 : index
    %184 = vector.load %arg5[%c0_78, %c0_79] : memref<2x128xf32, #tpu.memory_space<vmem>>, vector<2x128xf32>
    tpu.vector_store %arg5[%c0_78, %c0_79], %183 {strides = array<i32>} : memref<2x128xf32, #tpu.memory_space<vmem>>, vector<2x128xf32>,
    %c0_80 = arith.constant 0 : index
    %c0_81 = arith.constant 0 : index
    %185 = vector.load %arg6[%c0_80, %c0_81] : memref<2x128xf32, #tpu.memory_space<vmem>>, vector<2x128xf32>
    tpu.vector_store %arg6[%c0_80, %c0_81], %181 {strides = array<i32>} : memref<2x128xf32, #tpu.memory_space<vmem>>, vector<2x128xf32>,
    %186 = arith.truncf %183 : vector<2x128xf32> to vector<2x128xbf16>
    %187 = arith.index_cast %147 : i32 to index
    %c0_82 = arith.constant 0 : index
    %c0_83 = arith.constant 0 : index
    %188 = vector.load %arg4[%187, %c0_82, %c0_83] : memref<4x2x128xbf16, #tpu.memory_space<vmem>>, vector<1x2x128xbf16>
    %189 = vector.shape_cast %188 : vector<1x2x128xbf16> to vector<2x128xbf16>
    %190 = vector.shape_cast %186 : vector<2x128xbf16> to vector<1x2x128xbf16>
    tpu.vector_store %arg4[%187, %c0_82, %c0_83], %190 {strides = array<i32>} : memref<4x2x128xbf16, #tpu.memory_space<vmem>>, vector<1x2x128xbf16>,
    %c4_i32 = arith.constant 4 : i32
    return
  }
  func.func @transform_0(%arg0: i32, %arg1: i32) -> (i32, i32, i32) {
    %c2_i32 = arith.constant 2 : i32
    %0 = arith.muli %c2_i32, %arg1 : i32
    %c1_i32 = arith.constant 1 : i32
    %1 = arith.subi %c1_i32, %0 : i32
    %2 = arith.muli %arg0, %1 : i32
    %3 = arith.addi %arg1, %2 : i32
    %c0_i32 = arith.constant 0 : i32
    %c0_i32_0 = arith.constant 0 : i32
    return %3, %c0_i32, %arg0 : i32, i32, i32
  }
  func.func @transform_1(%arg0: i32, %arg1: i32) -> (i32, i32, i32) {
    %c0_i32 = arith.constant 0 : i32
    %c0_i32_0 = arith.constant 0 : i32
    %c0_i32_1 = arith.constant 0 : i32
    return %arg0, %c0_i32, %c0_i32_0 : i32, i32, i32
  }
  func.func @transform_2(%arg0: i32, %arg1: i32) -> (i32, i32, i32) {
    %c2_i32 = arith.constant 2 : i32
    %0 = arith.muli %c2_i32, %arg1 : i32
    %c1_i32 = arith.constant 1 : i32
    %1 = arith.subi %c1_i32, %0 : i32
    %2 = arith.muli %arg0, %1 : i32
    %3 = arith.addi %arg1, %2 : i32
    %c0_i32 = arith.constant 0 : i32
    %c0_i32_0 = arith.constant 0 : i32
    return %3, %c0_i32, %arg0 : i32, i32, i32
  }
}

module attributes {stable_mosaic.version = 11 : i64} {
  func.func @_lstm_recurrence_kernel(%arg0: i32, %arg1: i32, %arg2: memref<4x2x512xbf16, #tpu.memory_space<vmem>>, %arg3: memref<1x128x512xbf16, #tpu.memory_space<vmem>>, %arg4: memref<4x2x128xbf16, #tpu.memory_space<vmem>>, %arg5: memref<2x128xf32, #tpu.memory_space<vmem>>, %arg6: memref<2x128xf32, #tpu.memory_space<vmem>>) attributes {dimension_semantics = [#tpu.dimension_semantics<parallel>, #tpu.dimension_semantics<arbitrary>], iteration_bounds = array<i64: 2, 2>, scalar_prefetch = 0 : i64, scratch_operands = 2 : i64, tpu.core_type = #tpu.core_type<tc>, window_params = [{transform_indices = @transform_0, window_bounds = array<i64: 4, 2, 512>}, {transform_indices = @transform_1, window_bounds = array<i64: 1, 128, 512>}, {transform_indices = @transform_2, window_bounds = array<i64: 4, 2, 128>}]} {
    %c0_i32 = arith.constant 0 : i32
    %0 = arith.cmpi eq, %arg1, %c0_i32 : i32
    %1 = arith.extui %0 : i1 to i32
    %c0_i32_0 = arith.constant 0 : i32
    %2 = arith.cmpi ne, %1, %c0_i32_0 : i32
    scf.if %2 {
      %cst_84 = arith.constant 0.000000e+00 : f32
      %191 = vector.broadcast %cst_84 : f32 to vector<2x128xf32>
      %c0_85 = arith.constant 0 : index
      %c0_86 = arith.constant 0 : index
      %192 = vector.load %arg5[%c0_85, %c0_86] : memref<2x128xf32, #tpu.memory_space<vmem>>, vector<2x128xf32>
      tpu.vector_store %arg5[%c0_85, %c0_86], %191 {strides = array<i32>} : memref<2x128xf32, #tpu.memory_space<vmem>>, vector<2x128xf32>,
      %cst_87 = arith.constant 0.000000e+00 : f32
      %193 = vector.broadcast %cst_87 : f32 to vector<2x128xf32>
      %c0_88 = arith.constant 0 : index
      %c0_89 = arith.constant 0 : index
      %194 = vector.load %arg6[%c0_88, %c0_89] : memref<2x128xf32, #tpu.memory_space<vmem>>, vector<2x128xf32>
      tpu.vector_store %arg6[%c0_88, %c0_89], %193 {strides = array<i32>} : memref<2x128xf32, #tpu.memory_space<vmem>>, vector<2x128xf32>,
    } else {
    }
    %c0_i32_1 = arith.constant 0 : i32
    %c2_i32 = arith.constant 2 : i32
    %3 = arith.muli %c2_i32, %c0_i32_1 : i32
    %c3_i32 = arith.constant 3 : i32
    %4 = arith.subi %c3_i32, %3 : i32
    %5 = arith.muli %arg0, %4 : i32
    %6 = arith.addi %c0_i32_1, %5 : i32
    %7 = arith.index_cast %6 : i32 to index
    %c0 = arith.constant 0 : index
    %c0_2 = arith.constant 0 : index
    %8 = vector.load %arg2[%7, %c0, %c0_2] : memref<4x2x512xbf16, #tpu.memory_space<vmem>>, vector<1x2x512xbf16>
    %9 = vector.shape_cast %8 : vector<1x2x512xbf16> to vector<2x512xbf16>
    %10 = arith.extf %9 : vector<2x512xbf16> to vector<2x512xf32>
    %c0_3 = arith.constant 0 : index
    %c0_4 = arith.constant 0 : index
    %11 = vector.load %arg5[%c0_3, %c0_4] : memref<2x128xf32, #tpu.memory_space<vmem>>, vector<2x128xf32>
    %12 = arith.truncf %11 : vector<2x128xf32> to vector<2x128xbf16>
    %c0_5 = arith.constant 0 : index
    %c0_6 = arith.constant 0 : index
    %c0_7 = arith.constant 0 : index
    %13 = vector.load %arg3[%c0_5, %c0_6, %c0_7] : memref<1x128x512xbf16, #tpu.memory_space<vmem>>, vector<1x128x512xbf16>
    %14 = vector.shape_cast %13 : vector<1x128x512xbf16> to vector<128x512xbf16>
    %cst = arith.constant dense<0.000000e+00> : vector<2x512xf32>
    %15 = tpu.matmul %12, %14, %cst {dimension_numbers = #tpu.dot_dimension_numbers<[1], [0], [0], [1], [0, 0, 1, 1], [], []>} : vector<2x128xbf16>, vector<128x512xbf16>, vector<2x512xf32> -> vector<2x512xf32>
    %16 = arith.addf %10, %15 : vector<2x512xf32>
    %17 = vector.extract_strided_slice %16 {offsets = [0, 0], sizes = [2, 128], strides = [1, 1]} : vector<2x512xf32> to vector<2x128xf32>
    %18 = arith.negf %17 : vector<2x128xf32>
    %19 = math.exp %18 : vector<2x128xf32>
    %cst_8 = arith.constant 1.000000e+00 : f32
    %20 = vector.broadcast %cst_8 : f32 to vector<2x128xf32>
    %21 = arith.addf %20, %19 : vector<2x128xf32>
    %22 = arith.divf %20, %21 : vector<2x128xf32>
    %23 = vector.extract_strided_slice %16 {offsets = [0, 128], sizes = [2, 128], strides = [1, 1]} : vector<2x512xf32> to vector<2x128xf32>
    %24 = arith.negf %23 : vector<2x128xf32>
    %25 = math.exp %24 : vector<2x128xf32>
    %cst_9 = arith.constant 1.000000e+00 : f32
    %26 = vector.broadcast %cst_9 : f32 to vector<2x128xf32>
    %27 = arith.addf %26, %25 : vector<2x128xf32>
    %28 = arith.divf %26, %27 : vector<2x128xf32>
    %29 = vector.extract_strided_slice %16 {offsets = [0, 256], sizes = [2, 128], strides = [1, 1]} : vector<2x512xf32> to vector<2x128xf32>
    %30 = math.tanh %29 : vector<2x128xf32>
    %31 = vector.extract_strided_slice %16 {offsets = [0, 384], sizes = [2, 128], strides = [1, 1]} : vector<2x512xf32> to vector<2x128xf32>
    %32 = arith.negf %31 : vector<2x128xf32>
    %33 = math.exp %32 : vector<2x128xf32>
    %cst_10 = arith.constant 1.000000e+00 : f32
    %34 = vector.broadcast %cst_10 : f32 to vector<2x128xf32>
    %35 = arith.addf %34, %33 : vector<2x128xf32>
    %36 = arith.divf %34, %35 : vector<2x128xf32>
    %c0_11 = arith.constant 0 : index
    %c0_12 = arith.constant 0 : index
    %37 = vector.load %arg6[%c0_11, %c0_12] : memref<2x128xf32, #tpu.memory_space<vmem>>, vector<2x128xf32>
    %38 = arith.mulf %28, %37 : vector<2x128xf32>
    %39 = arith.mulf %22, %30 : vector<2x128xf32>
    %40 = arith.addf %38, %39 : vector<2x128xf32>
    %41 = math.tanh %40 : vector<2x128xf32>
    %42 = arith.mulf %36, %41 : vector<2x128xf32>
    %c0_13 = arith.constant 0 : index
    %c0_14 = arith.constant 0 : index
    %43 = vector.load %arg5[%c0_13, %c0_14] : memref<2x128xf32, #tpu.memory_space<vmem>>, vector<2x128xf32>
    tpu.vector_store %arg5[%c0_13, %c0_14], %42 {strides = array<i32>} : memref<2x128xf32, #tpu.memory_space<vmem>>, vector<2x128xf32>,
    %c0_15 = arith.constant 0 : index
    %c0_16 = arith.constant 0 : index
    %44 = vector.load %arg6[%c0_15, %c0_16] : memref<2x128xf32, #tpu.memory_space<vmem>>, vector<2x128xf32>
    tpu.vector_store %arg6[%c0_15, %c0_16], %40 {strides = array<i32>} : memref<2x128xf32, #tpu.memory_space<vmem>>, vector<2x128xf32>,
    %45 = arith.truncf %42 : vector<2x128xf32> to vector<2x128xbf16>
    %46 = arith.index_cast %6 : i32 to index
    %c0_17 = arith.constant 0 : index
    %c0_18 = arith.constant 0 : index
    %47 = vector.load %arg4[%46, %c0_17, %c0_18] : memref<4x2x128xbf16, #tpu.memory_space<vmem>>, vector<1x2x128xbf16>
    %48 = vector.shape_cast %47 : vector<1x2x128xbf16> to vector<2x128xbf16>
    %49 = vector.shape_cast %45 : vector<2x128xbf16> to vector<1x2x128xbf16>
    tpu.vector_store %arg4[%46, %c0_17, %c0_18], %49 {strides = array<i32>} : memref<4x2x128xbf16, #tpu.memory_space<vmem>>, vector<1x2x128xbf16>,
    %c1_i32 = arith.constant 1 : i32
    %c2_i32_19 = arith.constant 2 : i32
    %50 = arith.muli %c2_i32_19, %c1_i32 : i32
    %c3_i32_20 = arith.constant 3 : i32
    %51 = arith.subi %c3_i32_20, %50 : i32
    %52 = arith.muli %arg0, %51 : i32
    %53 = arith.addi %c1_i32, %52 : i32
    %54 = arith.index_cast %53 : i32 to index
    %c0_21 = arith.constant 0 : index
    %c0_22 = arith.constant 0 : index
    %55 = vector.load %arg2[%54, %c0_21, %c0_22] : memref<4x2x512xbf16, #tpu.memory_space<vmem>>, vector<1x2x512xbf16>
    %56 = vector.shape_cast %55 : vector<1x2x512xbf16> to vector<2x512xbf16>
    %57 = arith.extf %56 : vector<2x512xbf16> to vector<2x512xf32>
    %c0_23 = arith.constant 0 : index
    %c0_24 = arith.constant 0 : index
    %58 = vector.load %arg5[%c0_23, %c0_24] : memref<2x128xf32, #tpu.memory_space<vmem>>, vector<2x128xf32>
    %59 = arith.truncf %58 : vector<2x128xf32> to vector<2x128xbf16>
    %c0_25 = arith.constant 0 : index
    %c0_26 = arith.constant 0 : index
    %c0_27 = arith.constant 0 : index
    %60 = vector.load %arg3[%c0_25, %c0_26, %c0_27] : memref<1x128x512xbf16, #tpu.memory_space<vmem>>, vector<1x128x512xbf16>
    %61 = vector.shape_cast %60 : vector<1x128x512xbf16> to vector<128x512xbf16>
    %cst_28 = arith.constant dense<0.000000e+00> : vector<2x512xf32>
    %62 = tpu.matmul %59, %61, %cst_28 {dimension_numbers = #tpu.dot_dimension_numbers<[1], [0], [0], [1], [0, 0, 1, 1], [], []>} : vector<2x128xbf16>, vector<128x512xbf16>, vector<2x512xf32> -> vector<2x512xf32>
    %63 = arith.addf %57, %62 : vector<2x512xf32>
    %64 = vector.extract_strided_slice %63 {offsets = [0, 0], sizes = [2, 128], strides = [1, 1]} : vector<2x512xf32> to vector<2x128xf32>
    %65 = arith.negf %64 : vector<2x128xf32>
    %66 = math.exp %65 : vector<2x128xf32>
    %cst_29 = arith.constant 1.000000e+00 : f32
    %67 = vector.broadcast %cst_29 : f32 to vector<2x128xf32>
    %68 = arith.addf %67, %66 : vector<2x128xf32>
    %69 = arith.divf %67, %68 : vector<2x128xf32>
    %70 = vector.extract_strided_slice %63 {offsets = [0, 128], sizes = [2, 128], strides = [1, 1]} : vector<2x512xf32> to vector<2x128xf32>
    %71 = arith.negf %70 : vector<2x128xf32>
    %72 = math.exp %71 : vector<2x128xf32>
    %cst_30 = arith.constant 1.000000e+00 : f32
    %73 = vector.broadcast %cst_30 : f32 to vector<2x128xf32>
    %74 = arith.addf %73, %72 : vector<2x128xf32>
    %75 = arith.divf %73, %74 : vector<2x128xf32>
    %76 = vector.extract_strided_slice %63 {offsets = [0, 256], sizes = [2, 128], strides = [1, 1]} : vector<2x512xf32> to vector<2x128xf32>
    %77 = math.tanh %76 : vector<2x128xf32>
    %78 = vector.extract_strided_slice %63 {offsets = [0, 384], sizes = [2, 128], strides = [1, 1]} : vector<2x512xf32> to vector<2x128xf32>
    %79 = arith.negf %78 : vector<2x128xf32>
    %80 = math.exp %79 : vector<2x128xf32>
    %cst_31 = arith.constant 1.000000e+00 : f32
    %81 = vector.broadcast %cst_31 : f32 to vector<2x128xf32>
    %82 = arith.addf %81, %80 : vector<2x128xf32>
    %83 = arith.divf %81, %82 : vector<2x128xf32>
    %c0_32 = arith.constant 0 : index
    %c0_33 = arith.constant 0 : index
    %84 = vector.load %arg6[%c0_32, %c0_33] : memref<2x128xf32, #tpu.memory_space<vmem>>, vector<2x128xf32>
    %85 = arith.mulf %75, %84 : vector<2x128xf32>
    %86 = arith.mulf %69, %77 : vector<2x128xf32>
    %87 = arith.addf %85, %86 : vector<2x128xf32>
    %88 = math.tanh %87 : vector<2x128xf32>
    %89 = arith.mulf %83, %88 : vector<2x128xf32>
    %c0_34 = arith.constant 0 : index
    %c0_35 = arith.constant 0 : index
    %90 = vector.load %arg5[%c0_34, %c0_35] : memref<2x128xf32, #tpu.memory_space<vmem>>, vector<2x128xf32>
    tpu.vector_store %arg5[%c0_34, %c0_35], %89 {strides = array<i32>} : memref<2x128xf32, #tpu.memory_space<vmem>>, vector<2x128xf32>,
    %c0_36 = arith.constant 0 : index
    %c0_37 = arith.constant 0 : index
    %91 = vector.load %arg6[%c0_36, %c0_37] : memref<2x128xf32, #tpu.memory_space<vmem>>, vector<2x128xf32>
    tpu.vector_store %arg6[%c0_36, %c0_37], %87 {strides = array<i32>} : memref<2x128xf32, #tpu.memory_space<vmem>>, vector<2x128xf32>,
    %92 = arith.truncf %89 : vector<2x128xf32> to vector<2x128xbf16>
    %93 = arith.index_cast %53 : i32 to index
    %c0_38 = arith.constant 0 : index
    %c0_39 = arith.constant 0 : index
    %94 = vector.load %arg4[%93, %c0_38, %c0_39] : memref<4x2x128xbf16, #tpu.memory_space<vmem>>, vector<1x2x128xbf16>
    %95 = vector.shape_cast %94 : vector<1x2x128xbf16> to vector<2x128xbf16>
    %96 = vector.shape_cast %92 : vector<2x128xbf16> to vector<1x2x128xbf16>
    tpu.vector_store %arg4[%93, %c0_38, %c0_39], %96 {strides = array<i32>} : memref<4x2x128xbf16, #tpu.memory_space<vmem>>, vector<1x2x128xbf16>,
    %c2_i32_40 = arith.constant 2 : i32
    %c2_i32_41 = arith.constant 2 : i32
    %97 = arith.muli %c2_i32_41, %c2_i32_40 : i32
    %c3_i32_42 = arith.constant 3 : i32
    %98 = arith.subi %c3_i32_42, %97 : i32
    %99 = arith.muli %arg0, %98 : i32
    %100 = arith.addi %c2_i32_40, %99 : i32
    %101 = arith.index_cast %100 : i32 to index
    %c0_43 = arith.constant 0 : index
    %c0_44 = arith.constant 0 : index
    %102 = vector.load %arg2[%101, %c0_43, %c0_44] : memref<4x2x512xbf16, #tpu.memory_space<vmem>>, vector<1x2x512xbf16>
    %103 = vector.shape_cast %102 : vector<1x2x512xbf16> to vector<2x512xbf16>
    %104 = arith.extf %103 : vector<2x512xbf16> to vector<2x512xf32>
    %c0_45 = arith.constant 0 : index
    %c0_46 = arith.constant 0 : index
    %105 = vector.load %arg5[%c0_45, %c0_46] : memref<2x128xf32, #tpu.memory_space<vmem>>, vector<2x128xf32>
    %106 = arith.truncf %105 : vector<2x128xf32> to vector<2x128xbf16>
    %c0_47 = arith.constant 0 : index
    %c0_48 = arith.constant 0 : index
    %c0_49 = arith.constant 0 : index
    %107 = vector.load %arg3[%c0_47, %c0_48, %c0_49] : memref<1x128x512xbf16, #tpu.memory_space<vmem>>, vector<1x128x512xbf16>
    %108 = vector.shape_cast %107 : vector<1x128x512xbf16> to vector<128x512xbf16>
    %cst_50 = arith.constant dense<0.000000e+00> : vector<2x512xf32>
    %109 = tpu.matmul %106, %108, %cst_50 {dimension_numbers = #tpu.dot_dimension_numbers<[1], [0], [0], [1], [0, 0, 1, 1], [], []>} : vector<2x128xbf16>, vector<128x512xbf16>, vector<2x512xf32> -> vector<2x512xf32>
    %110 = arith.addf %104, %109 : vector<2x512xf32>
    %111 = vector.extract_strided_slice %110 {offsets = [0, 0], sizes = [2, 128], strides = [1, 1]} : vector<2x512xf32> to vector<2x128xf32>
    %112 = arith.negf %111 : vector<2x128xf32>
    %113 = math.exp %112 : vector<2x128xf32>
    %cst_51 = arith.constant 1.000000e+00 : f32
    %114 = vector.broadcast %cst_51 : f32 to vector<2x128xf32>
    %115 = arith.addf %114, %113 : vector<2x128xf32>
    %116 = arith.divf %114, %115 : vector<2x128xf32>
    %117 = vector.extract_strided_slice %110 {offsets = [0, 128], sizes = [2, 128], strides = [1, 1]} : vector<2x512xf32> to vector<2x128xf32>
    %118 = arith.negf %117 : vector<2x128xf32>
    %119 = math.exp %118 : vector<2x128xf32>
    %cst_52 = arith.constant 1.000000e+00 : f32
    %120 = vector.broadcast %cst_52 : f32 to vector<2x128xf32>
    %121 = arith.addf %120, %119 : vector<2x128xf32>
    %122 = arith.divf %120, %121 : vector<2x128xf32>
    %123 = vector.extract_strided_slice %110 {offsets = [0, 256], sizes = [2, 128], strides = [1, 1]} : vector<2x512xf32> to vector<2x128xf32>
    %124 = math.tanh %123 : vector<2x128xf32>
    %125 = vector.extract_strided_slice %110 {offsets = [0, 384], sizes = [2, 128], strides = [1, 1]} : vector<2x512xf32> to vector<2x128xf32>
    %126 = arith.negf %125 : vector<2x128xf32>
    %127 = math.exp %126 : vector<2x128xf32>
    %cst_53 = arith.constant 1.000000e+00 : f32
    %128 = vector.broadcast %cst_53 : f32 to vector<2x128xf32>
    %129 = arith.addf %128, %127 : vector<2x128xf32>
    %130 = arith.divf %128, %129 : vector<2x128xf32>
    %c0_54 = arith.constant 0 : index
    %c0_55 = arith.constant 0 : index
    %131 = vector.load %arg6[%c0_54, %c0_55] : memref<2x128xf32, #tpu.memory_space<vmem>>, vector<2x128xf32>
    %132 = arith.mulf %122, %131 : vector<2x128xf32>
    %133 = arith.mulf %116, %124 : vector<2x128xf32>
    %134 = arith.addf %132, %133 : vector<2x128xf32>
    %135 = math.tanh %134 : vector<2x128xf32>
    %136 = arith.mulf %130, %135 : vector<2x128xf32>
    %c0_56 = arith.constant 0 : index
    %c0_57 = arith.constant 0 : index
    %137 = vector.load %arg5[%c0_56, %c0_57] : memref<2x128xf32, #tpu.memory_space<vmem>>, vector<2x128xf32>
    tpu.vector_store %arg5[%c0_56, %c0_57], %136 {strides = array<i32>} : memref<2x128xf32, #tpu.memory_space<vmem>>, vector<2x128xf32>,
    %c0_58 = arith.constant 0 : index
    %c0_59 = arith.constant 0 : index
    %138 = vector.load %arg6[%c0_58, %c0_59] : memref<2x128xf32, #tpu.memory_space<vmem>>, vector<2x128xf32>
    tpu.vector_store %arg6[%c0_58, %c0_59], %134 {strides = array<i32>} : memref<2x128xf32, #tpu.memory_space<vmem>>, vector<2x128xf32>,
    %139 = arith.truncf %136 : vector<2x128xf32> to vector<2x128xbf16>
    %140 = arith.index_cast %100 : i32 to index
    %c0_60 = arith.constant 0 : index
    %c0_61 = arith.constant 0 : index
    %141 = vector.load %arg4[%140, %c0_60, %c0_61] : memref<4x2x128xbf16, #tpu.memory_space<vmem>>, vector<1x2x128xbf16>
    %142 = vector.shape_cast %141 : vector<1x2x128xbf16> to vector<2x128xbf16>
    %143 = vector.shape_cast %139 : vector<2x128xbf16> to vector<1x2x128xbf16>
    tpu.vector_store %arg4[%140, %c0_60, %c0_61], %143 {strides = array<i32>} : memref<4x2x128xbf16, #tpu.memory_space<vmem>>, vector<1x2x128xbf16>,
    %c3_i32_62 = arith.constant 3 : i32
    %c2_i32_63 = arith.constant 2 : i32
    %144 = arith.muli %c2_i32_63, %c3_i32_62 : i32
    %c3_i32_64 = arith.constant 3 : i32
    %145 = arith.subi %c3_i32_64, %144 : i32
    %146 = arith.muli %arg0, %145 : i32
    %147 = arith.addi %c3_i32_62, %146 : i32
    %148 = arith.index_cast %147 : i32 to index
    %c0_65 = arith.constant 0 : index
    %c0_66 = arith.constant 0 : index
    %149 = vector.load %arg2[%148, %c0_65, %c0_66] : memref<4x2x512xbf16, #tpu.memory_space<vmem>>, vector<1x2x512xbf16>
    %150 = vector.shape_cast %149 : vector<1x2x512xbf16> to vector<2x512xbf16>
    %151 = arith.extf %150 : vector<2x512xbf16> to vector<2x512xf32>
    %c0_67 = arith.constant 0 : index
    %c0_68 = arith.constant 0 : index
    %152 = vector.load %arg5[%c0_67, %c0_68] : memref<2x128xf32, #tpu.memory_space<vmem>>, vector<2x128xf32>
    %153 = arith.truncf %152 : vector<2x128xf32> to vector<2x128xbf16>
    %c0_69 = arith.constant 0 : index
    %c0_70 = arith.constant 0 : index
    %c0_71 = arith.constant 0 : index
    %154 = vector.load %arg3[%c0_69, %c0_70, %c0_71] : memref<1x128x512xbf16, #tpu.memory_space<vmem>>, vector<1x128x512xbf16>
    %155 = vector.shape_cast %154 : vector<1x128x512xbf16> to vector<128x512xbf16>
    %cst_72 = arith.constant dense<0.000000e+00> : vector<2x512xf32>
    %156 = tpu.matmul %153, %155, %cst_72 {dimension_numbers = #tpu.dot_dimension_numbers<[1], [0], [0], [1], [0, 0, 1, 1], [], []>} : vector<2x128xbf16>, vector<128x512xbf16>, vector<2x512xf32> -> vector<2x512xf32>
    %157 = arith.addf %151, %156 : vector<2x512xf32>
    %158 = vector.extract_strided_slice %157 {offsets = [0, 0], sizes = [2, 128], strides = [1, 1]} : vector<2x512xf32> to vector<2x128xf32>
    %159 = arith.negf %158 : vector<2x128xf32>
    %160 = math.exp %159 : vector<2x128xf32>
    %cst_73 = arith.constant 1.000000e+00 : f32
    %161 = vector.broadcast %cst_73 : f32 to vector<2x128xf32>
    %162 = arith.addf %161, %160 : vector<2x128xf32>
    %163 = arith.divf %161, %162 : vector<2x128xf32>
    %164 = vector.extract_strided_slice %157 {offsets = [0, 128], sizes = [2, 128], strides = [1, 1]} : vector<2x512xf32> to vector<2x128xf32>
    %165 = arith.negf %164 : vector<2x128xf32>
    %166 = math.exp %165 : vector<2x128xf32>
    %cst_74 = arith.constant 1.000000e+00 : f32
    %167 = vector.broadcast %cst_74 : f32 to vector<2x128xf32>
    %168 = arith.addf %167, %166 : vector<2x128xf32>
    %169 = arith.divf %167, %168 : vector<2x128xf32>
    %170 = vector.extract_strided_slice %157 {offsets = [0, 256], sizes = [2, 128], strides = [1, 1]} : vector<2x512xf32> to vector<2x128xf32>
    %171 = math.tanh %170 : vector<2x128xf32>
    %172 = vector.extract_strided_slice %157 {offsets = [0, 384], sizes = [2, 128], strides = [1, 1]} : vector<2x512xf32> to vector<2x128xf32>
    %173 = arith.negf %172 : vector<2x128xf32>
    %174 = math.exp %173 : vector<2x128xf32>
    %cst_75 = arith.constant 1.000000e+00 : f32
    %175 = vector.broadcast %cst_75 : f32 to vector<2x128xf32>
    %176 = arith.addf %175, %174 : vector<2x128xf32>
    %177 = arith.divf %175, %176 : vector<2x128xf32>
    %c0_76 = arith.constant 0 : index
    %c0_77 = arith.constant 0 : index
    %178 = vector.load %arg6[%c0_76, %c0_77] : memref<2x128xf32, #tpu.memory_space<vmem>>, vector<2x128xf32>
    %179 = arith.mulf %169, %178 : vector<2x128xf32>
    %180 = arith.mulf %163, %171 : vector<2x128xf32>
    %181 = arith.addf %179, %180 : vector<2x128xf32>
    %182 = math.tanh %181 : vector<2x128xf32>
    %183 = arith.mulf %177, %182 : vector<2x128xf32>
    %c0_78 = arith.constant 0 : index
    %c0_79 = arith.constant 0 : index
    %184 = vector.load %arg5[%c0_78, %c0_79] : memref<2x128xf32, #tpu.memory_space<vmem>>, vector<2x128xf32>
    tpu.vector_store %arg5[%c0_78, %c0_79], %183 {strides = array<i32>} : memref<2x128xf32, #tpu.memory_space<vmem>>, vector<2x128xf32>,
    %c0_80 = arith.constant 0 : index
    %c0_81 = arith.constant 0 : index
    %185 = vector.load %arg6[%c0_80, %c0_81] : memref<2x128xf32, #tpu.memory_space<vmem>>, vector<2x128xf32>
    tpu.vector_store %arg6[%c0_80, %c0_81], %181 {strides = array<i32>} : memref<2x128xf32, #tpu.memory_space<vmem>>, vector<2x128xf32>,
    %186 = arith.truncf %183 : vector<2x128xf32> to vector<2x128xbf16>
    %187 = arith.index_cast %147 : i32 to index
    %c0_82 = arith.constant 0 : index
    %c0_83 = arith.constant 0 : index
    %188 = vector.load %arg4[%187, %c0_82, %c0_83] : memref<4x2x128xbf16, #tpu.memory_space<vmem>>, vector<1x2x128xbf16>
    %189 = vector.shape_cast %188 : vector<1x2x128xbf16> to vector<2x128xbf16>
    %190 = vector.shape_cast %186 : vector<2x128xbf16> to vector<1x2x128xbf16>
    tpu.vector_store %arg4[%187, %c0_82, %c0_83], %190 {strides = array<i32>} : memref<4x2x128xbf16, #tpu.memory_space<vmem>>, vector<1x2x128xbf16>,
    %c4_i32 = arith.constant 4 : i32
    return
  }
  func.func @transform_0(%arg0: i32, %arg1: i32) -> (i32, i32, i32) {
    %c2_i32 = arith.constant 2 : i32
    %0 = arith.muli %c2_i32, %arg1 : i32
    %c1_i32 = arith.constant 1 : i32
    %1 = arith.subi %c1_i32, %0 : i32
    %2 = arith.muli %arg0, %1 : i32
    %3 = arith.addi %arg1, %2 : i32
    %c0_i32 = arith.constant 0 : i32
    %c0_i32_0 = arith.constant 0 : i32
    return %3, %c0_i32, %arg0 : i32, i32, i32
  }
  func.func @transform_1(%arg0: i32, %arg1: i32) -> (i32, i32, i32) {
    %c0_i32 = arith.constant 0 : i32
    %c0_i32_0 = arith.constant 0 : i32
    %c0_i32_1 = arith.constant 0 : i32
    return %arg0, %c0_i32, %c0_i32_0 : i32, i32, i32
  }
  func.func @transform_2(%arg0: i32, %arg1: i32) -> (i32, i32, i32) {
    %c2_i32 = arith.constant 2 : i32
    %0 = arith.muli %c2_i32, %arg1 : i32
    %c1_i32 = arith.constant 1 : i32
    %1 = arith.subi %c1_i32, %0 : i32
    %2 = arith.muli %arg0, %1 : i32
    %3 = arith.addi %arg1, %2 : i32
    %c0_i32 = arith.constant 0 : i32
    %c0_i32_0 = arith.constant 0 : i32
    return %3, %c0_i32, %arg0 : i32, i32, i32
  }
}

module attributes {stable_mosaic.version = 11 : i64} {
  func.func @_rowmm_bias_kernel(%arg0: i32, %arg1: memref<16x256xbf16, #tpu.memory_space<vmem>>, %arg2: memref<256x1024xbf16, #tpu.memory_space<vmem>>, %arg3: memref<1x1024xf32, #tpu.memory_space<vmem>>, %arg4: memref<16x1024xbf16, #tpu.memory_space<vmem>>) attributes {dimension_semantics = [#tpu.dimension_semantics<parallel>], iteration_bounds = array<i64: 1>, scalar_prefetch = 0 : i64, scratch_operands = 0 : i64, tpu.core_type = #tpu.core_type<tc>, window_params = [{transform_indices = @transform_0, window_bounds = array<i64: 16, 256>}, {pipeline_mode = #tpu.pipeline_mode<synchronous>, transform_indices = @transform_1, window_bounds = array<i64: 256, 1024>}, {pipeline_mode = #tpu.pipeline_mode<synchronous>, transform_indices = @transform_2, window_bounds = array<i64: 1, 1024>}, {transform_indices = @transform_3, window_bounds = array<i64: 16, 1024>}]} {
    %c0 = arith.constant 0 : index
    %c0_0 = arith.constant 0 : index
    %0 = vector.load %arg1[%c0, %c0_0] : memref<16x256xbf16, #tpu.memory_space<vmem>>, vector<16x256xbf16>
    %c0_1 = arith.constant 0 : index
    %c0_2 = arith.constant 0 : index
    %1 = vector.load %arg2[%c0_1, %c0_2] : memref<256x1024xbf16, #tpu.memory_space<vmem>>, vector<256x1024xbf16>
    %cst = arith.constant dense<0.000000e+00> : vector<16x1024xf32>
    %2 = tpu.matmul %0, %1, %cst {dimension_numbers = #tpu.dot_dimension_numbers<[1], [0], [0], [1], [0, 0, 1, 1], [], []>} : vector<16x256xbf16>, vector<256x1024xbf16>, vector<16x1024xf32> -> vector<16x1024xf32>
    %c0_3 = arith.constant 0 : index
    %c0_4 = arith.constant 0 : index
    %3 = vector.load %arg3[%c0_3, %c0_4] : memref<1x1024xf32, #tpu.memory_space<vmem>>, vector<1x1024xf32>
    %4 = vector.broadcast %3 : vector<1x1024xf32> to vector<16x1024xf32>
    %5 = arith.addf %2, %4 : vector<16x1024xf32>
    %6 = arith.truncf %5 : vector<16x1024xf32> to vector<16x1024xbf16>
    %c0_5 = arith.constant 0 : index
    %c0_6 = arith.constant 0 : index
    %7 = vector.load %arg4[%c0_5, %c0_6] : memref<16x1024xbf16, #tpu.memory_space<vmem>>, vector<16x1024xbf16>
    tpu.vector_store %arg4[%c0_5, %c0_6], %6 {strides = array<i32>} : memref<16x1024xbf16, #tpu.memory_space<vmem>>, vector<16x1024xbf16>,
    return
  }
  func.func @transform_0(%arg0: i32) -> (i32, i32) {
    %c0_i32 = arith.constant 0 : i32
    %c0_i32_0 = arith.constant 0 : i32
    return %arg0, %c0_i32 : i32, i32
  }
  func.func @transform_1(%arg0: i32) -> (i32, i32) {
    %c0_i32 = arith.constant 0 : i32
    %c0_i32_0 = arith.constant 0 : i32
    %c0_i32_1 = arith.constant 0 : i32
    return %c0_i32, %c0_i32_0 : i32, i32
  }
  func.func @transform_2(%arg0: i32) -> (i32, i32) {
    %c0_i32 = arith.constant 0 : i32
    %c0_i32_0 = arith.constant 0 : i32
    %c0_i32_1 = arith.constant 0 : i32
    return %c0_i32, %c0_i32_0 : i32, i32
  }
  func.func @transform_3(%arg0: i32) -> (i32, i32) {
    %c0_i32 = arith.constant 0 : i32
    %c0_i32_0 = arith.constant 0 : i32
    return %arg0, %c0_i32 : i32, i32
  }
}

module attributes {stable_mosaic.version = 11 : i64} {
  func.func @_rowmm_bias_kernel(%arg0: i32, %arg1: memref<16x256xbf16, #tpu.memory_space<vmem>>, %arg2: memref<256x1024xbf16, #tpu.memory_space<vmem>>, %arg3: memref<1x1024xf32, #tpu.memory_space<vmem>>, %arg4: memref<16x1024xbf16, #tpu.memory_space<vmem>>) attributes {dimension_semantics = [#tpu.dimension_semantics<parallel>], iteration_bounds = array<i64: 1>, scalar_prefetch = 0 : i64, scratch_operands = 0 : i64, tpu.core_type = #tpu.core_type<tc>, window_params = [{transform_indices = @transform_0, window_bounds = array<i64: 16, 256>}, {pipeline_mode = #tpu.pipeline_mode<synchronous>, transform_indices = @transform_1, window_bounds = array<i64: 256, 1024>}, {pipeline_mode = #tpu.pipeline_mode<synchronous>, transform_indices = @transform_2, window_bounds = array<i64: 1, 1024>}, {transform_indices = @transform_3, window_bounds = array<i64: 16, 1024>}]} {
    %c0 = arith.constant 0 : index
    %c0_0 = arith.constant 0 : index
    %0 = vector.load %arg1[%c0, %c0_0] : memref<16x256xbf16, #tpu.memory_space<vmem>>, vector<16x256xbf16>
    %c0_1 = arith.constant 0 : index
    %c0_2 = arith.constant 0 : index
    %1 = vector.load %arg2[%c0_1, %c0_2] : memref<256x1024xbf16, #tpu.memory_space<vmem>>, vector<256x1024xbf16>
    %cst = arith.constant dense<0.000000e+00> : vector<16x1024xf32>
    %2 = tpu.matmul %0, %1, %cst {dimension_numbers = #tpu.dot_dimension_numbers<[1], [0], [0], [1], [0, 0, 1, 1], [], []>} : vector<16x256xbf16>, vector<256x1024xbf16>, vector<16x1024xf32> -> vector<16x1024xf32>
    %c0_3 = arith.constant 0 : index
    %c0_4 = arith.constant 0 : index
    %3 = vector.load %arg3[%c0_3, %c0_4] : memref<1x1024xf32, #tpu.memory_space<vmem>>, vector<1x1024xf32>
    %4 = vector.broadcast %3 : vector<1x1024xf32> to vector<16x1024xf32>
    %5 = arith.addf %2, %4 : vector<16x1024xf32>
    %6 = arith.truncf %5 : vector<16x1024xf32> to vector<16x1024xbf16>
    %c0_5 = arith.constant 0 : index
    %c0_6 = arith.constant 0 : index
    %7 = vector.load %arg4[%c0_5, %c0_6] : memref<16x1024xbf16, #tpu.memory_space<vmem>>, vector<16x1024xbf16>
    tpu.vector_store %arg4[%c0_5, %c0_6], %6 {strides = array<i32>} : memref<16x1024xbf16, #tpu.memory_space<vmem>>, vector<16x1024xbf16>,
    return
  }
  func.func @transform_0(%arg0: i32) -> (i32, i32) {
    %c0_i32 = arith.constant 0 : i32
    %c0_i32_0 = arith.constant 0 : i32
    return %arg0, %c0_i32 : i32, i32
  }
  func.func @transform_1(%arg0: i32) -> (i32, i32) {
    %c0_i32 = arith.constant 0 : i32
    %c0_i32_0 = arith.constant 0 : i32
    %c0_i32_1 = arith.constant 0 : i32
    return %c0_i32, %c0_i32_0 : i32, i32
  }
  func.func @transform_2(%arg0: i32) -> (i32, i32) {
    %c0_i32 = arith.constant 0 : i32
    %c0_i32_0 = arith.constant 0 : i32
    %c0_i32_1 = arith.constant 0 : i32
    return %c0_i32, %c0_i32_0 : i32, i32
  }
  func.func @transform_3(%arg0: i32) -> (i32, i32) {
    %c0_i32 = arith.constant 0 : i32
    %c0_i32_0 = arith.constant 0 : i32
    return %arg0, %c0_i32 : i32, i32
  }
}

module attributes {stable_mosaic.version = 11 : i64} {
  func.func @_rowmm_bias_kernel(%arg0: i32, %arg1: memref<16x896xbf16, #tpu.memory_space<vmem>>, %arg2: memref<896x128xbf16, #tpu.memory_space<vmem>>, %arg3: memref<1x128xf32, #tpu.memory_space<vmem>>, %arg4: memref<16x128xf32, #tpu.memory_space<vmem>>) attributes {dimension_semantics = [#tpu.dimension_semantics<parallel>], iteration_bounds = array<i64: 1>, scalar_prefetch = 0 : i64, scratch_operands = 0 : i64, tpu.core_type = #tpu.core_type<tc>, window_params = [{transform_indices = @transform_0, window_bounds = array<i64: 16, 896>}, {pipeline_mode = #tpu.pipeline_mode<synchronous>, transform_indices = @transform_1, window_bounds = array<i64: 896, 128>}, {pipeline_mode = #tpu.pipeline_mode<synchronous>, transform_indices = @transform_2, window_bounds = array<i64: 1, 128>}, {transform_indices = @transform_3, window_bounds = array<i64: 16, 128>}]} {
    %c0 = arith.constant 0 : index
    %c0_0 = arith.constant 0 : index
    %0 = vector.load %arg1[%c0, %c0_0] : memref<16x896xbf16, #tpu.memory_space<vmem>>, vector<16x896xbf16>
    %c0_1 = arith.constant 0 : index
    %c0_2 = arith.constant 0 : index
    %1 = vector.load %arg2[%c0_1, %c0_2] : memref<896x128xbf16, #tpu.memory_space<vmem>>, vector<896x128xbf16>
    %cst = arith.constant dense<0.000000e+00> : vector<16x128xf32>
    %2 = tpu.matmul %0, %1, %cst {dimension_numbers = #tpu.dot_dimension_numbers<[1], [0], [0], [1], [0, 0, 1, 1], [], []>} : vector<16x896xbf16>, vector<896x128xbf16>, vector<16x128xf32> -> vector<16x128xf32>
    %c0_3 = arith.constant 0 : index
    %c0_4 = arith.constant 0 : index
    %3 = vector.load %arg3[%c0_3, %c0_4] : memref<1x128xf32, #tpu.memory_space<vmem>>, vector<1x128xf32>
    %4 = vector.broadcast %3 : vector<1x128xf32> to vector<16x128xf32>
    %5 = arith.addf %2, %4 : vector<16x128xf32>
    %c0_5 = arith.constant 0 : index
    %c0_6 = arith.constant 0 : index
    %6 = vector.load %arg4[%c0_5, %c0_6] : memref<16x128xf32, #tpu.memory_space<vmem>>, vector<16x128xf32>
    tpu.vector_store %arg4[%c0_5, %c0_6], %5 {strides = array<i32>} : memref<16x128xf32, #tpu.memory_space<vmem>>, vector<16x128xf32>,
    return
  }
  func.func @transform_0(%arg0: i32) -> (i32, i32) {
    %c0_i32 = arith.constant 0 : i32
    %c0_i32_0 = arith.constant 0 : i32
    return %arg0, %c0_i32 : i32, i32
  }
  func.func @transform_1(%arg0: i32) -> (i32, i32) {
    %c0_i32 = arith.constant 0 : i32
    %c0_i32_0 = arith.constant 0 : i32
    %c0_i32_1 = arith.constant 0 : i32
    return %c0_i32, %c0_i32_0 : i32, i32
  }
  func.func @transform_2(%arg0: i32) -> (i32, i32) {
    %c0_i32 = arith.constant 0 : i32
    %c0_i32_0 = arith.constant 0 : i32
    %c0_i32_1 = arith.constant 0 : i32
    return %c0_i32, %c0_i32_0 : i32, i32
  }
  func.func @transform_3(%arg0: i32) -> (i32, i32) {
    %c0_i32 = arith.constant 0 : i32
    %c0_i32_0 = arith.constant 0 : i32
    return %arg0, %c0_i32 : i32, i32
  }
}

</mosaic_0001>

<llo_original>
// kernel: prose_mt_forward.7
$region0: #{prose_mt_forward.7}
  #allocation0 [shape = 'u32[]', space=smem, size = 0x4, offset = 0x4, fixed_abs, tag = 'smem constant byte address 0x4 - core index']
  #allocation1 [shape = 'u32[144,128]{1,0:T(1,128)}', space=vmem, size = 0x12000, scoped, tag = 'internal scratch']
  %s0 = inlined_call_operand.vmem [shape: bf16[16,21], index: 0, kind: input, shape index: {}]
  %s1 = inlined_call_operand.hbm [shape: bf16[21,1024], index: 1, kind: input, shape index: {}]
  %s2 = inlined_call_operand.vmem [shape: f32[1,1024], index: 2, kind: input, shape index: {}]
  %s3 = inlined_call_operand.vmem [shape: bf16[16,1024], index: 3, kind: output, shape index: {}]
  %s4 = sld [smem:[#allocation0]]
  $region26: #{prose_mt_forward.7} parent=0
    _
  %s6 = ssub.s32 1, %s4
  %s7 = scalar_select 0, %s6, %s4
  $region1: #{prose_mt_forward.7} parent=0
    #allocation2 [shape = 'u8[49152]{0}', space=vmem, size = 0xc000, scoped, tag = 'input window, operand 1, single buffered']
    #allocation3 [shape = 's32[1]{0}', space=sflag, size = 0x4, scoped, tag = 'scoped memory for prose_mt_forward.7']
    %8 = vsyncpa [#allocation3], 0
    // Predicated region
    $region2: #{prose_mt_forward.7} parent=1 // pred_check
      _
    $region3: #{prose_mt_forward.7} parent=1 // pred_check_branch
      %10 = sbr.rel (0) target = $region5
    $region4: #{prose_mt_forward.7} parent=1 // pred_region
      _
    $region5: #{prose_mt_forward.7} parent=1 // pred_fallthru
      _
    // Predicated region
    $region6: #{prose_mt_forward.7} parent=1 // pred_check
      _
    $region7: #{prose_mt_forward.7} parent=1 // pred_check_branch
      %12 = sbr.rel (0) target = $region9
    $region8: #{prose_mt_forward.7} parent=1 // pred_region
      %s14 = ssub.s32 1536, 1536
      %15 = vsyncadd [#allocation3], %s14
      %s16 = sshll.u32 [#allocation2], 4
      %s17 = int_to_ptr.vmem [resolvable:$true] %s16
      %22 = dma.hbm_to_vmem [thread:$0]  %s1, 1536, %s17, [#allocation3], 512, 512, 32
    $region9: #{prose_mt_forward.7} parent=1 // pred_fallthru
      _
    // Predicated region
    $region10: #{prose_mt_forward.7} parent=1 // pred_check
      _
    $region11: #{prose_mt_forward.7} parent=1 // pred_check_branch
      %24 = sbr.rel (0) target = $region13
    $region12: #{prose_mt_forward.7} parent=1 // pred_region
      _
    $region13: #{prose_mt_forward.7} parent=1 // pred_fallthru
      _
    // Predicated region
    $region14: #{prose_mt_forward.7} parent=1 // pred_check
      _
    $region15: #{prose_mt_forward.7} parent=1 // pred_check_branch
      %26 = sbr.rel (0) target = $region17
    $region16: #{prose_mt_forward.7} parent=1 // pred_region
      %27 = dma.done [#allocation3], 1536
    $region17: #{prose_mt_forward.7} parent=1 // pred_fallthru
      _
    %v29 = vld [vmem:[%s0] sm:$0xf]
    %v30 = vld [vmem:[%s0 + $0x4] sm:$0xf]
    %v31 = vld [vmem:[#allocation2] sm:$0xff]
    %v32 = vld [vmem:[#allocation2 + $0x8] sm:$0xff]
    %v33 = vld [vmem:[#allocation2 + $0x10] sm:$0xff]
    %v34 = vld [vmem:[#allocation2 + $0x18] sm:$0xff]
    %v35 = vld [vmem:[#allocation2 + $0x20] sm:$0xff]
    %v36 = vld [vmem:[#allocation2 + $0x28] sm:$0xff]
    %v37 = vld [vmem:[#allocation2 + $0x30] sm:$0xff]
    %v38 = vld [vmem:[#allocation2 + $0x38] sm:$0xff]
    %v39 = vld [vmem:[#allocation2 + $0x40] sm:$0x77]
    %v40 = vld [vmem:[#allocation2 + $0x48] sm:$0x77]
    %v41 = vld [vmem:[#allocation2 + $0x50] sm:$0x77]
    %v42 = vld [vmem:[#allocation2 + $0x58] sm:$0x77]
    %v43 = vld [vmem:[%s2] sm:$0xff]
    %v45 = vlaneseq
    %v46 = vshrl.u32 %v45, 7
    %v47 = vsub.s32 0, %v46
    %v48 = vrot.slane %v43, %v47
    %v49 = vlaneseq
    %v50 = vshrl.u32 %v49, 7
    %v51 = vsub.s32 1, %v50
    %v52 = vrot.slane %v43, %v51
    %v53 = vlaneseq
    %v54 = vshrl.u32 %v53, 7
    %v55 = vsub.s32 2, %v54
    %v56 = vrot.slane %v43, %v55
    %v57 = vlaneseq
    %v58 = vshrl.u32 %v57, 7
    %v59 = vsub.s32 3, %v58
    %v60 = vrot.slane %v43, %v59
    %v61 = vlaneseq
    %v62 = vshrl.u32 %v61, 7
    %v63 = vsub.s32 4, %v62
    %v64 = vrot.slane %v43, %v63
    %v65 = vlaneseq
    %v66 = vshrl.u32 %v65, 7
    %v67 = vsub.s32 5, %v66
    %v68 = vrot.slane %v43, %v67
    %v69 = vlaneseq
    %v70 = vshrl.u32 %v69, 7
    %v71 = vsub.s32 6, %v70
    %v72 = vrot.slane %v43, %v71
    %v73 = vlaneseq
    %v74 = vshrl.u32 %v73, 7
    %v75 = vsub.s32 7, %v74
    %v76 = vrot.slane %v43, %v75
    %v87 = vunpack.c.l.b16 %v29
    %v88 = vunpack.c.l.b16 %v30
    %v89 = vpack.c.b16 %v88, %v87
    %v102 = vunpack.c.l.b16 %v31
    %v103 = vunpack.c.h.b16 %v31
    %v104 = vunpack.c.l.b16 %v32
    %v105 = vunpack.c.h.b16 %v32
    %v106 = vunpack.c.l.b16 %v33
    %v107 = vunpack.c.h.b16 %v33
    %v108 = vunpack.c.l.b16 %v34
    %v109 = vunpack.c.h.b16 %v34
    %v110 = vunpack.c.l.b16 %v35
    %v111 = vunpack.c.h.b16 %v35
    %v112 = vunpack.c.l.b16 %v36
    %v113 = vunpack.c.h.b16 %v36
    %v114 = vunpack.c.l.b16 %v37
    %v115 = vunpack.c.h.b16 %v37
    %v116 = vunpack.c.l.b16 %v38
    %v117 = vunpack.c.h.b16 %v38
    %v118 = vunpack.c.l.b16 %v39
    %v119 = vunpack.c.h.b16 %v39
    %v120 = vunpack.c.l.b16 %v40
    %v121 = vunpack.c.h.b16 %v40
    %v122 = vunpack.c.l.b16 %v41
    %v123 = vunpack.c.h.b16 %v41
    %v124 = vunpack.c.l.b16 %v42
    %v125 = vunpack.c.h.b16 %v42
    %v126 = vpack.c.b16 %v110, %v102
    %v127 = vpack.c.b16 %v111, %v103
    %v128 = vpack.c.b16 %v112, %v104
    %v129 = vpack.c.b16 %v113, %v105
    %v130 = vpack.c.b16 %v114, %v106
    %v131 = vpack.c.b16 %v115, %v107
    %v132 = vpack.c.b16 %v116, %v108
    %v133 = vpack.c.b16 %v117, %v109
    %v134 = vpack.c.b16 %v118, %v118
    %v135 = vpack.c.b16 %v119, %v119
    %v136 = vpack.c.b16 %v120, %v120
    %v137 = vpack.c.b16 %v121, %v121
    %v138 = vpack.c.b16 %v122, %v122
    %v139 = vpack.c.b16 %v123, %v123
    %v140 = vpack.c.b16 %v124, %v124
    %v141 = vpack.c.b16 %v125, %v125
    %vm150 = vcmask 171008
    %v152 = vsel %vm150, %v89, 0
    %vm154 = vcmask 1041408
    %vm155 = vcmask 1042432
    %v156 = vsel %vm154, 4294967295, 65535
    %v157 = vsel %vm155, %v156, 0
    %v159 = vand.u32 %v134, %v157
    %v162 = vand.u32 %v135, %v157
    %v165 = vand.u32 %v136, %v157
    %v168 = vand.u32 %v137, %v157
    %v171 = vand.u32 %v138, %v157
    %v174 = vand.u32 %v139, %v157
    %v177 = vand.u32 %v140, %v157
    %v180 = vand.u32 %v141, %v157
    %182 = vmatprep.subr.bf16.mxu0 %v127
    %183 = vmatpush1.bf16.msra.mxu0 %v126
    %184 = vmatprep.subr.bf16.mxu0 %v162
    %185 = vmatpush1.bf16.msra.mxu0 %v159
    %186 = vmatprep.subr.bf16.mxu0 0
    %187 = vmatpush1.bf16.msra.mxu0 0
    %188 = vmatprep.subr.bf16.mxu0 0
    %189 = vmatpush1.bf16.msra.mxu0 0
    %190 = vmatprep.subr.bf16.mxu0 0
    %191 = vmatpush1.bf16.msra.mxu0 0
    %192 = vmatprep.subr.bf16.mxu0 0
    %193 = vmatpush1.bf16.msra.mxu0 0
    %194 = vmatprep.subr.bf16.mxu0 0
    %195 = vmatpush1.bf16.msra.mxu0 0
    %196 = vmatprep.subr.bf16.mxu0 0
    %197 = vmatpush1.bf16.msra.mxu0 0
    %198 = vmatprep.subr.bf16.mxu0 0
    %199 = vmatpush1.bf16.msra.mxu0 0
    %200 = vmatprep.subr.bf16.mxu0 0
    %201 = vmatpush1.bf16.msra.mxu0 0
    %202 = vmatprep.subr.bf16.mxu0 0
    %203 = vmatpush1.bf16.msra.mxu0 0
    %204 = vmatprep.subr.bf16.mxu0 0
    %205 = vmatpush1.bf16.msra.mxu0 0
    %206 = vmatprep.subr.bf16.mxu0 0
    %207 = vmatpush1.bf16.msra.mxu0 0
    %208 = vmatprep.subr.bf16.mxu0 0
    %209 = vmatpush1.bf16.msra.mxu0 0
    %210 = vmatprep.subr.bf16.mxu0 0
    %211 = vmatpush1.bf16.msra.mxu0 0
    %212 = vmatprep.subr.bf16.mxu0 0
    %213 = vmatpush1.bf16.msra.mxu0 0
    %214 = vmatprep.mubr.bf16.mxu0 0
    %215 = vmatmul.mubr.bf16.gmra.mrb[0].mxu0 %v152
    %v216 = vpop.f32.mrb[0].mxu0
    %v217 = vadd.f32 %v48, %v216
    %v218 = vpop.f32.mrb[0].mxu0
    %v219 = vadd.f32 %v52, %v218
    %v220 = vpop.f32.mrb[0].mxu0
    %v221 = vadd.f32 %v48, %v220
    %v222 = vpop.f32.mrb[0].mxu0
    %v223 = vadd.f32 %v52, %v222
    %224 = vdwg.mxu0
    %225 = vmatprep.subr.bf16.mxu0 %v129
    %226 = vmatpush1.bf16.msra.mxu0 %v128
    %227 = vmatprep.subr.bf16.mxu0 %v168
    %228 = vmatpush1.bf16.msra.mxu0 %v165
    %229 = vmatprep.subr.bf16.mxu0 0
    %230 = vmatpush1.bf16.msra.mxu0 0
    %231 = vmatprep.subr.bf16.mxu0 0
    %232 = vmatpush1.bf16.msra.mxu0 0
    %233 = vmatprep.subr.bf16.mxu0 0
    %234 = vmatpush1.bf16.msra.mxu0 0
    %235 = vmatprep.subr.bf16.mxu0 0
    %236 = vmatpush1.bf16.msra.mxu0 0
    %237 = vmatprep.subr.bf16.mxu0 0
    %238 = vmatpush1.bf16.msra.mxu0 0
    %239 = vmatprep.subr.bf16.mxu0 0
    %240 = vmatpush1.bf16.msra.mxu0 0
    %241 = vmatprep.subr.bf16.mxu0 0
    %242 = vmatpush1.bf16.msra.mxu0 0
    %243 = vmatprep.subr.bf16.mxu0 0
    %244 = vmatpush1.bf16.msra.mxu0 0
    %245 = vmatprep.subr.bf16.mxu0 0
    %246 = vmatpush1.bf16.msra.mxu0 0
    %247 = vmatprep.subr.bf16.mxu0 0
    %248 = vmatpush1.bf16.msra.mxu0 0
    %249 = vmatprep.subr.bf16.mxu0 0
    %250 = vmatpush1.bf16.msra.mxu0 0
    %251 = vmatprep.subr.bf16.mxu0 0
    %252 = vmatpush1.bf16.msra.mxu0 0
    %253 = vmatprep.subr.bf16.mxu0 0
    %254 = vmatpush1.bf16.msra.mxu0 0
    %255 = vmatprep.subr.bf16.mxu0 0
    %256 = vmatpush1.bf16.msra.mxu0 0
    %257 = vmatprep.mubr.bf16.mxu0 0
    %258 = vmatmul.mubr.bf16.gmra.mrb[0].mxu0 %v152
    %v259 = vpop.f32.mrb[0].mxu0
    %v260 = vadd.f32 %v56, %v259
    %v261 = vpop.f32.mrb[0].mxu0
    %v262 = vadd.f32 %v60, %v261
    %v263 = vpop.f32.mrb[0].mxu0
    %v264 = vadd.f32 %v56, %v263
    %v265 = vpop.f32.mrb[0].mxu0
    %v266 = vadd.f32 %v60, %v265
    %267 = vdwg.mxu0
    %268 = vmatprep.subr.bf16.mxu0 %v131
    %269 = vmatpush1.bf16.msra.mxu0 %v130
    %270 = vmatprep.subr.bf16.mxu0 %v174
    %271 = vmatpush1.bf16.msra.mxu0 %v171
    %272 = vmatprep.subr.bf16.mxu0 0
    %273 = vmatpush1.bf16.msra.mxu0 0
    %274 = vmatprep.subr.bf16.mxu0 0
    %275 = vmatpush1.bf16.msra.mxu0 0
    %276 = vmatprep.subr.bf16.mxu0 0
    %277 = vmatpush1.bf16.msra.mxu0 0
    %278 = vmatprep.subr.bf16.mxu0 0
    %279 = vmatpush1.bf16.msra.mxu0 0
    %280 = vmatprep.subr.bf16.mxu0 0
    %281 = vmatpush1.bf16.msra.mxu0 0
    %282 = vmatprep.subr.bf16.mxu0 0
    %283 = vmatpush1.bf16.msra.mxu0 0
    %284 = vmatprep.subr.bf16.mxu0 0
    %285 = vmatpush1.bf16.msra.mxu0 0
    %286 = vmatprep.subr.bf16.mxu0 0
    %287 = vmatpush1.bf16.msra.mxu0 0
    %288 = vmatprep.subr.bf16.mxu0 0
    %289 = vmatpush1.bf16.msra.mxu0 0
    %290 = vmatprep.subr.bf16.mxu0 0
    %291 = vmatpush1.bf16.msra.mxu0 0
    %292 = vmatprep.subr.bf16.mxu0 0
    %293 = vmatpush1.bf16.msra.mxu0 0
    %294 = vmatprep.subr.bf16.mxu0 0
    %295 = vmatpush1.bf16.msra.mxu0 0
    %296 = vmatprep.subr.bf16.mxu0 0
    %297 = vmatpush1.bf16.msra.mxu0 0
    %298 = vmatprep.subr.bf16.mxu0 0
    %299 = vmatpush1.bf16.msra.mxu0 0
    %300 = vmatprep.mubr.bf16.mxu0 0
    %301 = vmatmul.mubr.bf16.gmra.mrb[0].mxu0 %v152
    %v302 = vpop.f32.mrb[0].mxu0
    %v303 = vadd.f32 %v64, %v302
    %v304 = vpop.f32.mrb[0].mxu0
    %v305 = vadd.f32 %v68, %v304
    %v306 = vpop.f32.mrb[0].mxu0
    %v307 = vadd.f32 %v64, %v306
    %v308 = vpop.f32.mrb[0].mxu0
    %v309 = vadd.f32 %v68, %v308
    %310 = vdwg.mxu0
    %311 = vmatprep.subr.bf16.mxu0 %v133
    %312 = vmatpush1.bf16.msra.mxu0 %v132
    %313 = vmatprep.subr.bf16.mxu0 %v180
    %314 = vmatpush1.bf16.msra.mxu0 %v177
    %315 = vmatprep.subr.bf16.mxu0 0
    %316 = vmatpush1.bf16.msra.mxu0 0
    %317 = vmatprep.subr.bf16.mxu0 0
    %318 = vmatpush1.bf16.msra.mxu0 0
    %319 = vmatprep.subr.bf16.mxu0 0
    %320 = vmatpush1.bf16.msra.mxu0 0
    %321 = vmatprep.subr.bf16.mxu0 0
    %322 = vmatpush1.bf16.msra.mxu0 0
    %323 = vmatprep.subr.bf16.mxu0 0
    %324 = vmatpush1.bf16.msra.mxu0 0
    %325 = vmatprep.subr.bf16.mxu0 0
    %326 = vmatpush1.bf16.msra.mxu0 0
    %327 = vmatprep.subr.bf16.mxu0 0
    %328 = vmatpush1.bf16.msra.mxu0 0
    %329 = vmatprep.subr.bf16.mxu0 0
    %330 = vmatpush1.bf16.msra.mxu0 0
    %331 = vmatprep.subr.bf16.mxu0 0
    %332 = vmatpush1.bf16.msra.mxu0 0
    %333 = vmatprep.subr.bf16.mxu0 0
    %334 = vmatpush1.bf16.msra.mxu0 0
    %335 = vmatprep.subr.bf16.mxu0 0
    %336 = vmatpush1.bf16.msra.mxu0 0
    %337 = vmatprep.subr.bf16.mxu0 0
    %338 = vmatpush1.bf16.msra.mxu0 0
    %339 = vmatprep.subr.bf16.mxu0 0
    %340 = vmatpush1.bf16.msra.mxu0 0
    %341 = vmatprep.subr.bf16.mxu0 0
    %342 = vmatpush1.bf16.msra.mxu0 0
    %343 = vmatprep.mubr.bf16.mxu0 0
    %344 = vmatmul.mubr.bf16.gmra.mrb[0].mxu0 %v152
    %v345 = vpop.f32.mrb[0].mxu0
    %v346 = vadd.f32 %v72, %v345
    %v347 = vpop.f32.mrb[0].mxu0
    %v348 = vadd.f32 %v76, %v347
    %v349 = vpop.f32.mrb[0].mxu0
    %v350 = vadd.f32 %v72, %v349
    %v351 = vpop.f32.mrb[0].mxu0
    %v352 = vadd.f32 %v76, %v351
    %353 = vdwg.mxu0
    %v354 = vpack.c.bf16 %v221, %v217
    %v355 = vpack.c.bf16 %v223, %v219
    %v356 = vpack.c.bf16 %v264, %v260
    %v357 = vpack.c.bf16 %v266, %v262
    %v358 = vpack.c.bf16 %v307, %v303
    %v359 = vpack.c.bf16 %v309, %v305
    %v360 = vpack.c.bf16 %v350, %v346
    %v361 = vpack.c.bf16 %v352, %v348
    %v370 = vunpack.c.l.b16 %v354
    %v371 = vunpack.c.l.b16 %v355
    %v372 = vunpack.c.l.b16 %v356
    %v373 = vunpack.c.l.b16 %v357
    %v374 = vunpack.c.l.b16 %v358
    %v375 = vunpack.c.l.b16 %v359
    %v376 = vunpack.c.l.b16 %v360
    %v377 = vunpack.c.l.b16 %v361
    %v378 = vunpack.c.h.b16 %v354
    %v379 = vunpack.c.h.b16 %v355
    %v380 = vunpack.c.h.b16 %v356
    %v381 = vunpack.c.h.b16 %v357
    %v382 = vunpack.c.h.b16 %v358
    %v383 = vunpack.c.h.b16 %v359
    %v384 = vunpack.c.h.b16 %v360
    %v385 = vunpack.c.h.b16 %v361
    %v386 = vpack.c.b16 %v371, %v370
    %v387 = vpack.c.b16 %v373, %v372
    %v388 = vpack.c.b16 %v375, %v374
    %v389 = vpack.c.b16 %v377, %v376
    %v390 = vpack.c.b16 %v379, %v378
    %v391 = vpack.c.b16 %v381, %v380
    %v392 = vpack.c.b16 %v383, %v382
    %v393 = vpack.c.b16 %v385, %v384
    %402 = vst [vmem:[%s3] sm:$0xff] %v386
    %403 = vst [vmem:[%s3 + $0x8] sm:$0xff] %v387
    %404 = vst [vmem:[%s3 + $0x10] sm:$0xff] %v388
    %405 = vst [vmem:[%s3 + $0x18] sm:$0xff] %v389
    %406 = vst [vmem:[%s3 + $0x20] sm:$0xff] %v390
    %407 = vst [vmem:[%s3 + $0x28] sm:$0xff] %v391
    %408 = vst [vmem:[%s3 + $0x30] sm:$0xff] %v392
    %409 = vst [vmem:[%s3 + $0x38] sm:$0xff] %v393
    // Predicated region
    $region18: #{prose_mt_forward.7} parent=1 // pred_check
      _
    $region19: #{prose_mt_forward.7} parent=1 // pred_check_branch
      %411 = sbr.rel (0) target = $region21
    $region20: #{prose_mt_forward.7} parent=1 // pred_region
      _
    $region21: #{prose_mt_forward.7} parent=1 // pred_fallthru
      _
    // Predicated region
    $region22: #{prose_mt_forward.7} parent=1 // pred_check
      _
    $region23: #{prose_mt_forward.7} parent=1 // pred_check_branch
      %413 = sbr.rel (0) target = $region25
    $region24: #{prose_mt_forward.7} parent=1 // pred_region
      _
    $region25: #{prose_mt_forward.7} parent=1 // pred_fallthru
      _
    %414 = vsyncpa [#allocation3], 1

// kernel: prose_mt_forward.9
$region0: #{prose_mt_forward.9}
  #allocation0 [shape = 'u32[]', space=smem, size = 0x4, offset = 0x4, fixed_abs, tag = 'smem constant byte address 0x4 - core index']
  #allocation1 [shape = 'u32[144,128]{1,0:T(1,128)}', space=vmem, size = 0x12000, scoped, tag = 'internal scratch']
  %s0 = inlined_call_operand.vmem [shape: bf16[16,256], index: 0, kind: input, shape index: {}]
  %s1 = inlined_call_operand.hbm [shape: bf16[256,1024], index: 1, kind: input, shape index: {}]
  %s2 = inlined_call_operand.vmem [shape: f32[1,1024], index: 2, kind: input, shape index: {}]
  %s3 = inlined_call_operand.vmem [shape: bf16[16,1024], index: 3, kind: output, shape index: {}]
  %s4 = sld [smem:[#allocation0]]
  $region26: #{prose_mt_forward.9} parent=0
    _
  %s6 = ssub.s32 1, %s4
  %s7 = scalar_select 0, %s6, %s4
  $region1: #{prose_mt_forward.9} parent=0
    #allocation2 [shape = 'u8[524288]{0}', space=vmem, size = 0x80000, scoped, tag = 'input window, operand 1, single buffered']
    #allocation3 [shape = 's32[1]{0}', space=sflag, size = 0x4, scoped, tag = 'scoped memory for prose_mt_forward.9']
    %8 = vsyncpa [#allocation3], 0
    // Predicated region
    $region2: #{prose_mt_forward.9} parent=1 // pred_check
      _
    $region3: #{prose_mt_forward.9} parent=1 // pred_check_branch
      %10 = sbr.rel (0) target = $region5
    $region4: #{prose_mt_forward.9} parent=1 // pred_region
      _
    $region5: #{prose_mt_forward.9} parent=1 // pred_fallthru
      _
    // Predicated region
    $region6: #{prose_mt_forward.9} parent=1 // pred_check
      _
    $region7: #{prose_mt_forward.9} parent=1 // pred_check_branch
      %12 = sbr.rel (0) target = $region9
    $region8: #{prose_mt_forward.9} parent=1 // pred_region
      %s14 = ssub.s32 16384, 16384
      %15 = vsyncadd [#allocation3], %s14
      %s16 = sshll.u32 [#allocation2], 4
      %s17 = int_to_ptr.vmem [resolvable:$true] %s16
      %22 = dma.hbm_to_vmem [thread:$0]  %s1, 16384, %s17, [#allocation3], 512, 512, 32
    $region9: #{prose_mt_forward.9} parent=1 // pred_fallthru
      _
    // Predicated region
    $region10: #{prose_mt_forward.9} parent=1 // pred_check
      _
    $region11: #{prose_mt_forward.9} parent=1 // pred_check_branch
      %24 = sbr.rel (0) target = $region13
    $region12: #{prose_mt_forward.9} parent=1 // pred_region
      _
    $region13: #{prose_mt_forward.9} parent=1 // pred_fallthru
      _
    // Predicated region
    $region14: #{prose_mt_forward.9} parent=1 // pred_check
      _
    $region15: #{prose_mt_forward.9} parent=1 // pred_check_branch
      %26 = sbr.rel (0) target = $region17
    $region16: #{prose_mt_forward.9} parent=1 // pred_region
      %27 = dma.done [#allocation3], 16384
    $region17: #{prose_mt_forward.9} parent=1 // pred_fallthru
      _
    %v28 = vld [vmem:[%s0] sm:$0xff]
    %v29 = vld [vmem:[%s0 + $0x8] sm:$0xff]
    %v30 = vld [vmem:[#allocation2] sm:$0xff]
    %v31 = vld [vmem:[#allocation2 + $0x8] sm:$0xff]
    %v32 = vld [vmem:[#allocation2 + $0x10] sm:$0xff]
    %v33 = vld [vmem:[#allocation2 + $0x18] sm:$0xff]
    %v34 = vld [vmem:[#allocation2 + $0x20] sm:$0xff]
    %v35 = vld [vmem:[#allocation2 + $0x28] sm:$0xff]
    %v36 = vld [vmem:[#allocation2 + $0x30] sm:$0xff]
    %v37 = vld [vmem:[#allocation2 + $0x38] sm:$0xff]
    %v38 = vld [vmem:[#allocation2 + $0x40] sm:$0xff]
    %v39 = vld [vmem:[#allocation2 + $0x48] sm:$0xff]
    %v40 = vld [vmem:[#allocation2 + $0x50] sm:$0xff]
    %v41 = vld [vmem:[#allocation2 + $0x58] sm:$0xff]
    %v42 = vld [vmem:[#allocation2 + $0x60] sm:$0xff]
    %v43 = vld [vmem:[#allocation2 + $0x68] sm:$0xff]
    %v44 = vld [vmem:[#allocation2 + $0x70] sm:$0xff]
    %v45 = vld [vmem:[#allocation2 + $0x78] sm:$0xff]
    %v46 = vld [vmem:[#allocation2 + $0x80] sm:$0xff]
    %v47 = vld [vmem:[#allocation2 + $0x88] sm:$0xff]
    %v48 = vld [vmem:[#allocation2 + $0x90] sm:$0xff]
    %v49 = vld [vmem:[#allocation2 + $0x98] sm:$0xff]
    %v50 = vld [vmem:[#allocation2 + $0xa0] sm:$0xff]
    %v51 = vld [vmem:[#allocation2 + $0xa8] sm:$0xff]
    %v52 = vld [vmem:[#allocation2 + $0xb0] sm:$0xff]
    %v53 = vld [vmem:[#allocation2 + $0xb8] sm:$0xff]
    %v54 = vld [vmem:[#allocation2 + $0xc0] sm:$0xff]
    %v55 = vld [vmem:[#allocation2 + $0xc8] sm:$0xff]
    %v56 = vld [vmem:[#allocation2 + $0xd0] sm:$0xff]
    %v57 = vld [vmem:[#allocation2 + $0xd8] sm:$0xff]
    %v58 = vld [vmem:[#allocation2 + $0xe0] sm:$0xff]
    %v59 = vld [vmem:[#allocation2 + $0xe8] sm:$0xff]
    %v60 = vld [vmem:[#allocation2 + $0xf0] sm:$0xff]
    %v61 = vld [vmem:[#allocation2 + $0xf8] sm:$0xff]
    %v62 = vld [vmem:[#allocation2 + $0x100] sm:$0xff]
    %v63 = vld [vmem:[#allocation2 + $0x108] sm:$0xff]
    %v64 = vld [vmem:[#allocation2 + $0x110] sm:$0xff]
    %v65 = vld [vmem:[#allocation2 + $0x118] sm:$0xff]
    %v66 = vld [vmem:[#allocation2 + $0x120] sm:$0xff]
    %v67 = vld [vmem:[#allocation2 + $0x128] sm:$0xff]
    %v68 = vld [vmem:[#allocation2 + $0x130] sm:$0xff]
    %v69 = vld [vmem:[#allocation2 + $0x138] sm:$0xff]
    %v70 = vld [vmem:[#allocation2 + $0x140] sm:$0xff]
    %v71 = vld [vmem:[#allocation2 + $0x148] sm:$0xff]
    %v72 = vld [vmem:[#allocation2 + $0x150] sm:$0xff]
    %v73 = vld [vmem:[#allocation2 + $0x158] sm:$0xff]
    %v74 = vld [vmem:[#allocation2 + $0x160] sm:$0xff]
    %v75 = vld [vmem:[#allocation2 + $0x168] sm:$0xff]
    %v76 = vld [vmem:[#allocation2 + $0x170] sm:$0xff]
    %v77 = vld [vmem:[#allocation2 + $0x178] sm:$0xff]
    %v78 = vld [vmem:[#allocation2 + $0x180] sm:$0xff]
    %v79 = vld [vmem:[#allocation2 + $0x188] sm:$0xff]
    %v80 = vld [vmem:[#allocation2 + $0x190] sm:$0xff]
    %v81 = vld [vmem:[#allocation2 + $0x198] sm:$0xff]
    %v82 = vld [vmem:[#allocation2 + $0x1a0] sm:$0xff]
    %v83 = vld [vmem:[#allocation2 + $0x1a8] sm:$0xff]
    %v84 = vld [vmem:[#allocation2 + $0x1b0] sm:$0xff]
    %v85 = vld [vmem:[#allocation2 + $0x1b8] sm:$0xff]
    %v86 = vld [vmem:[#allocation2 + $0x1c0] sm:$0xff]
    %v87 = vld [vmem:[#allocation2 + $0x1c8] sm:$0xff]
    %v88 = vld [vmem:[#allocation2 + $0x1d0] sm:$0xff]
    %v89 = vld [vmem:[#allocation2 + $0x1d8] sm:$0xff]
    %v90 = vld [vmem:[#allocation2 + $0x1e0] sm:$0xff]
    %v91 = vld [vmem:[#allocation2 + $0x1e8] sm:$0xff]
    %v92 = vld [vmem:[#allocation2 + $0x1f0] sm:$0xff]
    %v93 = vld [vmem:[#allocation2 + $0x1f8] sm:$0xff]
    %v94 = vld [vmem:[#allocation2 + $0x200] sm:$0xff]
    %v95 = vld [vmem:[#allocation2 + $0x208] sm:$0xff]
    %v96 = vld [vmem:[#allocation2 + $0x210] sm:$0xff]
    %v97 = vld [vmem:[#allocation2 + $0x218] sm:$0xff]
    %v98 = vld [vmem:[#allocation2 + $0x220] sm:$0xff]
    %v99 = vld [vmem:[#allocation2 + $0x228] sm:$0xff]
    %v100 = vld [vmem:[#allocation2 + $0x230] sm:$0xff]
    %v101 = vld [vmem:[#allocation2 + $0x238] sm:$0xff]
    %v102 = vld [vmem:[#allocation2 + $0x240] sm:$0xff]
    %v103 = vld [vmem:[#allocation2 + $0x248] sm:$0xff]
    %v104 = vld [vmem:[#allocation2 + $0x250] sm:$0xff]
    %v105 = vld [vmem:[#allocation2 + $0x258] sm:$0xff]
    %v106 = vld [vmem:[#allocation2 + $0x260] sm:$0xff]
    %v107 = vld [vmem:[#allocation2 + $0x268] sm:$0xff]
    %v108 = vld [vmem:[#allocation2 + $0x270] sm:$0xff]
    %v109 = vld [vmem:[#allocation2 + $0x278] sm:$0xff]
    %v110 = vld [vmem:[#allocation2 + $0x280] sm:$0xff]
    %v111 = vld [vmem:[#allocation2 + $0x288] sm:$0xff]
    %v112 = vld [vmem:[#allocation2 + $0x290] sm:$0xff]
    %v113 = vld [vmem:[#allocation2 + $0x298] sm:$0xff]
    %v114 = vld [vmem:[#allocation2 + $0x2a0] sm:$0xff]
    %v115 = vld [vmem:[#allocation2 + $0x2a8] sm:$0xff]
    %v116 = vld [vmem:[#allocation2 + $0x2b0] sm:$0xff]
    %v117 = vld [vmem:[#allocation2 + $0x2b8] sm:$0xff]
    %v118 = vld [vmem:[#allocation2 + $0x2c0] sm:$0xff]
    %v119 = vld [vmem:[#allocation2 + $0x2c8] sm:$0xff]
    %v120 = vld [vmem:[#allocation2 + $0x2d0] sm:$0xff]
    %v121 = vld [vmem:[#allocation2 + $0x2d8] sm:$0xff]
    %v122 = vld [vmem:[#allocation2 + $0x2e0] sm:$0xff]
    %v123 = vld [vmem:[#allocation2 + $0x2e8] sm:$0xff]
    %v124 = vld [vmem:[#allocation2 + $0x2f0] sm:$0xff]
    %v125 = vld [vmem:[#allocation2 + $0x2f8] sm:$0xff]
    %v126 = vld [vmem:[#allocation2 + $0x300] sm:$0xff]
    %v127 = vld [vmem:[#allocation2 + $0x308] sm:$0xff]
    %v128 = vld [vmem:[#allocation2 + $0x310] sm:$0xff]
    %v129 = vld [vmem:[#allocation2 + $0x318] sm:$0xff]
    %v130 = vld [vmem:[#allocation2 + $0x320] sm:$0xff]
    %v131 = vld [vmem:[#allocation2 + $0x328] sm:$0xff]
    %v132 = vld [vmem:[#allocation2 + $0x330] sm:$0xff]
    %v133 = vld [vmem:[#allocation2 + $0x338] sm:$0xff]
    %v134 = vld [vmem:[#allocation2 + $0x340] sm:$0xff]
    %v135 = vld [vmem:[#allocation2 + $0x348] sm:$0xff]
    %v136 = vld [vmem:[#allocation2 + $0x350] sm:$0xff]
    %v137 = vld [vmem:[#allocation2 + $0x358] sm:$0xff]
    %v138 = vld [vmem:[#allocation2 + $0x360] sm:$0xff]
    %v139 = vld [vmem:[#allocation2 + $0x368] sm:$0xff]
    %v140 = vld [vmem:[#allocation2 + $0x370] sm:$0xff]
    %v141 = vld [vmem:[#allocation2 + $0x378] sm:$0xff]
    %v142 = vld [vmem:[#allocation2 + $0x380] sm:$0xff]
    %v143 = vld [vmem:[#allocation2 + $0x388] sm:$0xff]
    %v144 = vld [vmem:[#allocation2 + $0x390] sm:$0xff]
    %v145 = vld [vmem:[#allocation2 + $0x398] sm:$0xff]
    %v146 = vld [vmem:[#allocation2 + $0x3a0] sm:$0xff]
    %v147 = vld [vmem:[#allocation2 + $0x3a8] sm:$0xff]
    %v148 = vld [vmem:[#allocation2 + $0x3b0] sm:$0xff]
    %v149 = vld [vmem:[#allocation2 + $0x3b8] sm:$0xff]
    %v150 = vld [vmem:[#allocation2 + $0x3c0] sm:$0xff]
    %v151 = vld [vmem:[#allocation2 + $0x3c8] sm:$0xff]
    %v152 = vld [vmem:[#allocation2 + $0x3d0] sm:$0xff]
    %v153 = vld [vmem:[#allocation2 + $0x3d8] sm:$0xff]
    %v154 = vld [vmem:[#allocation2 + $0x3e0] sm:$0xff]
    %v155 = vld [vmem:[#allocation2 + $0x3e8] sm:$0xff]
    %v156 = vld [vmem:[#allocation2 + $0x3f0] sm:$0xff]
    %v157 = vld [vmem:[#allocation2 + $0x3f8] sm:$0xff]
    %v158 = vld [vmem:[%s2] sm:$0xff]
    %v160 = vlaneseq
    %v161 = vshrl.u32 %v160, 7
    %v162 = vsub.s32 0, %v161
    %v163 = vrot.slane %v158, %v162
    %v164 = vlaneseq
    %v165 = vshrl.u32 %v164, 7
    %v166 = vsub.s32 1, %v165
    %v167 = vrot.slane %v158, %v166
    %v168 = vlaneseq
    %v169 = vshrl.u32 %v168, 7
    %v170 = vsub.s32 2, %v169
    %v171 = vrot.slane %v158, %v170
    %v172 = vlaneseq
    %v173 = vshrl.u32 %v172, 7
    %v174 = vsub.s32 3, %v173
    %v175 = vrot.slane %v158, %v174
    %v176 = vlaneseq
    %v177 = vshrl.u32 %v176, 7
    %v178 = vsub.s32 4, %v177
    %v179 = vrot.slane %v158, %v178
    %v180 = vlaneseq
    %v181 = vshrl.u32 %v180, 7
    %v182 = vsub.s32 5, %v181
    %v183 = vrot.slane %v158, %v182
    %v184 = vlaneseq
    %v185 = vshrl.u32 %v184, 7
    %v186 = vsub.s32 6, %v185
    %v187 = vrot.slane %v158, %v186
    %v188 = vlaneseq
    %v189 = vshrl.u32 %v188, 7
    %v190 = vsub.s32 7, %v189
    %v191 = vrot.slane %v158, %v190
    %v202 = vunpack.c.l.b16 %v28
    %v203 = vunpack.c.h.b16 %v28
    %v204 = vunpack.c.l.b16 %v29
    %v205 = vunpack.c.h.b16 %v29
    %v206 = vpack.c.b16 %v204, %v202
    %v207 = vpack.c.b16 %v205, %v203
    %v338 = vunpack.c.l.b16 %v30
    %v339 = vunpack.c.h.b16 %v30
    %v340 = vunpack.c.l.b16 %v31
    %v341 = vunpack.c.h.b16 %v31
    %v342 = vunpack.c.l.b16 %v32
    %v343 = vunpack.c.h.b16 %v32
    %v344 = vunpack.c.l.b16 %v33
    %v345 = vunpack.c.h.b16 %v33
    %v346 = vunpack.c.l.b16 %v34
    %v347 = vunpack.c.h.b16 %v34
    %v348 = vunpack.c.l.b16 %v35
    %v349 = vunpack.c.h.b16 %v35
    %v350 = vunpack.c.l.b16 %v36
    %v351 = vunpack.c.h.b16 %v36
    %v352 = vunpack.c.l.b16 %v37
    %v353 = vunpack.c.h.b16 %v37
    %v354 = vunpack.c.l.b16 %v38
    %v355 = vunpack.c.h.b16 %v38
    %v356 = vunpack.c.l.b16 %v39
    %v357 = vunpack.c.h.b16 %v39
    %v358 = vunpack.c.l.b16 %v40
    %v359 = vunpack.c.h.b16 %v40
    %v360 = vunpack.c.l.b16 %v41
    %v361 = vunpack.c.h.b16 %v41
    %v362 = vunpack.c.l.b16 %v42
    %v363 = vunpack.c.h.b16 %v42
    %v364 = vunpack.c.l.b16 %v43
    %v365 = vunpack.c.h.b16 %v43
    %v366 = vunpack.c.l.b16 %v44
    %v367 = vunpack.c.h.b16 %v44
    %v368 = vunpack.c.l.b16 %v45
    %v369 = vunpack.c.h.b16 %v45
    %v370 = vunpack.c.l.b16 %v46
    %v371 = vunpack.c.h.b16 %v46
    %v372 = vunpack.c.l.b16 %v47
    %v373 = vunpack.c.h.b16 %v47
    %v374 = vunpack.c.l.b16 %v48
    %v375 = vunpack.c.h.b16 %v48
    %v376 = vunpack.c.l.b16 %v49
    %v377 = vunpack.c.h.b16 %v49
    %v378 = vunpack.c.l.b16 %v50
    %v379 = vunpack.c.h.b16 %v50
    %v380 = vunpack.c.l.b16 %v51
    %v381 = vunpack.c.h.b16 %v51
    %v382 = vunpack.c.l.b16 %v52
    %v383 = vunpack.c.h.b16 %v52
    %v384 = vunpack.c.l.b16 %v53
    %v385 = vunpack.c.h.b16 %v53
    %v386 = vunpack.c.l.b16 %v54
    %v387 = vunpack.c.h.b16 %v54
    %v388 = vunpack.c.l.b16 %v55
    %v389 = vunpack.c.h.b16 %v55
    %v390 = vunpack.c.l.b16 %v56
    %v391 = vunpack.c.h.b16 %v56
    %v392 = vunpack.c.l.b16 %v57
    %v393 = vunpack.c.h.b16 %v57
    %v394 = vunpack.c.l.b16 %v58
    %v395 = vunpack.c.h.b16 %v58
    %v396 = vunpack.c.l.b16 %v59
    %v397 = vunpack.c.h.b16 %v59
    %v398 = vunpack.c.l.b16 %v60
    %v399 = vunpack.c.h.b16 %v60
    %v400 = vunpack.c.l.b16 %v61
    %v401 = vunpack.c.h.b16 %v61
    %v402 = vunpack.c.l.b16 %v62
    %v403 = vunpack.c.h.b16 %v62
    %v404 = vunpack.c.l.b16 %v63
    %v405 = vunpack.c.h.b16 %v63
    %v406 = vunpack.c.l.b16 %v64
    %v407 = vunpack.c.h.b16 %v64
    %v408 = vunpack.c.l.b16 %v65
    %v409 = vunpack.c.h.b16 %v65
    %v410 = vunpack.c.l.b16 %v66
    %v411 = vunpack.c.h.b16 %v66
    %v412 = vunpack.c.l.b16 %v67
    %v413 = vunpack.c.h.b16 %v67
    %v414 = vunpack.c.l.b16 %v68
    %v415 = vunpack.c.h.b16 %v68
    %v416 = vunpack.c.l.b16 %v69
    %v417 = vunpack.c.h.b16 %v69
    %v418 = vunpack.c.l.b16 %v70
    %v419 = vunpack.c.h.b16 %v70
    %v420 = vunpack.c.l.b16 %v71
    %v421 = vunpack.c.h.b16 %v71
    %v422 = vunpack.c.l.b16 %v72
    %v423 = vunpack.c.h.b16 %v72
    %v424 = vunpack.c.l.b16 %v73
    %v425 = vunpack.c.h.b16 %v73
    %v426 = vunpack.c.l.b16 %v74
    %v427 = vunpack.c.h.b16 %v74
    %v428 = vunpack.c.l.b16 %v75
    %v429 = vunpack.c.h.b16 %v75
    %v430 = vunpack.c.l.b16 %v76
    %v431 = vunpack.c.h.b16 %v76
    %v432 = vunpack.c.l.b16 %v77
    %v433 = vunpack.c.h.b16 %v77
    %v434 = vunpack.c.l.b16 %v78
    %v435 = vunpack.c.h.b16 %v78
    %v436 = vunpack.c.l.b16 %v79
    %v437 = vunpack.c.h.b16 %v79
    %v438 = vunpack.c.l.b16 %v80
    %v439 = vunpack.c.h.b16 %v80
    %v440 = vunpack.c.l.b16 %v81
    %v441 = vunpack.c.h.b16 %v81
    %v442 = vunpack.c.l.b16 %v82
    %v443 = vunpack.c.h.b16 %v82
    %v444 = vunpack.c.l.b16 %v83
    %v445 = vunpack.c.h.b16 %v83
    %v446 = vunpack.c.l.b16 %v84
    %v447 = vunpack.c.h.b16 %v84
    %v448 = vunpack.c.l.b16 %v85
    %v449 = vunpack.c.h.b16 %v85
    %v450 = vunpack.c.l.b16 %v86
    %v451 = vunpack.c.h.b16 %v86
    %v452 = vunpack.c.l.b16 %v87
    %v453 = vunpack.c.h.b16 %v87
    %v454 = vunpack.c.l.b16 %v88
    %v455 = vunpack.c.h.b16 %v88
    %v456 = vunpack.c.l.b16 %v89
    %v457 = vunpack.c.h.b16 %v89
    %v458 = vunpack.c.l.b16 %v90
    %v459 = vunpack.c.h.b16 %v90
    %v460 = vunpack.c.l.b16 %v91
    %v461 = vunpack.c.h.b16 %v91
    %v462 = vunpack.c.l.b16 %v92
    %v463 = vunpack.c.h.b16 %v92
    %v464 = vunpack.c.l.b16 %v93
    %v465 = vunpack.c.h.b16 %v93
    %v466 = vunpack.c.l.b16 %v94
    %v467 = vunpack.c.h.b16 %v94
    %v468 = vunpack.c.l.b16 %v95
    %v469 = vunpack.c.h.b16 %v95
    %v470 = vunpack.c.l.b16 %v96
    %v471 = vunpack.c.h.b16 %v96
    %v472 = vunpack.c.l.b16 %v97
    %v473 = vunpack.c.h.b16 %v97
    %v474 = vunpack.c.l.b16 %v98
    %v475 = vunpack.c.h.b16 %v98
    %v476 = vunpack.c.l.b16 %v99
    %v477 = vunpack.c.h.b16 %v99
    %v478 = vunpack.c.l.b16 %v100
    %v479 = vunpack.c.h.b16 %v100
    %v480 = vunpack.c.l.b16 %v101
    %v481 = vunpack.c.h.b16 %v101
    %v482 = vunpack.c.l.b16 %v102
    %v483 = vunpack.c.h.b16 %v102
    %v484 = vunpack.c.l.b16 %v103
    %v485 = vunpack.c.h.b16 %v103
    %v486 = vunpack.c.l.b16 %v104
    %v487 = vunpack.c.h.b16 %v104
    %v488 = vunpack.c.l.b16 %v105
    %v489 = vunpack.c.h.b16 %v105
    %v490 = vunpack.c.l.b16 %v106
    %v491 = vunpack.c.h.b16 %v106
    %v492 = vunpack.c.l.b16 %v107
    %v493 = vunpack.c.h.b16 %v107
    %v494 = vunpack.c.l.b16 %v108
    %v495 = vunpack.c.h.b16 %v108
    %v496 = vunpack.c.l.b16 %v109
    %v497 = vunpack.c.h.b16 %v109
    %v498 = vunpack.c.l.b16 %v110
    %v499 = vunpack.c.h.b16 %v110
    %v500 = vunpack.c.l.b16 %v111
    %v501 = vunpack.c.h.b16 %v111
    %v502 = vunpack.c.l.b16 %v112
    %v503 = vunpack.c.h.b16 %v112
    %v504 = vunpack.c.l.b16 %v113
    %v505 = vunpack.c.h.b16 %v113
    %v506 = vunpack.c.l.b16 %v114
    %v507 = vunpack.c.h.b16 %v114
    %v508 = vunpack.c.l.b16 %v115
    %v509 = vunpack.c.h.b16 %v115
    %v510 = vunpack.c.l.b16 %v116
    %v511 = vunpack.c.h.b16 %v116
    %v512 = vunpack.c.l.b16 %v117
    %v513 = vunpack.c.h.b16 %v117
    %v514 = vunpack.c.l.b16 %v118
    %v515 = vunpack.c.h.b16 %v118
    %v516 = vunpack.c.l.b16 %v119
    %v517 = vunpack.c.h.b16 %v119
    %v518 = vunpack.c.l.b16 %v120
    %v519 = vunpack.c.h.b16 %v120
    %v520 = vunpack.c.l.b16 %v121
    %v521 = vunpack.c.h.b16 %v121
    %v522 = vunpack.c.l.b16 %v122
    %v523 = vunpack.c.h.b16 %v122
    %v524 = vunpack.c.l.b16 %v123
    %v525 = vunpack.c.h.b16 %v123
    %v526 = vunpack.c.l.b16 %v124
    %v527 = vunpack.c.h.b16 %v124
    %v528 = vunpack.c.l.b16 %v125
    %v529 = vunpack.c.h.b16 %v125
    %v530 = vunpack.c.l.b16 %v126
    %v531 = vunpack.c.h.b16 %v126
    %v532 = vunpack.c.l.b16 %v127
    %v533 = vunpack.c.h.b16 %v127
    %v534 = vunpack.c.l.b16 %v128
    %v535 = vunpack.c.h.b16 %v128
    %v536 = vunpack.c.l.b16 %v129
    %v537 = vunpack.c.h.b16 %v129
    %v538 = vunpack.c.l.b16 %v130
    %v539 = vunpack.c.h.b16 %v130
    %v540 = vunpack.c.l.b16 %v131
    %v541 = vunpack.c.h.b16 %v131
    %v542 = vunpack.c.l.b16 %v132
    %v543 = vunpack.c.h.b16 %v132
    %v544 = vunpack.c.l.b16 %v133
    %v545 = vunpack.c.h.b16 %v133
    %v546 = vunpack.c.l.b16 %v134
    %v547 = vunpack.c.h.b16 %v134
    %v548 = vunpack.c.l.b16 %v135
    %v549 = vunpack.c.h.b16 %v135
    %v550 = vunpack.c.l.b16 %v136
    %v551 = vunpack.c.h.b16 %v136
    %v552 = vunpack.c.l.b16 %v137
    %v553 = vunpack.c.h.b16 %v137
    %v554 = vunpack.c.l.b16 %v138
    %v555 = vunpack.c.h.b16 %v138
    %v556 = vunpack.c.l.b16 %v139
    %v557 = vunpack.c.h.b16 %v139
    %v558 = vunpack.c.l.b16 %v140
    %v559 = vunpack.c.h.b16 %v140
    %v560 = vunpack.c.l.b16 %v141
    %v561 = vunpack.c.h.b16 %v141
    %v562 = vunpack.c.l.b16 %v142
    %v563 = vunpack.c.h.b16 %v142
    %v564 = vunpack.c.l.b16 %v143
    %v565 = vunpack.c.h.b16 %v143
    %v566 = vunpack.c.l.b16 %v144
    %v567 = vunpack.c.h.b16 %v144
    %v568 = vunpack.c.l.b16 %v145
    %v569 = vunpack.c.h.b16 %v145
    %v570 = vunpack.c.l.b16 %v146
    %v571 = vunpack.c.h.b16 %v146
    %v572 = vunpack.c.l.b16 %v147
    %v573 = vunpack.c.h.b16 %v147
    %v574 = vunpack.c.l.b16 %v148
    %v575 = vunpack.c.h.b16 %v148
    %v576 = vunpack.c.l.b16 %v149
    %v577 = vunpack.c.h.b16 %v149
    %v578 = vunpack.c.l.b16 %v150
    %v579 = vunpack.c.h.b16 %v150
    %v580 = vunpack.c.l.b16 %v151
    %v581 = vunpack.c.h.b16 %v151
    %v582 = vunpack.c.l.b16 %v152
    %v583 = vunpack.c.h.b16 %v152
    %v584 = vunpack.c.l.b16 %v153
    %v585 = vunpack.c.h.b16 %v153
    %v586 = vunpack.c.l.b16 %v154
    %v587 = vunpack.c.h.b16 %v154
    %v588 = vunpack.c.l.b16 %v155
    %v589 = vunpack.c.h.b16 %v155
    %v590 = vunpack.c.l.b16 %v156
    %v591 = vunpack.c.h.b16 %v156
    %v592 = vunpack.c.l.b16 %v157
    %v593 = vunpack.c.h.b16 %v157
    %v594 = vpack.c.b16 %v346, %v338
    %v595 = vpack.c.b16 %v347, %v339
    %v596 = vpack.c.b16 %v348, %v340
    %v597 = vpack.c.b16 %v349, %v341
    %v598 = vpack.c.b16 %v350, %v342
    %v599 = vpack.c.b16 %v351, %v343
    %v600 = vpack.c.b16 %v352, %v344
    %v601 = vpack.c.b16 %v353, %v345
    %v602 = vpack.c.b16 %v362, %v354
    %v603 = vpack.c.b16 %v363, %v355
    %v604 = vpack.c.b16 %v364, %v356
    %v605 = vpack.c.b16 %v365, %v357
    %v606 = vpack.c.b16 %v366, %v358
    %v607 = vpack.c.b16 %v367, %v359
    %v608 = vpack.c.b16 %v368, %v360
    %v609 = vpack.c.b16 %v369, %v361
    %v610 = vpack.c.b16 %v378, %v370
    %v611 = vpack.c.b16 %v379, %v371
    %v612 = vpack.c.b16 %v380, %v372
    %v613 = vpack.c.b16 %v381, %v373
    %v614 = vpack.c.b16 %v382, %v374
    %v615 = vpack.c.b16 %v383, %v375
    %v616 = vpack.c.b16 %v384, %v376
    %v617 = vpack.c.b16 %v385, %v377
    %v618 = vpack.c.b16 %v394, %v386
    %v619 = vpack.c.b16 %v395, %v387
    %v620 = vpack.c.b16 %v396, %v388
    %v621 = vpack.c.b16 %v397, %v389
    %v622 = vpack.c.b16 %v398, %v390
    %v623 = vpack.c.b16 %v399, %v391
    %v624 = vpack.c.b16 %v400, %v392
    %v625 = vpack.c.b16 %v401, %v393
    %v626 = vpack.c.b16 %v410, %v402
    %v627 = vpack.c.b16 %v411, %v403
    %v628 = vpack.c.b16 %v412, %v404
    %v629 = vpack.c.b16 %v413, %v405
    %v630 = vpack.c.b16 %v414, %v406
    %v631 = vpack.c.b16 %v415, %v407
    %v632 = vpack.c.b16 %v416, %v408
    %v633 = vpack.c.b16 %v417, %v409
    %v634 = vpack.c.b16 %v426, %v418
    %v635 = vpack.c.b16 %v427, %v419
    %v636 = vpack.c.b16 %v428, %v420
    %v637 = vpack.c.b16 %v429, %v421
    %v638 = vpack.c.b16 %v430, %v422
    %v639 = vpack.c.b16 %v431, %v423
    %v640 = vpack.c.b16 %v432, %v424
    %v641 = vpack.c.b16 %v433, %v425
    %v642 = vpack.c.b16 %v442, %v434
    %v643 = vpack.c.b16 %v443, %v435
    %v644 = vpack.c.b16 %v444, %v436
    %v645 = vpack.c.b16 %v445, %v437
    %v646 = vpack.c.b16 %v446, %v438
    %v647 = vpack.c.b16 %v447, %v439
    %v648 = vpack.c.b16 %v448, %v440
    %v649 = vpack.c.b16 %v449, %v441
    %v650 = vpack.c.b16 %v458, %v450
    %v651 = vpack.c.b16 %v459, %v451
    %v652 = vpack.c.b16 %v460, %v452
    %v653 = vpack.c.b16 %v461, %v453
    %v654 = vpack.c.b16 %v462, %v454
    %v655 = vpack.c.b16 %v463, %v455
    %v656 = vpack.c.b16 %v464, %v456
    %v657 = vpack.c.b16 %v465, %v457
    %v658 = vpack.c.b16 %v474, %v466
    %v659 = vpack.c.b16 %v475, %v467
    %v660 = vpack.c.b16 %v476, %v468
    %v661 = vpack.c.b16 %v477, %v469
    %v662 = vpack.c.b16 %v478, %v470
    %v663 = vpack.c.b16 %v479, %v471
    %v664 = vpack.c.b16 %v480, %v472
    %v665 = vpack.c.b16 %v481, %v473
    %v666 = vpack.c.b16 %v490, %v482
    %v667 = vpack.c.b16 %v491, %v483
    %v668 = vpack.c.b16 %v492, %v484
    %v669 = vpack.c.b16 %v493, %v485
    %v670 = vpack.c.b16 %v494, %v486
    %v671 = vpack.c.b16 %v495, %v487
    %v672 = vpack.c.b16 %v496, %v488
    %v673 = vpack.c.b16 %v497, %v489
    %v674 = vpack.c.b16 %v506, %v498
    %v675 = vpack.c.b16 %v507, %v499
    %v676 = vpack.c.b16 %v508, %v500
    %v677 = vpack.c.b16 %v509, %v501
    %v678 = vpack.c.b16 %v510, %v502
    %v679 = vpack.c.b16 %v511, %v503
    %v680 = vpack.c.b16 %v512, %v504
    %v681 = vpack.c.b16 %v513, %v505
    %v682 = vpack.c.b16 %v522, %v514
    %v683 = vpack.c.b16 %v523, %v515
    %v684 = vpack.c.b16 %v524, %v516
    %v685 = vpack.c.b16 %v525, %v517
    %v686 = vpack.c.b16 %v526, %v518
    %v687 = vpack.c.b16 %v527, %v519
    %v688 = vpack.c.b16 %v528, %v520
    %v689 = vpack.c.b16 %v529, %v521
    %v690 = vpack.c.b16 %v538, %v530
    %v691 = vpack.c.b16 %v539, %v531
    %v692 = vpack.c.b16 %v540, %v532
    %v693 = vpack.c.b16 %v541, %v533
    %v694 = vpack.c.b16 %v542, %v534
    %v695 = vpack.c.b16 %v543, %v535
    %v696 = vpack.c.b16 %v544, %v536
    %v697 = vpack.c.b16 %v545, %v537
    %v698 = vpack.c.b16 %v554, %v546
    %v699 = vpack.c.b16 %v555, %v547
    %v700 = vpack.c.b16 %v556, %v548
    %v701 = vpack.c.b16 %v557, %v549
    %v702 = vpack.c.b16 %v558, %v550
    %v703 = vpack.c.b16 %v559, %v551
    %v704 = vpack.c.b16 %v560, %v552
    %v705 = vpack.c.b16 %v561, %v553
    %v706 = vpack.c.b16 %v570, %v562
    %v707 = vpack.c.b16 %v571, %v563
    %v708 = vpack.c.b16 %v572, %v564
    %v709 = vpack.c.b16 %v573, %v565
    %v710 = vpack.c.b16 %v574, %v566
    %v711 = vpack.c.b16 %v575, %v567
    %v712 = vpack.c.b16 %v576, %v568
    %v713 = vpack.c.b16 %v577, %v569
    %v714 = vpack.c.b16 %v586, %v578
    %v715 = vpack.c.b16 %v587, %v579
    %v716 = vpack.c.b16 %v588, %v580
    %v717 = vpack.c.b16 %v589, %v581
    %v718 = vpack.c.b16 %v590, %v582
    %v719 = vpack.c.b16 %v591, %v583
    %v720 = vpack.c.b16 %v592, %v584
    %v721 = vpack.c.b16 %v593, %v585
    %850 = vmatprep.subr.bf16.mxu0 %v595
    %851 = vmatpush1.bf16.msra.mxu0 %v594
    %852 = vmatprep.subr.bf16.mxu0 %v603
    %853 = vmatpush1.bf16.msra.mxu0 %v602
    %854 = vmatprep.subr.bf16.mxu0 %v611
    %855 = vmatpush1.bf16.msra.mxu0 %v610
    %856 = vmatprep.subr.bf16.mxu0 %v619
    %857 = vmatpush1.bf16.msra.mxu0 %v618
    %858 = vmatprep.subr.bf16.mxu0 %v627
    %859 = vmatpush1.bf16.msra.mxu0 %v626
    %860 = vmatprep.subr.bf16.mxu0 %v635
    %861 = vmatpush1.bf16.msra.mxu0 %v634
    %862 = vmatprep.subr.bf16.mxu0 %v643
    %863 = vmatpush1.bf16.msra.mxu0 %v642
    %864 = vmatprep.subr.bf16.mxu0 %v651
    %865 = vmatpush1.bf16.msra.mxu0 %v650
    %866 = vmatprep.subr.bf16.mxu0 %v659
    %867 = vmatpush1.bf16.msra.mxu0 %v658
    %868 = vmatprep.subr.bf16.mxu0 %v667
    %869 = vmatpush1.bf16.msra.mxu0 %v666
    %870 = vmatprep.subr.bf16.mxu0 %v675
    %871 = vmatpush1.bf16.msra.mxu0 %v674
    %872 = vmatprep.subr.bf16.mxu0 %v683
    %873 = vmatpush1.bf16.msra.mxu0 %v682
    %874 = vmatprep.subr.bf16.mxu0 %v691
    %875 = vmatpush1.bf16.msra.mxu0 %v690
    %876 = vmatprep.subr.bf16.mxu0 %v699
    %877 = vmatpush1.bf16.msra.mxu0 %v698
    %878 = vmatprep.subr.bf16.mxu0 %v707
    %879 = vmatpush1.bf16.msra.mxu0 %v706
    %880 = vmatprep.subr.bf16.mxu0 %v715
    %881 = vmatpush1.bf16.msra.mxu0 %v714
    %882 = vmatprep.mubr.bf16.mxu0 %v207
    %883 = vmatmul.mubr.bf16.gmra.mrb[0].mxu0 %v206
    %v884 = vpop.f32.mrb[0].mxu0
    %v885 = vadd.f32 %v163, %v884
    %v886 = vpop.f32.mrb[0].mxu0
    %v887 = vadd.f32 %v167, %v886
    %v888 = vpop.f32.mrb[0].mxu0
    %v889 = vadd.f32 %v163, %v888
    %v890 = vpop.f32.mrb[0].mxu0
    %v891 = vadd.f32 %v167, %v890
    %892 = vdwg.mxu0
    %893 = vmatprep.subr.bf16.mxu0 %v597
    %894 = vmatpush1.bf16.msra.mxu0 %v596
    %895 = vmatprep.subr.bf16.mxu0 %v605
    %896 = vmatpush1.bf16.msra.mxu0 %v604
    %897 = vmatprep.subr.bf16.mxu0 %v613
    %898 = vmatpush1.bf16.msra.mxu0 %v612
    %899 = vmatprep.subr.bf16.mxu0 %v621
    %900 = vmatpush1.bf16.msra.mxu0 %v620
    %901 = vmatprep.subr.bf16.mxu0 %v629
    %902 = vmatpush1.bf16.msra.mxu0 %v628
    %903 = vmatprep.subr.bf16.mxu0 %v637
    %904 = vmatpush1.bf16.msra.mxu0 %v636
    %905 = vmatprep.subr.bf16.mxu0 %v645
    %906 = vmatpush1.bf16.msra.mxu0 %v644
    %907 = vmatprep.subr.bf16.mxu0 %v653
    %908 = vmatpush1.bf16.msra.mxu0 %v652
    %909 = vmatprep.subr.bf16.mxu0 %v661
    %910 = vmatpush1.bf16.msra.mxu0 %v660
    %911 = vmatprep.subr.bf16.mxu0 %v669
    %912 = vmatpush1.bf16.msra.mxu0 %v668
    %913 = vmatprep.subr.bf16.mxu0 %v677
    %914 = vmatpush1.bf16.msra.mxu0 %v676
    %915 = vmatprep.subr.bf16.mxu0 %v685
    %916 = vmatpush1.bf16.msra.mxu0 %v684
    %917 = vmatprep.subr.bf16.mxu0 %v693
    %918 = vmatpush1.bf16.msra.mxu0 %v692
    %919 = vmatprep.subr.bf16.mxu0 %v701
    %920 = vmatpush1.bf16.msra.mxu0 %v700
    %921 = vmatprep.subr.bf16.mxu0 %v709
    %922 = vmatpush1.bf16.msra.mxu0 %v708
    %923 = vmatprep.subr.bf16.mxu0 %v717
    %924 = vmatpush1.bf16.msra.mxu0 %v716
    %925 = vmatprep.mubr.bf16.mxu0 %v207
    %926 = vmatmul.mubr.bf16.gmra.mrb[0].mxu0 %v206
    %v927 = vpop.f32.mrb[0].mxu0
    %v928 = vadd.f32 %v171, %v927
    %v929 = vpop.f32.mrb[0].mxu0
    %v930 = vadd.f32 %v175, %v929
    %v931 = vpop.f32.mrb[0].mxu0
    %v932 = vadd.f32 %v171, %v931
    %v933 = vpop.f32.mrb[0].mxu0
    %v934 = vadd.f32 %v175, %v933
    %935 = vdwg.mxu0
    %936 = vmatprep.subr.bf16.mxu0 %v599
    %937 = vmatpush1.bf16.msra.mxu0 %v598
    %938 = vmatprep.subr.bf16.mxu0 %v607
    %939 = vmatpush1.bf16.msra.mxu0 %v606
    %940 = vmatprep.subr.bf16.mxu0 %v615
    %941 = vmatpush1.bf16.msra.mxu0 %v614
    %942 = vmatprep.subr.bf16.mxu0 %v623
    %943 = vmatpush1.bf16.msra.mxu0 %v622
    %944 = vmatprep.subr.bf16.mxu0 %v631
    %945 = vmatpush1.bf16.msra.mxu0 %v630
    %946 = vmatprep.subr.bf16.mxu0 %v639
    %947 = vmatpush1.bf16.msra.mxu0 %v638
    %948 = vmatprep.subr.bf16.mxu0 %v647
    %949 = vmatpush1.bf16.msra.mxu0 %v646
    %950 = vmatprep.subr.bf16.mxu0 %v655
    %951 = vmatpush1.bf16.msra.mxu0 %v654
    %952 = vmatprep.subr.bf16.mxu0 %v663
    %953 = vmatpush1.bf16.msra.mxu0 %v662
    %954 = vmatprep.subr.bf16.mxu0 %v671
    %955 = vmatpush1.bf16.msra.mxu0 %v670
    %956 = vmatprep.subr.bf16.mxu0 %v679
    %957 = vmatpush1.bf16.msra.mxu0 %v678
    %958 = vmatprep.subr.bf16.mxu0 %v687
    %959 = vmatpush1.bf16.msra.mxu0 %v686
    %960 = vmatprep.subr.bf16.mxu0 %v695
    %961 = vmatpush1.bf16.msra.mxu0 %v694
    %962 = vmatprep.subr.bf16.mxu0 %v703
    %963 = vmatpush1.bf16.msra.mxu0 %v702
    %964 = vmatprep.subr.bf16.mxu0 %v711
    %965 = vmatpush1.bf16.msra.mxu0 %v710
    %966 = vmatprep.subr.bf16.mxu0 %v719
    %967 = vmatpush1.bf16.msra.mxu0 %v718
    %968 = vmatprep.mubr.bf16.mxu0 %v207
    %969 = vmatmul.mubr.bf16.gmra.mrb[0].mxu0 %v206
    %v970 = vpop.f32.mrb[0].mxu0
    %v971 = vadd.f32 %v179, %v970
    %v972 = vpop.f32.mrb[0].mxu0
    %v973 = vadd.f32 %v183, %v972
    %v974 = vpop.f32.mrb[0].mxu0
    %v975 = vadd.f32 %v179, %v974
    %v976 = vpop.f32.mrb[0].mxu0
    %v977 = vadd.f32 %v183, %v976
    %978 = vdwg.mxu0
    %979 = vmatprep.subr.bf16.mxu0 %v601
    %980 = vmatpush1.bf16.msra.mxu0 %v600
    %981 = vmatprep.subr.bf16.mxu0 %v609
    %982 = vmatpush1.bf16.msra.mxu0 %v608
    %983 = vmatprep.subr.bf16.mxu0 %v617
    %984 = vmatpush1.bf16.msra.mxu0 %v616
    %985 = vmatprep.subr.bf16.mxu0 %v625
    %986 = vmatpush1.bf16.msra.mxu0 %v624
    %987 = vmatprep.subr.bf16.mxu0 %v633
    %988 = vmatpush1.bf16.msra.mxu0 %v632
    %989 = vmatprep.subr.bf16.mxu0 %v641
    %990 = vmatpush1.bf16.msra.mxu0 %v640
    %991 = vmatprep.subr.bf16.mxu0 %v649
    %992 = vmatpush1.bf16.msra.mxu0 %v648
    %993 = vmatprep.subr.bf16.mxu0 %v657
    %994 = vmatpush1.bf16.msra.mxu0 %v656
    %995 = vmatprep.subr.bf16.mxu0 %v665
    %996 = vmatpush1.bf16.msra.mxu0 %v664
    %997 = vmatprep.subr.bf16.mxu0 %v673
    %998 = vmatpush1.bf16.msra.mxu0 %v672
    %999 = vmatprep.subr.bf16.mxu0 %v681
    %1000 = vmatpush1.bf16.msra.mxu0 %v680
    %1001 = vmatprep.subr.bf16.mxu0 %v689
    %1002 = vmatpush1.bf16.msra.mxu0 %v688
    %1003 = vmatprep.subr.bf16.mxu0 %v697
    %1004 = vmatpush1.bf16.msra.mxu0 %v696
    %1005 = vmatprep.subr.bf16.mxu0 %v705
    %1006 = vmatpush1.bf16.msra.mxu0 %v704
    %1007 = vmatprep.subr.bf16.mxu0 %v713
    %1008 = vmatpush1.bf16.msra.mxu0 %v712
    %1009 = vmatprep.subr.bf16.mxu0 %v721
    %1010 = vmatpush1.bf16.msra.mxu0 %v720
    %1011 = vmatprep.mubr.bf16.mxu0 %v207
    %1012 = vmatmul.mubr.bf16.gmra.mrb[0].mxu0 %v206
    %v1013 = vpop.f32.mrb[0].mxu0
    %v1014 = vadd.f32 %v187, %v1013
    %v1015 = vpop.f32.mrb[0].mxu0
    %v1016 = vadd.f32 %v191, %v1015
    %v1017 = vpop.f32.mrb[0].mxu0
    %v1018 = vadd.f32 %v187, %v1017
    %v1019 = vpop.f32.mrb[0].mxu0
    %v1020 = vadd.f32 %v191, %v1019
    %1021 = vdwg.mxu0
    %v1022 = vpack.c.bf16 %v889, %v885
    %v1023 = vpack.c.bf16 %v891, %v887
    %v1024 = vpack.c.bf16 %v932, %v928
    %v1025 = vpack.c.bf16 %v934, %v930
    %v1026 = vpack.c.bf16 %v975, %v971
    %v1027 = vpack.c.bf16 %v977, %v973
    %v1028 = vpack.c.bf16 %v1018, %v1014
    %v1029 = vpack.c.bf16 %v1020, %v1016
    %v1038 = vunpack.c.l.b16 %v1022
    %v1039 = vunpack.c.l.b16 %v1023
    %v1040 = vunpack.c.l.b16 %v1024
    %v1041 = vunpack.c.l.b16 %v1025
    %v1042 = vunpack.c.l.b16 %v1026
    %v1043 = vunpack.c.l.b16 %v1027
    %v1044 = vunpack.c.l.b16 %v1028
    %v1045 = vunpack.c.l.b16 %v1029
    %v1046 = vunpack.c.h.b16 %v1022
    %v1047 = vunpack.c.h.b16 %v1023
    %v1048 = vunpack.c.h.b16 %v1024
    %v1049 = vunpack.c.h.b16 %v1025
    %v1050 = vunpack.c.h.b16 %v1026
    %v1051 = vunpack.c.h.b16 %v1027
    %v1052 = vunpack.c.h.b16 %v1028
    %v1053 = vunpack.c.h.b16 %v1029
    %v1054 = vpack.c.b16 %v1039, %v1038
    %v1055 = vpack.c.b16 %v1041, %v1040
    %v1056 = vpack.c.b16 %v1043, %v1042
    %v1057 = vpack.c.b16 %v1045, %v1044
    %v1058 = vpack.c.b16 %v1047, %v1046
    %v1059 = vpack.c.b16 %v1049, %v1048
    %v1060 = vpack.c.b16 %v1051, %v1050
    %v1061 = vpack.c.b16 %v1053, %v1052
    %1070 = vst [vmem:[%s3] sm:$0xff] %v1054
    %1071 = vst [vmem:[%s3 + $0x8] sm:$0xff] %v1055
    %1072 = vst [vmem:[%s3 + $0x10] sm:$0xff] %v1056
    %1073 = vst [vmem:[%s3 + $0x18] sm:$0xff] %v1057
    %1074 = vst [vmem:[%s3 + $0x20] sm:$0xff] %v1058
    %1075 = vst [vmem:[%s3 + $0x28] sm:$0xff] %v1059
    %1076 = vst [vmem:[%s3 + $0x30] sm:$0xff] %v1060
    %1077 = vst [vmem:[%s3 + $0x38] sm:$0xff] %v1061
    // Predicated region
    $region18: #{prose_mt_forward.9} parent=1 // pred_check
      _
    $region19: #{prose_mt_forward.9} parent=1 // pred_check_branch
      %1079 = sbr.rel (0) target = $region21
    $region20: #{prose_mt_forward.9} parent=1 // pred_region
      _
    $region21: #{prose_mt_forward.9} parent=1 // pred_fallthru
      _
    // Predicated region
    $region22: #{prose_mt_forward.9} parent=1 // pred_check
      _
    $region23: #{prose_mt_forward.9} parent=1 // pred_check_branch
      %1081 = sbr.rel (0) target = $region25
    $region24: #{prose_mt_forward.9} parent=1 // pred_region
      _
    $region25: #{prose_mt_forward.9} parent=1 // pred_fallthru
      _
    %1082 = vsyncpa [#allocation3], 1

// kernel: prose_mt_forward.10
$region0: #{prose_mt_forward.10}
  #allocation0 [shape = 'u32[]', space=smem, size = 0x4, offset = 0x4, fixed_abs, tag = 'smem constant byte address 0x4 - core index']
  #allocation1 [shape = 'u32[144,128]{1,0:T(1,128)}', space=vmem, size = 0x12000, scoped, tag = 'internal scratch']
  #allocation2 [shape = 'f32[2,128]{1,0:T(2,128)}', space=vmem, size = 0x400, scoped, tag = 'scratch operand']
  #allocation3 [shape = 'f32[2,128]{1,0:T(2,128)}', space=vmem, size = 0x400, scoped, tag = 'scratch operand']
  %s0 = inlined_call_operand.vmem [shape: bf16[8,2,1024], index: 0, kind: input, shape index: {}]
  %s1 = inlined_call_operand.vmem [shape: bf16[2,128,512], index: 1, kind: input, shape index: {}]
  %s2 = inlined_call_operand.vmem [shape: bf16[8,2,256], index: 2, kind: output, shape index: {}]
  %s3 = sld [smem:[#allocation0]]
  $region116: #{prose_mt_forward.10} parent=0
    _
  %s5 = ssub.s32 1, %s3
  %s6 = scalar_select 0, %s5, %s3
  $region1: #{prose_mt_forward.10} parent=0
    #allocation4 [shape = 'u8[16384]{0}', space=vmem, size = 0x4000, scoped, tag = 'input window, operand 0']
    #allocation5 [shape = 'u8[4096]{0}', space=vmem, size = 0x1000, scoped, tag = 'output window, operand 0']
    loop: start=0, step=1, limit=6
    $region2: #{prose_mt_forward.10} parent=1 // loop_pre_header
      _
    $region3: #{prose_mt_forward.10} parent=1 // loop_header
      %s8 = sphi 0, %s12
      %p9 = scmp.ge.s32.totalorder %s8, 6
      %s15 = sphi 0, %s27
      %s16 = sphi 0, %s23
      %s17 = sphi 0, %s15
      %s18 = sphi 0, %s16
      %s19 = sphi 0, %s17
      %s20 = sphi 0, %s18
      %s40 = sphi 0, %s42
      %s43 = sphi 0, %s40
      %s44 = sphi 0, %s43
      %s60 = sphi 0, %s44
      %s66 = sphi 0, %s68
      %s69 = sphi 0, %s66
      %s70 = sphi 0, %s69
      %s86 = sphi 0, %s70
      %s102 = sphi 0, %s104
      %s105 = sphi 0, %s102
      %s106 = sphi 0, %s105
      %s122 = sphi 0, %s106
    $region4: #{prose_mt_forward.10} parent=1 // loop_header_branch
      %11 = sbr.rel (%p9) target = $region8
    $region5: #{prose_mt_forward.10} parent=1 // loop_body
      %s13 = ssub.s32 %s8, 1
      %s14 = ssub.s32 %s8, 2
      %s21 = sadd.s32 1, %s16
      %p22 = scmp.ge.s32.totalorder %s21, 2
      %s23 = scalar_select %p22, 0, %s21
      %s24 = sadd.s32 1, %s15
      %s25 = scalar_select %p22, %s24, %s15
      %p26 = scmp.ge.s32.totalorder %s25, 2
      %s27 = scalar_select %p26, 0, %s25
      %s28 = smul.u32 %s16, 2
      %s29 = ssub.s32 1, %s28
      %s30 = smul.u32 %s15, %s29
      %s31 = sadd.s32 %s16, %s30
      %s32 = smul.u32 %s23, 2
      %s33 = ssub.s32 1, %s32
      %s34 = smul.u32 %s27, %s33
      %s35 = sadd.s32 %s23, %s34
      %s36 = ssub.s32 %s31, %s35
      %s37 = ssub.s32 %s15, %s27
      %s38 = sor.u32 %s36, %s37
      %p39 = scmp.eq.s32.totalorder %s38, 0
      %s41 = sadd.s32 %s40, 1
      %s42 = scalar_select %p39, %s40, %s41
      %p45 = pneg %p39
      %p46 = scmp.eq.s32.totalorder %s8, 3
      %p47 = por %p45, %p46
      %p48 = scmp.ne.s32.totalorder %s40, %s43
      %p49 = scmp.eq.s32.totalorder %s8, 0
      %p50 = por %p48, %p49
      %p51 = scmp.ne.s32.totalorder %s40, %s43
      %p52 = scmp.eq.s32.totalorder %s13, 3
      %p53 = por %p51, %p52
      %p54 = scmp.ne.s32.totalorder %s43, %s44
      %p55 = scmp.eq.s32.totalorder %s13, 0
      %p56 = por %p54, %p55
      %p57 = scmp.ne.s32.totalorder %s43, %s44
      %p58 = scmp.eq.s32.totalorder %s14, 3
      %p59 = por %p57, %p58
      %p61 = scmp.ne.s32.totalorder %s44, %s60
      %p62 = scmp.eq.s32.totalorder %s14, 0
      %p63 = por %p61, %p62
      %s64 = ssub.s32 %s15, %s27
      %p65 = scmp.eq.s32.totalorder %s64, 0
      %s67 = sadd.s32 %s66, 1
      %s68 = scalar_select %p65, %s66, %s67
      %p71 = pneg %p65
      %p72 = scmp.eq.s32.totalorder %s8, 3
      %p73 = por %p71, %p72
      %p74 = scmp.ne.s32.totalorder %s66, %s69
      %p75 = scmp.eq.s32.totalorder %s8, 0
      %p76 = por %p74, %p75
      %p77 = scmp.ne.s32.totalorder %s66, %s69
      %p78 = scmp.eq.s32.totalorder %s13, 3
      %p79 = por %p77, %p78
      %p80 = scmp.ne.s32.totalorder %s69, %s70
      %p81 = scmp.eq.s32.totalorder %s13, 0
      %p82 = por %p80, %p81
      %p83 = scmp.ne.s32.totalorder %s69, %s70
      %p84 = scmp.eq.s32.totalorder %s14, 3
      %p85 = por %p83, %p84
      %p87 = scmp.ne.s32.totalorder %s70, %s86
      %p88 = scmp.eq.s32.totalorder %s14, 0
      %p89 = por %p87, %p88
      %s90 = smul.u32 %s16, 2
      %s91 = ssub.s32 1, %s90
      %s92 = smul.u32 %s15, %s91
      %s93 = sadd.s32 %s16, %s92
      %s94 = smul.u32 %s23, 2
      %s95 = ssub.s32 1, %s94
      %s96 = smul.u32 %s27, %s95
      %s97 = sadd.s32 %s23, %s96
      %s98 = ssub.s32 %s93, %s97
      %s99 = ssub.s32 %s15, %s27
      %s100 = sor.u32 %s98, %s99
      %p101 = scmp.eq.s32.totalorder %s100, 0
      %s103 = sadd.s32 %s102, 1
      %s104 = scalar_select %p101, %s102, %s103
      %p107 = pneg %p101
      %p108 = scmp.eq.s32.totalorder %s8, 3
      %p109 = por %p107, %p108
      %p110 = scmp.ne.s32.totalorder %s102, %s105
      %p111 = scmp.eq.s32.totalorder %s8, 0
      %p112 = por %p110, %p111
      %p113 = scmp.ne.s32.totalorder %s102, %s105
      %p114 = scmp.eq.s32.totalorder %s13, 3
      %p115 = por %p113, %p114
      %p116 = scmp.ne.s32.totalorder %s105, %s106
      %p117 = scmp.eq.s32.totalorder %s13, 0
      %p118 = por %p116, %p117
      %p119 = scmp.ne.s32.totalorder %s105, %s106
      %p120 = scmp.eq.s32.totalorder %s14, 3
      %p121 = por %p119, %p120
      %p123 = scmp.ne.s32.totalorder %s106, %s122
      %p124 = scmp.eq.s32.totalorder %s14, 0
      %p125 = por %p123, %p124
      %p126 = scmp.le.s32.totalorder 1, %s8
      %p127 = scmp.lt.s32.totalorder %s8, 5
      %p128 = pnand %p126, %p127
      %p129 = pneg %p128
      // Predicated region
      $region9: #{prose_mt_forward.10} parent=5 // pred_check
        _
      $region10: #{prose_mt_forward.10} parent=5 // pred_check_branch
        %131 = sbr.rel (%p128) target = $region12
      $region11: #{prose_mt_forward.10} parent=5 // pred_region
        %s132 = ssub.s32 %s8, 1
      $region12: #{prose_mt_forward.10} parent=5 // pred_fallthru
        _
      %p133 = scmp.lt.s32.totalorder %s8, 4
      // Predicated region
      $region13: #{prose_mt_forward.10} parent=5 // pred_check
        %p134 = pneg %p133
      $region14: #{prose_mt_forward.10} parent=5 // pred_check_branch
        %136 = sbr.rel (%p134) target = $region16
      $region15: #{prose_mt_forward.10} parent=5 // pred_region
        // Predicated region
        $region17: #{prose_mt_forward.10} parent=15 // pred_check
          %p137 = pneg %p50
        $region18: #{prose_mt_forward.10} parent=15 // pred_check_branch
          %139 = sbr.rel (%p137) target = $region20
        $region19: #{prose_mt_forward.10} parent=15 // pred_region
          %s140 = sand.u32 %s40, 1
          %s141 = sand.u32 %s40, 1
          %s142 = smul.addr %s141, 16
          %s143 = scalar_lea.vmem [#allocation4], %s142
          %s144 = smul.u32 %s16, 2
          %s145 = ssub.s32 1, %s144
          %s146 = smul.u32 %s15, %s145
          %s147 = sadd.s32 %s16, %s146
          %s148 = smul.u32 4, %s147
          %s149 = smul.u32 4, %s15
          %s150 = smul.addr %s148, 8
          %s151 = sadd.s32 %s149, %s150
          %s152 = scalar_lea.vmem %s0, %s151
          // Predicated region
          $region21: #{prose_mt_forward.10} parent=19 // pred_check
            _
          $region22: #{prose_mt_forward.10} parent=19 // pred_check_branch
            %154 = sbr.rel (0) target = $region24
          $region23: #{prose_mt_forward.10} parent=19 // pred_region
            // Predicated region
            $region25: #{prose_mt_forward.10} parent=23 // pred_check
              _
            $region26: #{prose_mt_forward.10} parent=23 // pred_check_branch
              %156 = sbr.rel target = $region28
            $region27: #{prose_mt_forward.10} parent=23 // pred_region
              // Predicated region
              $region40: #{prose_mt_forward.10} parent=27 // pred_check
                _
              $region41: #{prose_mt_forward.10} parent=27 // pred_check_branch
                %177 = sbr.rel (0) target = $region43
              $region42: #{prose_mt_forward.10} parent=27 // pred_region
                loop: start=0, step=1, limit=1
                $region44: #{prose_mt_forward.10} parent=42 // loop_pre_header
                  _
                $region45: #{prose_mt_forward.10} parent=42 // loop_header
                  %s179 = sphi 0, %s183
                  %p180 = scmp.ge.s32.totalorder %s179, 1
                  %s184 = sphi %s152, %s152
                  %s185 = sphi %s143, %s143
                $region46: #{prose_mt_forward.10} parent=42 // loop_header_branch
                  %182 = sbr.rel (%p180) target = $region50
                $region47: #{prose_mt_forward.10} parent=42 // loop_body
                  _
                $region48: #{prose_mt_forward.10} parent=42 // loop_footer
                  %s183 = sadd.s32 1, %s179
                $region49: #{prose_mt_forward.10} parent=42 // loop_footer_branch
                  %178 = sbr.rel target = $region45
                $region50: #{prose_mt_forward.10} parent=42 // loop_exit
                  _
                loop: start=0, step=1, limit=1
                $region51: #{prose_mt_forward.10} parent=42 // loop_pre_header
                  _
                $region52: #{prose_mt_forward.10} parent=42 // loop_header
                  %s188 = sphi 0, %s192
                  %p189 = scmp.ge.s32.totalorder %s188, 1
                  %s193 = sphi %s152, %s152
                  %s194 = sphi %s143, %s143
                $region53: #{prose_mt_forward.10} parent=42 // loop_header_branch
                  %191 = sbr.rel (%p189) target = $region57
                $region54: #{prose_mt_forward.10} parent=42 // loop_body
                  %v195 = vld [vmem:[%s193] sm:$0xf]
                  %196 = vst [vmem:[%s194] sm:$0xf] %v195
                  %v197 = vld [vmem:[%s193 + $0x8] sm:$0xf]
                  %198 = vst [vmem:[%s194 + $0x4] sm:$0xf] %v197
                  %v199 = vld [vmem:[%s193 + $0x10] sm:$0xf]
                  %200 = vst [vmem:[%s194 + $0x8] sm:$0xf] %v199
                  %v201 = vld [vmem:[%s193 + $0x18] sm:$0xf]
                  %202 = vst [vmem:[%s194 + $0xc] sm:$0xf] %v201
                $region55: #{prose_mt_forward.10} parent=42 // loop_footer
                  %s192 = sadd.s32 1, %s188
                $region56: #{prose_mt_forward.10} parent=42 // loop_footer_branch
                  %187 = sbr.rel target = $region52
                $region57: #{prose_mt_forward.10} parent=42 // loop_exit
                  _
              $region43: #{prose_mt_forward.10} parent=27 // pred_fallthru
                _
            $region28: #{prose_mt_forward.10} parent=23 // pred_fallthru
              _
            // Predicated region
            $region29: #{prose_mt_forward.10} parent=23 // pred_check
              _
            $region30: #{prose_mt_forward.10} parent=23 // pred_check_branch
              %158 = sbr.rel (0) target = $region32
            $region31: #{prose_mt_forward.10} parent=23 // pred_region
              loop: start=0, step=1, limit=1
              $region33: #{prose_mt_forward.10} parent=31 // loop_pre_header
                _
              $region34: #{prose_mt_forward.10} parent=31 // loop_header
                %s161 = sphi 0, %s165
                %p162 = scmp.ge.s32.totalorder %s161, 1
                %s166 = sphi %s152, %s152
                %s167 = sphi %s143, %s143
              $region35: #{prose_mt_forward.10} parent=31 // loop_header_branch
                %164 = sbr.rel (%p162) target = $region39
              $region36: #{prose_mt_forward.10} parent=31 // loop_body
                %v168 = vld [vmem:[%s166] sm:$0xf]
                %169 = vst [vmem:[%s167] sm:$0xf] %v168
                %v170 = vld [vmem:[%s166 + $0x8] sm:$0xf]
                %171 = vst [vmem:[%s167 + $0x4] sm:$0xf] %v170
                %v172 = vld [vmem:[%s166 + $0x10] sm:$0xf]
                %173 = vst [vmem:[%s167 + $0x8] sm:$0xf] %v172
                %v174 = vld [vmem:[%s166 + $0x18] sm:$0xf]
                %175 = vst [vmem:[%s167 + $0xc] sm:$0xf] %v174
              $region37: #{prose_mt_forward.10} parent=31 // loop_footer
                %s165 = sadd.s32 1, %s161
              $region38: #{prose_mt_forward.10} parent=31 // loop_footer_branch
                %160 = sbr.rel target = $region34
              $region39: #{prose_mt_forward.10} parent=31 // loop_exit
                _
            $region32: #{prose_mt_forward.10} parent=23 // pred_fallthru
              _
          $region24: #{prose_mt_forward.10} parent=19 // pred_fallthru
            _
          %203 = vnop
        $region20: #{prose_mt_forward.10} parent=15 // pred_fallthru
          _
        // Predicated region
        $region58: #{prose_mt_forward.10} parent=15 // pred_check
          %p204 = pneg %p76
        $region59: #{prose_mt_forward.10} parent=15 // pred_check_branch
          %206 = sbr.rel (%p204) target = $region61
        $region60: #{prose_mt_forward.10} parent=15 // pred_region
          %p207 = scmp.lt.s32.totalorder %s15, 1
          %s208 = scalar_select %p207, %s15, 1
          %s209 = smul.addr %s208, 64
          %s210 = smul.addr %s209, 4
          %s211 = scalar_lea.vmem %s1, %s210
        $region61: #{prose_mt_forward.10} parent=15 // pred_fallthru
          _
      $region16: #{prose_mt_forward.10} parent=5 // pred_fallthru
        _
      %p212 = scmp.le.s32.totalorder 1, %s8
      %p213 = scmp.lt.s32.totalorder %s8, 5
      %p214 = pnand %p212, %p213
      %p215 = pneg %p214
      // Predicated region
      $region62: #{prose_mt_forward.10} parent=5 // pred_check
        _
      $region63: #{prose_mt_forward.10} parent=5 // pred_check_branch
        %217 = sbr.rel (%p214) target = $region65
      $region64: #{prose_mt_forward.10} parent=5 // pred_region
        %s218 = ssub.s32 %s8, 1
        %s219 = sand.u32 %s43, 1
        %s220 = sand.u32 %s43, 1
        %s221 = smul.addr %s220, 16
        %s222 = scalar_lea.vmem [#allocation4], %s221
        // Predicated region
        $region66: #{prose_mt_forward.10} parent=64 // pred_check
          %p223 = pneg %p56
        $region67: #{prose_mt_forward.10} parent=64 // pred_check_branch
          %225 = sbr.rel (%p223) target = $region69
        $region68: #{prose_mt_forward.10} parent=64 // pred_region
          _
        $region69: #{prose_mt_forward.10} parent=64 // pred_fallthru
          _
        %s226 = sand.u32 %s43, 1
        %s227 = sand.u32 %s43, 1
        %s228 = smul.addr %s227, 16
        %s229 = scalar_lea.vmem [#allocation4], %s228
        %p230 = pneg %p56
        %p231 = pneg %p53
        %p232 = scmp.lt.s32.totalorder %s17, 1
        %s233 = scalar_select %p232, %s17, 1
        %s234 = smul.addr %s233, 64
        %s235 = smul.addr %s234, 4
        %s236 = scalar_lea.vmem %s1, %s235
        %p237 = pneg %p82
        %p238 = pneg %p79
        %p239 = pneg %p118
        %p240 = pneg %p115
        %s241 = sand.u32 %s105, 1
        %s242 = sand.u32 %s105, 1
        %s243 = smul.addr %s242, 4
        %s244 = scalar_lea.vmem [#allocation5], %s243
        %s245 = smul.u32 %s18, 2
        %s246 = ssub.s32 1, %s245
        %s247 = smul.u32 %s17, %s246
        %s248 = sadd.s32 %s18, %s247
        %s249 = smul.u32 4, %s248
        %s250 = smul.u32 4, %s17
        %p251 = scmp.lt.s32.totalorder %s17, 1
        %s252 = scalar_select %p251, %s17, 1
        %s253 = smul.addr %s252, 64
        %s254 = smul.addr %s253, 4
        %s255 = scalar_lea.vmem %s1, %s254
        %s256 = smul.u32 %s18, 2
        %s257 = ssub.s32 1, %s256
        %s258 = smul.u32 %s17, %s257
        %s259 = sadd.s32 %s18, %s258
        %s260 = smul.u32 4, %s259
        %p262 = scmp.eq.s32.totalorder %s18, 0
        // Predicated region
        $region70: #{prose_mt_forward.10} parent=64 // pred_check
          %p263 = pneg %p262
        $region71: #{prose_mt_forward.10} parent=64 // pred_check_branch
          %265 = sbr.rel (%p263) target = $region73
        $region72: #{prose_mt_forward.10} parent=64 // pred_region
          %266 = vst [vmem:[#allocation2] sm:$0x3] 0.0
          %267 = vst [vmem:[#allocation3] sm:$0x3] 0.0
        $region73: #{prose_mt_forward.10} parent=64 // pred_fallthru
          _
        %s268 = smul.u32 %s17, 3
        %s269 = smul.u32 %s268, 4
        %s270 = scalar_lea.vmem %s222, %s269 [#allocation4]
        %v271 = vld [vmem:[%s270] sm:$0xf]
        %v272 = vunpack.c.l.bf16 %v271
        %v273 = vld [vmem:[#allocation2] sm:$0x3]
        %v274 = vpack.c.bf16 %v273, %v273
        %v275 = vld [vmem:[%s255] sm:$0xff]
        %v276 = vld [vmem:[%s255 + $0x8] sm:$0xff]
        %v277 = vld [vmem:[%s255 + $0x10] sm:$0xff]
        %v278 = vld [vmem:[%s255 + $0x18] sm:$0xff]
        %v279 = vld [vmem:[%s255 + $0x20] sm:$0xff]
        %v280 = vld [vmem:[%s255 + $0x28] sm:$0xff]
        %v281 = vld [vmem:[%s255 + $0x30] sm:$0xff]
        %v282 = vld [vmem:[%s255 + $0x38] sm:$0xff]
        %v283 = vld [vmem:[%s255 + $0x40] sm:$0xff]
        %v284 = vld [vmem:[%s255 + $0x48] sm:$0xff]
        %v285 = vld [vmem:[%s255 + $0x50] sm:$0xff]
        %v286 = vld [vmem:[%s255 + $0x58] sm:$0xff]
        %v287 = vld [vmem:[%s255 + $0x60] sm:$0xff]
        %v288 = vld [vmem:[%s255 + $0x68] sm:$0xff]
        %v289 = vld [vmem:[%s255 + $0x70] sm:$0xff]
        %v290 = vld [vmem:[%s255 + $0x78] sm:$0xff]
        %v291 = vld [vmem:[%s255 + $0x80] sm:$0xff]
        %v292 = vld [vmem:[%s255 + $0x88] sm:$0xff]
        %v293 = vld [vmem:[%s255 + $0x90] sm:$0xff]
        %v294 = vld [vmem:[%s255 + $0x98] sm:$0xff]
        %v295 = vld [vmem:[%s255 + $0xa0] sm:$0xff]
        %v296 = vld [vmem:[%s255 + $0xa8] sm:$0xff]
        %v297 = vld [vmem:[%s255 + $0xb0] sm:$0xff]
        %v298 = vld [vmem:[%s255 + $0xb8] sm:$0xff]
        %v299 = vld [vmem:[%s255 + $0xc0] sm:$0xff]
        %v300 = vld [vmem:[%s255 + $0xc8] sm:$0xff]
        %v301 = vld [vmem:[%s255 + $0xd0] sm:$0xff]
        %v302 = vld [vmem:[%s255 + $0xd8] sm:$0xff]
        %v303 = vld [vmem:[%s255 + $0xe0] sm:$0xff]
        %v304 = vld [vmem:[%s255 + $0xe8] sm:$0xff]
        %v305 = vld [vmem:[%s255 + $0xf0] sm:$0xff]
        %v306 = vld [vmem:[%s255 + $0xf8] sm:$0xff]
        %v339 = vunpack.c.l.b16 %v275
        %v340 = vunpack.c.h.b16 %v275
        %v341 = vunpack.c.l.b16 %v276
        %v342 = vunpack.c.h.b16 %v276
        %v343 = vunpack.c.l.b16 %v277
        %v344 = vunpack.c.h.b16 %v277
        %v345 = vunpack.c.l.b16 %v278
        %v346 = vunpack.c.h.b16 %v278
        %v347 = vunpack.c.l.b16 %v279
        %v348 = vunpack.c.h.b16 %v279
        %v349 = vunpack.c.l.b16 %v280
        %v350 = vunpack.c.h.b16 %v280
        %v351 = vunpack.c.l.b16 %v281
        %v352 = vunpack.c.h.b16 %v281
        %v353 = vunpack.c.l.b16 %v282
        %v354 = vunpack.c.h.b16 %v282
        %v355 = vunpack.c.l.b16 %v283
        %v356 = vunpack.c.h.b16 %v283
        %v357 = vunpack.c.l.b16 %v284
        %v358 = vunpack.c.h.b16 %v284
        %v359 = vunpack.c.l.b16 %v285
        %v360 = vunpack.c.h.b16 %v285
        %v361 = vunpack.c.l.b16 %v286
        %v362 = vunpack.c.h.b16 %v286
        %v363 = vunpack.c.l.b16 %v287
        %v364 = vunpack.c.h.b16 %v287
        %v365 = vunpack.c.l.b16 %v288
        %v366 = vunpack.c.h.b16 %v288
        %v367 = vunpack.c.l.b16 %v289
        %v368 = vunpack.c.h.b16 %v289
        %v369 = vunpack.c.l.b16 %v290
        %v370 = vunpack.c.h.b16 %v290
        %v371 = vunpack.c.l.b16 %v291
        %v372 = vunpack.c.h.b16 %v291
        %v373 = vunpack.c.l.b16 %v292
        %v374 = vunpack.c.h.b16 %v292
        %v375 = vunpack.c.l.b16 %v293
        %v376 = vunpack.c.h.b16 %v293
        %v377 = vunpack.c.l.b16 %v294
        %v378 = vunpack.c.h.b16 %v294
        %v379 = vunpack.c.l.b16 %v295
        %v380 = vunpack.c.h.b16 %v295
        %v381 = vunpack.c.l.b16 %v296
        %v382 = vunpack.c.h.b16 %v296
        %v383 = vunpack.c.l.b16 %v297
        %v384 = vunpack.c.h.b16 %v297
        %v385 = vunpack.c.l.b16 %v298
        %v386 = vunpack.c.h.b16 %v298
        %v387 = vunpack.c.l.b16 %v299
        %v388 = vunpack.c.h.b16 %v299
        %v389 = vunpack.c.l.b16 %v300
        %v390 = vunpack.c.h.b16 %v300
        %v391 = vunpack.c.l.b16 %v301
        %v392 = vunpack.c.h.b16 %v301
        %v393 = vunpack.c.l.b16 %v302
        %v394 = vunpack.c.h.b16 %v302
        %v395 = vunpack.c.l.b16 %v303
        %v396 = vunpack.c.h.b16 %v303
        %v397 = vunpack.c.l.b16 %v304
        %v398 = vunpack.c.h.b16 %v304
        %v399 = vunpack.c.l.b16 %v305
        %v400 = vunpack.c.h.b16 %v305
        %v401 = vunpack.c.l.b16 %v306
        %v402 = vunpack.c.h.b16 %v306
        %v403 = vpack.c.b16 %v343, %v339
        %v404 = vpack.c.b16 %v344, %v340
        %v405 = vpack.c.b16 %v345, %v341
        %v406 = vpack.c.b16 %v346, %v342
        %v407 = vpack.c.b16 %v351, %v347
        %v408 = vpack.c.b16 %v352, %v348
        %v409 = vpack.c.b16 %v353, %v349
        %v410 = vpack.c.b16 %v354, %v350
        %v411 = vpack.c.b16 %v359, %v355
        %v412 = vpack.c.b16 %v360, %v356
        %v413 = vpack.c.b16 %v361, %v357
        %v414 = vpack.c.b16 %v362, %v358
        %v415 = vpack.c.b16 %v367, %v363
        %v416 = vpack.c.b16 %v368, %v364
        %v417 = vpack.c.b16 %v369, %v365
        %v418 = vpack.c.b16 %v370, %v366
        %v419 = vpack.c.b16 %v375, %v371
        %v420 = vpack.c.b16 %v376, %v372
        %v421 = vpack.c.b16 %v377, %v373
        %v422 = vpack.c.b16 %v378, %v374
        %v423 = vpack.c.b16 %v383, %v379
        %v424 = vpack.c.b16 %v384, %v380
        %v425 = vpack.c.b16 %v385, %v381
        %v426 = vpack.c.b16 %v386, %v382
        %v427 = vpack.c.b16 %v391, %v387
        %v428 = vpack.c.b16 %v392, %v388
        %v429 = vpack.c.b16 %v393, %v389
        %v430 = vpack.c.b16 %v394, %v390
        %v431 = vpack.c.b16 %v399, %v395
        %v432 = vpack.c.b16 %v400, %v396
        %v433 = vpack.c.b16 %v401, %v397
        %v434 = vpack.c.b16 %v402, %v398
        %467 = vmatprep.subr.bf16.mxu0 %v404
        %468 = vmatpush1.bf16.msra.mxu0 %v403
        %469 = vmatprep.subr.bf16.mxu0 %v408
        %470 = vmatpush1.bf16.msra.mxu0 %v407
        %471 = vmatprep.subr.bf16.mxu0 %v412
        %472 = vmatpush1.bf16.msra.mxu0 %v411
        %473 = vmatprep.subr.bf16.mxu0 %v416
        %474 = vmatpush1.bf16.msra.mxu0 %v415
        %475 = vmatprep.subr.bf16.mxu0 %v420
        %476 = vmatpush1.bf16.msra.mxu0 %v419
        %477 = vmatprep.subr.bf16.mxu0 %v424
        %478 = vmatpush1.bf16.msra.mxu0 %v423
        %479 = vmatprep.subr.bf16.mxu0 %v428
        %480 = vmatpush1.bf16.msra.mxu0 %v427
        %481 = vmatprep.subr.bf16.mxu0 %v432
        %482 = vmatpush1.bf16.msra.mxu0 %v431
        %483 = vmatprep.subr.bf16.mxu0 0
        %484 = vmatpush1.bf16.msra.mxu0 0
        %485 = vmatprep.subr.bf16.mxu0 0
        %486 = vmatpush1.bf16.msra.mxu0 0
        %487 = vmatprep.subr.bf16.mxu0 0
        %488 = vmatpush1.bf16.msra.mxu0 0
        %489 = vmatprep.subr.bf16.mxu0 0
        %490 = vmatpush1.bf16.msra.mxu0 0
        %491 = vmatprep.subr.bf16.mxu0 0
        %492 = vmatpush1.bf16.msra.mxu0 0
        %493 = vmatprep.subr.bf16.mxu0 0
        %494 = vmatpush1.bf16.msra.mxu0 0
        %495 = vmatprep.subr.bf16.mxu0 0
        %496 = vmatpush1.bf16.msra.mxu0 0
        %497 = vmatprep.subr.bf16.mxu0 0
        %498 = vmatpush1.bf16.msra.mxu0 0
        %499 = vmatprep.mubr.bf16.mxu0 0
        %500 = vmatmul.mubr.bf16.gmra.mrb[0].mxu0 %v274
        %v501 = vpop.f32.mrb[0].mxu0
        %v502 = vadd.f32 0.0, %v501
        %v503 = vpop.f32.mrb[0].mxu0
        %v504 = vadd.f32 0.0, %v503
        %v505 = vpop.f32.mrb[0].mxu0
        %v506 = vpop.f32.mrb[0].mxu0
        %507 = vdwg.mxu0
        %508 = vmatprep.subr.bf16.mxu0 %v406
        %509 = vmatpush1.bf16.msra.mxu0 %v405
        %510 = vmatprep.subr.bf16.mxu0 %v410
        %511 = vmatpush1.bf16.msra.mxu0 %v409
        %512 = vmatprep.subr.bf16.mxu0 %v414
        %513 = vmatpush1.bf16.msra.mxu0 %v413
        %514 = vmatprep.subr.bf16.mxu0 %v418
        %515 = vmatpush1.bf16.msra.mxu0 %v417
        %516 = vmatprep.subr.bf16.mxu0 %v422
        %517 = vmatpush1.bf16.msra.mxu0 %v421
        %518 = vmatprep.subr.bf16.mxu0 %v426
        %519 = vmatpush1.bf16.msra.mxu0 %v425
        %520 = vmatprep.subr.bf16.mxu0 %v430
        %521 = vmatpush1.bf16.msra.mxu0 %v429
        %522 = vmatprep.subr.bf16.mxu0 %v434
        %523 = vmatpush1.bf16.msra.mxu0 %v433
        %524 = vmatprep.subr.bf16.mxu0 0
        %525 = vmatpush1.bf16.msra.mxu0 0
        %526 = vmatprep.subr.bf16.mxu0 0
        %527 = vmatpush1.bf16.msra.mxu0 0
        %528 = vmatprep.subr.bf16.mxu0 0
        %529 = vmatpush1.bf16.msra.mxu0 0
        %530 = vmatprep.subr.bf16.mxu0 0
        %531 = vmatpush1.bf16.msra.mxu0 0
        %532 = vmatprep.subr.bf16.mxu0 0
        %533 = vmatpush1.bf16.msra.mxu0 0
        %534 = vmatprep.subr.bf16.mxu0 0
        %535 = vmatpush1.bf16.msra.mxu0 0
        %536 = vmatprep.subr.bf16.mxu0 0
        %537 = vmatpush1.bf16.msra.mxu0 0
        %538 = vmatprep.subr.bf16.mxu0 0
        %539 = vmatpush1.bf16.msra.mxu0 0
        %540 = vmatprep.mubr.bf16.mxu0 0
        %541 = vmatmul.mubr.bf16.gmra.mrb[0].mxu0 %v274
        %v542 = vpop.f32.mrb[0].mxu0
        %v543 = vadd.f32 0.0, %v542
        %v544 = vpop.f32.mrb[0].mxu0
        %v545 = vadd.f32 0.0, %v544
        %v546 = vpop.f32.mrb[0].mxu0
        %v547 = vpop.f32.mrb[0].mxu0
        %548 = vdwg.mxu0
        %v553 = vcombine.low %v502, %v504
        %v554 = vcombine.low %v543, %v545
        %v556 = vunpack.c.l.s4 1983009808
        %v557 = vunpack.c.0.s8 %v556
        %v558 = vlaneseq
        %v559 = vshrl.u32 %v558, 7
        %v560 = vsub.s32 %v557, %v559
        %v561 = vrot.slane %v553, %v560
        %v563 = vunpack.c.l.s4 1983009808
        %v564 = vunpack.c.0.s8 %v563
        %v565 = vlaneseq
        %v566 = vshrl.u32 %v565, 7
        %v567 = vsub.s32 %v564, %v566
        %v568 = vrot.slane %v554, %v567
        %v569 = vcombine.low %v561, %v568
        %v571 = vadd.f32 %v272, %v569
        %v572 = vxor.u32 %v571, 2147483648
        %v573 = vmul.f32 %v572, 1.442695
        %v574 = vpow.pop %v573
        %v575 = vadd.f32 %v574, 1.0
        %v576 = vrcp.pop %v575
        %v577 = vmul.f32 1.0, %v576
        %v579 = vrot.slane %v571, 2
        %v581 = vxor.u32 %v579, 2147483648
        %v582 = vmul.f32 %v581, 1.442695
        %v583 = vpow.pop %v582
        %v584 = vadd.f32 %v583, 1.0
        %v585 = vrcp.pop %v584
        %v586 = vmul.f32 1.0, %v585
        %v587 = vrot.slane %v571, 4
        %v589 = vtanh.pop %v587
        %v590 = vrot.slane %v571, 6
        %v592 = vxor.u32 %v590, 2147483648
        %v593 = vmul.f32 %v592, 1.442695
        %v594 = vpow.pop %v593
        %v595 = vadd.f32 %v594, 1.0
        %v596 = vrcp.pop %v595
        %v597 = vmul.f32 1.0, %v596
        %v598 = vld [vmem:[#allocation3] sm:$0x3]
        %v599 = vmul.f32 %v586, %v598
        %v600 = vmul.f32 %v577, %v589
        %v601 = vadd.f32 %v599, %v600
        %v602 = vtanh.pop %v601
        %v603 = vmul.f32 %v597, %v602
        %604 = vst [vmem:[#allocation2] sm:$0x3] %v603
        %605 = vst [vmem:[#allocation3] sm:$0x3] %v601
        %v606 = vpack.c.bf16 %v603, %v603
        %s607 = scalar_lea.vmem %s244, %s268 [#allocation5]
        %608 = vst [vmem:[%s607] sm:$0x1] %v606
        %s609 = sadd.s32 %s17, 1
        %s610 = smul.u32 %s609, 4
        %s611 = scalar_lea.vmem %s222, %s610 [#allocation4]
        %v612 = vld [vmem:[%s611] sm:$0xf]
        %v613 = vunpack.c.l.bf16 %v612
        %v614 = vld [vmem:[#allocation2] sm:$0x3]
        %v615 = vpack.c.bf16 %v614, %v614
        %v616 = vld [vmem:[%s255] sm:$0xff]
        %v617 = vld [vmem:[%s255 + $0x8] sm:$0xff]
        %v618 = vld [vmem:[%s255 + $0x10] sm:$0xff]
        %v619 = vld [vmem:[%s255 + $0x18] sm:$0xff]
        %v620 = vld [vmem:[%s255 + $0x20] sm:$0xff]
        %v621 = vld [vmem:[%s255 + $0x28] sm:$0xff]
        %v622 = vld [vmem:[%s255 + $0x30] sm:$0xff]
        %v623 = vld [vmem:[%s255 + $0x38] sm:$0xff]
        %v624 = vld [vmem:[%s255 + $0x40] sm:$0xff]
        %v625 = vld [vmem:[%s255 + $0x48] sm:$0xff]
        %v626 = vld [vmem:[%s255 + $0x50] sm:$0xff]
        %v627 = vld [vmem:[%s255 + $0x58] sm:$0xff]
        %v628 = vld [vmem:[%s255 + $0x60] sm:$0xff]
        %v629 = vld [vmem:[%s255 + $0x68] sm:$0xff]
        %v630 = vld [vmem:[%s255 + $0x70] sm:$0xff]
        %v631 = vld [vmem:[%s255 + $0x78] sm:$0xff]
        %v632 = vld [vmem:[%s255 + $0x80] sm:$0xff]
        %v633 = vld [vmem:[%s255 + $0x88] sm:$0xff]
        %v634 = vld [vmem:[%s255 + $0x90] sm:$0xff]
        %v635 = vld [vmem:[%s255 + $0x98] sm:$0xff]
        %v636 = vld [vmem:[%s255 + $0xa0] sm:$0xff]
        %v637 = vld [vmem:[%s255 + $0xa8] sm:$0xff]
        %v638 = vld [vmem:[%s255 + $0xb0] sm:$0xff]
        %v639 = vld [vmem:[%s255 + $0xb8] sm:$0xff]
        %v640 = vld [vmem:[%s255 + $0xc0] sm:$0xff]
        %v641 = vld [vmem:[%s255 + $0xc8] sm:$0xff]
        %v642 = vld [vmem:[%s255 + $0xd0] sm:$0xff]
        %v643 = vld [vmem:[%s255 + $0xd8] sm:$0xff]
        %v644 = vld [vmem:[%s255 + $0xe0] sm:$0xff]
        %v645 = vld [vmem:[%s255 + $0xe8] sm:$0xff]
        %v646 = vld [vmem:[%s255 + $0xf0] sm:$0xff]
        %v647 = vld [vmem:[%s255 + $0xf8] sm:$0xff]
        %v680 = vunpack.c.l.b16 %v616
        %v681 = vunpack.c.h.b16 %v616
        %v682 = vunpack.c.l.b16 %v617
        %v683 = vunpack.c.h.b16 %v617
        %v684 = vunpack.c.l.b16 %v618
        %v685 = vunpack.c.h.b16 %v618
        %v686 = vunpack.c.l.b16 %v619
        %v687 = vunpack.c.h.b16 %v619
        %v688 = vunpack.c.l.b16 %v620
        %v689 = vunpack.c.h.b16 %v620
        %v690 = vunpack.c.l.b16 %v621
        %v691 = vunpack.c.h.b16 %v621
        %v692 = vunpack.c.l.b16 %v622
        %v693 = vunpack.c.h.b16 %v622
        %v694 = vunpack.c.l.b16 %v623
        %v695 = vunpack.c.h.b16 %v623
        %v696 = vunpack.c.l.b16 %v624
        %v697 = vunpack.c.h.b16 %v624
        %v698 = vunpack.c.l.b16 %v625
        %v699 = vunpack.c.h.b16 %v625
        %v700 = vunpack.c.l.b16 %v626
        %v701 = vunpack.c.h.b16 %v626
        %v702 = vunpack.c.l.b16 %v627
        %v703 = vunpack.c.h.b16 %v627
        %v704 = vunpack.c.l.b16 %v628
        %v705 = vunpack.c.h.b16 %v628
        %v706 = vunpack.c.l.b16 %v629
        %v707 = vunpack.c.h.b16 %v629
        %v708 = vunpack.c.l.b16 %v630
        %v709 = vunpack.c.h.b16 %v630
        %v710 = vunpack.c.l.b16 %v631
        %v711 = vunpack.c.h.b16 %v631
        %v712 = vunpack.c.l.b16 %v632
        %v713 = vunpack.c.h.b16 %v632
        %v714 = vunpack.c.l.b16 %v633
        %v715 = vunpack.c.h.b16 %v633
        %v716 = vunpack.c.l.b16 %v634
        %v717 = vunpack.c.h.b16 %v634
        %v718 = vunpack.c.l.b16 %v635
        %v719 = vunpack.c.h.b16 %v635
        %v720 = vunpack.c.l.b16 %v636
        %v721 = vunpack.c.h.b16 %v636
        %v722 = vunpack.c.l.b16 %v637
        %v723 = vunpack.c.h.b16 %v637
        %v724 = vunpack.c.l.b16 %v638
        %v725 = vunpack.c.h.b16 %v638
        %v726 = vunpack.c.l.b16 %v639
        %v727 = vunpack.c.h.b16 %v639
        %v728 = vunpack.c.l.b16 %v640
        %v729 = vunpack.c.h.b16 %v640
        %v730 = vunpack.c.l.b16 %v641
        %v731 = vunpack.c.h.b16 %v641
        %v732 = vunpack.c.l.b16 %v642
        %v733 = vunpack.c.h.b16 %v642
        %v734 = vunpack.c.l.b16 %v643
        %v735 = vunpack.c.h.b16 %v643
        %v736 = vunpack.c.l.b16 %v644
        %v737 = vunpack.c.h.b16 %v644
        %v738 = vunpack.c.l.b16 %v645
        %v739 = vunpack.c.h.b16 %v645
        %v740 = vunpack.c.l.b16 %v646
        %v741 = vunpack.c.h.b16 %v646
        %v742 = vunpack.c.l.b16 %v647
        %v743 = vunpack.c.h.b16 %v647
        %v744 = vpack.c.b16 %v684, %v680
        %v745 = vpack.c.b16 %v685, %v681
        %v746 = vpack.c.b16 %v686, %v682
        %v747 = vpack.c.b16 %v687, %v683
        %v748 = vpack.c.b16 %v692, %v688
        %v749 = vpack.c.b16 %v693, %v689
        %v750 = vpack.c.b16 %v694, %v690
        %v751 = vpack.c.b16 %v695, %v691
        %v752 = vpack.c.b16 %v700, %v696
        %v753 = vpack.c.b16 %v701, %v697
        %v754 = vpack.c.b16 %v702, %v698
        %v755 = vpack.c.b16 %v703, %v699
        %v756 = vpack.c.b16 %v708, %v704
        %v757 = vpack.c.b16 %v709, %v705
        %v758 = vpack.c.b16 %v710, %v706
        %v759 = vpack.c.b16 %v711, %v707
        %v760 = vpack.c.b16 %v716, %v712
        %v761 = vpack.c.b16 %v717, %v713
        %v762 = vpack.c.b16 %v718, %v714
        %v763 = vpack.c.b16 %v719, %v715
        %v764 = vpack.c.b16 %v724, %v720
        %v765 = vpack.c.b16 %v725, %v721
        %v766 = vpack.c.b16 %v726, %v722
        %v767 = vpack.c.b16 %v727, %v723
        %v768 = vpack.c.b16 %v732, %v728
        %v769 = vpack.c.b16 %v733, %v729
        %v770 = vpack.c.b16 %v734, %v730
        %v771 = vpack.c.b16 %v735, %v731
        %v772 = vpack.c.b16 %v740, %v736
        %v773 = vpack.c.b16 %v741, %v737
        %v774 = vpack.c.b16 %v742, %v738
        %v775 = vpack.c.b16 %v743, %v739
        %808 = vmatprep.subr.bf16.mxu0 %v745
        %809 = vmatpush1.bf16.msra.mxu0 %v744
        %810 = vmatprep.subr.bf16.mxu0 %v749
        %811 = vmatpush1.bf16.msra.mxu0 %v748
        %812 = vmatprep.subr.bf16.mxu0 %v753
        %813 = vmatpush1.bf16.msra.mxu0 %v752
        %814 = vmatprep.subr.bf16.mxu0 %v757
        %815 = vmatpush1.bf16.msra.mxu0 %v756
        %816 = vmatprep.subr.bf16.mxu0 %v761
        %817 = vmatpush1.bf16.msra.mxu0 %v760
        %818 = vmatprep.subr.bf16.mxu0 %v765
        %819 = vmatpush1.bf16.msra.mxu0 %v764
        %820 = vmatprep.subr.bf16.mxu0 %v769
        %821 = vmatpush1.bf16.msra.mxu0 %v768
        %822 = vmatprep.subr.bf16.mxu0 %v773
        %823 = vmatpush1.bf16.msra.mxu0 %v772
        %824 = vmatprep.subr.bf16.mxu0 0
        %825 = vmatpush1.bf16.msra.mxu0 0
        %826 = vmatprep.subr.bf16.mxu0 0
        %827 = vmatpush1.bf16.msra.mxu0 0
        %828 = vmatprep.subr.bf16.mxu0 0
        %829 = vmatpush1.bf16.msra.mxu0 0
        %830 = vmatprep.subr.bf16.mxu0 0
        %831 = vmatpush1.bf16.msra.mxu0 0
        %832 = vmatprep.subr.bf16.mxu0 0
        %833 = vmatpush1.bf16.msra.mxu0 0
        %834 = vmatprep.subr.bf16.mxu0 0
        %835 = vmatpush1.bf16.msra.mxu0 0
        %836 = vmatprep.subr.bf16.mxu0 0
        %837 = vmatpush1.bf16.msra.mxu0 0
        %838 = vmatprep.subr.bf16.mxu0 0
        %839 = vmatpush1.bf16.msra.mxu0 0
        %840 = vmatprep.mubr.bf16.mxu0 0
        %841 = vmatmul.mubr.bf16.gmra.mrb[0].mxu0 %v615
        %v842 = vpop.f32.mrb[0].mxu0
        %v843 = vadd.f32 0.0, %v842
        %v844 = vpop.f32.mrb[0].mxu0
        %v845 = vadd.f32 0.0, %v844
        %v846 = vpop.f32.mrb[0].mxu0
        %v847 = vpop.f32.mrb[0].mxu0
        %848 = vdwg.mxu0
        %849 = vmatprep.subr.bf16.mxu0 %v747
        %850 = vmatpush1.bf16.msra.mxu0 %v746
        %851 = vmatprep.subr.bf16.mxu0 %v751
        %852 = vmatpush1.bf16.msra.mxu0 %v750
        %853 = vmatprep.subr.bf16.mxu0 %v755
        %854 = vmatpush1.bf16.msra.mxu0 %v754
        %855 = vmatprep.subr.bf16.mxu0 %v759
        %856 = vmatpush1.bf16.msra.mxu0 %v758
        %857 = vmatprep.subr.bf16.mxu0 %v763
        %858 = vmatpush1.bf16.msra.mxu0 %v762
        %859 = vmatprep.subr.bf16.mxu0 %v767
        %860 = vmatpush1.bf16.msra.mxu0 %v766
        %861 = vmatprep.subr.bf16.mxu0 %v771
        %862 = vmatpush1.bf16.msra.mxu0 %v770
        %863 = vmatprep.subr.bf16.mxu0 %v775
        %864 = vmatpush1.bf16.msra.mxu0 %v774
        %865 = vmatprep.subr.bf16.mxu0 0
        %866 = vmatpush1.bf16.msra.mxu0 0
        %867 = vmatprep.subr.bf16.mxu0 0
        %868 = vmatpush1.bf16.msra.mxu0 0
        %869 = vmatprep.subr.bf16.mxu0 0
        %870 = vmatpush1.bf16.msra.mxu0 0
        %871 = vmatprep.subr.bf16.mxu0 0
        %872 = vmatpush1.bf16.msra.mxu0 0
        %873 = vmatprep.subr.bf16.mxu0 0
        %874 = vmatpush1.bf16.msra.mxu0 0
        %875 = vmatprep.subr.bf16.mxu0 0
        %876 = vmatpush1.bf16.msra.mxu0 0
        %877 = vmatprep.subr.bf16.mxu0 0
        %878 = vmatpush1.bf16.msra.mxu0 0
        %879 = vmatprep.subr.bf16.mxu0 0
        %880 = vmatpush1.bf16.msra.mxu0 0
        %881 = vmatprep.mubr.bf16.mxu0 0
        %882 = vmatmul.mubr.bf16.gmra.mrb[0].mxu0 %v615
        %v883 = vpop.f32.mrb[0].mxu0
        %v884 = vadd.f32 0.0, %v883
        %v885 = vpop.f32.mrb[0].mxu0
        %v886 = vadd.f32 0.0, %v885
        %v887 = vpop.f32.mrb[0].mxu0
        %v888 = vpop.f32.mrb[0].mxu0
        %889 = vdwg.mxu0
        %v894 = vcombine.low %v843, %v845
        %v895 = vcombine.low %v884, %v886
        %v897 = vunpack.c.l.s4 1983009808
        %v898 = vunpack.c.0.s8 %v897
        %v899 = vlaneseq
        %v900 = vshrl.u32 %v899, 7
        %v901 = vsub.s32 %v898, %v900
        %v902 = vrot.slane %v894, %v901
        %v904 = vunpack.c.l.s4 1983009808
        %v905 = vunpack.c.0.s8 %v904
        %v906 = vlaneseq
        %v907 = vshrl.u32 %v906, 7
        %v908 = vsub.s32 %v905, %v907
        %v909 = vrot.slane %v895, %v908
        %v910 = vcombine.low %v902, %v909
        %v912 = vadd.f32 %v613, %v910
        %v913 = vxor.u32 %v912, 2147483648
        %v914 = vmul.f32 %v913, 1.442695
        %v915 = vpow.pop %v914
        %v916 = vadd.f32 %v915, 1.0
        %v917 = vrcp.pop %v916
        %v918 = vmul.f32 1.0, %v917
        %v920 = vrot.slane %v912, 2
        %v922 = vxor.u32 %v920, 2147483648
        %v923 = vmul.f32 %v922, 1.442695
        %v924 = vpow.pop %v923
        %v925 = vadd.f32 %v924, 1.0
        %v926 = vrcp.pop %v925
        %v927 = vmul.f32 1.0, %v926
        %v928 = vrot.slane %v912, 4
        %v930 = vtanh.pop %v928
        %v931 = vrot.slane %v912, 6
        %v933 = vxor.u32 %v931, 2147483648
        %v934 = vmul.f32 %v933, 1.442695
        %v935 = vpow.pop %v934
        %v936 = vadd.f32 %v935, 1.0
        %v937 = vrcp.pop %v936
        %v938 = vmul.f32 1.0, %v937
        %v939 = vld [vmem:[#allocation3] sm:$0x3]
        %v940 = vmul.f32 %v927, %v939
        %v941 = vmul.f32 %v918, %v930
        %v942 = vadd.f32 %v940, %v941
        %v943 = vtanh.pop %v942
        %v944 = vmul.f32 %v938, %v943
        %945 = vst [vmem:[#allocation2] sm:$0x3] %v944
        %946 = vst [vmem:[#allocation3] sm:$0x3] %v942
        %v947 = vpack.c.bf16 %v944, %v944
        %s948 = scalar_lea.vmem %s244, %s609 [#allocation5]
        %949 = vst [vmem:[%s948] sm:$0x1] %v947
        %s950 = ssub.s32 2, %s17
        %s951 = smul.u32 %s950, 4
        %s952 = scalar_lea.vmem %s222, %s951 [#allocation4]
        %v953 = vld [vmem:[%s952] sm:$0xf]
        %v954 = vunpack.c.l.bf16 %v953
        %v955 = vld [vmem:[#allocation2] sm:$0x3]
        %v956 = vpack.c.bf16 %v955, %v955
        %v957 = vld [vmem:[%s255] sm:$0xff]
        %v958 = vld [vmem:[%s255 + $0x8] sm:$0xff]
        %v959 = vld [vmem:[%s255 + $0x10] sm:$0xff]
        %v960 = vld [vmem:[%s255 + $0x18] sm:$0xff]
        %v961 = vld [vmem:[%s255 + $0x20] sm:$0xff]
        %v962 = vld [vmem:[%s255 + $0x28] sm:$0xff]
        %v963 = vld [vmem:[%s255 + $0x30] sm:$0xff]
        %v964 = vld [vmem:[%s255 + $0x38] sm:$0xff]
        %v965 = vld [vmem:[%s255 + $0x40] sm:$0xff]
        %v966 = vld [vmem:[%s255 + $0x48] sm:$0xff]
        %v967 = vld [vmem:[%s255 + $0x50] sm:$0xff]
        %v968 = vld [vmem:[%s255 + $0x58] sm:$0xff]
        %v969 = vld [vmem:[%s255 + $0x60] sm:$0xff]
        %v970 = vld [vmem:[%s255 + $0x68] sm:$0xff]
        %v971 = vld [vmem:[%s255 + $0x70] sm:$0xff]
        %v972 = vld [vmem:[%s255 + $0x78] sm:$0xff]
        %v973 = vld [vmem:[%s255 + $0x80] sm:$0xff]
        %v974 = vld [vmem:[%s255 + $0x88] sm:$0xff]
        %v975 = vld [vmem:[%s255 + $0x90] sm:$0xff]
        %v976 = vld [vmem:[%s255 + $0x98] sm:$0xff]
        %v977 = vld [vmem:[%s255 + $0xa0] sm:$0xff]
        %v978 = vld [vmem:[%s255 + $0xa8] sm:$0xff]
        %v979 = vld [vmem:[%s255 + $0xb0] sm:$0xff]
        %v980 = vld [vmem:[%s255 + $0xb8] sm:$0xff]
        %v981 = vld [vmem:[%s255 + $0xc0] sm:$0xff]
        %v982 = vld [vmem:[%s255 + $0xc8] sm:$0xff]
        %v983 = vld [vmem:[%s255 + $0xd0] sm:$0xff]
        %v984 = vld [vmem:[%s255 + $0xd8] sm:$0xff]
        %v985 = vld [vmem:[%s255 + $0xe0] sm:$0xff]
        %v986 = vld [vmem:[%s255 + $0xe8] sm:$0xff]
        %v987 = vld [vmem:[%s255 + $0xf0] sm:$0xff]
        %v988 = vld [vmem:[%s255 + $0xf8] sm:$0xff]
        %v1021 = vunpack.c.l.b16 %v957
        %v1022 = vunpack.c.h.b16 %v957
        %v1023 = vunpack.c.l.b16 %v958
        %v1024 = vunpack.c.h.b16 %v958
        %v1025 = vunpack.c.l.b16 %v959
        %v1026 = vunpack.c.h.b16 %v959
        %v1027 = vunpack.c.l.b16 %v960
        %v1028 = vunpack.c.h.b16 %v960
        %v1029 = vunpack.c.l.b16 %v961
        %v1030 = vunpack.c.h.b16 %v961
        %v1031 = vunpack.c.l.b16 %v962
        %v1032 = vunpack.c.h.b16 %v962
        %v1033 = vunpack.c.l.b16 %v963
        %v1034 = vunpack.c.h.b16 %v963
        %v1035 = vunpack.c.l.b16 %v964
        %v1036 = vunpack.c.h.b16 %v964
        %v1037 = vunpack.c.l.b16 %v965
        %v1038 = vunpack.c.h.b16 %v965
        %v1039 = vunpack.c.l.b16 %v966
        %v1040 = vunpack.c.h.b16 %v966
        %v1041 = vunpack.c.l.b16 %v967
        %v1042 = vunpack.c.h.b16 %v967
        %v1043 = vunpack.c.l.b16 %v968
        %v1044 = vunpack.c.h.b16 %v968
        %v1045 = vunpack.c.l.b16 %v969
        %v1046 = vunpack.c.h.b16 %v969
        %v1047 = vunpack.c.l.b16 %v970
        %v1048 = vunpack.c.h.b16 %v970
        %v1049 = vunpack.c.l.b16 %v971
        %v1050 = vunpack.c.h.b16 %v971
        %v1051 = vunpack.c.l.b16 %v972
        %v1052 = vunpack.c.h.b16 %v972
        %v1053 = vunpack.c.l.b16 %v973
        %v1054 = vunpack.c.h.b16 %v973
        %v1055 = vunpack.c.l.b16 %v974
        %v1056 = vunpack.c.h.b16 %v974
        %v1057 = vunpack.c.l.b16 %v975
        %v1058 = vunpack.c.h.b16 %v975
        %v1059 = vunpack.c.l.b16 %v976
        %v1060 = vunpack.c.h.b16 %v976
        %v1061 = vunpack.c.l.b16 %v977
        %v1062 = vunpack.c.h.b16 %v977
        %v1063 = vunpack.c.l.b16 %v978
        %v1064 = vunpack.c.h.b16 %v978
        %v1065 = vunpack.c.l.b16 %v979
        %v1066 = vunpack.c.h.b16 %v979
        %v1067 = vunpack.c.l.b16 %v980
        %v1068 = vunpack.c.h.b16 %v980
        %v1069 = vunpack.c.l.b16 %v981
        %v1070 = vunpack.c.h.b16 %v981
        %v1071 = vunpack.c.l.b16 %v982
        %v1072 = vunpack.c.h.b16 %v982
        %v1073 = vunpack.c.l.b16 %v983
        %v1074 = vunpack.c.h.b16 %v983
        %v1075 = vunpack.c.l.b16 %v984
        %v1076 = vunpack.c.h.b16 %v984
        %v1077 = vunpack.c.l.b16 %v985
        %v1078 = vunpack.c.h.b16 %v985
        %v1079 = vunpack.c.l.b16 %v986
        %v1080 = vunpack.c.h.b16 %v986
        %v1081 = vunpack.c.l.b16 %v987
        %v1082 = vunpack.c.h.b16 %v987
        %v1083 = vunpack.c.l.b16 %v988
        %v1084 = vunpack.c.h.b16 %v988
        %v1085 = vpack.c.b16 %v1025, %v1021
        %v1086 = vpack.c.b16 %v1026, %v1022
        %v1087 = vpack.c.b16 %v1027, %v1023
        %v1088 = vpack.c.b16 %v1028, %v1024
        %v1089 = vpack.c.b16 %v1033, %v1029
        %v1090 = vpack.c.b16 %v1034, %v1030
        %v1091 = vpack.c.b16 %v1035, %v1031
        %v1092 = vpack.c.b16 %v1036, %v1032
        %v1093 = vpack.c.b16 %v1041, %v1037
        %v1094 = vpack.c.b16 %v1042, %v1038
        %v1095 = vpack.c.b16 %v1043, %v1039
        %v1096 = vpack.c.b16 %v1044, %v1040
        %v1097 = vpack.c.b16 %v1049, %v1045
        %v1098 = vpack.c.b16 %v1050, %v1046
        %v1099 = vpack.c.b16 %v1051, %v1047
        %v1100 = vpack.c.b16 %v1052, %v1048
        %v1101 = vpack.c.b16 %v1057, %v1053
        %v1102 = vpack.c.b16 %v1058, %v1054
        %v1103 = vpack.c.b16 %v1059, %v1055
        %v1104 = vpack.c.b16 %v1060, %v1056
        %v1105 = vpack.c.b16 %v1065, %v1061
        %v1106 = vpack.c.b16 %v1066, %v1062
        %v1107 = vpack.c.b16 %v1067, %v1063
        %v1108 = vpack.c.b16 %v1068, %v1064
        %v1109 = vpack.c.b16 %v1073, %v1069
        %v1110 = vpack.c.b16 %v1074, %v1070
        %v1111 = vpack.c.b16 %v1075, %v1071
        %v1112 = vpack.c.b16 %v1076, %v1072
        %v1113 = vpack.c.b16 %v1081, %v1077
        %v1114 = vpack.c.b16 %v1082, %v1078
        %v1115 = vpack.c.b16 %v1083, %v1079
        %v1116 = vpack.c.b16 %v1084, %v1080
        %1149 = vmatprep.subr.bf16.mxu0 %v1086
        %1150 = vmatpush1.bf16.msra.mxu0 %v1085
        %1151 = vmatprep.subr.bf16.mxu0 %v1090
        %1152 = vmatpush1.bf16.msra.mxu0 %v1089
        %1153 = vmatprep.subr.bf16.mxu0 %v1094
        %1154 = vmatpush1.bf16.msra.mxu0 %v1093
        %1155 = vmatprep.subr.bf16.mxu0 %v1098
        %1156 = vmatpush1.bf16.msra.mxu0 %v1097
        %1157 = vmatprep.subr.bf16.mxu0 %v1102
        %1158 = vmatpush1.bf16.msra.mxu0 %v1101
        %1159 = vmatprep.subr.bf16.mxu0 %v1106
        %1160 = vmatpush1.bf16.msra.mxu0 %v1105
        %1161 = vmatprep.subr.bf16.mxu0 %v1110
        %1162 = vmatpush1.bf16.msra.mxu0 %v1109
        %1163 = vmatprep.subr.bf16.mxu0 %v1114
        %1164 = vmatpush1.bf16.msra.mxu0 %v1113
        %1165 = vmatprep.subr.bf16.mxu0 0
        %1166 = vmatpush1.bf16.msra.mxu0 0
        %1167 = vmatprep.subr.bf16.mxu0 0
        %1168 = vmatpush1.bf16.msra.mxu0 0
        %1169 = vmatprep.subr.bf16.mxu0 0
        %1170 = vmatpush1.bf16.msra.mxu0 0
        %1171 = vmatprep.subr.bf16.mxu0 0
        %1172 = vmatpush1.bf16.msra.mxu0 0
        %1173 = vmatprep.subr.bf16.mxu0 0
        %1174 = vmatpush1.bf16.msra.mxu0 0
        %1175 = vmatprep.subr.bf16.mxu0 0
        %1176 = vmatpush1.bf16.msra.mxu0 0
        %1177 = vmatprep.subr.bf16.mxu0 0
        %1178 = vmatpush1.bf16.msra.mxu0 0
        %1179 = vmatprep.subr.bf16.mxu0 0
        %1180 = vmatpush1.bf16.msra.mxu0 0
        %1181 = vmatprep.mubr.bf16.mxu0 0
        %1182 = vmatmul.mubr.bf16.gmra.mrb[0].mxu0 %v956
        %v1183 = vpop.f32.mrb[0].mxu0
        %v1184 = vadd.f32 0.0, %v1183
        %v1185 = vpop.f32.mrb[0].mxu0
        %v1186 = vadd.f32 0.0, %v1185
        %v1187 = vpop.f32.mrb[0].mxu0
        %v1188 = vpop.f32.mrb[0].mxu0
        %1189 = vdwg.mxu0
        %1190 = vmatprep.subr.bf16.mxu0 %v1088
        %1191 = vmatpush1.bf16.msra.mxu0 %v1087
        %1192 = vmatprep.subr.bf16.mxu0 %v1092
        %1193 = vmatpush1.bf16.msra.mxu0 %v1091
        %1194 = vmatprep.subr.bf16.mxu0 %v1096
        %1195 = vmatpush1.bf16.msra.mxu0 %v1095
        %1196 = vmatprep.subr.bf16.mxu0 %v1100
        %1197 = vmatpush1.bf16.msra.mxu0 %v1099
        %1198 = vmatprep.subr.bf16.mxu0 %v1104
        %1199 = vmatpush1.bf16.msra.mxu0 %v1103
        %1200 = vmatprep.subr.bf16.mxu0 %v1108
        %1201 = vmatpush1.bf16.msra.mxu0 %v1107
        %1202 = vmatprep.subr.bf16.mxu0 %v1112
        %1203 = vmatpush1.bf16.msra.mxu0 %v1111
        %1204 = vmatprep.subr.bf16.mxu0 %v1116
        %1205 = vmatpush1.bf16.msra.mxu0 %v1115
        %1206 = vmatprep.subr.bf16.mxu0 0
        %1207 = vmatpush1.bf16.msra.mxu0 0
        %1208 = vmatprep.subr.bf16.mxu0 0
        %1209 = vmatpush1.bf16.msra.mxu0 0
        %1210 = vmatprep.subr.bf16.mxu0 0
        %1211 = vmatpush1.bf16.msra.mxu0 0
        %1212 = vmatprep.subr.bf16.mxu0 0
        %1213 = vmatpush1.bf16.msra.mxu0 0
        %1214 = vmatprep.subr.bf16.mxu0 0
        %1215 = vmatpush1.bf16.msra.mxu0 0
        %1216 = vmatprep.subr.bf16.mxu0 0
        %1217 = vmatpush1.bf16.msra.mxu0 0
        %1218 = vmatprep.subr.bf16.mxu0 0
        %1219 = vmatpush1.bf16.msra.mxu0 0
        %1220 = vmatprep.subr.bf16.mxu0 0
        %1221 = vmatpush1.bf16.msra.mxu0 0
        %1222 = vmatprep.mubr.bf16.mxu0 0
        %1223 = vmatmul.mubr.bf16.gmra.mrb[0].mxu0 %v956
        %v1224 = vpop.f32.mrb[0].mxu0
        %v1225 = vadd.f32 0.0, %v1224
        %v1226 = vpop.f32.mrb[0].mxu0
        %v1227 = vadd.f32 0.0, %v1226
        %v1228 = vpop.f32.mrb[0].mxu0
        %v1229 = vpop.f32.mrb[0].mxu0
        %1230 = vdwg.mxu0
        %v1235 = vcombine.low %v1184, %v1186
        %v1236 = vcombine.low %v1225, %v1227
        %v1238 = vunpack.c.l.s4 1983009808
        %v1239 = vunpack.c.0.s8 %v1238
        %v1240 = vlaneseq
        %v1241 = vshrl.u32 %v1240, 7
        %v1242 = vsub.s32 %v1239, %v1241
        %v1243 = vrot.slane %v1235, %v1242
        %v1245 = vunpack.c.l.s4 1983009808
        %v1246 = vunpack.c.0.s8 %v1245
        %v1247 = vlaneseq
        %v1248 = vshrl.u32 %v1247, 7
        %v1249 = vsub.s32 %v1246, %v1248
        %v1250 = vrot.slane %v1236, %v1249
        %v1251 = vcombine.low %v1243, %v1250
        %v1253 = vadd.f32 %v954, %v1251
        %v1254 = vxor.u32 %v1253, 2147483648
        %v1255 = vmul.f32 %v1254, 1.442695
        %v1256 = vpow.pop %v1255
        %v1257 = vadd.f32 %v1256, 1.0
        %v1258 = vrcp.pop %v1257
        %v1259 = vmul.f32 1.0, %v1258
        %v1261 = vrot.slane %v1253, 2
        %v1263 = vxor.u32 %v1261, 2147483648
        %v1264 = vmul.f32 %v1263, 1.442695
        %v1265 = vpow.pop %v1264
        %v1266 = vadd.f32 %v1265, 1.0
        %v1267 = vrcp.pop %v1266
        %v1268 = vmul.f32 1.0, %v1267
        %v1269 = vrot.slane %v1253, 4
        %v1271 = vtanh.pop %v1269
        %v1272 = vrot.slane %v1253, 6
        %v1274 = vxor.u32 %v1272, 2147483648
        %v1275 = vmul.f32 %v1274, 1.442695
        %v1276 = vpow.pop %v1275
        %v1277 = vadd.f32 %v1276, 1.0
        %v1278 = vrcp.pop %v1277
        %v1279 = vmul.f32 1.0, %v1278
        %v1280 = vld [vmem:[#allocation3] sm:$0x3]
        %v1281 = vmul.f32 %v1268, %v1280
        %v1282 = vmul.f32 %v1259, %v1271
        %v1283 = vadd.f32 %v1281, %v1282
        %v1284 = vtanh.pop %v1283
        %v1285 = vmul.f32 %v1279, %v1284
        %1286 = vst [vmem:[#allocation2] sm:$0x3] %v1285
        %1287 = vst [vmem:[#allocation3] sm:$0x3] %v1283
        %v1288 = vpack.c.bf16 %v1285, %v1285
        %s1289 = scalar_lea.vmem %s244, %s950 [#allocation5]
        %1290 = vst [vmem:[%s1289] sm:$0x1] %v1288
        %s1291 = smul.u32 %s17, 4294967293
        %s1292 = sadd.s32 %s1291, 3
        %s1293 = smul.u32 %s1292, 4
        %s1294 = scalar_lea.vmem %s222, %s1293 [#allocation4]
        %v1295 = vld [vmem:[%s1294] sm:$0xf]
        %v1296 = vunpack.c.l.bf16 %v1295
        %v1297 = vld [vmem:[#allocation2] sm:$0x3]
        %v1298 = vpack.c.bf16 %v1297, %v1297
        %v1299 = vld [vmem:[%s255] sm:$0xff]
        %v1300 = vld [vmem:[%s255 + $0x8] sm:$0xff]
        %v1301 = vld [vmem:[%s255 + $0x10] sm:$0xff]
        %v1302 = vld [vmem:[%s255 + $0x18] sm:$0xff]
        %v1303 = vld [vmem:[%s255 + $0x20] sm:$0xff]
        %v1304 = vld [vmem:[%s255 + $0x28] sm:$0xff]
        %v1305 = vld [vmem:[%s255 + $0x30] sm:$0xff]
        %v1306 = vld [vmem:[%s255 + $0x38] sm:$0xff]
        %v1307 = vld [vmem:[%s255 + $0x40] sm:$0xff]
        %v1308 = vld [vmem:[%s255 + $0x48] sm:$0xff]
        %v1309 = vld [vmem:[%s255 + $0x50] sm:$0xff]
        %v1310 = vld [vmem:[%s255 + $0x58] sm:$0xff]
        %v1311 = vld [vmem:[%s255 + $0x60] sm:$0xff]
        %v1312 = vld [vmem:[%s255 + $0x68] sm:$0xff]
        %v1313 = vld [vmem:[%s255 + $0x70] sm:$0xff]
        %v1314 = vld [vmem:[%s255 + $0x78] sm:$0xff]
        %v1315 = vld [vmem:[%s255 + $0x80] sm:$0xff]
        %v1316 = vld [vmem:[%s255 + $0x88] sm:$0xff]
        %v1317 = vld [vmem:[%s255 + $0x90] sm:$0xff]
        %v1318 = vld [vmem:[%s255 + $0x98] sm:$0xff]
        %v1319 = vld [vmem:[%s255 + $0xa0] sm:$0xff]
        %v1320 = vld [vmem:[%s255 + $0xa8] sm:$0xff]
        %v1321 = vld [vmem:[%s255 + $0xb0] sm:$0xff]
        %v1322 = vld [vmem:[%s255 + $0xb8] sm:$0xff]
        %v1323 = vld [vmem:[%s255 + $0xc0] sm:$0xff]
        %v1324 = vld [vmem:[%s255 + $0xc8] sm:$0xff]
        %v1325 = vld [vmem:[%s255 + $0xd0] sm:$0xff]
        %v1326 = vld [vmem:[%s255 + $0xd8] sm:$0xff]
        %v1327 = vld [vmem:[%s255 + $0xe0] sm:$0xff]
        %v1328 = vld [vmem:[%s255 + $0xe8] sm:$0xff]
        %v1329 = vld [vmem:[%s255 + $0xf0] sm:$0xff]
        %v1330 = vld [vmem:[%s255 + $0xf8] sm:$0xff]
        %v1363 = vunpack.c.l.b16 %v1299
        %v1364 = vunpack.c.h.b16 %v1299
        %v1365 = vunpack.c.l.b16 %v1300
        %v1366 = vunpack.c.h.b16 %v1300
        %v1367 = vunpack.c.l.b16 %v1301
        %v1368 = vunpack.c.h.b16 %v1301
        %v1369 = vunpack.c.l.b16 %v1302
        %v1370 = vunpack.c.h.b16 %v1302
        %v1371 = vunpack.c.l.b16 %v1303
        %v1372 = vunpack.c.h.b16 %v1303
        %v1373 = vunpack.c.l.b16 %v1304
        %v1374 = vunpack.c.h.b16 %v1304
        %v1375 = vunpack.c.l.b16 %v1305
        %v1376 = vunpack.c.h.b16 %v1305
        %v1377 = vunpack.c.l.b16 %v1306
        %v1378 = vunpack.c.h.b16 %v1306
        %v1379 = vunpack.c.l.b16 %v1307
        %v1380 = vunpack.c.h.b16 %v1307
        %v1381 = vunpack.c.l.b16 %v1308
        %v1382 = vunpack.c.h.b16 %v1308
        %v1383 = vunpack.c.l.b16 %v1309
        %v1384 = vunpack.c.h.b16 %v1309
        %v1385 = vunpack.c.l.b16 %v1310
        %v1386 = vunpack.c.h.b16 %v1310
        %v1387 = vunpack.c.l.b16 %v1311
        %v1388 = vunpack.c.h.b16 %v1311
        %v1389 = vunpack.c.l.b16 %v1312
        %v1390 = vunpack.c.h.b16 %v1312
        %v1391 = vunpack.c.l.b16 %v1313
        %v1392 = vunpack.c.h.b16 %v1313
        %v1393 = vunpack.c.l.b16 %v1314
        %v1394 = vunpack.c.h.b16 %v1314
        %v1395 = vunpack.c.l.b16 %v1315
        %v1396 = vunpack.c.h.b16 %v1315
        %v1397 = vunpack.c.l.b16 %v1316
        %v1398 = vunpack.c.h.b16 %v1316
        %v1399 = vunpack.c.l.b16 %v1317
        %v1400 = vunpack.c.h.b16 %v1317
        %v1401 = vunpack.c.l.b16 %v1318
        %v1402 = vunpack.c.h.b16 %v1318
        %v1403 = vunpack.c.l.b16 %v1319
        %v1404 = vunpack.c.h.b16 %v1319
        %v1405 = vunpack.c.l.b16 %v1320
        %v1406 = vunpack.c.h.b16 %v1320
        %v1407 = vunpack.c.l.b16 %v1321
        %v1408 = vunpack.c.h.b16 %v1321
        %v1409 = vunpack.c.l.b16 %v1322
        %v1410 = vunpack.c.h.b16 %v1322
        %v1411 = vunpack.c.l.b16 %v1323
        %v1412 = vunpack.c.h.b16 %v1323
        %v1413 = vunpack.c.l.b16 %v1324
        %v1414 = vunpack.c.h.b16 %v1324
        %v1415 = vunpack.c.l.b16 %v1325
        %v1416 = vunpack.c.h.b16 %v1325
        %v1417 = vunpack.c.l.b16 %v1326
        %v1418 = vunpack.c.h.b16 %v1326
        %v1419 = vunpack.c.l.b16 %v1327
        %v1420 = vunpack.c.h.b16 %v1327
        %v1421 = vunpack.c.l.b16 %v1328
        %v1422 = vunpack.c.h.b16 %v1328
        %v1423 = vunpack.c.l.b16 %v1329
        %v1424 = vunpack.c.h.b16 %v1329
        %v1425 = vunpack.c.l.b16 %v1330
        %v1426 = vunpack.c.h.b16 %v1330
        %v1427 = vpack.c.b16 %v1367, %v1363
        %v1428 = vpack.c.b16 %v1368, %v1364
        %v1429 = vpack.c.b16 %v1369, %v1365
        %v1430 = vpack.c.b16 %v1370, %v1366
        %v1431 = vpack.c.b16 %v1375, %v1371
        %v1432 = vpack.c.b16 %v1376, %v1372
        %v1433 = vpack.c.b16 %v1377, %v1373
        %v1434 = vpack.c.b16 %v1378, %v1374
        %v1435 = vpack.c.b16 %v1383, %v1379
        %v1436 = vpack.c.b16 %v1384, %v1380
        %v1437 = vpack.c.b16 %v1385, %v1381
        %v1438 = vpack.c.b16 %v1386, %v1382
        %v1439 = vpack.c.b16 %v1391, %v1387
        %v1440 = vpack.c.b16 %v1392, %v1388
        %v1441 = vpack.c.b16 %v1393, %v1389
        %v1442 = vpack.c.b16 %v1394, %v1390
        %v1443 = vpack.c.b16 %v1399, %v1395
        %v1444 = vpack.c.b16 %v1400, %v1396
        %v1445 = vpack.c.b16 %v1401, %v1397
        %v1446 = vpack.c.b16 %v1402, %v1398
        %v1447 = vpack.c.b16 %v1407, %v1403
        %v1448 = vpack.c.b16 %v1408, %v1404
        %v1449 = vpack.c.b16 %v1409, %v1405
        %v1450 = vpack.c.b16 %v1410, %v1406
        %v1451 = vpack.c.b16 %v1415, %v1411
        %v1452 = vpack.c.b16 %v1416, %v1412
        %v1453 = vpack.c.b16 %v1417, %v1413
        %v1454 = vpack.c.b16 %v1418, %v1414
        %v1455 = vpack.c.b16 %v1423, %v1419
        %v1456 = vpack.c.b16 %v1424, %v1420
        %v1457 = vpack.c.b16 %v1425, %v1421
        %v1458 = vpack.c.b16 %v1426, %v1422
        %1491 = vmatprep.subr.bf16.mxu0 %v1428
        %1492 = vmatpush1.bf16.msra.mxu0 %v1427
        %1493 = vmatprep.subr.bf16.mxu0 %v1432
        %1494 = vmatpush1.bf16.msra.mxu0 %v1431
        %1495 = vmatprep.subr.bf16.mxu0 %v1436
        %1496 = vmatpush1.bf16.msra.mxu0 %v1435
        %1497 = vmatprep.subr.bf16.mxu0 %v1440
        %1498 = vmatpush1.bf16.msra.mxu0 %v1439
        %1499 = vmatprep.subr.bf16.mxu0 %v1444
        %1500 = vmatpush1.bf16.msra.mxu0 %v1443
        %1501 = vmatprep.subr.bf16.mxu0 %v1448
        %1502 = vmatpush1.bf16.msra.mxu0 %v1447
        %1503 = vmatprep.subr.bf16.mxu0 %v1452
        %1504 = vmatpush1.bf16.msra.mxu0 %v1451
        %1505 = vmatprep.subr.bf16.mxu0 %v1456
        %1506 = vmatpush1.bf16.msra.mxu0 %v1455
        %1507 = vmatprep.subr.bf16.mxu0 0
        %1508 = vmatpush1.bf16.msra.mxu0 0
        %1509 = vmatprep.subr.bf16.mxu0 0
        %1510 = vmatpush1.bf16.msra.mxu0 0
        %1511 = vmatprep.subr.bf16.mxu0 0
        %1512 = vmatpush1.bf16.msra.mxu0 0
        %1513 = vmatprep.subr.bf16.mxu0 0
        %1514 = vmatpush1.bf16.msra.mxu0 0
        %1515 = vmatprep.subr.bf16.mxu0 0
        %1516 = vmatpush1.bf16.msra.mxu0 0
        %1517 = vmatprep.subr.bf16.mxu0 0
        %1518 = vmatpush1.bf16.msra.mxu0 0
        %1519 = vmatprep.subr.bf16.mxu0 0
        %1520 = vmatpush1.bf16.msra.mxu0 0
        %1521 = vmatprep.subr.bf16.mxu0 0
        %1522 = vmatpush1.bf16.msra.mxu0 0
        %1523 = vmatprep.mubr.bf16.mxu0 0
        %1524 = vmatmul.mubr.bf16.gmra.mrb[0].mxu0 %v1298
        %v1525 = vpop.f32.mrb[0].mxu0
        %v1526 = vadd.f32 0.0, %v1525
        %v1527 = vpop.f32.mrb[0].mxu0
        %v1528 = vadd.f32 0.0, %v1527
        %v1529 = vpop.f32.mrb[0].mxu0
        %v1530 = vpop.f32.mrb[0].mxu0
        %1531 = vdwg.mxu0
        %1532 = vmatprep.subr.bf16.mxu0 %v1430
        %1533 = vmatpush1.bf16.msra.mxu0 %v1429
        %1534 = vmatprep.subr.bf16.mxu0 %v1434
        %1535 = vmatpush1.bf16.msra.mxu0 %v1433
        %1536 = vmatprep.subr.bf16.mxu0 %v1438
        %1537 = vmatpush1.bf16.msra.mxu0 %v1437
        %1538 = vmatprep.subr.bf16.mxu0 %v1442
        %1539 = vmatpush1.bf16.msra.mxu0 %v1441
        %1540 = vmatprep.subr.bf16.mxu0 %v1446
        %1541 = vmatpush1.bf16.msra.mxu0 %v1445
        %1542 = vmatprep.subr.bf16.mxu0 %v1450
        %1543 = vmatpush1.bf16.msra.mxu0 %v1449
        %1544 = vmatprep.subr.bf16.mxu0 %v1454
        %1545 = vmatpush1.bf16.msra.mxu0 %v1453
        %1546 = vmatprep.subr.bf16.mxu0 %v1458
        %1547 = vmatpush1.bf16.msra.mxu0 %v1457
        %1548 = vmatprep.subr.bf16.mxu0 0
        %1549 = vmatpush1.bf16.msra.mxu0 0
        %1550 = vmatprep.subr.bf16.mxu0 0
        %1551 = vmatpush1.bf16.msra.mxu0 0
        %1552 = vmatprep.subr.bf16.mxu0 0
        %1553 = vmatpush1.bf16.msra.mxu0 0
        %1554 = vmatprep.subr.bf16.mxu0 0
        %1555 = vmatpush1.bf16.msra.mxu0 0
        %1556 = vmatprep.subr.bf16.mxu0 0
        %1557 = vmatpush1.bf16.msra.mxu0 0
        %1558 = vmatprep.subr.bf16.mxu0 0
        %1559 = vmatpush1.bf16.msra.mxu0 0
        %1560 = vmatprep.subr.bf16.mxu0 0
        %1561 = vmatpush1.bf16.msra.mxu0 0
        %1562 = vmatprep.subr.bf16.mxu0 0
        %1563 = vmatpush1.bf16.msra.mxu0 0
        %1564 = vmatprep.mubr.bf16.mxu0 0
        %1565 = vmatmul.mubr.bf16.gmra.mrb[0].mxu0 %v1298
        %v1566 = vpop.f32.mrb[0].mxu0
        %v1567 = vadd.f32 0.0, %v1566
        %v1568 = vpop.f32.mrb[0].mxu0
        %v1569 = vadd.f32 0.0, %v1568
        %v1570 = vpop.f32.mrb[0].mxu0
        %v1571 = vpop.f32.mrb[0].mxu0
        %1572 = vdwg.mxu0
        %v1577 = vcombine.low %v1526, %v1528
        %v1578 = vcombine.low %v1567, %v1569
        %v1580 = vunpack.c.l.s4 1983009808
        %v1581 = vunpack.c.0.s8 %v1580
        %v1582 = vlaneseq
        %v1583 = vshrl.u32 %v1582, 7
        %v1584 = vsub.s32 %v1581, %v1583
        %v1585 = vrot.slane %v1577, %v1584
        %v1587 = vunpack.c.l.s4 1983009808
        %v1588 = vunpack.c.0.s8 %v1587
        %v1589 = vlaneseq
        %v1590 = vshrl.u32 %v1589, 7
        %v1591 = vsub.s32 %v1588, %v1590
        %v1592 = vrot.slane %v1578, %v1591
        %v1593 = vcombine.low %v1585, %v1592
        %v1595 = vadd.f32 %v1296, %v1593
        %v1596 = vxor.u32 %v1595, 2147483648
        %v1597 = vmul.f32 %v1596, 1.442695
        %v1598 = vpow.pop %v1597
        %v1599 = vadd.f32 %v1598, 1.0
        %v1600 = vrcp.pop %v1599
        %v1601 = vmul.f32 1.0, %v1600
        %v1603 = vrot.slane %v1595, 2
        %v1605 = vxor.u32 %v1603, 2147483648
        %v1606 = vmul.f32 %v1605, 1.442695
        %v1607 = vpow.pop %v1606
        %v1608 = vadd.f32 %v1607, 1.0
        %v1609 = vrcp.pop %v1608
        %v1610 = vmul.f32 1.0, %v1609
        %v1611 = vrot.slane %v1595, 4
        %v1613 = vtanh.pop %v1611
        %v1614 = vrot.slane %v1595, 6
        %v1616 = vxor.u32 %v1614, 2147483648
        %v1617 = vmul.f32 %v1616, 1.442695
        %v1618 = vpow.pop %v1617
        %v1619 = vadd.f32 %v1618, 1.0
        %v1620 = vrcp.pop %v1619
        %v1621 = vmul.f32 1.0, %v1620
        %v1622 = vld [vmem:[#allocation3] sm:$0x3]
        %v1623 = vmul.f32 %v1610, %v1622
        %v1624 = vmul.f32 %v1601, %v1613
        %v1625 = vadd.f32 %v1623, %v1624
        %v1626 = vtanh.pop %v1625
        %v1627 = vmul.f32 %v1621, %v1626
        %1628 = vst [vmem:[#allocation2] sm:$0x3] %v1627
        %1629 = vst [vmem:[#allocation3] sm:$0x3] %v1625
        %v1630 = vpack.c.bf16 %v1627, %v1627
        %s1631 = scalar_lea.vmem %s244, %s1292 [#allocation5]
        %1632 = vst [vmem:[%s1631] sm:$0x1] %v1630
        %s1633 = sand.u32 %s105, 1
        %s1634 = sand.u32 %s105, 1
        %s1635 = smul.addr %s1634, 4
        %s1636 = scalar_lea.vmem [#allocation5], %s1635
        // Predicated region
        $region74: #{prose_mt_forward.10} parent=64 // pred_check
          %p1637 = pneg %p115
        $region75: #{prose_mt_forward.10} parent=64 // pred_check_branch
          %1639 = sbr.rel (%p1637) target = $region77
        $region76: #{prose_mt_forward.10} parent=64 // pred_region
          %s1640 = smul.u32 %s18, 2
          %s1641 = ssub.s32 1, %s1640
          %s1642 = smul.u32 %s17, %s1641
          %s1643 = sadd.s32 %s18, %s1642
          %s1644 = smul.u32 4, %s1643
          %s1645 = smul.addr %s1644, 2
          %s1646 = sadd.s32 %s17, %s1645
          %s1647 = scalar_lea.vmem %s2, %s1646
          // Predicated region
          $region78: #{prose_mt_forward.10} parent=76 // pred_check
            _
          $region79: #{prose_mt_forward.10} parent=76 // pred_check_branch
            %1649 = sbr.rel (0) target = $region81
          $region80: #{prose_mt_forward.10} parent=76 // pred_region
            // Predicated region
            $region82: #{prose_mt_forward.10} parent=80 // pred_check
              _
            $region83: #{prose_mt_forward.10} parent=80 // pred_check_branch
              %1651 = sbr.rel target = $region85
            $region84: #{prose_mt_forward.10} parent=80 // pred_region
              // Predicated region
              $region97: #{prose_mt_forward.10} parent=84 // pred_check
                _
              $region98: #{prose_mt_forward.10} parent=84 // pred_check_branch
                %1672 = sbr.rel (0) target = $region100
              $region99: #{prose_mt_forward.10} parent=84 // pred_region
                loop: start=0, step=1, limit=1
                $region101: #{prose_mt_forward.10} parent=99 // loop_pre_header
                  _
                $region102: #{prose_mt_forward.10} parent=99 // loop_header
                  %s1675 = sphi 0, %s1679
                  %p1676 = scmp.ge.s32.totalorder %s1675, 1
                  %s1680 = sphi %s1636, %s1636
                  %s1681 = sphi %s1647, %s1647
                $region103: #{prose_mt_forward.10} parent=99 // loop_header_branch
                  %1678 = sbr.rel (%p1676) target = $region107
                $region104: #{prose_mt_forward.10} parent=99 // loop_body
                  %v1682 = vld [vmem:[%s1680] sm:$0x1]
                  %1683 = vst [vmem:[%s1681] sm:$0x1] %v1682
                  %v1684 = vld [vmem:[%s1680 + $0x1] sm:$0x1]
                  %1685 = vst [vmem:[%s1681 + $0x2] sm:$0x1] %v1684
                  %v1686 = vld [vmem:[%s1680 + $0x2] sm:$0x1]
                  %1687 = vst [vmem:[%s1681 + $0x4] sm:$0x1] %v1686
                  %v1688 = vld [vmem:[%s1680 + $0x3] sm:$0x1]
                  %1689 = vst [vmem:[%s1681 + $0x6] sm:$0x1] %v1688
                $region105: #{prose_mt_forward.10} parent=99 // loop_footer
                  %s1679 = sadd.s32 1, %s1675
                $region106: #{prose_mt_forward.10} parent=99 // loop_footer_branch
                  %1674 = sbr.rel target = $region102
                $region107: #{prose_mt_forward.10} parent=99 // loop_exit
                  _
              $region100: #{prose_mt_forward.10} parent=84 // pred_fallthru
                _
            $region85: #{prose_mt_forward.10} parent=80 // pred_fallthru
              _
            // Predicated region
            $region86: #{prose_mt_forward.10} parent=80 // pred_check
              _
            $region87: #{prose_mt_forward.10} parent=80 // pred_check_branch
              %1653 = sbr.rel (0) target = $region89
            $region88: #{prose_mt_forward.10} parent=80 // pred_region
              loop: start=0, step=1, limit=1
              $region90: #{prose_mt_forward.10} parent=88 // loop_pre_header
                _
              $region91: #{prose_mt_forward.10} parent=88 // loop_header
                %s1656 = sphi 0, %s1660
                %p1657 = scmp.ge.s32.totalorder %s1656, 1
                %s1661 = sphi %s1636, %s1636
                %s1662 = sphi %s1647, %s1647
              $region92: #{prose_mt_forward.10} parent=88 // loop_header_branch
                %1659 = sbr.rel (%p1657) target = $region96
              $region93: #{prose_mt_forward.10} parent=88 // loop_body
                %v1663 = vld [vmem:[%s1661] sm:$0x1]
                %1664 = vst [vmem:[%s1662] sm:$0x1] %v1663
                %v1665 = vld [vmem:[%s1661 + $0x1] sm:$0x1]
                %1666 = vst [vmem:[%s1662 + $0x2] sm:$0x1] %v1665
                %v1667 = vld [vmem:[%s1661 + $0x2] sm:$0x1]
                %1668 = vst [vmem:[%s1662 + $0x4] sm:$0x1] %v1667
                %v1669 = vld [vmem:[%s1661 + $0x3] sm:$0x1]
                %1670 = vst [vmem:[%s1662 + $0x6] sm:$0x1] %v1669
              $region94: #{prose_mt_forward.10} parent=88 // loop_footer
                %s1660 = sadd.s32 1, %s1656
              $region95: #{prose_mt_forward.10} parent=88 // loop_footer_branch
                %1655 = sbr.rel target = $region91
              $region96: #{prose_mt_forward.10} parent=88 // loop_exit
                _
            $region89: #{prose_mt_forward.10} parent=80 // pred_fallthru
              _
          $region81: #{prose_mt_forward.10} parent=76 // pred_fallthru
            _
          %1690 = vnop
        $region77: #{prose_mt_forward.10} parent=64 // pred_fallthru
          _
      $region65: #{prose_mt_forward.10} parent=5 // pred_fallthru
        _
      %p1691 = scmp.le.s32.totalorder 2, %s8
      // Predicated region
      $region108: #{prose_mt_forward.10} parent=5 // pred_check
        %p1692 = pneg %p1691
      $region109: #{prose_mt_forward.10} parent=5 // pred_check_branch
        %1694 = sbr.rel (%p1692) target = $region111
      $region110: #{prose_mt_forward.10} parent=5 // pred_region
        %s1695 = ssub.s32 %s8, 2
        // Predicated region
        $region112: #{prose_mt_forward.10} parent=110 // pred_check
          %p1696 = pneg %p121
        $region113: #{prose_mt_forward.10} parent=110 // pred_check_branch
          %1698 = sbr.rel (%p1696) target = $region115
        $region114: #{prose_mt_forward.10} parent=110 // pred_region
          %s1699 = sand.u32 %s106, 1
          %s1700 = sand.u32 %s106, 1
          %s1701 = smul.addr %s1700, 4
          %s1702 = scalar_lea.vmem [#allocation5], %s1701
        $region115: #{prose_mt_forward.10} parent=110 // pred_fallthru
          _
      $region111: #{prose_mt_forward.10} parent=5 // pred_fallthru
        _
    $region6: #{prose_mt_forward.10} parent=1 // loop_footer
      %s12 = sadd.s32 1, %s8
    $region7: #{prose_mt_forward.10} parent=1 // loop_footer_branch
      %7 = sbr.rel target = $region3
    $region8: #{prose_mt_forward.10} parent=1 // loop_exit
      _

// kernel: prose_mt_forward.8
$region0: #{prose_mt_forward.8}
  #allocation0 [shape = 'u32[]', space=smem, size = 0x4, offset = 0x4, fixed_abs, tag = 'smem constant byte address 0x4 - core index']
  #allocation1 [shape = 'u32[144,128]{1,0:T(1,128)}', space=vmem, size = 0x12000, scoped, tag = 'internal scratch']
  #allocation2 [shape = 'f32[2,128]{1,0:T(2,128)}', space=vmem, size = 0x400, scoped, tag = 'scratch operand']
  #allocation3 [shape = 'f32[2,128]{1,0:T(2,128)}', space=vmem, size = 0x400, scoped, tag = 'scratch operand']
  %s0 = inlined_call_operand.vmem [shape: bf16[8,2,1024], index: 0, kind: input, shape index: {}]
  %s1 = inlined_call_operand.hbm [shape: bf16[2,128,512], index: 1, kind: input, shape index: {}]
  %s2 = inlined_call_operand.vmem [shape: bf16[8,2,256], index: 2, kind: output, shape index: {}]
  %s3 = sld [smem:[#allocation0]]
  $region120: #{prose_mt_forward.8} parent=0
    _
  %s5 = ssub.s32 1, %s3
  %s6 = scalar_select 0, %s5, %s3
  $region1: #{prose_mt_forward.8} parent=0
    #allocation4 [shape = 'u8[16384]{0}', space=vmem, size = 0x4000, scoped, tag = 'input window, operand 0']
    #allocation5 [shape = 'u8[262144]{0}', space=vmem, size = 0x40000, scoped, tag = 'input window, operand 1']
    #allocation6 [shape = 's32[2]{0}', space=sflag, size = 0x8, scoped, tag = 'scoped memory for prose_mt_forward.8']
    #allocation7 [shape = 'u8[4096]{0}', space=vmem, size = 0x1000, scoped, tag = 'output window, operand 0']
    %7 = vsyncpa [#allocation6], 0
    %s8 = scalar_lea.sflag [#allocation6], 1
    %9 = vsyncpa %s8, 0
    loop: start=0, step=1, limit=6
    $region2: #{prose_mt_forward.8} parent=1 // loop_pre_header
      _
    $region3: #{prose_mt_forward.8} parent=1 // loop_header
      %s11 = sphi 0, %s15
      %p12 = scmp.ge.s32.totalorder %s11, 6
      %s18 = sphi 0, %s30
      %s19 = sphi 0, %s26
      %s20 = sphi 0, %s18
      %s21 = sphi 0, %s19
      %s22 = sphi 0, %s20
      %s23 = sphi 0, %s21
      %s43 = sphi 0, %s45
      %s46 = sphi 0, %s43
      %s47 = sphi 0, %s46
      %s63 = sphi 0, %s47
      %s69 = sphi 0, %s71
      %s72 = sphi 0, %s69
      %s73 = sphi 0, %s72
      %s89 = sphi 0, %s73
      %s105 = sphi 0, %s107
      %s108 = sphi 0, %s105
      %s109 = sphi 0, %s108
      %s125 = sphi 0, %s109
    $region4: #{prose_mt_forward.8} parent=1 // loop_header_branch
      %14 = sbr.rel (%p12) target = $region8
    $region5: #{prose_mt_forward.8} parent=1 // loop_body
      %s16 = ssub.s32 %s11, 1
      %s17 = ssub.s32 %s11, 2
      %s24 = sadd.s32 1, %s19
      %p25 = scmp.ge.s32.totalorder %s24, 2
      %s26 = scalar_select %p25, 0, %s24
      %s27 = sadd.s32 1, %s18
      %s28 = scalar_select %p25, %s27, %s18
      %p29 = scmp.ge.s32.totalorder %s28, 2
      %s30 = scalar_select %p29, 0, %s28
      %s31 = smul.u32 %s19, 2
      %s32 = ssub.s32 1, %s31
      %s33 = smul.u32 %s18, %s32
      %s34 = sadd.s32 %s19, %s33
      %s35 = smul.u32 %s26, 2
      %s36 = ssub.s32 1, %s35
      %s37 = smul.u32 %s30, %s36
      %s38 = sadd.s32 %s26, %s37
      %s39 = ssub.s32 %s34, %s38
      %s40 = ssub.s32 %s18, %s30
      %s41 = sor.u32 %s39, %s40
      %p42 = scmp.eq.s32.totalorder %s41, 0
      %s44 = sadd.s32 %s43, 1
      %s45 = scalar_select %p42, %s43, %s44
      %p48 = pneg %p42
      %p49 = scmp.eq.s32.totalorder %s11, 3
      %p50 = por %p48, %p49
      %p51 = scmp.ne.s32.totalorder %s43, %s46
      %p52 = scmp.eq.s32.totalorder %s11, 0
      %p53 = por %p51, %p52
      %p54 = scmp.ne.s32.totalorder %s43, %s46
      %p55 = scmp.eq.s32.totalorder %s16, 3
      %p56 = por %p54, %p55
      %p57 = scmp.ne.s32.totalorder %s46, %s47
      %p58 = scmp.eq.s32.totalorder %s16, 0
      %p59 = por %p57, %p58
      %p60 = scmp.ne.s32.totalorder %s46, %s47
      %p61 = scmp.eq.s32.totalorder %s17, 3
      %p62 = por %p60, %p61
      %p64 = scmp.ne.s32.totalorder %s47, %s63
      %p65 = scmp.eq.s32.totalorder %s17, 0
      %p66 = por %p64, %p65
      %s67 = ssub.s32 %s18, %s30
      %p68 = scmp.eq.s32.totalorder %s67, 0
      %s70 = sadd.s32 %s69, 1
      %s71 = scalar_select %p68, %s69, %s70
      %p74 = pneg %p68
      %p75 = scmp.eq.s32.totalorder %s11, 3
      %p76 = por %p74, %p75
      %p77 = scmp.ne.s32.totalorder %s69, %s72
      %p78 = scmp.eq.s32.totalorder %s11, 0
      %p79 = por %p77, %p78
      %p80 = scmp.ne.s32.totalorder %s69, %s72
      %p81 = scmp.eq.s32.totalorder %s16, 3
      %p82 = por %p80, %p81
      %p83 = scmp.ne.s32.totalorder %s72, %s73
      %p84 = scmp.eq.s32.totalorder %s16, 0
      %p85 = por %p83, %p84
      %p86 = scmp.ne.s32.totalorder %s72, %s73
      %p87 = scmp.eq.s32.totalorder %s17, 3
      %p88 = por %p86, %p87
      %p90 = scmp.ne.s32.totalorder %s73, %s89
      %p91 = scmp.eq.s32.totalorder %s17, 0
      %p92 = por %p90, %p91
      %s93 = smul.u32 %s19, 2
      %s94 = ssub.s32 1, %s93
      %s95 = smul.u32 %s18, %s94
      %s96 = sadd.s32 %s19, %s95
      %s97 = smul.u32 %s26, 2
      %s98 = ssub.s32 1, %s97
      %s99 = smul.u32 %s30, %s98
      %s100 = sadd.s32 %s26, %s99
      %s101 = ssub.s32 %s96, %s100
      %s102 = ssub.s32 %s18, %s30
      %s103 = sor.u32 %s101, %s102
      %p104 = scmp.eq.s32.totalorder %s103, 0
      %s106 = sadd.s32 %s105, 1
      %s107 = scalar_select %p104, %s105, %s106
      %p110 = pneg %p104
      %p111 = scmp.eq.s32.totalorder %s11, 3
      %p112 = por %p110, %p111
      %p113 = scmp.ne.s32.totalorder %s105, %s108
      %p114 = scmp.eq.s32.totalorder %s11, 0
      %p115 = por %p113, %p114
      %p116 = scmp.ne.s32.totalorder %s105, %s108
      %p117 = scmp.eq.s32.totalorder %s16, 3
      %p118 = por %p116, %p117
      %p119 = scmp.ne.s32.totalorder %s108, %s109
      %p120 = scmp.eq.s32.totalorder %s16, 0
      %p121 = por %p119, %p120
      %p122 = scmp.ne.s32.totalorder %s108, %s109
      %p123 = scmp.eq.s32.totalorder %s17, 3
      %p124 = por %p122, %p123
      %p126 = scmp.ne.s32.totalorder %s109, %s125
      %p127 = scmp.eq.s32.totalorder %s17, 0
      %p128 = por %p126, %p127
      %p129 = scmp.le.s32.totalorder 1, %s11
      %p130 = scmp.lt.s32.totalorder %s11, 5
      %p131 = pnand %p129, %p130
      %p132 = pneg %p131
      // Predicated region
      $region9: #{prose_mt_forward.8} parent=5 // pred_check
        _
      $region10: #{prose_mt_forward.8} parent=5 // pred_check_branch
        %134 = sbr.rel (%p131) target = $region12
      $region11: #{prose_mt_forward.8} parent=5 // pred_region
        %s135 = ssub.s32 %s11, 1
      $region12: #{prose_mt_forward.8} parent=5 // pred_fallthru
        _
      %p136 = scmp.lt.s32.totalorder %s11, 4
      // Predicated region
      $region13: #{prose_mt_forward.8} parent=5 // pred_check
        %p137 = pneg %p136
      $region14: #{prose_mt_forward.8} parent=5 // pred_check_branch
        %139 = sbr.rel (%p137) target = $region16
      $region15: #{prose_mt_forward.8} parent=5 // pred_region
        // Predicated region
        $region17: #{prose_mt_forward.8} parent=15 // pred_check
          %p140 = pneg %p53
        $region18: #{prose_mt_forward.8} parent=15 // pred_check_branch
          %142 = sbr.rel (%p140) target = $region20
        $region19: #{prose_mt_forward.8} parent=15 // pred_region
          %s143 = sand.u32 %s43, 1
          %s144 = sand.u32 %s43, 1
          %s145 = smul.addr %s144, 16
          %s146 = scalar_lea.vmem [#allocation4], %s145
          %s147 = smul.u32 %s19, 2
          %s148 = ssub.s32 1, %s147
          %s149 = smul.u32 %s18, %s148
          %s150 = sadd.s32 %s19, %s149
          %s151 = smul.u32 4, %s150
          %s152 = smul.u32 4, %s18
          %s153 = smul.addr %s151, 8
          %s154 = sadd.s32 %s152, %s153
          %s155 = scalar_lea.vmem %s0, %s154
          // Predicated region
          $region21: #{prose_mt_forward.8} parent=19 // pred_check
            _
          $region22: #{prose_mt_forward.8} parent=19 // pred_check_branch
            %157 = sbr.rel (0) target = $region24
          $region23: #{prose_mt_forward.8} parent=19 // pred_region
            // Predicated region
            $region25: #{prose_mt_forward.8} parent=23 // pred_check
              _
            $region26: #{prose_mt_forward.8} parent=23 // pred_check_branch
              %159 = sbr.rel target = $region28
            $region27: #{prose_mt_forward.8} parent=23 // pred_region
              // Predicated region
              $region40: #{prose_mt_forward.8} parent=27 // pred_check
                _
              $region41: #{prose_mt_forward.8} parent=27 // pred_check_branch
                %180 = sbr.rel (0) target = $region43
              $region42: #{prose_mt_forward.8} parent=27 // pred_region
                loop: start=0, step=1, limit=1
                $region44: #{prose_mt_forward.8} parent=42 // loop_pre_header
                  _
                $region45: #{prose_mt_forward.8} parent=42 // loop_header
                  %s182 = sphi 0, %s186
                  %p183 = scmp.ge.s32.totalorder %s182, 1
                  %s187 = sphi %s155, %s155
                  %s188 = sphi %s146, %s146
                $region46: #{prose_mt_forward.8} parent=42 // loop_header_branch
                  %185 = sbr.rel (%p183) target = $region50
                $region47: #{prose_mt_forward.8} parent=42 // loop_body
                  _
                $region48: #{prose_mt_forward.8} parent=42 // loop_footer
                  %s186 = sadd.s32 1, %s182
                $region49: #{prose_mt_forward.8} parent=42 // loop_footer_branch
                  %181 = sbr.rel target = $region45
                $region50: #{prose_mt_forward.8} parent=42 // loop_exit
                  _
                loop: start=0, step=1, limit=1
                $region51: #{prose_mt_forward.8} parent=42 // loop_pre_header
                  _
                $region52: #{prose_mt_forward.8} parent=42 // loop_header
                  %s191 = sphi 0, %s195
                  %p192 = scmp.ge.s32.totalorder %s191, 1
                  %s196 = sphi %s155, %s155
                  %s197 = sphi %s146, %s146
                $region53: #{prose_mt_forward.8} parent=42 // loop_header_branch
                  %194 = sbr.rel (%p192) target = $region57
                $region54: #{prose_mt_forward.8} parent=42 // loop_body
                  %v198 = vld [vmem:[%s196] sm:$0xf]
                  %199 = vst [vmem:[%s197] sm:$0xf] %v198
                  %v200 = vld [vmem:[%s196 + $0x8] sm:$0xf]
                  %201 = vst [vmem:[%s197 + $0x4] sm:$0xf] %v200
                  %v202 = vld [vmem:[%s196 + $0x10] sm:$0xf]
                  %203 = vst [vmem:[%s197 + $0x8] sm:$0xf] %v202
                  %v204 = vld [vmem:[%s196 + $0x18] sm:$0xf]
                  %205 = vst [vmem:[%s197 + $0xc] sm:$0xf] %v204
                $region55: #{prose_mt_forward.8} parent=42 // loop_footer
                  %s195 = sadd.s32 1, %s191
                $region56: #{prose_mt_forward.8} parent=42 // loop_footer_branch
                  %190 = sbr.rel target = $region52
                $region57: #{prose_mt_forward.8} parent=42 // loop_exit
                  _
              $region43: #{prose_mt_forward.8} parent=27 // pred_fallthru
                _
            $region28: #{prose_mt_forward.8} parent=23 // pred_fallthru
              _
            // Predicated region
            $region29: #{prose_mt_forward.8} parent=23 // pred_check
              _
            $region30: #{prose_mt_forward.8} parent=23 // pred_check_branch
              %161 = sbr.rel (0) target = $region32
            $region31: #{prose_mt_forward.8} parent=23 // pred_region
              loop: start=0, step=1, limit=1
              $region33: #{prose_mt_forward.8} parent=31 // loop_pre_header
                _
              $region34: #{prose_mt_forward.8} parent=31 // loop_header
                %s164 = sphi 0, %s168
                %p165 = scmp.ge.s32.totalorder %s164, 1
                %s169 = sphi %s155, %s155
                %s170 = sphi %s146, %s146
              $region35: #{prose_mt_forward.8} parent=31 // loop_header_branch
                %167 = sbr.rel (%p165) target = $region39
              $region36: #{prose_mt_forward.8} parent=31 // loop_body
                %v171 = vld [vmem:[%s169] sm:$0xf]
                %172 = vst [vmem:[%s170] sm:$0xf] %v171
                %v173 = vld [vmem:[%s169 + $0x8] sm:$0xf]
                %174 = vst [vmem:[%s170 + $0x4] sm:$0xf] %v173
                %v175 = vld [vmem:[%s169 + $0x10] sm:$0xf]
                %176 = vst [vmem:[%s170 + $0x8] sm:$0xf] %v175
                %v177 = vld [vmem:[%s169 + $0x18] sm:$0xf]
                %178 = vst [vmem:[%s170 + $0xc] sm:$0xf] %v177
              $region37: #{prose_mt_forward.8} parent=31 // loop_footer
                %s168 = sadd.s32 1, %s164
              $region38: #{prose_mt_forward.8} parent=31 // loop_footer_branch
                %163 = sbr.rel target = $region34
              $region39: #{prose_mt_forward.8} parent=31 // loop_exit
                _
            $region32: #{prose_mt_forward.8} parent=23 // pred_fallthru
              _
          $region24: #{prose_mt_forward.8} parent=19 // pred_fallthru
            _
          %206 = vnop
        $region20: #{prose_mt_forward.8} parent=15 // pred_fallthru
          _
        // Predicated region
        $region58: #{prose_mt_forward.8} parent=15 // pred_check
          %p207 = pneg %p79
        $region59: #{prose_mt_forward.8} parent=15 // pred_check_branch
          %209 = sbr.rel (%p207) target = $region61
        $region60: #{prose_mt_forward.8} parent=15 // pred_region
          %s210 = sand.u32 %s69, 1
          %s211 = scalar_lea.sflag [#allocation6], %s210
          %s212 = sand.u32 %s69, 1
          %s213 = smul.addr %s212, 256
          %s214 = scalar_lea.vmem [#allocation5], %s213
          %s216 = ssub.s32 4096, 4096
          %217 = vsyncadd %s211, %s216
          %s218 = smul.addr %s18, 64
          %s219 = smul.addr %s218, 64
          %s220 = scalar_lea.hbm %s1, %s219
          %s221 = sshll.u32 %s214, 4
          %s222 = int_to_ptr.vmem [resolvable:$true] %s221
          %227 = dma.hbm_to_vmem [thread:$0]  %s220, 4096, %s222, %s211, 256, 256, 16
        $region61: #{prose_mt_forward.8} parent=15 // pred_fallthru
          _
      $region16: #{prose_mt_forward.8} parent=5 // pred_fallthru
        _
      %p228 = scmp.le.s32.totalorder 1, %s11
      %p229 = scmp.lt.s32.totalorder %s11, 5
      %p230 = pnand %p228, %p229
      %p231 = pneg %p230
      // Predicated region
      $region62: #{prose_mt_forward.8} parent=5 // pred_check
        _
      $region63: #{prose_mt_forward.8} parent=5 // pred_check_branch
        %233 = sbr.rel (%p230) target = $region65
      $region64: #{prose_mt_forward.8} parent=5 // pred_region
        %s234 = ssub.s32 %s11, 1
        %s235 = sand.u32 %s46, 1
        %s236 = sand.u32 %s46, 1
        %s237 = smul.addr %s236, 16
        %s238 = scalar_lea.vmem [#allocation4], %s237
        // Predicated region
        $region66: #{prose_mt_forward.8} parent=64 // pred_check
          %p239 = pneg %p59
        $region67: #{prose_mt_forward.8} parent=64 // pred_check_branch
          %241 = sbr.rel (%p239) target = $region69
        $region68: #{prose_mt_forward.8} parent=64 // pred_region
          _
        $region69: #{prose_mt_forward.8} parent=64 // pred_fallthru
          _
        %s242 = sand.u32 %s72, 1
        %s243 = scalar_lea.sflag [#allocation6], %s242
        %s244 = sand.u32 %s72, 1
        %s245 = smul.addr %s244, 256
        %s246 = scalar_lea.vmem [#allocation5], %s245
        // Predicated region
        $region70: #{prose_mt_forward.8} parent=64 // pred_check
          %p247 = pneg %p85
        $region71: #{prose_mt_forward.8} parent=64 // pred_check_branch
          %249 = sbr.rel (%p247) target = $region73
        $region72: #{prose_mt_forward.8} parent=64 // pred_region
          %250 = dma.done %s243, 4096
        $region73: #{prose_mt_forward.8} parent=64 // pred_fallthru
          _
        %s251 = sand.u32 %s46, 1
        %s252 = sand.u32 %s46, 1
        %s253 = smul.addr %s252, 16
        %s254 = scalar_lea.vmem [#allocation4], %s253
        %p255 = pneg %p59
        %p256 = pneg %p56
        %s257 = sand.u32 %s72, 1
        %s258 = scalar_lea.sflag [#allocation6], %s257
        %s259 = sand.u32 %s72, 1
        %s260 = smul.addr %s259, 256
        %s261 = scalar_lea.vmem [#allocation5], %s260
        %p262 = pneg %p85
        %p263 = pneg %p82
        %p264 = pneg %p121
        %p265 = pneg %p118
        %s266 = sand.u32 %s108, 1
        %s267 = sand.u32 %s108, 1
        %s268 = smul.addr %s267, 4
        %s269 = scalar_lea.vmem [#allocation7], %s268
        %s270 = smul.u32 %s21, 2
        %s271 = ssub.s32 1, %s270
        %s272 = smul.u32 %s20, %s271
        %s273 = sadd.s32 %s21, %s272
        %s274 = smul.u32 4, %s273
        %s275 = smul.u32 4, %s20
        %s276 = smul.u32 %s21, 2
        %s277 = ssub.s32 1, %s276
        %s278 = smul.u32 %s20, %s277
        %s279 = sadd.s32 %s21, %s278
        %s280 = smul.u32 4, %s279
        %p282 = scmp.eq.s32.totalorder %s21, 0
        // Predicated region
        $region74: #{prose_mt_forward.8} parent=64 // pred_check
          %p283 = pneg %p282
        $region75: #{prose_mt_forward.8} parent=64 // pred_check_branch
          %285 = sbr.rel (%p283) target = $region77
        $region76: #{prose_mt_forward.8} parent=64 // pred_region
          %286 = vst [vmem:[#allocation2] sm:$0x3] 0.0
          %287 = vst [vmem:[#allocation3] sm:$0x3] 0.0
        $region77: #{prose_mt_forward.8} parent=64 // pred_fallthru
          _
        %s288 = smul.u32 %s20, 3
        %s289 = smul.u32 %s288, 4
        %s290 = scalar_lea.vmem %s238, %s289 [#allocation4]
        %v291 = vld [vmem:[%s290] sm:$0xf]
        %v292 = vunpack.c.l.bf16 %v291
        %v293 = vld [vmem:[#allocation2] sm:$0x3]
        %v294 = vpack.c.bf16 %v293, %v293
        %v295 = vld [vmem:[%s246] sm:$0xff]
        %v296 = vld [vmem:[%s246 + $0x8] sm:$0xff]
        %v297 = vld [vmem:[%s246 + $0x10] sm:$0xff]
        %v298 = vld [vmem:[%s246 + $0x18] sm:$0xff]
        %v299 = vld [vmem:[%s246 + $0x20] sm:$0xff]
        %v300 = vld [vmem:[%s246 + $0x28] sm:$0xff]
        %v301 = vld [vmem:[%s246 + $0x30] sm:$0xff]
        %v302 = vld [vmem:[%s246 + $0x38] sm:$0xff]
        %v303 = vld [vmem:[%s246 + $0x40] sm:$0xff]
        %v304 = vld [vmem:[%s246 + $0x48] sm:$0xff]
        %v305 = vld [vmem:[%s246 + $0x50] sm:$0xff]
        %v306 = vld [vmem:[%s246 + $0x58] sm:$0xff]
        %v307 = vld [vmem:[%s246 + $0x60] sm:$0xff]
        %v308 = vld [vmem:[%s246 + $0x68] sm:$0xff]
        %v309 = vld [vmem:[%s246 + $0x70] sm:$0xff]
        %v310 = vld [vmem:[%s246 + $0x78] sm:$0xff]
        %v311 = vld [vmem:[%s246 + $0x80] sm:$0xff]
        %v312 = vld [vmem:[%s246 + $0x88] sm:$0xff]
        %v313 = vld [vmem:[%s246 + $0x90] sm:$0xff]
        %v314 = vld [vmem:[%s246 + $0x98] sm:$0xff]
        %v315 = vld [vmem:[%s246 + $0xa0] sm:$0xff]
        %v316 = vld [vmem:[%s246 + $0xa8] sm:$0xff]
        %v317 = vld [vmem:[%s246 + $0xb0] sm:$0xff]
        %v318 = vld [vmem:[%s246 + $0xb8] sm:$0xff]
        %v319 = vld [vmem:[%s246 + $0xc0] sm:$0xff]
        %v320 = vld [vmem:[%s246 + $0xc8] sm:$0xff]
        %v321 = vld [vmem:[%s246 + $0xd0] sm:$0xff]
        %v322 = vld [vmem:[%s246 + $0xd8] sm:$0xff]
        %v323 = vld [vmem:[%s246 + $0xe0] sm:$0xff]
        %v324 = vld [vmem:[%s246 + $0xe8] sm:$0xff]
        %v325 = vld [vmem:[%s246 + $0xf0] sm:$0xff]
        %v326 = vld [vmem:[%s246 + $0xf8] sm:$0xff]
        %v359 = vunpack.c.l.b16 %v295
        %v360 = vunpack.c.h.b16 %v295
        %v361 = vunpack.c.l.b16 %v296
        %v362 = vunpack.c.h.b16 %v296
        %v363 = vunpack.c.l.b16 %v297
        %v364 = vunpack.c.h.b16 %v297
        %v365 = vunpack.c.l.b16 %v298
        %v366 = vunpack.c.h.b16 %v298
        %v367 = vunpack.c.l.b16 %v299
        %v368 = vunpack.c.h.b16 %v299
        %v369 = vunpack.c.l.b16 %v300
        %v370 = vunpack.c.h.b16 %v300
        %v371 = vunpack.c.l.b16 %v301
        %v372 = vunpack.c.h.b16 %v301
        %v373 = vunpack.c.l.b16 %v302
        %v374 = vunpack.c.h.b16 %v302
        %v375 = vunpack.c.l.b16 %v303
        %v376 = vunpack.c.h.b16 %v303
        %v377 = vunpack.c.l.b16 %v304
        %v378 = vunpack.c.h.b16 %v304
        %v379 = vunpack.c.l.b16 %v305
        %v380 = vunpack.c.h.b16 %v305
        %v381 = vunpack.c.l.b16 %v306
        %v382 = vunpack.c.h.b16 %v306
        %v383 = vunpack.c.l.b16 %v307
        %v384 = vunpack.c.h.b16 %v307
        %v385 = vunpack.c.l.b16 %v308
        %v386 = vunpack.c.h.b16 %v308
        %v387 = vunpack.c.l.b16 %v309
        %v388 = vunpack.c.h.b16 %v309
        %v389 = vunpack.c.l.b16 %v310
        %v390 = vunpack.c.h.b16 %v310
        %v391 = vunpack.c.l.b16 %v311
        %v392 = vunpack.c.h.b16 %v311
        %v393 = vunpack.c.l.b16 %v312
        %v394 = vunpack.c.h.b16 %v312
        %v395 = vunpack.c.l.b16 %v313
        %v396 = vunpack.c.h.b16 %v313
        %v397 = vunpack.c.l.b16 %v314
        %v398 = vunpack.c.h.b16 %v314
        %v399 = vunpack.c.l.b16 %v315
        %v400 = vunpack.c.h.b16 %v315
        %v401 = vunpack.c.l.b16 %v316
        %v402 = vunpack.c.h.b16 %v316
        %v403 = vunpack.c.l.b16 %v317
        %v404 = vunpack.c.h.b16 %v317
        %v405 = vunpack.c.l.b16 %v318
        %v406 = vunpack.c.h.b16 %v318
        %v407 = vunpack.c.l.b16 %v319
        %v408 = vunpack.c.h.b16 %v319
        %v409 = vunpack.c.l.b16 %v320
        %v410 = vunpack.c.h.b16 %v320
        %v411 = vunpack.c.l.b16 %v321
        %v412 = vunpack.c.h.b16 %v321
        %v413 = vunpack.c.l.b16 %v322
        %v414 = vunpack.c.h.b16 %v322
        %v415 = vunpack.c.l.b16 %v323
        %v416 = vunpack.c.h.b16 %v323
        %v417 = vunpack.c.l.b16 %v324
        %v418 = vunpack.c.h.b16 %v324
        %v419 = vunpack.c.l.b16 %v325
        %v420 = vunpack.c.h.b16 %v325
        %v421 = vunpack.c.l.b16 %v326
        %v422 = vunpack.c.h.b16 %v326
        %v423 = vpack.c.b16 %v363, %v359
        %v424 = vpack.c.b16 %v364, %v360
        %v425 = vpack.c.b16 %v365, %v361
        %v426 = vpack.c.b16 %v366, %v362
        %v427 = vpack.c.b16 %v371, %v367
        %v428 = vpack.c.b16 %v372, %v368
        %v429 = vpack.c.b16 %v373, %v369
        %v430 = vpack.c.b16 %v374, %v370
        %v431 = vpack.c.b16 %v379, %v375
        %v432 = vpack.c.b16 %v380, %v376
        %v433 = vpack.c.b16 %v381, %v377
        %v434 = vpack.c.b16 %v382, %v378
        %v435 = vpack.c.b16 %v387, %v383
        %v436 = vpack.c.b16 %v388, %v384
        %v437 = vpack.c.b16 %v389, %v385
        %v438 = vpack.c.b16 %v390, %v386
        %v439 = vpack.c.b16 %v395, %v391
        %v440 = vpack.c.b16 %v396, %v392
        %v441 = vpack.c.b16 %v397, %v393
        %v442 = vpack.c.b16 %v398, %v394
        %v443 = vpack.c.b16 %v403, %v399
        %v444 = vpack.c.b16 %v404, %v400
        %v445 = vpack.c.b16 %v405, %v401
        %v446 = vpack.c.b16 %v406, %v402
        %v447 = vpack.c.b16 %v411, %v407
        %v448 = vpack.c.b16 %v412, %v408
        %v449 = vpack.c.b16 %v413, %v409
        %v450 = vpack.c.b16 %v414, %v410
        %v451 = vpack.c.b16 %v419, %v415
        %v452 = vpack.c.b16 %v420, %v416
        %v453 = vpack.c.b16 %v421, %v417
        %v454 = vpack.c.b16 %v422, %v418
        %487 = vmatprep.subr.bf16.mxu0 %v424
        %488 = vmatpush1.bf16.msra.mxu0 %v423
        %489 = vmatprep.subr.bf16.mxu0 %v428
        %490 = vmatpush1.bf16.msra.mxu0 %v427
        %491 = vmatprep.subr.bf16.mxu0 %v432
        %492 = vmatpush1.bf16.msra.mxu0 %v431
        %493 = vmatprep.subr.bf16.mxu0 %v436
        %494 = vmatpush1.bf16.msra.mxu0 %v435
        %495 = vmatprep.subr.bf16.mxu0 %v440
        %496 = vmatpush1.bf16.msra.mxu0 %v439
        %497 = vmatprep.subr.bf16.mxu0 %v444
        %498 = vmatpush1.bf16.msra.mxu0 %v443
        %499 = vmatprep.subr.bf16.mxu0 %v448
        %500 = vmatpush1.bf16.msra.mxu0 %v447
        %501 = vmatprep.subr.bf16.mxu0 %v452
        %502 = vmatpush1.bf16.msra.mxu0 %v451
        %503 = vmatprep.subr.bf16.mxu0 0
        %504 = vmatpush1.bf16.msra.mxu0 0
        %505 = vmatprep.subr.bf16.mxu0 0
        %506 = vmatpush1.bf16.msra.mxu0 0
        %507 = vmatprep.subr.bf16.mxu0 0
        %508 = vmatpush1.bf16.msra.mxu0 0
        %509 = vmatprep.subr.bf16.mxu0 0
        %510 = vmatpush1.bf16.msra.mxu0 0
        %511 = vmatprep.subr.bf16.mxu0 0
        %512 = vmatpush1.bf16.msra.mxu0 0
        %513 = vmatprep.subr.bf16.mxu0 0
        %514 = vmatpush1.bf16.msra.mxu0 0
        %515 = vmatprep.subr.bf16.mxu0 0
        %516 = vmatpush1.bf16.msra.mxu0 0
        %517 = vmatprep.subr.bf16.mxu0 0
        %518 = vmatpush1.bf16.msra.mxu0 0
        %519 = vmatprep.mubr.bf16.mxu0 0
        %520 = vmatmul.mubr.bf16.gmra.mrb[0].mxu0 %v294
        %v521 = vpop.f32.mrb[0].mxu0
        %v522 = vadd.f32 0.0, %v521
        %v523 = vpop.f32.mrb[0].mxu0
        %v524 = vadd.f32 0.0, %v523
        %v525 = vpop.f32.mrb[0].mxu0
        %v526 = vpop.f32.mrb[0].mxu0
        %527 = vdwg.mxu0
        %528 = vmatprep.subr.bf16.mxu0 %v426
        %529 = vmatpush1.bf16.msra.mxu0 %v425
        %530 = vmatprep.subr.bf16.mxu0 %v430
        %531 = vmatpush1.bf16.msra.mxu0 %v429
        %532 = vmatprep.subr.bf16.mxu0 %v434
        %533 = vmatpush1.bf16.msra.mxu0 %v433
        %534 = vmatprep.subr.bf16.mxu0 %v438
        %535 = vmatpush1.bf16.msra.mxu0 %v437
        %536 = vmatprep.subr.bf16.mxu0 %v442
        %537 = vmatpush1.bf16.msra.mxu0 %v441
        %538 = vmatprep.subr.bf16.mxu0 %v446
        %539 = vmatpush1.bf16.msra.mxu0 %v445
        %540 = vmatprep.subr.bf16.mxu0 %v450
        %541 = vmatpush1.bf16.msra.mxu0 %v449
        %542 = vmatprep.subr.bf16.mxu0 %v454
        %543 = vmatpush1.bf16.msra.mxu0 %v453
        %544 = vmatprep.subr.bf16.mxu0 0
        %545 = vmatpush1.bf16.msra.mxu0 0
        %546 = vmatprep.subr.bf16.mxu0 0
        %547 = vmatpush1.bf16.msra.mxu0 0
        %548 = vmatprep.subr.bf16.mxu0 0
        %549 = vmatpush1.bf16.msra.mxu0 0
        %550 = vmatprep.subr.bf16.mxu0 0
        %551 = vmatpush1.bf16.msra.mxu0 0
        %552 = vmatprep.subr.bf16.mxu0 0
        %553 = vmatpush1.bf16.msra.mxu0 0
        %554 = vmatprep.subr.bf16.mxu0 0
        %555 = vmatpush1.bf16.msra.mxu0 0
        %556 = vmatprep.subr.bf16.mxu0 0
        %557 = vmatpush1.bf16.msra.mxu0 0
        %558 = vmatprep.subr.bf16.mxu0 0
        %559 = vmatpush1.bf16.msra.mxu0 0
        %560 = vmatprep.mubr.bf16.mxu0 0
        %561 = vmatmul.mubr.bf16.gmra.mrb[0].mxu0 %v294
        %v562 = vpop.f32.mrb[0].mxu0
        %v563 = vadd.f32 0.0, %v562
        %v564 = vpop.f32.mrb[0].mxu0
        %v565 = vadd.f32 0.0, %v564
        %v566 = vpop.f32.mrb[0].mxu0
        %v567 = vpop.f32.mrb[0].mxu0
        %568 = vdwg.mxu0
        %v573 = vcombine.low %v522, %v524
        %v574 = vcombine.low %v563, %v565
        %v576 = vunpack.c.l.s4 1983009808
        %v577 = vunpack.c.0.s8 %v576
        %v578 = vlaneseq
        %v579 = vshrl.u32 %v578, 7
        %v580 = vsub.s32 %v577, %v579
        %v581 = vrot.slane %v573, %v580
        %v583 = vunpack.c.l.s4 1983009808
        %v584 = vunpack.c.0.s8 %v583
        %v585 = vlaneseq
        %v586 = vshrl.u32 %v585, 7
        %v587 = vsub.s32 %v584, %v586
        %v588 = vrot.slane %v574, %v587
        %v589 = vcombine.low %v581, %v588
        %v591 = vadd.f32 %v292, %v589
        %v592 = vxor.u32 %v591, 2147483648
        %v593 = vmul.f32 %v592, 1.442695
        %v594 = vpow.pop %v593
        %v595 = vadd.f32 %v594, 1.0
        %v596 = vrcp.pop %v595
        %v597 = vmul.f32 1.0, %v596
        %v599 = vrot.slane %v591, 2
        %v601 = vxor.u32 %v599, 2147483648
        %v602 = vmul.f32 %v601, 1.442695
        %v603 = vpow.pop %v602
        %v604 = vadd.f32 %v603, 1.0
        %v605 = vrcp.pop %v604
        %v606 = vmul.f32 1.0, %v605
        %v607 = vrot.slane %v591, 4
        %v609 = vtanh.pop %v607
        %v610 = vrot.slane %v591, 6
        %v612 = vxor.u32 %v610, 2147483648
        %v613 = vmul.f32 %v612, 1.442695
        %v614 = vpow.pop %v613
        %v615 = vadd.f32 %v614, 1.0
        %v616 = vrcp.pop %v615
        %v617 = vmul.f32 1.0, %v616
        %v618 = vld [vmem:[#allocation3] sm:$0x3]
        %v619 = vmul.f32 %v606, %v618
        %v620 = vmul.f32 %v597, %v609
        %v621 = vadd.f32 %v619, %v620
        %v622 = vtanh.pop %v621
        %v623 = vmul.f32 %v617, %v622
        %624 = vst [vmem:[#allocation2] sm:$0x3] %v623
        %625 = vst [vmem:[#allocation3] sm:$0x3] %v621
        %v626 = vpack.c.bf16 %v623, %v623
        %s627 = scalar_lea.vmem %s269, %s288 [#allocation7]
        %628 = vst [vmem:[%s627] sm:$0x1] %v626
        %s629 = sadd.s32 %s20, 1
        %s630 = smul.u32 %s629, 4
        %s631 = scalar_lea.vmem %s238, %s630 [#allocation4]
        %v632 = vld [vmem:[%s631] sm:$0xf]
        %v633 = vunpack.c.l.bf16 %v632
        %v634 = vld [vmem:[#allocation2] sm:$0x3]
        %v635 = vpack.c.bf16 %v634, %v634
        %v636 = vld [vmem:[%s246] sm:$0xff]
        %v637 = vld [vmem:[%s246 + $0x8] sm:$0xff]
        %v638 = vld [vmem:[%s246 + $0x10] sm:$0xff]
        %v639 = vld [vmem:[%s246 + $0x18] sm:$0xff]
        %v640 = vld [vmem:[%s246 + $0x20] sm:$0xff]
        %v641 = vld [vmem:[%s246 + $0x28] sm:$0xff]
        %v642 = vld [vmem:[%s246 + $0x30] sm:$0xff]
        %v643 = vld [vmem:[%s246 + $0x38] sm:$0xff]
        %v644 = vld [vmem:[%s246 + $0x40] sm:$0xff]
        %v645 = vld [vmem:[%s246 + $0x48] sm:$0xff]
        %v646 = vld [vmem:[%s246 + $0x50] sm:$0xff]
        %v647 = vld [vmem:[%s246 + $0x58] sm:$0xff]
        %v648 = vld [vmem:[%s246 + $0x60] sm:$0xff]
        %v649 = vld [vmem:[%s246 + $0x68] sm:$0xff]
        %v650 = vld [vmem:[%s246 + $0x70] sm:$0xff]
        %v651 = vld [vmem:[%s246 + $0x78] sm:$0xff]
        %v652 = vld [vmem:[%s246 + $0x80] sm:$0xff]
        %v653 = vld [vmem:[%s246 + $0x88] sm:$0xff]
        %v654 = vld [vmem:[%s246 + $0x90] sm:$0xff]
        %v655 = vld [vmem:[%s246 + $0x98] sm:$0xff]
        %v656 = vld [vmem:[%s246 + $0xa0] sm:$0xff]
        %v657 = vld [vmem:[%s246 + $0xa8] sm:$0xff]
        %v658 = vld [vmem:[%s246 + $0xb0] sm:$0xff]
        %v659 = vld [vmem:[%s246 + $0xb8] sm:$0xff]
        %v660 = vld [vmem:[%s246 + $0xc0] sm:$0xff]
        %v661 = vld [vmem:[%s246 + $0xc8] sm:$0xff]
        %v662 = vld [vmem:[%s246 + $0xd0] sm:$0xff]
        %v663 = vld [vmem:[%s246 + $0xd8] sm:$0xff]
        %v664 = vld [vmem:[%s246 + $0xe0] sm:$0xff]
        %v665 = vld [vmem:[%s246 + $0xe8] sm:$0xff]
        %v666 = vld [vmem:[%s246 + $0xf0] sm:$0xff]
        %v667 = vld [vmem:[%s246 + $0xf8] sm:$0xff]
        %v700 = vunpack.c.l.b16 %v636
        %v701 = vunpack.c.h.b16 %v636
        %v702 = vunpack.c.l.b16 %v637
        %v703 = vunpack.c.h.b16 %v637
        %v704 = vunpack.c.l.b16 %v638
        %v705 = vunpack.c.h.b16 %v638
        %v706 = vunpack.c.l.b16 %v639
        %v707 = vunpack.c.h.b16 %v639
        %v708 = vunpack.c.l.b16 %v640
        %v709 = vunpack.c.h.b16 %v640
        %v710 = vunpack.c.l.b16 %v641
        %v711 = vunpack.c.h.b16 %v641
        %v712 = vunpack.c.l.b16 %v642
        %v713 = vunpack.c.h.b16 %v642
        %v714 = vunpack.c.l.b16 %v643
        %v715 = vunpack.c.h.b16 %v643
        %v716 = vunpack.c.l.b16 %v644
        %v717 = vunpack.c.h.b16 %v644
        %v718 = vunpack.c.l.b16 %v645
        %v719 = vunpack.c.h.b16 %v645
        %v720 = vunpack.c.l.b16 %v646
        %v721 = vunpack.c.h.b16 %v646
        %v722 = vunpack.c.l.b16 %v647
        %v723 = vunpack.c.h.b16 %v647
        %v724 = vunpack.c.l.b16 %v648
        %v725 = vunpack.c.h.b16 %v648
        %v726 = vunpack.c.l.b16 %v649
        %v727 = vunpack.c.h.b16 %v649
        %v728 = vunpack.c.l.b16 %v650
        %v729 = vunpack.c.h.b16 %v650
        %v730 = vunpack.c.l.b16 %v651
        %v731 = vunpack.c.h.b16 %v651
        %v732 = vunpack.c.l.b16 %v652
        %v733 = vunpack.c.h.b16 %v652
        %v734 = vunpack.c.l.b16 %v653
        %v735 = vunpack.c.h.b16 %v653
        %v736 = vunpack.c.l.b16 %v654
        %v737 = vunpack.c.h.b16 %v654
        %v738 = vunpack.c.l.b16 %v655
        %v739 = vunpack.c.h.b16 %v655
        %v740 = vunpack.c.l.b16 %v656
        %v741 = vunpack.c.h.b16 %v656
        %v742 = vunpack.c.l.b16 %v657
        %v743 = vunpack.c.h.b16 %v657
        %v744 = vunpack.c.l.b16 %v658
        %v745 = vunpack.c.h.b16 %v658
        %v746 = vunpack.c.l.b16 %v659
        %v747 = vunpack.c.h.b16 %v659
        %v748 = vunpack.c.l.b16 %v660
        %v749 = vunpack.c.h.b16 %v660
        %v750 = vunpack.c.l.b16 %v661
        %v751 = vunpack.c.h.b16 %v661
        %v752 = vunpack.c.l.b16 %v662
        %v753 = vunpack.c.h.b16 %v662
        %v754 = vunpack.c.l.b16 %v663
        %v755 = vunpack.c.h.b16 %v663
        %v756 = vunpack.c.l.b16 %v664
        %v757 = vunpack.c.h.b16 %v664
        %v758 = vunpack.c.l.b16 %v665
        %v759 = vunpack.c.h.b16 %v665
        %v760 = vunpack.c.l.b16 %v666
        %v761 = vunpack.c.h.b16 %v666
        %v762 = vunpack.c.l.b16 %v667
        %v763 = vunpack.c.h.b16 %v667
        %v764 = vpack.c.b16 %v704, %v700
        %v765 = vpack.c.b16 %v705, %v701
        %v766 = vpack.c.b16 %v706, %v702
        %v767 = vpack.c.b16 %v707, %v703
        %v768 = vpack.c.b16 %v712, %v708
        %v769 = vpack.c.b16 %v713, %v709
        %v770 = vpack.c.b16 %v714, %v710
        %v771 = vpack.c.b16 %v715, %v711
        %v772 = vpack.c.b16 %v720, %v716
        %v773 = vpack.c.b16 %v721, %v717
        %v774 = vpack.c.b16 %v722, %v718
        %v775 = vpack.c.b16 %v723, %v719
        %v776 = vpack.c.b16 %v728, %v724
        %v777 = vpack.c.b16 %v729, %v725
        %v778 = vpack.c.b16 %v730, %v726
        %v779 = vpack.c.b16 %v731, %v727
        %v780 = vpack.c.b16 %v736, %v732
        %v781 = vpack.c.b16 %v737, %v733
        %v782 = vpack.c.b16 %v738, %v734
        %v783 = vpack.c.b16 %v739, %v735
        %v784 = vpack.c.b16 %v744, %v740
        %v785 = vpack.c.b16 %v745, %v741
        %v786 = vpack.c.b16 %v746, %v742
        %v787 = vpack.c.b16 %v747, %v743
        %v788 = vpack.c.b16 %v752, %v748
        %v789 = vpack.c.b16 %v753, %v749
        %v790 = vpack.c.b16 %v754, %v750
        %v791 = vpack.c.b16 %v755, %v751
        %v792 = vpack.c.b16 %v760, %v756
        %v793 = vpack.c.b16 %v761, %v757
        %v794 = vpack.c.b16 %v762, %v758
        %v795 = vpack.c.b16 %v763, %v759
        %828 = vmatprep.subr.bf16.mxu0 %v765
        %829 = vmatpush1.bf16.msra.mxu0 %v764
        %830 = vmatprep.subr.bf16.mxu0 %v769
        %831 = vmatpush1.bf16.msra.mxu0 %v768
        %832 = vmatprep.subr.bf16.mxu0 %v773
        %833 = vmatpush1.bf16.msra.mxu0 %v772
        %834 = vmatprep.subr.bf16.mxu0 %v777
        %835 = vmatpush1.bf16.msra.mxu0 %v776
        %836 = vmatprep.subr.bf16.mxu0 %v781
        %837 = vmatpush1.bf16.msra.mxu0 %v780
        %838 = vmatprep.subr.bf16.mxu0 %v785
        %839 = vmatpush1.bf16.msra.mxu0 %v784
        %840 = vmatprep.subr.bf16.mxu0 %v789
        %841 = vmatpush1.bf16.msra.mxu0 %v788
        %842 = vmatprep.subr.bf16.mxu0 %v793
        %843 = vmatpush1.bf16.msra.mxu0 %v792
        %844 = vmatprep.subr.bf16.mxu0 0
        %845 = vmatpush1.bf16.msra.mxu0 0
        %846 = vmatprep.subr.bf16.mxu0 0
        %847 = vmatpush1.bf16.msra.mxu0 0
        %848 = vmatprep.subr.bf16.mxu0 0
        %849 = vmatpush1.bf16.msra.mxu0 0
        %850 = vmatprep.subr.bf16.mxu0 0
        %851 = vmatpush1.bf16.msra.mxu0 0
        %852 = vmatprep.subr.bf16.mxu0 0
        %853 = vmatpush1.bf16.msra.mxu0 0
        %854 = vmatprep.subr.bf16.mxu0 0
        %855 = vmatpush1.bf16.msra.mxu0 0
        %856 = vmatprep.subr.bf16.mxu0 0
        %857 = vmatpush1.bf16.msra.mxu0 0
        %858 = vmatprep.subr.bf16.mxu0 0
        %859 = vmatpush1.bf16.msra.mxu0 0
        %860 = vmatprep.mubr.bf16.mxu0 0
        %861 = vmatmul.mubr.bf16.gmra.mrb[0].mxu0 %v635
        %v862 = vpop.f32.mrb[0].mxu0
        %v863 = vadd.f32 0.0, %v862
        %v864 = vpop.f32.mrb[0].mxu0
        %v865 = vadd.f32 0.0, %v864
        %v866 = vpop.f32.mrb[0].mxu0
        %v867 = vpop.f32.mrb[0].mxu0
        %868 = vdwg.mxu0
        %869 = vmatprep.subr.bf16.mxu0 %v767
        %870 = vmatpush1.bf16.msra.mxu0 %v766
        %871 = vmatprep.subr.bf16.mxu0 %v771
        %872 = vmatpush1.bf16.msra.mxu0 %v770
        %873 = vmatprep.subr.bf16.mxu0 %v775
        %874 = vmatpush1.bf16.msra.mxu0 %v774
        %875 = vmatprep.subr.bf16.mxu0 %v779
        %876 = vmatpush1.bf16.msra.mxu0 %v778
        %877 = vmatprep.subr.bf16.mxu0 %v783
        %878 = vmatpush1.bf16.msra.mxu0 %v782
        %879 = vmatprep.subr.bf16.mxu0 %v787
        %880 = vmatpush1.bf16.msra.mxu0 %v786
        %881 = vmatprep.subr.bf16.mxu0 %v791
        %882 = vmatpush1.bf16.msra.mxu0 %v790
        %883 = vmatprep.subr.bf16.mxu0 %v795
        %884 = vmatpush1.bf16.msra.mxu0 %v794
        %885 = vmatprep.subr.bf16.mxu0 0
        %886 = vmatpush1.bf16.msra.mxu0 0
        %887 = vmatprep.subr.bf16.mxu0 0
        %888 = vmatpush1.bf16.msra.mxu0 0
        %889 = vmatprep.subr.bf16.mxu0 0
        %890 = vmatpush1.bf16.msra.mxu0 0
        %891 = vmatprep.subr.bf16.mxu0 0
        %892 = vmatpush1.bf16.msra.mxu0 0
        %893 = vmatprep.subr.bf16.mxu0 0
        %894 = vmatpush1.bf16.msra.mxu0 0
        %895 = vmatprep.subr.bf16.mxu0 0
        %896 = vmatpush1.bf16.msra.mxu0 0
        %897 = vmatprep.subr.bf16.mxu0 0
        %898 = vmatpush1.bf16.msra.mxu0 0
        %899 = vmatprep.subr.bf16.mxu0 0
        %900 = vmatpush1.bf16.msra.mxu0 0
        %901 = vmatprep.mubr.bf16.mxu0 0
        %902 = vmatmul.mubr.bf16.gmra.mrb[0].mxu0 %v635
        %v903 = vpop.f32.mrb[0].mxu0
        %v904 = vadd.f32 0.0, %v903
        %v905 = vpop.f32.mrb[0].mxu0
        %v906 = vadd.f32 0.0, %v905
        %v907 = vpop.f32.mrb[0].mxu0
        %v908 = vpop.f32.mrb[0].mxu0
        %909 = vdwg.mxu0
        %v914 = vcombine.low %v863, %v865
        %v915 = vcombine.low %v904, %v906
        %v917 = vunpack.c.l.s4 1983009808
        %v918 = vunpack.c.0.s8 %v917
        %v919 = vlaneseq
        %v920 = vshrl.u32 %v919, 7
        %v921 = vsub.s32 %v918, %v920
        %v922 = vrot.slane %v914, %v921
        %v924 = vunpack.c.l.s4 1983009808
        %v925 = vunpack.c.0.s8 %v924
        %v926 = vlaneseq
        %v927 = vshrl.u32 %v926, 7
        %v928 = vsub.s32 %v925, %v927
        %v929 = vrot.slane %v915, %v928
        %v930 = vcombine.low %v922, %v929
        %v932 = vadd.f32 %v633, %v930
        %v933 = vxor.u32 %v932, 2147483648
        %v934 = vmul.f32 %v933, 1.442695
        %v935 = vpow.pop %v934
        %v936 = vadd.f32 %v935, 1.0
        %v937 = vrcp.pop %v936
        %v938 = vmul.f32 1.0, %v937
        %v940 = vrot.slane %v932, 2
        %v942 = vxor.u32 %v940, 2147483648
        %v943 = vmul.f32 %v942, 1.442695
        %v944 = vpow.pop %v943
        %v945 = vadd.f32 %v944, 1.0
        %v946 = vrcp.pop %v945
        %v947 = vmul.f32 1.0, %v946
        %v948 = vrot.slane %v932, 4
        %v950 = vtanh.pop %v948
        %v951 = vrot.slane %v932, 6
        %v953 = vxor.u32 %v951, 2147483648
        %v954 = vmul.f32 %v953, 1.442695
        %v955 = vpow.pop %v954
        %v956 = vadd.f32 %v955, 1.0
        %v957 = vrcp.pop %v956
        %v958 = vmul.f32 1.0, %v957
        %v959 = vld [vmem:[#allocation3] sm:$0x3]
        %v960 = vmul.f32 %v947, %v959
        %v961 = vmul.f32 %v938, %v950
        %v962 = vadd.f32 %v960, %v961
        %v963 = vtanh.pop %v962
        %v964 = vmul.f32 %v958, %v963
        %965 = vst [vmem:[#allocation2] sm:$0x3] %v964
        %966 = vst [vmem:[#allocation3] sm:$0x3] %v962
        %v967 = vpack.c.bf16 %v964, %v964
        %s968 = scalar_lea.vmem %s269, %s629 [#allocation7]
        %969 = vst [vmem:[%s968] sm:$0x1] %v967
        %s970 = ssub.s32 2, %s20
        %s971 = smul.u32 %s970, 4
        %s972 = scalar_lea.vmem %s238, %s971 [#allocation4]
        %v973 = vld [vmem:[%s972] sm:$0xf]
        %v974 = vunpack.c.l.bf16 %v973
        %v975 = vld [vmem:[#allocation2] sm:$0x3]
        %v976 = vpack.c.bf16 %v975, %v975
        %v977 = vld [vmem:[%s246] sm:$0xff]
        %v978 = vld [vmem:[%s246 + $0x8] sm:$0xff]
        %v979 = vld [vmem:[%s246 + $0x10] sm:$0xff]
        %v980 = vld [vmem:[%s246 + $0x18] sm:$0xff]
        %v981 = vld [vmem:[%s246 + $0x20] sm:$0xff]
        %v982 = vld [vmem:[%s246 + $0x28] sm:$0xff]
        %v983 = vld [vmem:[%s246 + $0x30] sm:$0xff]
        %v984 = vld [vmem:[%s246 + $0x38] sm:$0xff]
        %v985 = vld [vmem:[%s246 + $0x40] sm:$0xff]
        %v986 = vld [vmem:[%s246 + $0x48] sm:$0xff]
        %v987 = vld [vmem:[%s246 + $0x50] sm:$0xff]
        %v988 = vld [vmem:[%s246 + $0x58] sm:$0xff]
        %v989 = vld [vmem:[%s246 + $0x60] sm:$0xff]
        %v990 = vld [vmem:[%s246 + $0x68] sm:$0xff]
        %v991 = vld [vmem:[%s246 + $0x70] sm:$0xff]
        %v992 = vld [vmem:[%s246 + $0x78] sm:$0xff]
        %v993 = vld [vmem:[%s246 + $0x80] sm:$0xff]
        %v994 = vld [vmem:[%s246 + $0x88] sm:$0xff]
        %v995 = vld [vmem:[%s246 + $0x90] sm:$0xff]
        %v996 = vld [vmem:[%s246 + $0x98] sm:$0xff]
        %v997 = vld [vmem:[%s246 + $0xa0] sm:$0xff]
        %v998 = vld [vmem:[%s246 + $0xa8] sm:$0xff]
        %v999 = vld [vmem:[%s246 + $0xb0] sm:$0xff]
        %v1000 = vld [vmem:[%s246 + $0xb8] sm:$0xff]
        %v1001 = vld [vmem:[%s246 + $0xc0] sm:$0xff]
        %v1002 = vld [vmem:[%s246 + $0xc8] sm:$0xff]
        %v1003 = vld [vmem:[%s246 + $0xd0] sm:$0xff]
        %v1004 = vld [vmem:[%s246 + $0xd8] sm:$0xff]
        %v1005 = vld [vmem:[%s246 + $0xe0] sm:$0xff]
        %v1006 = vld [vmem:[%s246 + $0xe8] sm:$0xff]
        %v1007 = vld [vmem:[%s246 + $0xf0] sm:$0xff]
        %v1008 = vld [vmem:[%s246 + $0xf8] sm:$0xff]
        %v1041 = vunpack.c.l.b16 %v977
        %v1042 = vunpack.c.h.b16 %v977
        %v1043 = vunpack.c.l.b16 %v978
        %v1044 = vunpack.c.h.b16 %v978
        %v1045 = vunpack.c.l.b16 %v979
        %v1046 = vunpack.c.h.b16 %v979
        %v1047 = vunpack.c.l.b16 %v980
        %v1048 = vunpack.c.h.b16 %v980
        %v1049 = vunpack.c.l.b16 %v981
        %v1050 = vunpack.c.h.b16 %v981
        %v1051 = vunpack.c.l.b16 %v982
        %v1052 = vunpack.c.h.b16 %v982
        %v1053 = vunpack.c.l.b16 %v983
        %v1054 = vunpack.c.h.b16 %v983
        %v1055 = vunpack.c.l.b16 %v984
        %v1056 = vunpack.c.h.b16 %v984
        %v1057 = vunpack.c.l.b16 %v985
        %v1058 = vunpack.c.h.b16 %v985
        %v1059 = vunpack.c.l.b16 %v986
        %v1060 = vunpack.c.h.b16 %v986
        %v1061 = vunpack.c.l.b16 %v987
        %v1062 = vunpack.c.h.b16 %v987
        %v1063 = vunpack.c.l.b16 %v988
        %v1064 = vunpack.c.h.b16 %v988
        %v1065 = vunpack.c.l.b16 %v989
        %v1066 = vunpack.c.h.b16 %v989
        %v1067 = vunpack.c.l.b16 %v990
        %v1068 = vunpack.c.h.b16 %v990
        %v1069 = vunpack.c.l.b16 %v991
        %v1070 = vunpack.c.h.b16 %v991
        %v1071 = vunpack.c.l.b16 %v992
        %v1072 = vunpack.c.h.b16 %v992
        %v1073 = vunpack.c.l.b16 %v993
        %v1074 = vunpack.c.h.b16 %v993
        %v1075 = vunpack.c.l.b16 %v994
        %v1076 = vunpack.c.h.b16 %v994
        %v1077 = vunpack.c.l.b16 %v995
        %v1078 = vunpack.c.h.b16 %v995
        %v1079 = vunpack.c.l.b16 %v996
        %v1080 = vunpack.c.h.b16 %v996
        %v1081 = vunpack.c.l.b16 %v997
        %v1082 = vunpack.c.h.b16 %v997
        %v1083 = vunpack.c.l.b16 %v998
        %v1084 = vunpack.c.h.b16 %v998
        %v1085 = vunpack.c.l.b16 %v999
        %v1086 = vunpack.c.h.b16 %v999
        %v1087 = vunpack.c.l.b16 %v1000
        %v1088 = vunpack.c.h.b16 %v1000
        %v1089 = vunpack.c.l.b16 %v1001
        %v1090 = vunpack.c.h.b16 %v1001
        %v1091 = vunpack.c.l.b16 %v1002
        %v1092 = vunpack.c.h.b16 %v1002
        %v1093 = vunpack.c.l.b16 %v1003
        %v1094 = vunpack.c.h.b16 %v1003
        %v1095 = vunpack.c.l.b16 %v1004
        %v1096 = vunpack.c.h.b16 %v1004
        %v1097 = vunpack.c.l.b16 %v1005
        %v1098 = vunpack.c.h.b16 %v1005
        %v1099 = vunpack.c.l.b16 %v1006
        %v1100 = vunpack.c.h.b16 %v1006
        %v1101 = vunpack.c.l.b16 %v1007
        %v1102 = vunpack.c.h.b16 %v1007
        %v1103 = vunpack.c.l.b16 %v1008
        %v1104 = vunpack.c.h.b16 %v1008
        %v1105 = vpack.c.b16 %v1045, %v1041
        %v1106 = vpack.c.b16 %v1046, %v1042
        %v1107 = vpack.c.b16 %v1047, %v1043
        %v1108 = vpack.c.b16 %v1048, %v1044
        %v1109 = vpack.c.b16 %v1053, %v1049
        %v1110 = vpack.c.b16 %v1054, %v1050
        %v1111 = vpack.c.b16 %v1055, %v1051
        %v1112 = vpack.c.b16 %v1056, %v1052
        %v1113 = vpack.c.b16 %v1061, %v1057
        %v1114 = vpack.c.b16 %v1062, %v1058
        %v1115 = vpack.c.b16 %v1063, %v1059
        %v1116 = vpack.c.b16 %v1064, %v1060
        %v1117 = vpack.c.b16 %v1069, %v1065
        %v1118 = vpack.c.b16 %v1070, %v1066
        %v1119 = vpack.c.b16 %v1071, %v1067
        %v1120 = vpack.c.b16 %v1072, %v1068
        %v1121 = vpack.c.b16 %v1077, %v1073
        %v1122 = vpack.c.b16 %v1078, %v1074
        %v1123 = vpack.c.b16 %v1079, %v1075
        %v1124 = vpack.c.b16 %v1080, %v1076
        %v1125 = vpack.c.b16 %v1085, %v1081
        %v1126 = vpack.c.b16 %v1086, %v1082
        %v1127 = vpack.c.b16 %v1087, %v1083
        %v1128 = vpack.c.b16 %v1088, %v1084
        %v1129 = vpack.c.b16 %v1093, %v1089
        %v1130 = vpack.c.b16 %v1094, %v1090
        %v1131 = vpack.c.b16 %v1095, %v1091
        %v1132 = vpack.c.b16 %v1096, %v1092
        %v1133 = vpack.c.b16 %v1101, %v1097
        %v1134 = vpack.c.b16 %v1102, %v1098
        %v1135 = vpack.c.b16 %v1103, %v1099
        %v1136 = vpack.c.b16 %v1104, %v1100
        %1169 = vmatprep.subr.bf16.mxu0 %v1106
        %1170 = vmatpush1.bf16.msra.mxu0 %v1105
        %1171 = vmatprep.subr.bf16.mxu0 %v1110
        %1172 = vmatpush1.bf16.msra.mxu0 %v1109
        %1173 = vmatprep.subr.bf16.mxu0 %v1114
        %1174 = vmatpush1.bf16.msra.mxu0 %v1113
        %1175 = vmatprep.subr.bf16.mxu0 %v1118
        %1176 = vmatpush1.bf16.msra.mxu0 %v1117
        %1177 = vmatprep.subr.bf16.mxu0 %v1122
        %1178 = vmatpush1.bf16.msra.mxu0 %v1121
        %1179 = vmatprep.subr.bf16.mxu0 %v1126
        %1180 = vmatpush1.bf16.msra.mxu0 %v1125
        %1181 = vmatprep.subr.bf16.mxu0 %v1130
        %1182 = vmatpush1.bf16.msra.mxu0 %v1129
        %1183 = vmatprep.subr.bf16.mxu0 %v1134
        %1184 = vmatpush1.bf16.msra.mxu0 %v1133
        %1185 = vmatprep.subr.bf16.mxu0 0
        %1186 = vmatpush1.bf16.msra.mxu0 0
        %1187 = vmatprep.subr.bf16.mxu0 0
        %1188 = vmatpush1.bf16.msra.mxu0 0
        %1189 = vmatprep.subr.bf16.mxu0 0
        %1190 = vmatpush1.bf16.msra.mxu0 0
        %1191 = vmatprep.subr.bf16.mxu0 0
        %1192 = vmatpush1.bf16.msra.mxu0 0
        %1193 = vmatprep.subr.bf16.mxu0 0
        %1194 = vmatpush1.bf16.msra.mxu0 0
        %1195 = vmatprep.subr.bf16.mxu0 0
        %1196 = vmatpush1.bf16.msra.mxu0 0
        %1197 = vmatprep.subr.bf16.mxu0 0
        %1198 = vmatpush1.bf16.msra.mxu0 0
        %1199 = vmatprep.subr.bf16.mxu0 0
        %1200 = vmatpush1.bf16.msra.mxu0 0
        %1201 = vmatprep.mubr.bf16.mxu0 0
        %1202 = vmatmul.mubr.bf16.gmra.mrb[0].mxu0 %v976
        %v1203 = vpop.f32.mrb[0].mxu0
        %v1204 = vadd.f32 0.0, %v1203
        %v1205 = vpop.f32.mrb[0].mxu0
        %v1206 = vadd.f32 0.0, %v1205
        %v1207 = vpop.f32.mrb[0].mxu0
        %v1208 = vpop.f32.mrb[0].mxu0
        %1209 = vdwg.mxu0
        %1210 = vmatprep.subr.bf16.mxu0 %v1108
        %1211 = vmatpush1.bf16.msra.mxu0 %v1107
        %1212 = vmatprep.subr.bf16.mxu0 %v1112
        %1213 = vmatpush1.bf16.msra.mxu0 %v1111
        %1214 = vmatprep.subr.bf16.mxu0 %v1116
        %1215 = vmatpush1.bf16.msra.mxu0 %v1115
        %1216 = vmatprep.subr.bf16.mxu0 %v1120
        %1217 = vmatpush1.bf16.msra.mxu0 %v1119
        %1218 = vmatprep.subr.bf16.mxu0 %v1124
        %1219 = vmatpush1.bf16.msra.mxu0 %v1123
        %1220 = vmatprep.subr.bf16.mxu0 %v1128
        %1221 = vmatpush1.bf16.msra.mxu0 %v1127
        %1222 = vmatprep.subr.bf16.mxu0 %v1132
        %1223 = vmatpush1.bf16.msra.mxu0 %v1131
        %1224 = vmatprep.subr.bf16.mxu0 %v1136
        %1225 = vmatpush1.bf16.msra.mxu0 %v1135
        %1226 = vmatprep.subr.bf16.mxu0 0
        %1227 = vmatpush1.bf16.msra.mxu0 0
        %1228 = vmatprep.subr.bf16.mxu0 0
        %1229 = vmatpush1.bf16.msra.mxu0 0
        %1230 = vmatprep.subr.bf16.mxu0 0
        %1231 = vmatpush1.bf16.msra.mxu0 0
        %1232 = vmatprep.subr.bf16.mxu0 0
        %1233 = vmatpush1.bf16.msra.mxu0 0
        %1234 = vmatprep.subr.bf16.mxu0 0
        %1235 = vmatpush1.bf16.msra.mxu0 0
        %1236 = vmatprep.subr.bf16.mxu0 0
        %1237 = vmatpush1.bf16.msra.mxu0 0
        %1238 = vmatprep.subr.bf16.mxu0 0
        %1239 = vmatpush1.bf16.msra.mxu0 0
        %1240 = vmatprep.subr.bf16.mxu0 0
        %1241 = vmatpush1.bf16.msra.mxu0 0
        %1242 = vmatprep.mubr.bf16.mxu0 0
        %1243 = vmatmul.mubr.bf16.gmra.mrb[0].mxu0 %v976
        %v1244 = vpop.f32.mrb[0].mxu0
        %v1245 = vadd.f32 0.0, %v1244
        %v1246 = vpop.f32.mrb[0].mxu0
        %v1247 = vadd.f32 0.0, %v1246
        %v1248 = vpop.f32.mrb[0].mxu0
        %v1249 = vpop.f32.mrb[0].mxu0
        %1250 = vdwg.mxu0
        %v1255 = vcombine.low %v1204, %v1206
        %v1256 = vcombine.low %v1245, %v1247
        %v1258 = vunpack.c.l.s4 1983009808
        %v1259 = vunpack.c.0.s8 %v1258
        %v1260 = vlaneseq
        %v1261 = vshrl.u32 %v1260, 7
        %v1262 = vsub.s32 %v1259, %v1261
        %v1263 = vrot.slane %v1255, %v1262
        %v1265 = vunpack.c.l.s4 1983009808
        %v1266 = vunpack.c.0.s8 %v1265
        %v1267 = vlaneseq
        %v1268 = vshrl.u32 %v1267, 7
        %v1269 = vsub.s32 %v1266, %v1268
        %v1270 = vrot.slane %v1256, %v1269
        %v1271 = vcombine.low %v1263, %v1270
        %v1273 = vadd.f32 %v974, %v1271
        %v1274 = vxor.u32 %v1273, 2147483648
        %v1275 = vmul.f32 %v1274, 1.442695
        %v1276 = vpow.pop %v1275
        %v1277 = vadd.f32 %v1276, 1.0
        %v1278 = vrcp.pop %v1277
        %v1279 = vmul.f32 1.0, %v1278
        %v1281 = vrot.slane %v1273, 2
        %v1283 = vxor.u32 %v1281, 2147483648
        %v1284 = vmul.f32 %v1283, 1.442695
        %v1285 = vpow.pop %v1284
        %v1286 = vadd.f32 %v1285, 1.0
        %v1287 = vrcp.pop %v1286
        %v1288 = vmul.f32 1.0, %v1287
        %v1289 = vrot.slane %v1273, 4
        %v1291 = vtanh.pop %v1289
        %v1292 = vrot.slane %v1273, 6
        %v1294 = vxor.u32 %v1292, 2147483648
        %v1295 = vmul.f32 %v1294, 1.442695
        %v1296 = vpow.pop %v1295
        %v1297 = vadd.f32 %v1296, 1.0
        %v1298 = vrcp.pop %v1297
        %v1299 = vmul.f32 1.0, %v1298
        %v1300 = vld [vmem:[#allocation3] sm:$0x3]
        %v1301 = vmul.f32 %v1288, %v1300
        %v1302 = vmul.f32 %v1279, %v1291
        %v1303 = vadd.f32 %v1301, %v1302
        %v1304 = vtanh.pop %v1303
        %v1305 = vmul.f32 %v1299, %v1304
        %1306 = vst [vmem:[#allocation2] sm:$0x3] %v1305
        %1307 = vst [vmem:[#allocation3] sm:$0x3] %v1303
        %v1308 = vpack.c.bf16 %v1305, %v1305
        %s1309 = scalar_lea.vmem %s269, %s970 [#allocation7]
        %1310 = vst [vmem:[%s1309] sm:$0x1] %v1308
        %s1311 = smul.u32 %s20, 4294967293
        %s1312 = sadd.s32 %s1311, 3
        %s1313 = smul.u32 %s1312, 4
        %s1314 = scalar_lea.vmem %s238, %s1313 [#allocation4]
        %v1315 = vld [vmem:[%s1314] sm:$0xf]
        %v1316 = vunpack.c.l.bf16 %v1315
        %v1317 = vld [vmem:[#allocation2] sm:$0x3]
        %v1318 = vpack.c.bf16 %v1317, %v1317
        %v1319 = vld [vmem:[%s246] sm:$0xff]
        %v1320 = vld [vmem:[%s246 + $0x8] sm:$0xff]
        %v1321 = vld [vmem:[%s246 + $0x10] sm:$0xff]
        %v1322 = vld [vmem:[%s246 + $0x18] sm:$0xff]
        %v1323 = vld [vmem:[%s246 + $0x20] sm:$0xff]
        %v1324 = vld [vmem:[%s246 + $0x28] sm:$0xff]
        %v1325 = vld [vmem:[%s246 + $0x30] sm:$0xff]
        %v1326 = vld [vmem:[%s246 + $0x38] sm:$0xff]
        %v1327 = vld [vmem:[%s246 + $0x40] sm:$0xff]
        %v1328 = vld [vmem:[%s246 + $0x48] sm:$0xff]
        %v1329 = vld [vmem:[%s246 + $0x50] sm:$0xff]
        %v1330 = vld [vmem:[%s246 + $0x58] sm:$0xff]
        %v1331 = vld [vmem:[%s246 + $0x60] sm:$0xff]
        %v1332 = vld [vmem:[%s246 + $0x68] sm:$0xff]
        %v1333 = vld [vmem:[%s246 + $0x70] sm:$0xff]
        %v1334 = vld [vmem:[%s246 + $0x78] sm:$0xff]
        %v1335 = vld [vmem:[%s246 + $0x80] sm:$0xff]
        %v1336 = vld [vmem:[%s246 + $0x88] sm:$0xff]
        %v1337 = vld [vmem:[%s246 + $0x90] sm:$0xff]
        %v1338 = vld [vmem:[%s246 + $0x98] sm:$0xff]
        %v1339 = vld [vmem:[%s246 + $0xa0] sm:$0xff]
        %v1340 = vld [vmem:[%s246 + $0xa8] sm:$0xff]
        %v1341 = vld [vmem:[%s246 + $0xb0] sm:$0xff]
        %v1342 = vld [vmem:[%s246 + $0xb8] sm:$0xff]
        %v1343 = vld [vmem:[%s246 + $0xc0] sm:$0xff]
        %v1344 = vld [vmem:[%s246 + $0xc8] sm:$0xff]
        %v1345 = vld [vmem:[%s246 + $0xd0] sm:$0xff]
        %v1346 = vld [vmem:[%s246 + $0xd8] sm:$0xff]
        %v1347 = vld [vmem:[%s246 + $0xe0] sm:$0xff]
        %v1348 = vld [vmem:[%s246 + $0xe8] sm:$0xff]
        %v1349 = vld [vmem:[%s246 + $0xf0] sm:$0xff]
        %v1350 = vld [vmem:[%s246 + $0xf8] sm:$0xff]
        %v1383 = vunpack.c.l.b16 %v1319
        %v1384 = vunpack.c.h.b16 %v1319
        %v1385 = vunpack.c.l.b16 %v1320
        %v1386 = vunpack.c.h.b16 %v1320
        %v1387 = vunpack.c.l.b16 %v1321
        %v1388 = vunpack.c.h.b16 %v1321
        %v1389 = vunpack.c.l.b16 %v1322
        %v1390 = vunpack.c.h.b16 %v1322
        %v1391 = vunpack.c.l.b16 %v1323
        %v1392 = vunpack.c.h.b16 %v1323
        %v1393 = vunpack.c.l.b16 %v1324
        %v1394 = vunpack.c.h.b16 %v1324
        %v1395 = vunpack.c.l.b16 %v1325
        %v1396 = vunpack.c.h.b16 %v1325
        %v1397 = vunpack.c.l.b16 %v1326
        %v1398 = vunpack.c.h.b16 %v1326
        %v1399 = vunpack.c.l.b16 %v1327
        %v1400 = vunpack.c.h.b16 %v1327
        %v1401 = vunpack.c.l.b16 %v1328
        %v1402 = vunpack.c.h.b16 %v1328
        %v1403 = vunpack.c.l.b16 %v1329
        %v1404 = vunpack.c.h.b16 %v1329
        %v1405 = vunpack.c.l.b16 %v1330
        %v1406 = vunpack.c.h.b16 %v1330
        %v1407 = vunpack.c.l.b16 %v1331
        %v1408 = vunpack.c.h.b16 %v1331
        %v1409 = vunpack.c.l.b16 %v1332
        %v1410 = vunpack.c.h.b16 %v1332
        %v1411 = vunpack.c.l.b16 %v1333
        %v1412 = vunpack.c.h.b16 %v1333
        %v1413 = vunpack.c.l.b16 %v1334
        %v1414 = vunpack.c.h.b16 %v1334
        %v1415 = vunpack.c.l.b16 %v1335
        %v1416 = vunpack.c.h.b16 %v1335
        %v1417 = vunpack.c.l.b16 %v1336
        %v1418 = vunpack.c.h.b16 %v1336
        %v1419 = vunpack.c.l.b16 %v1337
        %v1420 = vunpack.c.h.b16 %v1337
        %v1421 = vunpack.c.l.b16 %v1338
        %v1422 = vunpack.c.h.b16 %v1338
        %v1423 = vunpack.c.l.b16 %v1339
        %v1424 = vunpack.c.h.b16 %v1339
        %v1425 = vunpack.c.l.b16 %v1340
        %v1426 = vunpack.c.h.b16 %v1340
        %v1427 = vunpack.c.l.b16 %v1341
        %v1428 = vunpack.c.h.b16 %v1341
        %v1429 = vunpack.c.l.b16 %v1342
        %v1430 = vunpack.c.h.b16 %v1342
        %v1431 = vunpack.c.l.b16 %v1343
        %v1432 = vunpack.c.h.b16 %v1343
        %v1433 = vunpack.c.l.b16 %v1344
        %v1434 = vunpack.c.h.b16 %v1344
        %v1435 = vunpack.c.l.b16 %v1345
        %v1436 = vunpack.c.h.b16 %v1345
        %v1437 = vunpack.c.l.b16 %v1346
        %v1438 = vunpack.c.h.b16 %v1346
        %v1439 = vunpack.c.l.b16 %v1347
        %v1440 = vunpack.c.h.b16 %v1347
        %v1441 = vunpack.c.l.b16 %v1348
        %v1442 = vunpack.c.h.b16 %v1348
        %v1443 = vunpack.c.l.b16 %v1349
        %v1444 = vunpack.c.h.b16 %v1349
        %v1445 = vunpack.c.l.b16 %v1350
        %v1446 = vunpack.c.h.b16 %v1350
        %v1447 = vpack.c.b16 %v1387, %v1383
        %v1448 = vpack.c.b16 %v1388, %v1384
        %v1449 = vpack.c.b16 %v1389, %v1385
        %v1450 = vpack.c.b16 %v1390, %v1386
        %v1451 = vpack.c.b16 %v1395, %v1391
        %v1452 = vpack.c.b16 %v1396, %v1392
        %v1453 = vpack.c.b16 %v1397, %v1393
        %v1454 = vpack.c.b16 %v1398, %v1394
        %v1455 = vpack.c.b16 %v1403, %v1399
        %v1456 = vpack.c.b16 %v1404, %v1400
        %v1457 = vpack.c.b16 %v1405, %v1401
        %v1458 = vpack.c.b16 %v1406, %v1402
        %v1459 = vpack.c.b16 %v1411, %v1407
        %v1460 = vpack.c.b16 %v1412, %v1408
        %v1461 = vpack.c.b16 %v1413, %v1409
        %v1462 = vpack.c.b16 %v1414, %v1410
        %v1463 = vpack.c.b16 %v1419, %v1415
        %v1464 = vpack.c.b16 %v1420, %v1416
        %v1465 = vpack.c.b16 %v1421, %v1417
        %v1466 = vpack.c.b16 %v1422, %v1418
        %v1467 = vpack.c.b16 %v1427, %v1423
        %v1468 = vpack.c.b16 %v1428, %v1424
        %v1469 = vpack.c.b16 %v1429, %v1425
        %v1470 = vpack.c.b16 %v1430, %v1426
        %v1471 = vpack.c.b16 %v1435, %v1431
        %v1472 = vpack.c.b16 %v1436, %v1432
        %v1473 = vpack.c.b16 %v1437, %v1433
        %v1474 = vpack.c.b16 %v1438, %v1434
        %v1475 = vpack.c.b16 %v1443, %v1439
        %v1476 = vpack.c.b16 %v1444, %v1440
        %v1477 = vpack.c.b16 %v1445, %v1441
        %v1478 = vpack.c.b16 %v1446, %v1442
        %1511 = vmatprep.subr.bf16.mxu0 %v1448
        %1512 = vmatpush1.bf16.msra.mxu0 %v1447
        %1513 = vmatprep.subr.bf16.mxu0 %v1452
        %1514 = vmatpush1.bf16.msra.mxu0 %v1451
        %1515 = vmatprep.subr.bf16.mxu0 %v1456
        %1516 = vmatpush1.bf16.msra.mxu0 %v1455
        %1517 = vmatprep.subr.bf16.mxu0 %v1460
        %1518 = vmatpush1.bf16.msra.mxu0 %v1459
        %1519 = vmatprep.subr.bf16.mxu0 %v1464
        %1520 = vmatpush1.bf16.msra.mxu0 %v1463
        %1521 = vmatprep.subr.bf16.mxu0 %v1468
        %1522 = vmatpush1.bf16.msra.mxu0 %v1467
        %1523 = vmatprep.subr.bf16.mxu0 %v1472
        %1524 = vmatpush1.bf16.msra.mxu0 %v1471
        %1525 = vmatprep.subr.bf16.mxu0 %v1476
        %1526 = vmatpush1.bf16.msra.mxu0 %v1475
        %1527 = vmatprep.subr.bf16.mxu0 0
        %1528 = vmatpush1.bf16.msra.mxu0 0
        %1529 = vmatprep.subr.bf16.mxu0 0
        %1530 = vmatpush1.bf16.msra.mxu0 0
        %1531 = vmatprep.subr.bf16.mxu0 0
        %1532 = vmatpush1.bf16.msra.mxu0 0
        %1533 = vmatprep.subr.bf16.mxu0 0
        %1534 = vmatpush1.bf16.msra.mxu0 0
        %1535 = vmatprep.subr.bf16.mxu0 0
        %1536 = vmatpush1.bf16.msra.mxu0 0
        %1537 = vmatprep.subr.bf16.mxu0 0
        %1538 = vmatpush1.bf16.msra.mxu0 0
        %1539 = vmatprep.subr.bf16.mxu0 0
        %1540 = vmatpush1.bf16.msra.mxu0 0
        %1541 = vmatprep.subr.bf16.mxu0 0
        %1542 = vmatpush1.bf16.msra.mxu0 0
        %1543 = vmatprep.mubr.bf16.mxu0 0
        %1544 = vmatmul.mubr.bf16.gmra.mrb[0].mxu0 %v1318
        %v1545 = vpop.f32.mrb[0].mxu0
        %v1546 = vadd.f32 0.0, %v1545
        %v1547 = vpop.f32.mrb[0].mxu0
        %v1548 = vadd.f32 0.0, %v1547
        %v1549 = vpop.f32.mrb[0].mxu0
        %v1550 = vpop.f32.mrb[0].mxu0
        %1551 = vdwg.mxu0
        %1552 = vmatprep.subr.bf16.mxu0 %v1450
        %1553 = vmatpush1.bf16.msra.mxu0 %v1449
        %1554 = vmatprep.subr.bf16.mxu0 %v1454
        %1555 = vmatpush1.bf16.msra.mxu0 %v1453
        %1556 = vmatprep.subr.bf16.mxu0 %v1458
        %1557 = vmatpush1.bf16.msra.mxu0 %v1457
        %1558 = vmatprep.subr.bf16.mxu0 %v1462
        %1559 = vmatpush1.bf16.msra.mxu0 %v1461
        %1560 = vmatprep.subr.bf16.mxu0 %v1466
        %1561 = vmatpush1.bf16.msra.mxu0 %v1465
        %1562 = vmatprep.subr.bf16.mxu0 %v1470
        %1563 = vmatpush1.bf16.msra.mxu0 %v1469
        %1564 = vmatprep.subr.bf16.mxu0 %v1474
        %1565 = vmatpush1.bf16.msra.mxu0 %v1473
        %1566 = vmatprep.subr.bf16.mxu0 %v1478
        %1567 = vmatpush1.bf16.msra.mxu0 %v1477
        %1568 = vmatprep.subr.bf16.mxu0 0
        %1569 = vmatpush1.bf16.msra.mxu0 0
        %1570 = vmatprep.subr.bf16.mxu0 0
        %1571 = vmatpush1.bf16.msra.mxu0 0
        %1572 = vmatprep.subr.bf16.mxu0 0
        %1573 = vmatpush1.bf16.msra.mxu0 0
        %1574 = vmatprep.subr.bf16.mxu0 0
        %1575 = vmatpush1.bf16.msra.mxu0 0
        %1576 = vmatprep.subr.bf16.mxu0 0
        %1577 = vmatpush1.bf16.msra.mxu0 0
        %1578 = vmatprep.subr.bf16.mxu0 0
        %1579 = vmatpush1.bf16.msra.mxu0 0
        %1580 = vmatprep.subr.bf16.mxu0 0
        %1581 = vmatpush1.bf16.msra.mxu0 0
        %1582 = vmatprep.subr.bf16.mxu0 0
        %1583 = vmatpush1.bf16.msra.mxu0 0
        %1584 = vmatprep.mubr.bf16.mxu0 0
        %1585 = vmatmul.mubr.bf16.gmra.mrb[0].mxu0 %v1318
        %v1586 = vpop.f32.mrb[0].mxu0
        %v1587 = vadd.f32 0.0, %v1586
        %v1588 = vpop.f32.mrb[0].mxu0
        %v1589 = vadd.f32 0.0, %v1588
        %v1590 = vpop.f32.mrb[0].mxu0
        %v1591 = vpop.f32.mrb[0].mxu0
        %1592 = vdwg.mxu0
        %v1597 = vcombine.low %v1546, %v1548
        %v1598 = vcombine.low %v1587, %v1589
        %v1600 = vunpack.c.l.s4 1983009808
        %v1601 = vunpack.c.0.s8 %v1600
        %v1602 = vlaneseq
        %v1603 = vshrl.u32 %v1602, 7
        %v1604 = vsub.s32 %v1601, %v1603
        %v1605 = vrot.slane %v1597, %v1604
        %v1607 = vunpack.c.l.s4 1983009808
        %v1608 = vunpack.c.0.s8 %v1607
        %v1609 = vlaneseq
        %v1610 = vshrl.u32 %v1609, 7
        %v1611 = vsub.s32 %v1608, %v1610
        %v1612 = vrot.slane %v1598, %v1611
        %v1613 = vcombine.low %v1605, %v1612
        %v1615 = vadd.f32 %v1316, %v1613
        %v1616 = vxor.u32 %v1615, 2147483648
        %v1617 = vmul.f32 %v1616, 1.442695
        %v1618 = vpow.pop %v1617
        %v1619 = vadd.f32 %v1618, 1.0
        %v1620 = vrcp.pop %v1619
        %v1621 = vmul.f32 1.0, %v1620
        %v1623 = vrot.slane %v1615, 2
        %v1625 = vxor.u32 %v1623, 2147483648
        %v1626 = vmul.f32 %v1625, 1.442695
        %v1627 = vpow.pop %v1626
        %v1628 = vadd.f32 %v1627, 1.0
        %v1629 = vrcp.pop %v1628
        %v1630 = vmul.f32 1.0, %v1629
        %v1631 = vrot.slane %v1615, 4
        %v1633 = vtanh.pop %v1631
        %v1634 = vrot.slane %v1615, 6
        %v1636 = vxor.u32 %v1634, 2147483648
        %v1637 = vmul.f32 %v1636, 1.442695
        %v1638 = vpow.pop %v1637
        %v1639 = vadd.f32 %v1638, 1.0
        %v1640 = vrcp.pop %v1639
        %v1641 = vmul.f32 1.0, %v1640
        %v1642 = vld [vmem:[#allocation3] sm:$0x3]
        %v1643 = vmul.f32 %v1630, %v1642
        %v1644 = vmul.f32 %v1621, %v1633
        %v1645 = vadd.f32 %v1643, %v1644
        %v1646 = vtanh.pop %v1645
        %v1647 = vmul.f32 %v1641, %v1646
        %1648 = vst [vmem:[#allocation2] sm:$0x3] %v1647
        %1649 = vst [vmem:[#allocation3] sm:$0x3] %v1645
        %v1650 = vpack.c.bf16 %v1647, %v1647
        %s1651 = scalar_lea.vmem %s269, %s1312 [#allocation7]
        %1652 = vst [vmem:[%s1651] sm:$0x1] %v1650
        %s1653 = sand.u32 %s108, 1
        %s1654 = sand.u32 %s108, 1
        %s1655 = smul.addr %s1654, 4
        %s1656 = scalar_lea.vmem [#allocation7], %s1655
        // Predicated region
        $region78: #{prose_mt_forward.8} parent=64 // pred_check
          %p1657 = pneg %p118
        $region79: #{prose_mt_forward.8} parent=64 // pred_check_branch
          %1659 = sbr.rel (%p1657) target = $region81
        $region80: #{prose_mt_forward.8} parent=64 // pred_region
          %s1660 = smul.u32 %s21, 2
          %s1661 = ssub.s32 1, %s1660
          %s1662 = smul.u32 %s20, %s1661
          %s1663 = sadd.s32 %s21, %s1662
          %s1664 = smul.u32 4, %s1663
          %s1665 = smul.addr %s1664, 2
          %s1666 = sadd.s32 %s20, %s1665
          %s1667 = scalar_lea.vmem %s2, %s1666
          // Predicated region
          $region82: #{prose_mt_forward.8} parent=80 // pred_check
            _
          $region83: #{prose_mt_forward.8} parent=80 // pred_check_branch
            %1669 = sbr.rel (0) target = $region85
          $region84: #{prose_mt_forward.8} parent=80 // pred_region
            // Predicated region
            $region86: #{prose_mt_forward.8} parent=84 // pred_check
              _
            $region87: #{prose_mt_forward.8} parent=84 // pred_check_branch
              %1671 = sbr.rel target = $region89
            $region88: #{prose_mt_forward.8} parent=84 // pred_region
              // Predicated region
              $region101: #{prose_mt_forward.8} parent=88 // pred_check
                _
              $region102: #{prose_mt_forward.8} parent=88 // pred_check_branch
                %1692 = sbr.rel (0) target = $region104
              $region103: #{prose_mt_forward.8} parent=88 // pred_region
                loop: start=0, step=1, limit=1
                $region105: #{prose_mt_forward.8} parent=103 // loop_pre_header
                  _
                $region106: #{prose_mt_forward.8} parent=103 // loop_header
                  %s1695 = sphi 0, %s1699
                  %p1696 = scmp.ge.s32.totalorder %s1695, 1
                  %s1700 = sphi %s1656, %s1656
                  %s1701 = sphi %s1667, %s1667
                $region107: #{prose_mt_forward.8} parent=103 // loop_header_branch
                  %1698 = sbr.rel (%p1696) target = $region111
                $region108: #{prose_mt_forward.8} parent=103 // loop_body
                  %v1702 = vld [vmem:[%s1700] sm:$0x1]
                  %1703 = vst [vmem:[%s1701] sm:$0x1] %v1702
                  %v1704 = vld [vmem:[%s1700 + $0x1] sm:$0x1]
                  %1705 = vst [vmem:[%s1701 + $0x2] sm:$0x1] %v1704
                  %v1706 = vld [vmem:[%s1700 + $0x2] sm:$0x1]
                  %1707 = vst [vmem:[%s1701 + $0x4] sm:$0x1] %v1706
                  %v1708 = vld [vmem:[%s1700 + $0x3] sm:$0x1]
                  %1709 = vst [vmem:[%s1701 + $0x6] sm:$0x1] %v1708
                $region109: #{prose_mt_forward.8} parent=103 // loop_footer
                  %s1699 = sadd.s32 1, %s1695
                $region110: #{prose_mt_forward.8} parent=103 // loop_footer_branch
                  %1694 = sbr.rel target = $region106
                $region111: #{prose_mt_forward.8} parent=103 // loop_exit
                  _
              $region104: #{prose_mt_forward.8} parent=88 // pred_fallthru
                _
            $region89: #{prose_mt_forward.8} parent=84 // pred_fallthru
              _
            // Predicated region
            $region90: #{prose_mt_forward.8} parent=84 // pred_check
              _
            $region91: #{prose_mt_forward.8} parent=84 // pred_check_branch
              %1673 = sbr.rel (0) target = $region93
            $region92: #{prose_mt_forward.8} parent=84 // pred_region
              loop: start=0, step=1, limit=1
              $region94: #{prose_mt_forward.8} parent=92 // loop_pre_header
                _
              $region95: #{prose_mt_forward.8} parent=92 // loop_header
                %s1676 = sphi 0, %s1680
                %p1677 = scmp.ge.s32.totalorder %s1676, 1
                %s1681 = sphi %s1656, %s1656
                %s1682 = sphi %s1667, %s1667
              $region96: #{prose_mt_forward.8} parent=92 // loop_header_branch
                %1679 = sbr.rel (%p1677) target = $region100
              $region97: #{prose_mt_forward.8} parent=92 // loop_body
                %v1683 = vld [vmem:[%s1681] sm:$0x1]
                %1684 = vst [vmem:[%s1682] sm:$0x1] %v1683
                %v1685 = vld [vmem:[%s1681 + $0x1] sm:$0x1]
                %1686 = vst [vmem:[%s1682 + $0x2] sm:$0x1] %v1685
                %v1687 = vld [vmem:[%s1681 + $0x2] sm:$0x1]
                %1688 = vst [vmem:[%s1682 + $0x4] sm:$0x1] %v1687
                %v1689 = vld [vmem:[%s1681 + $0x3] sm:$0x1]
                %1690 = vst [vmem:[%s1682 + $0x6] sm:$0x1] %v1689
              $region98: #{prose_mt_forward.8} parent=92 // loop_footer
                %s1680 = sadd.s32 1, %s1676
              $region99: #{prose_mt_forward.8} parent=92 // loop_footer_branch
                %1675 = sbr.rel target = $region95
              $region100: #{prose_mt_forward.8} parent=92 // loop_exit
                _
            $region93: #{prose_mt_forward.8} parent=84 // pred_fallthru
              _
          $region85: #{prose_mt_forward.8} parent=80 // pred_fallthru
            _
          %1710 = vnop
        $region81: #{prose_mt_forward.8} parent=64 // pred_fallthru
          _
      $region65: #{prose_mt_forward.8} parent=5 // pred_fallthru
        _
      %p1711 = scmp.le.s32.totalorder 2, %s11
      // Predicated region
      $region112: #{prose_mt_forward.8} parent=5 // pred_check
        %p1712 = pneg %p1711
      $region113: #{prose_mt_forward.8} parent=5 // pred_check_branch
        %1714 = sbr.rel (%p1712) target = $region115
      $region114: #{prose_mt_forward.8} parent=5 // pred_region
        %s1715 = ssub.s32 %s11, 2
        // Predicated region
        $region116: #{prose_mt_forward.8} parent=114 // pred_check
          %p1716 = pneg %p124
        $region117: #{prose_mt_forward.8} parent=114 // pred_check_branch
          %1718 = sbr.rel (%p1716) target = $region119
        $region118: #{prose_mt_forward.8} parent=114 // pred_region
          %s1719 = sand.u32 %s109, 1
          %s1720 = sand.u32 %s109, 1
          %s1721 = smul.addr %s1720, 4
          %s1722 = scalar_lea.vmem [#allocation7], %s1721
        $region119: #{prose_mt_forward.8} parent=114 // pred_fallthru
          _
      $region115: #{prose_mt_forward.8} parent=5 // pred_fallthru
        _
    $region6: #{prose_mt_forward.8} parent=1 // loop_footer
      %s15 = sadd.s32 1, %s11
    $region7: #{prose_mt_forward.8} parent=1 // loop_footer_branch
      %10 = sbr.rel target = $region3
    $region8: #{prose_mt_forward.8} parent=1 // loop_exit
      _
    %1723 = vsyncpa [#allocation6], 1
    %s1724 = scalar_lea.sflag [#allocation6], 1
    %1725 = vsyncpa %s1724, 1

// kernel: prose_mt_forward.11
$region0: #{prose_mt_forward.11}
  #allocation0 [shape = 'u32[]', space=smem, size = 0x4, offset = 0x4, fixed_abs, tag = 'smem constant byte address 0x4 - core index']
  #allocation1 [shape = 'u32[144,128]{1,0:T(1,128)}', space=vmem, size = 0x12000, scoped, tag = 'internal scratch']
  %s0 = inlined_call_operand.vmem [shape: bf16[16,256], index: 0, kind: input, shape index: {}]
  %s1 = inlined_call_operand.vmem [shape: bf16[256,1024], index: 1, kind: input, shape index: {}]
  %s2 = inlined_call_operand.vmem [shape: f32[1,1024], index: 2, kind: input, shape index: {}]
  %s3 = inlined_call_operand.vmem [shape: bf16[16,1024], index: 3, kind: output, shape index: {}]
  %s4 = sld [smem:[#allocation0]]
  $region22: #{prose_mt_forward.11} parent=0
    _
  %s6 = ssub.s32 1, %s4
  %s7 = scalar_select 0, %s6, %s4
  // Predicated region
  $region2: #{prose_mt_forward.11} parent=0 // pred_check
    _
  $region3: #{prose_mt_forward.11} parent=0 // pred_check_branch
    %9 = sbr.rel (0) target = $region5
  $region4: #{prose_mt_forward.11} parent=0 // pred_region
    _
  $region5: #{prose_mt_forward.11} parent=0 // pred_fallthru
    _
  // Predicated region
  $region6: #{prose_mt_forward.11} parent=0 // pred_check
    _
  $region7: #{prose_mt_forward.11} parent=0 // pred_check_branch
    %11 = sbr.rel (0) target = $region9
  $region8: #{prose_mt_forward.11} parent=0 // pred_region
    _
  $region9: #{prose_mt_forward.11} parent=0 // pred_fallthru
    _
  // Predicated region
  $region10: #{prose_mt_forward.11} parent=0 // pred_check
    _
  $region11: #{prose_mt_forward.11} parent=0 // pred_check_branch
    %13 = sbr.rel (0) target = $region13
  $region12: #{prose_mt_forward.11} parent=0 // pred_region
    _
  $region13: #{prose_mt_forward.11} parent=0 // pred_fallthru
    _
  %v14 = vld [vmem:[%s0] sm:$0xff]
  %v15 = vld [vmem:[%s0 + $0x8] sm:$0xff]
  %v16 = vld [vmem:[%s1] sm:$0xff]
  %v17 = vld [vmem:[%s1 + $0x8] sm:$0xff]
  %v18 = vld [vmem:[%s1 + $0x10] sm:$0xff]
  %v19 = vld [vmem:[%s1 + $0x18] sm:$0xff]
  %v20 = vld [vmem:[%s1 + $0x20] sm:$0xff]
  %v21 = vld [vmem:[%s1 + $0x28] sm:$0xff]
  %v22 = vld [vmem:[%s1 + $0x30] sm:$0xff]
  %v23 = vld [vmem:[%s1 + $0x38] sm:$0xff]
  %v24 = vld [vmem:[%s1 + $0x40] sm:$0xff]
  %v25 = vld [vmem:[%s1 + $0x48] sm:$0xff]
  %v26 = vld [vmem:[%s1 + $0x50] sm:$0xff]
  %v27 = vld [vmem:[%s1 + $0x58] sm:$0xff]
  %v28 = vld [vmem:[%s1 + $0x60] sm:$0xff]
  %v29 = vld [vmem:[%s1 + $0x68] sm:$0xff]
  %v30 = vld [vmem:[%s1 + $0x70] sm:$0xff]
  %v31 = vld [vmem:[%s1 + $0x78] sm:$0xff]
  %v32 = vld [vmem:[%s1 + $0x80] sm:$0xff]
  %v33 = vld [vmem:[%s1 + $0x88] sm:$0xff]
  %v34 = vld [vmem:[%s1 + $0x90] sm:$0xff]
  %v35 = vld [vmem:[%s1 + $0x98] sm:$0xff]
  %v36 = vld [vmem:[%s1 + $0xa0] sm:$0xff]
  %v37 = vld [vmem:[%s1 + $0xa8] sm:$0xff]
  %v38 = vld [vmem:[%s1 + $0xb0] sm:$0xff]
  %v39 = vld [vmem:[%s1 + $0xb8] sm:$0xff]
  %v40 = vld [vmem:[%s1 + $0xc0] sm:$0xff]
  %v41 = vld [vmem:[%s1 + $0xc8] sm:$0xff]
  %v42 = vld [vmem:[%s1 + $0xd0] sm:$0xff]
  %v43 = vld [vmem:[%s1 + $0xd8] sm:$0xff]
  %v44 = vld [vmem:[%s1 + $0xe0] sm:$0xff]
  %v45 = vld [vmem:[%s1 + $0xe8] sm:$0xff]
  %v46 = vld [vmem:[%s1 + $0xf0] sm:$0xff]
  %v47 = vld [vmem:[%s1 + $0xf8] sm:$0xff]
  %v48 = vld [vmem:[%s1 + $0x100] sm:$0xff]
  %v49 = vld [vmem:[%s1 + $0x108] sm:$0xff]
  %v50 = vld [vmem:[%s1 + $0x110] sm:$0xff]
  %v51 = vld [vmem:[%s1 + $0x118] sm:$0xff]
  %v52 = vld [vmem:[%s1 + $0x120] sm:$0xff]
  %v53 = vld [vmem:[%s1 + $0x128] sm:$0xff]
  %v54 = vld [vmem:[%s1 + $0x130] sm:$0xff]
  %v55 = vld [vmem:[%s1 + $0x138] sm:$0xff]
  %v56 = vld [vmem:[%s1 + $0x140] sm:$0xff]
  %v57 = vld [vmem:[%s1 + $0x148] sm:$0xff]
  %v58 = vld [vmem:[%s1 + $0x150] sm:$0xff]
  %v59 = vld [vmem:[%s1 + $0x158] sm:$0xff]
  %v60 = vld [vmem:[%s1 + $0x160] sm:$0xff]
  %v61 = vld [vmem:[%s1 + $0x168] sm:$0xff]
  %v62 = vld [vmem:[%s1 + $0x170] sm:$0xff]
  %v63 = vld [vmem:[%s1 + $0x178] sm:$0xff]
  %v64 = vld [vmem:[%s1 + $0x180] sm:$0xff]
  %v65 = vld [vmem:[%s1 + $0x188] sm:$0xff]
  %v66 = vld [vmem:[%s1 + $0x190] sm:$0xff]
  %v67 = vld [vmem:[%s1 + $0x198] sm:$0xff]
  %v68 = vld [vmem:[%s1 + $0x1a0] sm:$0xff]
  %v69 = vld [vmem:[%s1 + $0x1a8] sm:$0xff]
  %v70 = vld [vmem:[%s1 + $0x1b0] sm:$0xff]
  %v71 = vld [vmem:[%s1 + $0x1b8] sm:$0xff]
  %v72 = vld [vmem:[%s1 + $0x1c0] sm:$0xff]
  %v73 = vld [vmem:[%s1 + $0x1c8] sm:$0xff]
  %v74 = vld [vmem:[%s1 + $0x1d0] sm:$0xff]
  %v75 = vld [vmem:[%s1 + $0x1d8] sm:$0xff]
  %v76 = vld [vmem:[%s1 + $0x1e0] sm:$0xff]
  %v77 = vld [vmem:[%s1 + $0x1e8] sm:$0xff]
  %v78 = vld [vmem:[%s1 + $0x1f0] sm:$0xff]
  %v79 = vld [vmem:[%s1 + $0x1f8] sm:$0xff]
  %v80 = vld [vmem:[%s1 + $0x200] sm:$0xff]
  %v81 = vld [vmem:[%s1 + $0x208] sm:$0xff]
  %v82 = vld [vmem:[%s1 + $0x210] sm:$0xff]
  %v83 = vld [vmem:[%s1 + $0x218] sm:$0xff]
  %v84 = vld [vmem:[%s1 + $0x220] sm:$0xff]
  %v85 = vld [vmem:[%s1 + $0x228] sm:$0xff]
  %v86 = vld [vmem:[%s1 + $0x230] sm:$0xff]
  %v87 = vld [vmem:[%s1 + $0x238] sm:$0xff]
  %v88 = vld [vmem:[%s1 + $0x240] sm:$0xff]
  %v89 = vld [vmem:[%s1 + $0x248] sm:$0xff]
  %v90 = vld [vmem:[%s1 + $0x250] sm:$0xff]
  %v91 = vld [vmem:[%s1 + $0x258] sm:$0xff]
  %v92 = vld [vmem:[%s1 + $0x260] sm:$0xff]
  %v93 = vld [vmem:[%s1 + $0x268] sm:$0xff]
  %v94 = vld [vmem:[%s1 + $0x270] sm:$0xff]
  %v95 = vld [vmem:[%s1 + $0x278] sm:$0xff]
  %v96 = vld [vmem:[%s1 + $0x280] sm:$0xff]
  %v97 = vld [vmem:[%s1 + $0x288] sm:$0xff]
  %v98 = vld [vmem:[%s1 + $0x290] sm:$0xff]
  %v99 = vld [vmem:[%s1 + $0x298] sm:$0xff]
  %v100 = vld [vmem:[%s1 + $0x2a0] sm:$0xff]
  %v101 = vld [vmem:[%s1 + $0x2a8] sm:$0xff]
  %v102 = vld [vmem:[%s1 + $0x2b0] sm:$0xff]
  %v103 = vld [vmem:[%s1 + $0x2b8] sm:$0xff]
  %v104 = vld [vmem:[%s1 + $0x2c0] sm:$0xff]
  %v105 = vld [vmem:[%s1 + $0x2c8] sm:$0xff]
  %v106 = vld [vmem:[%s1 + $0x2d0] sm:$0xff]
  %v107 = vld [vmem:[%s1 + $0x2d8] sm:$0xff]
  %v108 = vld [vmem:[%s1 + $0x2e0] sm:$0xff]
  %v109 = vld [vmem:[%s1 + $0x2e8] sm:$0xff]
  %v110 = vld [vmem:[%s1 + $0x2f0] sm:$0xff]
  %v111 = vld [vmem:[%s1 + $0x2f8] sm:$0xff]
  %v112 = vld [vmem:[%s1 + $0x300] sm:$0xff]
  %v113 = vld [vmem:[%s1 + $0x308] sm:$0xff]
  %v114 = vld [vmem:[%s1 + $0x310] sm:$0xff]
  %v115 = vld [vmem:[%s1 + $0x318] sm:$0xff]
  %v116 = vld [vmem:[%s1 + $0x320] sm:$0xff]
  %v117 = vld [vmem:[%s1 + $0x328] sm:$0xff]
  %v118 = vld [vmem:[%s1 + $0x330] sm:$0xff]
  %v119 = vld [vmem:[%s1 + $0x338] sm:$0xff]
  %v120 = vld [vmem:[%s1 + $0x340] sm:$0xff]
  %v121 = vld [vmem:[%s1 + $0x348] sm:$0xff]
  %v122 = vld [vmem:[%s1 + $0x350] sm:$0xff]
  %v123 = vld [vmem:[%s1 + $0x358] sm:$0xff]
  %v124 = vld [vmem:[%s1 + $0x360] sm:$0xff]
  %v125 = vld [vmem:[%s1 + $0x368] sm:$0xff]
  %v126 = vld [vmem:[%s1 + $0x370] sm:$0xff]
  %v127 = vld [vmem:[%s1 + $0x378] sm:$0xff]
  %v128 = vld [vmem:[%s1 + $0x380] sm:$0xff]
  %v129 = vld [vmem:[%s1 + $0x388] sm:$0xff]
  %v130 = vld [vmem:[%s1 + $0x390] sm:$0xff]
  %v131 = vld [vmem:[%s1 + $0x398] sm:$0xff]
  %v132 = vld [vmem:[%s1 + $0x3a0] sm:$0xff]
  %v133 = vld [vmem:[%s1 + $0x3a8] sm:$0xff]
  %v134 = vld [vmem:[%s1 + $0x3b0] sm:$0xff]
  %v135 = vld [vmem:[%s1 + $0x3b8] sm:$0xff]
  %v136 = vld [vmem:[%s1 + $0x3c0] sm:$0xff]
  %v137 = vld [vmem:[%s1 + $0x3c8] sm:$0xff]
  %v138 = vld [vmem:[%s1 + $0x3d0] sm:$0xff]
  %v139 = vld [vmem:[%s1 + $0x3d8] sm:$0xff]
  %v140 = vld [vmem:[%s1 + $0x3e0] sm:$0xff]
  %v141 = vld [vmem:[%s1 + $0x3e8] sm:$0xff]
  %v142 = vld [vmem:[%s1 + $0x3f0] sm:$0xff]
  %v143 = vld [vmem:[%s1 + $0x3f8] sm:$0xff]
  %v144 = vld [vmem:[%s2] sm:$0xff]
  %v146 = vlaneseq
  %v147 = vshrl.u32 %v146, 7
  %v148 = vsub.s32 0, %v147
  %v149 = vrot.slane %v144, %v148
  %v150 = vlaneseq
  %v151 = vshrl.u32 %v150, 7
  %v152 = vsub.s32 1, %v151
  %v153 = vrot.slane %v144, %v152
  %v154 = vlaneseq
  %v155 = vshrl.u32 %v154, 7
  %v156 = vsub.s32 2, %v155
  %v157 = vrot.slane %v144, %v156
  %v158 = vlaneseq
  %v159 = vshrl.u32 %v158, 7
  %v160 = vsub.s32 3, %v159
  %v161 = vrot.slane %v144, %v160
  %v162 = vlaneseq
  %v163 = vshrl.u32 %v162, 7
  %v164 = vsub.s32 4, %v163
  %v165 = vrot.slane %v144, %v164
  %v166 = vlaneseq
  %v167 = vshrl.u32 %v166, 7
  %v168 = vsub.s32 5, %v167
  %v169 = vrot.slane %v144, %v168
  %v170 = vlaneseq
  %v171 = vshrl.u32 %v170, 7
  %v172 = vsub.s32 6, %v171
  %v173 = vrot.slane %v144, %v172
  %v174 = vlaneseq
  %v175 = vshrl.u32 %v174, 7
  %v176 = vsub.s32 7, %v175
  %v177 = vrot.slane %v144, %v176
  %v188 = vunpack.c.l.b16 %v14
  %v189 = vunpack.c.h.b16 %v14
  %v190 = vunpack.c.l.b16 %v15
  %v191 = vunpack.c.h.b16 %v15
  %v192 = vpack.c.b16 %v190, %v188
  %v193 = vpack.c.b16 %v191, %v189
  %v324 = vunpack.c.l.b16 %v16
  %v325 = vunpack.c.h.b16 %v16
  %v326 = vunpack.c.l.b16 %v17
  %v327 = vunpack.c.h.b16 %v17
  %v328 = vunpack.c.l.b16 %v18
  %v329 = vunpack.c.h.b16 %v18
  %v330 = vunpack.c.l.b16 %v19
  %v331 = vunpack.c.h.b16 %v19
  %v332 = vunpack.c.l.b16 %v20
  %v333 = vunpack.c.h.b16 %v20
  %v334 = vunpack.c.l.b16 %v21
  %v335 = vunpack.c.h.b16 %v21
  %v336 = vunpack.c.l.b16 %v22
  %v337 = vunpack.c.h.b16 %v22
  %v338 = vunpack.c.l.b16 %v23
  %v339 = vunpack.c.h.b16 %v23
  %v340 = vunpack.c.l.b16 %v24
  %v341 = vunpack.c.h.b16 %v24
  %v342 = vunpack.c.l.b16 %v25
  %v343 = vunpack.c.h.b16 %v25
  %v344 = vunpack.c.l.b16 %v26
  %v345 = vunpack.c.h.b16 %v26
  %v346 = vunpack.c.l.b16 %v27
  %v347 = vunpack.c.h.b16 %v27
  %v348 = vunpack.c.l.b16 %v28
  %v349 = vunpack.c.h.b16 %v28
  %v350 = vunpack.c.l.b16 %v29
  %v351 = vunpack.c.h.b16 %v29
  %v352 = vunpack.c.l.b16 %v30
  %v353 = vunpack.c.h.b16 %v30
  %v354 = vunpack.c.l.b16 %v31
  %v355 = vunpack.c.h.b16 %v31
  %v356 = vunpack.c.l.b16 %v32
  %v357 = vunpack.c.h.b16 %v32
  %v358 = vunpack.c.l.b16 %v33
  %v359 = vunpack.c.h.b16 %v33
  %v360 = vunpack.c.l.b16 %v34
  %v361 = vunpack.c.h.b16 %v34
  %v362 = vunpack.c.l.b16 %v35
  %v363 = vunpack.c.h.b16 %v35
  %v364 = vunpack.c.l.b16 %v36
  %v365 = vunpack.c.h.b16 %v36
  %v366 = vunpack.c.l.b16 %v37
  %v367 = vunpack.c.h.b16 %v37
  %v368 = vunpack.c.l.b16 %v38
  %v369 = vunpack.c.h.b16 %v38
  %v370 = vunpack.c.l.b16 %v39
  %v371 = vunpack.c.h.b16 %v39
  %v372 = vunpack.c.l.b16 %v40
  %v373 = vunpack.c.h.b16 %v40
  %v374 = vunpack.c.l.b16 %v41
  %v375 = vunpack.c.h.b16 %v41
  %v376 = vunpack.c.l.b16 %v42
  %v377 = vunpack.c.h.b16 %v42
  %v378 = vunpack.c.l.b16 %v43
  %v379 = vunpack.c.h.b16 %v43
  %v380 = vunpack.c.l.b16 %v44
  %v381 = vunpack.c.h.b16 %v44
  %v382 = vunpack.c.l.b16 %v45
  %v383 = vunpack.c.h.b16 %v45
  %v384 = vunpack.c.l.b16 %v46
  %v385 = vunpack.c.h.b16 %v46
  %v386 = vunpack.c.l.b16 %v47
  %v387 = vunpack.c.h.b16 %v47
  %v388 = vunpack.c.l.b16 %v48
  %v389 = vunpack.c.h.b16 %v48
  %v390 = vunpack.c.l.b16 %v49
  %v391 = vunpack.c.h.b16 %v49
  %v392 = vunpack.c.l.b16 %v50
  %v393 = vunpack.c.h.b16 %v50
  %v394 = vunpack.c.l.b16 %v51
  %v395 = vunpack.c.h.b16 %v51
  %v396 = vunpack.c.l.b16 %v52
  %v397 = vunpack.c.h.b16 %v52
  %v398 = vunpack.c.l.b16 %v53
  %v399 = vunpack.c.h.b16 %v53
  %v400 = vunpack.c.l.b16 %v54
  %v401 = vunpack.c.h.b16 %v54
  %v402 = vunpack.c.l.b16 %v55
  %v403 = vunpack.c.h.b16 %v55
  %v404 = vunpack.c.l.b16 %v56
  %v405 = vunpack.c.h.b16 %v56
  %v406 = vunpack.c.l.b16 %v57
  %v407 = vunpack.c.h.b16 %v57
  %v408 = vunpack.c.l.b16 %v58
  %v409 = vunpack.c.h.b16 %v58
  %v410 = vunpack.c.l.b16 %v59
  %v411 = vunpack.c.h.b16 %v59
  %v412 = vunpack.c.l.b16 %v60
  %v413 = vunpack.c.h.b16 %v60
  %v414 = vunpack.c.l.b16 %v61
  %v415 = vunpack.c.h.b16 %v61
  %v416 = vunpack.c.l.b16 %v62
  %v417 = vunpack.c.h.b16 %v62
  %v418 = vunpack.c.l.b16 %v63
  %v419 = vunpack.c.h.b16 %v63
  %v420 = vunpack.c.l.b16 %v64
  %v421 = vunpack.c.h.b16 %v64
  %v422 = vunpack.c.l.b16 %v65
  %v423 = vunpack.c.h.b16 %v65
  %v424 = vunpack.c.l.b16 %v66
  %v425 = vunpack.c.h.b16 %v66
  %v426 = vunpack.c.l.b16 %v67
  %v427 = vunpack.c.h.b16 %v67
  %v428 = vunpack.c.l.b16 %v68
  %v429 = vunpack.c.h.b16 %v68
  %v430 = vunpack.c.l.b16 %v69
  %v431 = vunpack.c.h.b16 %v69
  %v432 = vunpack.c.l.b16 %v70
  %v433 = vunpack.c.h.b16 %v70
  %v434 = vunpack.c.l.b16 %v71
  %v435 = vunpack.c.h.b16 %v71
  %v436 = vunpack.c.l.b16 %v72
  %v437 = vunpack.c.h.b16 %v72
  %v438 = vunpack.c.l.b16 %v73
  %v439 = vunpack.c.h.b16 %v73
  %v440 = vunpack.c.l.b16 %v74
  %v441 = vunpack.c.h.b16 %v74
  %v442 = vunpack.c.l.b16 %v75
  %v443 = vunpack.c.h.b16 %v75
  %v444 = vunpack.c.l.b16 %v76
  %v445 = vunpack.c.h.b16 %v76
  %v446 = vunpack.c.l.b16 %v77
  %v447 = vunpack.c.h.b16 %v77
  %v448 = vunpack.c.l.b16 %v78
  %v449 = vunpack.c.h.b16 %v78
  %v450 = vunpack.c.l.b16 %v79
  %v451 = vunpack.c.h.b16 %v79
  %v452 = vunpack.c.l.b16 %v80
  %v453 = vunpack.c.h.b16 %v80
  %v454 = vunpack.c.l.b16 %v81
  %v455 = vunpack.c.h.b16 %v81
  %v456 = vunpack.c.l.b16 %v82
  %v457 = vunpack.c.h.b16 %v82
  %v458 = vunpack.c.l.b16 %v83
  %v459 = vunpack.c.h.b16 %v83
  %v460 = vunpack.c.l.b16 %v84
  %v461 = vunpack.c.h.b16 %v84
  %v462 = vunpack.c.l.b16 %v85
  %v463 = vunpack.c.h.b16 %v85
  %v464 = vunpack.c.l.b16 %v86
  %v465 = vunpack.c.h.b16 %v86
  %v466 = vunpack.c.l.b16 %v87
  %v467 = vunpack.c.h.b16 %v87
  %v468 = vunpack.c.l.b16 %v88
  %v469 = vunpack.c.h.b16 %v88
  %v470 = vunpack.c.l.b16 %v89
  %v471 = vunpack.c.h.b16 %v89
  %v472 = vunpack.c.l.b16 %v90
  %v473 = vunpack.c.h.b16 %v90
  %v474 = vunpack.c.l.b16 %v91
  %v475 = vunpack.c.h.b16 %v91
  %v476 = vunpack.c.l.b16 %v92
  %v477 = vunpack.c.h.b16 %v92
  %v478 = vunpack.c.l.b16 %v93
  %v479 = vunpack.c.h.b16 %v93
  %v480 = vunpack.c.l.b16 %v94
  %v481 = vunpack.c.h.b16 %v94
  %v482 = vunpack.c.l.b16 %v95
  %v483 = vunpack.c.h.b16 %v95
  %v484 = vunpack.c.l.b16 %v96
  %v485 = vunpack.c.h.b16 %v96
  %v486 = vunpack.c.l.b16 %v97
  %v487 = vunpack.c.h.b16 %v97
  %v488 = vunpack.c.l.b16 %v98
  %v489 = vunpack.c.h.b16 %v98
  %v490 = vunpack.c.l.b16 %v99
  %v491 = vunpack.c.h.b16 %v99
  %v492 = vunpack.c.l.b16 %v100
  %v493 = vunpack.c.h.b16 %v100
  %v494 = vunpack.c.l.b16 %v101
  %v495 = vunpack.c.h.b16 %v101
  %v496 = vunpack.c.l.b16 %v102
  %v497 = vunpack.c.h.b16 %v102
  %v498 = vunpack.c.l.b16 %v103
  %v499 = vunpack.c.h.b16 %v103
  %v500 = vunpack.c.l.b16 %v104
  %v501 = vunpack.c.h.b16 %v104
  %v502 = vunpack.c.l.b16 %v105
  %v503 = vunpack.c.h.b16 %v105
  %v504 = vunpack.c.l.b16 %v106
  %v505 = vunpack.c.h.b16 %v106
  %v506 = vunpack.c.l.b16 %v107
  %v507 = vunpack.c.h.b16 %v107
  %v508 = vunpack.c.l.b16 %v108
  %v509 = vunpack.c.h.b16 %v108
  %v510 = vunpack.c.l.b16 %v109
  %v511 = vunpack.c.h.b16 %v109
  %v512 = vunpack.c.l.b16 %v110
  %v513 = vunpack.c.h.b16 %v110
  %v514 = vunpack.c.l.b16 %v111
  %v515 = vunpack.c.h.b16 %v111
  %v516 = vunpack.c.l.b16 %v112
  %v517 = vunpack.c.h.b16 %v112
  %v518 = vunpack.c.l.b16 %v113
  %v519 = vunpack.c.h.b16 %v113
  %v520 = vunpack.c.l.b16 %v114
  %v521 = vunpack.c.h.b16 %v114
  %v522 = vunpack.c.l.b16 %v115
  %v523 = vunpack.c.h.b16 %v115
  %v524 = vunpack.c.l.b16 %v116
  %v525 = vunpack.c.h.b16 %v116
  %v526 = vunpack.c.l.b16 %v117
  %v527 = vunpack.c.h.b16 %v117
  %v528 = vunpack.c.l.b16 %v118
  %v529 = vunpack.c.h.b16 %v118
  %v530 = vunpack.c.l.b16 %v119
  %v531 = vunpack.c.h.b16 %v119
  %v532 = vunpack.c.l.b16 %v120
  %v533 = vunpack.c.h.b16 %v120
  %v534 = vunpack.c.l.b16 %v121
  %v535 = vunpack.c.h.b16 %v121
  %v536 = vunpack.c.l.b16 %v122
  %v537 = vunpack.c.h.b16 %v122
  %v538 = vunpack.c.l.b16 %v123
  %v539 = vunpack.c.h.b16 %v123
  %v540 = vunpack.c.l.b16 %v124
  %v541 = vunpack.c.h.b16 %v124
  %v542 = vunpack.c.l.b16 %v125
  %v543 = vunpack.c.h.b16 %v125
  %v544 = vunpack.c.l.b16 %v126
  %v545 = vunpack.c.h.b16 %v126
  %v546 = vunpack.c.l.b16 %v127
  %v547 = vunpack.c.h.b16 %v127
  %v548 = vunpack.c.l.b16 %v128
  %v549 = vunpack.c.h.b16 %v128
  %v550 = vunpack.c.l.b16 %v129
  %v551 = vunpack.c.h.b16 %v129
  %v552 = vunpack.c.l.b16 %v130
  %v553 = vunpack.c.h.b16 %v130
  %v554 = vunpack.c.l.b16 %v131
  %v555 = vunpack.c.h.b16 %v131
  %v556 = vunpack.c.l.b16 %v132
  %v557 = vunpack.c.h.b16 %v132
  %v558 = vunpack.c.l.b16 %v133
  %v559 = vunpack.c.h.b16 %v133
  %v560 = vunpack.c.l.b16 %v134
  %v561 = vunpack.c.h.b16 %v134
  %v562 = vunpack.c.l.b16 %v135
  %v563 = vunpack.c.h.b16 %v135
  %v564 = vunpack.c.l.b16 %v136
  %v565 = vunpack.c.h.b16 %v136
  %v566 = vunpack.c.l.b16 %v137
  %v567 = vunpack.c.h.b16 %v137
  %v568 = vunpack.c.l.b16 %v138
  %v569 = vunpack.c.h.b16 %v138
  %v570 = vunpack.c.l.b16 %v139
  %v571 = vunpack.c.h.b16 %v139
  %v572 = vunpack.c.l.b16 %v140
  %v573 = vunpack.c.h.b16 %v140
  %v574 = vunpack.c.l.b16 %v141
  %v575 = vunpack.c.h.b16 %v141
  %v576 = vunpack.c.l.b16 %v142
  %v577 = vunpack.c.h.b16 %v142
  %v578 = vunpack.c.l.b16 %v143
  %v579 = vunpack.c.h.b16 %v143
  %v580 = vpack.c.b16 %v332, %v324
  %v581 = vpack.c.b16 %v333, %v325
  %v582 = vpack.c.b16 %v334, %v326
  %v583 = vpack.c.b16 %v335, %v327
  %v584 = vpack.c.b16 %v336, %v328
  %v585 = vpack.c.b16 %v337, %v329
  %v586 = vpack.c.b16 %v338, %v330
  %v587 = vpack.c.b16 %v339, %v331
  %v588 = vpack.c.b16 %v348, %v340
  %v589 = vpack.c.b16 %v349, %v341
  %v590 = vpack.c.b16 %v350, %v342
  %v591 = vpack.c.b16 %v351, %v343
  %v592 = vpack.c.b16 %v352, %v344
  %v593 = vpack.c.b16 %v353, %v345
  %v594 = vpack.c.b16 %v354, %v346
  %v595 = vpack.c.b16 %v355, %v347
  %v596 = vpack.c.b16 %v364, %v356
  %v597 = vpack.c.b16 %v365, %v357
  %v598 = vpack.c.b16 %v366, %v358
  %v599 = vpack.c.b16 %v367, %v359
  %v600 = vpack.c.b16 %v368, %v360
  %v601 = vpack.c.b16 %v369, %v361
  %v602 = vpack.c.b16 %v370, %v362
  %v603 = vpack.c.b16 %v371, %v363
  %v604 = vpack.c.b16 %v380, %v372
  %v605 = vpack.c.b16 %v381, %v373
  %v606 = vpack.c.b16 %v382, %v374
  %v607 = vpack.c.b16 %v383, %v375
  %v608 = vpack.c.b16 %v384, %v376
  %v609 = vpack.c.b16 %v385, %v377
  %v610 = vpack.c.b16 %v386, %v378
  %v611 = vpack.c.b16 %v387, %v379
  %v612 = vpack.c.b16 %v396, %v388
  %v613 = vpack.c.b16 %v397, %v389
  %v614 = vpack.c.b16 %v398, %v390
  %v615 = vpack.c.b16 %v399, %v391
  %v616 = vpack.c.b16 %v400, %v392
  %v617 = vpack.c.b16 %v401, %v393
  %v618 = vpack.c.b16 %v402, %v394
  %v619 = vpack.c.b16 %v403, %v395
  %v620 = vpack.c.b16 %v412, %v404
  %v621 = vpack.c.b16 %v413, %v405
  %v622 = vpack.c.b16 %v414, %v406
  %v623 = vpack.c.b16 %v415, %v407
  %v624 = vpack.c.b16 %v416, %v408
  %v625 = vpack.c.b16 %v417, %v409
  %v626 = vpack.c.b16 %v418, %v410
  %v627 = vpack.c.b16 %v419, %v411
  %v628 = vpack.c.b16 %v428, %v420
  %v629 = vpack.c.b16 %v429, %v421
  %v630 = vpack.c.b16 %v430, %v422
  %v631 = vpack.c.b16 %v431, %v423
  %v632 = vpack.c.b16 %v432, %v424
  %v633 = vpack.c.b16 %v433, %v425
  %v634 = vpack.c.b16 %v434, %v426
  %v635 = vpack.c.b16 %v435, %v427
  %v636 = vpack.c.b16 %v444, %v436
  %v637 = vpack.c.b16 %v445, %v437
  %v638 = vpack.c.b16 %v446, %v438
  %v639 = vpack.c.b16 %v447, %v439
  %v640 = vpack.c.b16 %v448, %v440
  %v641 = vpack.c.b16 %v449, %v441
  %v642 = vpack.c.b16 %v450, %v442
  %v643 = vpack.c.b16 %v451, %v443
  %v644 = vpack.c.b16 %v460, %v452
  %v645 = vpack.c.b16 %v461, %v453
  %v646 = vpack.c.b16 %v462, %v454
  %v647 = vpack.c.b16 %v463, %v455
  %v648 = vpack.c.b16 %v464, %v456
  %v649 = vpack.c.b16 %v465, %v457
  %v650 = vpack.c.b16 %v466, %v458
  %v651 = vpack.c.b16 %v467, %v459
  %v652 = vpack.c.b16 %v476, %v468
  %v653 = vpack.c.b16 %v477, %v469
  %v654 = vpack.c.b16 %v478, %v470
  %v655 = vpack.c.b16 %v479, %v471
  %v656 = vpack.c.b16 %v480, %v472
  %v657 = vpack.c.b16 %v481, %v473
  %v658 = vpack.c.b16 %v482, %v474
  %v659 = vpack.c.b16 %v483, %v475
  %v660 = vpack.c.b16 %v492, %v484
  %v661 = vpack.c.b16 %v493, %v485
  %v662 = vpack.c.b16 %v494, %v486
  %v663 = vpack.c.b16 %v495, %v487
  %v664 = vpack.c.b16 %v496, %v488
  %v665 = vpack.c.b16 %v497, %v489
  %v666 = vpack.c.b16 %v498, %v490
  %v667 = vpack.c.b16 %v499, %v491
  %v668 = vpack.c.b16 %v508, %v500
  %v669 = vpack.c.b16 %v509, %v501
  %v670 = vpack.c.b16 %v510, %v502
  %v671 = vpack.c.b16 %v511, %v503
  %v672 = vpack.c.b16 %v512, %v504
  %v673 = vpack.c.b16 %v513, %v505
  %v674 = vpack.c.b16 %v514, %v506
  %v675 = vpack.c.b16 %v515, %v507
  %v676 = vpack.c.b16 %v524, %v516
  %v677 = vpack.c.b16 %v525, %v517
  %v678 = vpack.c.b16 %v526, %v518
  %v679 = vpack.c.b16 %v527, %v519
  %v680 = vpack.c.b16 %v528, %v520
  %v681 = vpack.c.b16 %v529, %v521
  %v682 = vpack.c.b16 %v530, %v522
  %v683 = vpack.c.b16 %v531, %v523
  %v684 = vpack.c.b16 %v540, %v532
  %v685 = vpack.c.b16 %v541, %v533
  %v686 = vpack.c.b16 %v542, %v534
  %v687 = vpack.c.b16 %v543, %v535
  %v688 = vpack.c.b16 %v544, %v536
  %v689 = vpack.c.b16 %v545, %v537
  %v690 = vpack.c.b16 %v546, %v538
  %v691 = vpack.c.b16 %v547, %v539
  %v692 = vpack.c.b16 %v556, %v548
  %v693 = vpack.c.b16 %v557, %v549
  %v694 = vpack.c.b16 %v558, %v550
  %v695 = vpack.c.b16 %v559, %v551
  %v696 = vpack.c.b16 %v560, %v552
  %v697 = vpack.c.b16 %v561, %v553
  %v698 = vpack.c.b16 %v562, %v554
  %v699 = vpack.c.b16 %v563, %v555
  %v700 = vpack.c.b16 %v572, %v564
  %v701 = vpack.c.b16 %v573, %v565
  %v702 = vpack.c.b16 %v574, %v566
  %v703 = vpack.c.b16 %v575, %v567
  %v704 = vpack.c.b16 %v576, %v568
  %v705 = vpack.c.b16 %v577, %v569
  %v706 = vpack.c.b16 %v578, %v570
  %v707 = vpack.c.b16 %v579, %v571
  %836 = vmatprep.subr.bf16.mxu0 %v581
  %837 = vmatpush1.bf16.msra.mxu0 %v580
  %838 = vmatprep.subr.bf16.mxu0 %v589
  %839 = vmatpush1.bf16.msra.mxu0 %v588
  %840 = vmatprep.subr.bf16.mxu0 %v597
  %841 = vmatpush1.bf16.msra.mxu0 %v596
  %842 = vmatprep.subr.bf16.mxu0 %v605
  %843 = vmatpush1.bf16.msra.mxu0 %v604
  %844 = vmatprep.subr.bf16.mxu0 %v613
  %845 = vmatpush1.bf16.msra.mxu0 %v612
  %846 = vmatprep.subr.bf16.mxu0 %v621
  %847 = vmatpush1.bf16.msra.mxu0 %v620
  %848 = vmatprep.subr.bf16.mxu0 %v629
  %849 = vmatpush1.bf16.msra.mxu0 %v628
  %850 = vmatprep.subr.bf16.mxu0 %v637
  %851 = vmatpush1.bf16.msra.mxu0 %v636
  %852 = vmatprep.subr.bf16.mxu0 %v645
  %853 = vmatpush1.bf16.msra.mxu0 %v644
  %854 = vmatprep.subr.bf16.mxu0 %v653
  %855 = vmatpush1.bf16.msra.mxu0 %v652
  %856 = vmatprep.subr.bf16.mxu0 %v661
  %857 = vmatpush1.bf16.msra.mxu0 %v660
  %858 = vmatprep.subr.bf16.mxu0 %v669
  %859 = vmatpush1.bf16.msra.mxu0 %v668
  %860 = vmatprep.subr.bf16.mxu0 %v677
  %861 = vmatpush1.bf16.msra.mxu0 %v676
  %862 = vmatprep.subr.bf16.mxu0 %v685
  %863 = vmatpush1.bf16.msra.mxu0 %v684
  %864 = vmatprep.subr.bf16.mxu0 %v693
  %865 = vmatpush1.bf16.msra.mxu0 %v692
  %866 = vmatprep.subr.bf16.mxu0 %v701
  %867 = vmatpush1.bf16.msra.mxu0 %v700
  %868 = vmatprep.mubr.bf16.mxu0 %v193
  %869 = vmatmul.mubr.bf16.gmra.mrb[0].mxu0 %v192
  %v870 = vpop.f32.mrb[0].mxu0
  %v871 = vadd.f32 %v149, %v870
  %v872 = vpop.f32.mrb[0].mxu0
  %v873 = vadd.f32 %v153, %v872
  %v874 = vpop.f32.mrb[0].mxu0
  %v875 = vadd.f32 %v149, %v874
  %v876 = vpop.f32.mrb[0].mxu0
  %v877 = vadd.f32 %v153, %v876
  %878 = vdwg.mxu0
  %879 = vmatprep.subr.bf16.mxu0 %v583
  %880 = vmatpush1.bf16.msra.mxu0 %v582
  %881 = vmatprep.subr.bf16.mxu0 %v591
  %882 = vmatpush1.bf16.msra.mxu0 %v590
  %883 = vmatprep.subr.bf16.mxu0 %v599
  %884 = vmatpush1.bf16.msra.mxu0 %v598
  %885 = vmatprep.subr.bf16.mxu0 %v607
  %886 = vmatpush1.bf16.msra.mxu0 %v606
  %887 = vmatprep.subr.bf16.mxu0 %v615
  %888 = vmatpush1.bf16.msra.mxu0 %v614
  %889 = vmatprep.subr.bf16.mxu0 %v623
  %890 = vmatpush1.bf16.msra.mxu0 %v622
  %891 = vmatprep.subr.bf16.mxu0 %v631
  %892 = vmatpush1.bf16.msra.mxu0 %v630
  %893 = vmatprep.subr.bf16.mxu0 %v639
  %894 = vmatpush1.bf16.msra.mxu0 %v638
  %895 = vmatprep.subr.bf16.mxu0 %v647
  %896 = vmatpush1.bf16.msra.mxu0 %v646
  %897 = vmatprep.subr.bf16.mxu0 %v655
  %898 = vmatpush1.bf16.msra.mxu0 %v654
  %899 = vmatprep.subr.bf16.mxu0 %v663
  %900 = vmatpush1.bf16.msra.mxu0 %v662
  %901 = vmatprep.subr.bf16.mxu0 %v671
  %902 = vmatpush1.bf16.msra.mxu0 %v670
  %903 = vmatprep.subr.bf16.mxu0 %v679
  %904 = vmatpush1.bf16.msra.mxu0 %v678
  %905 = vmatprep.subr.bf16.mxu0 %v687
  %906 = vmatpush1.bf16.msra.mxu0 %v686
  %907 = vmatprep.subr.bf16.mxu0 %v695
  %908 = vmatpush1.bf16.msra.mxu0 %v694
  %909 = vmatprep.subr.bf16.mxu0 %v703
  %910 = vmatpush1.bf16.msra.mxu0 %v702
  %911 = vmatprep.mubr.bf16.mxu0 %v193
  %912 = vmatmul.mubr.bf16.gmra.mrb[0].mxu0 %v192
  %v913 = vpop.f32.mrb[0].mxu0
  %v914 = vadd.f32 %v157, %v913
  %v915 = vpop.f32.mrb[0].mxu0
  %v916 = vadd.f32 %v161, %v915
  %v917 = vpop.f32.mrb[0].mxu0
  %v918 = vadd.f32 %v157, %v917
  %v919 = vpop.f32.mrb[0].mxu0
  %v920 = vadd.f32 %v161, %v919
  %921 = vdwg.mxu0
  %922 = vmatprep.subr.bf16.mxu0 %v585
  %923 = vmatpush1.bf16.msra.mxu0 %v584
  %924 = vmatprep.subr.bf16.mxu0 %v593
  %925 = vmatpush1.bf16.msra.mxu0 %v592
  %926 = vmatprep.subr.bf16.mxu0 %v601
  %927 = vmatpush1.bf16.msra.mxu0 %v600
  %928 = vmatprep.subr.bf16.mxu0 %v609
  %929 = vmatpush1.bf16.msra.mxu0 %v608
  %930 = vmatprep.subr.bf16.mxu0 %v617
  %931 = vmatpush1.bf16.msra.mxu0 %v616
  %932 = vmatprep.subr.bf16.mxu0 %v625
  %933 = vmatpush1.bf16.msra.mxu0 %v624
  %934 = vmatprep.subr.bf16.mxu0 %v633
  %935 = vmatpush1.bf16.msra.mxu0 %v632
  %936 = vmatprep.subr.bf16.mxu0 %v641
  %937 = vmatpush1.bf16.msra.mxu0 %v640
  %938 = vmatprep.subr.bf16.mxu0 %v649
  %939 = vmatpush1.bf16.msra.mxu0 %v648
  %940 = vmatprep.subr.bf16.mxu0 %v657
  %941 = vmatpush1.bf16.msra.mxu0 %v656
  %942 = vmatprep.subr.bf16.mxu0 %v665
  %943 = vmatpush1.bf16.msra.mxu0 %v664
  %944 = vmatprep.subr.bf16.mxu0 %v673
  %945 = vmatpush1.bf16.msra.mxu0 %v672
  %946 = vmatprep.subr.bf16.mxu0 %v681
  %947 = vmatpush1.bf16.msra.mxu0 %v680
  %948 = vmatprep.subr.bf16.mxu0 %v689
  %949 = vmatpush1.bf16.msra.mxu0 %v688
  %950 = vmatprep.subr.bf16.mxu0 %v697
  %951 = vmatpush1.bf16.msra.mxu0 %v696
  %952 = vmatprep.subr.bf16.mxu0 %v705
  %953 = vmatpush1.bf16.msra.mxu0 %v704
  %954 = vmatprep.mubr.bf16.mxu0 %v193
  %955 = vmatmul.mubr.bf16.gmra.mrb[0].mxu0 %v192
  %v956 = vpop.f32.mrb[0].mxu0
  %v957 = vadd.f32 %v165, %v956
  %v958 = vpop.f32.mrb[0].mxu0
  %v959 = vadd.f32 %v169, %v958
  %v960 = vpop.f32.mrb[0].mxu0
  %v961 = vadd.f32 %v165, %v960
  %v962 = vpop.f32.mrb[0].mxu0
  %v963 = vadd.f32 %v169, %v962
  %964 = vdwg.mxu0
  %965 = vmatprep.subr.bf16.mxu0 %v587
  %966 = vmatpush1.bf16.msra.mxu0 %v586
  %967 = vmatprep.subr.bf16.mxu0 %v595
  %968 = vmatpush1.bf16.msra.mxu0 %v594
  %969 = vmatprep.subr.bf16.mxu0 %v603
  %970 = vmatpush1.bf16.msra.mxu0 %v602
  %971 = vmatprep.subr.bf16.mxu0 %v611
  %972 = vmatpush1.bf16.msra.mxu0 %v610
  %973 = vmatprep.subr.bf16.mxu0 %v619
  %974 = vmatpush1.bf16.msra.mxu0 %v618
  %975 = vmatprep.subr.bf16.mxu0 %v627
  %976 = vmatpush1.bf16.msra.mxu0 %v626
  %977 = vmatprep.subr.bf16.mxu0 %v635
  %978 = vmatpush1.bf16.msra.mxu0 %v634
  %979 = vmatprep.subr.bf16.mxu0 %v643
  %980 = vmatpush1.bf16.msra.mxu0 %v642
  %981 = vmatprep.subr.bf16.mxu0 %v651
  %982 = vmatpush1.bf16.msra.mxu0 %v650
  %983 = vmatprep.subr.bf16.mxu0 %v659
  %984 = vmatpush1.bf16.msra.mxu0 %v658
  %985 = vmatprep.subr.bf16.mxu0 %v667
  %986 = vmatpush1.bf16.msra.mxu0 %v666
  %987 = vmatprep.subr.bf16.mxu0 %v675
  %988 = vmatpush1.bf16.msra.mxu0 %v674
  %989 = vmatprep.subr.bf16.mxu0 %v683
  %990 = vmatpush1.bf16.msra.mxu0 %v682
  %991 = vmatprep.subr.bf16.mxu0 %v691
  %992 = vmatpush1.bf16.msra.mxu0 %v690
  %993 = vmatprep.subr.bf16.mxu0 %v699
  %994 = vmatpush1.bf16.msra.mxu0 %v698
  %995 = vmatprep.subr.bf16.mxu0 %v707
  %996 = vmatpush1.bf16.msra.mxu0 %v706
  %997 = vmatprep.mubr.bf16.mxu0 %v193
  %998 = vmatmul.mubr.bf16.gmra.mrb[0].mxu0 %v192
  %v999 = vpop.f32.mrb[0].mxu0
  %v1000 = vadd.f32 %v173, %v999
  %v1001 = vpop.f32.mrb[0].mxu0
  %v1002 = vadd.f32 %v177, %v1001
  %v1003 = vpop.f32.mrb[0].mxu0
  %v1004 = vadd.f32 %v173, %v1003
  %v1005 = vpop.f32.mrb[0].mxu0
  %v1006 = vadd.f32 %v177, %v1005
  %1007 = vdwg.mxu0
  %v1008 = vpack.c.bf16 %v875, %v871
  %v1009 = vpack.c.bf16 %v877, %v873
  %v1010 = vpack.c.bf16 %v918, %v914
  %v1011 = vpack.c.bf16 %v920, %v916
  %v1012 = vpack.c.bf16 %v961, %v957
  %v1013 = vpack.c.bf16 %v963, %v959
  %v1014 = vpack.c.bf16 %v1004, %v1000
  %v1015 = vpack.c.bf16 %v1006, %v1002
  %v1024 = vunpack.c.l.b16 %v1008
  %v1025 = vunpack.c.l.b16 %v1009
  %v1026 = vunpack.c.l.b16 %v1010
  %v1027 = vunpack.c.l.b16 %v1011
  %v1028 = vunpack.c.l.b16 %v1012
  %v1029 = vunpack.c.l.b16 %v1013
  %v1030 = vunpack.c.l.b16 %v1014
  %v1031 = vunpack.c.l.b16 %v1015
  %v1032 = vunpack.c.h.b16 %v1008
  %v1033 = vunpack.c.h.b16 %v1009
  %v1034 = vunpack.c.h.b16 %v1010
  %v1035 = vunpack.c.h.b16 %v1011
  %v1036 = vunpack.c.h.b16 %v1012
  %v1037 = vunpack.c.h.b16 %v1013
  %v1038 = vunpack.c.h.b16 %v1014
  %v1039 = vunpack.c.h.b16 %v1015
  %v1040 = vpack.c.b16 %v1025, %v1024
  %v1041 = vpack.c.b16 %v1027, %v1026
  %v1042 = vpack.c.b16 %v1029, %v1028
  %v1043 = vpack.c.b16 %v1031, %v1030
  %v1044 = vpack.c.b16 %v1033, %v1032
  %v1045 = vpack.c.b16 %v1035, %v1034
  %v1046 = vpack.c.b16 %v1037, %v1036
  %v1047 = vpack.c.b16 %v1039, %v1038
  %1056 = vst [vmem:[%s3] sm:$0xff] %v1040
  %1057 = vst [vmem:[%s3 + $0x8] sm:$0xff] %v1041
  %1058 = vst [vmem:[%s3 + $0x10] sm:$0xff] %v1042
  %1059 = vst [vmem:[%s3 + $0x18] sm:$0xff] %v1043
  %1060 = vst [vmem:[%s3 + $0x20] sm:$0xff] %v1044
  %1061 = vst [vmem:[%s3 + $0x28] sm:$0xff] %v1045
  %1062 = vst [vmem:[%s3 + $0x30] sm:$0xff] %v1046
  %1063 = vst [vmem:[%s3 + $0x38] sm:$0xff] %v1047
  // Predicated region
  $region14: #{prose_mt_forward.11} parent=0 // pred_check
    _
  $region15: #{prose_mt_forward.11} parent=0 // pred_check_branch
    %1065 = sbr.rel (0) target = $region17
  $region16: #{prose_mt_forward.11} parent=0 // pred_region
    _
  $region17: #{prose_mt_forward.11} parent=0 // pred_fallthru
    _
  // Predicated region
  $region18: #{prose_mt_forward.11} parent=0 // pred_check
    _
  $region19: #{prose_mt_forward.11} parent=0 // pred_check_branch
    %1067 = sbr.rel (0) target = $region21
  $region20: #{prose_mt_forward.11} parent=0 // pred_region
    _
  $region21: #{prose_mt_forward.11} parent=0 // pred_fallthru
    _

// kernel: prose_mt_forward.13
$region0: #{prose_mt_forward.13}
  #allocation0 [shape = 'u32[]', space=smem, size = 0x4, offset = 0x4, fixed_abs, tag = 'smem constant byte address 0x4 - core index']
  #allocation1 [shape = 'u32[144,128]{1,0:T(1,128)}', space=vmem, size = 0x12000, scoped, tag = 'internal scratch']
  %s0 = inlined_call_operand.vmem [shape: bf16[16,896], index: 0, kind: input, shape index: {}]
  %s1 = inlined_call_operand.vmem [shape: bf16[896,128], index: 1, kind: input, shape index: {}]
  %s2 = inlined_call_operand.vmem [shape: f32[1,128], index: 2, kind: input, shape index: {}]
  %s3 = inlined_call_operand.vmem [shape: f32[16,128], index: 3, kind: output, shape index: {}]
  %s4 = sld [smem:[#allocation0]]
  $region22: #{prose_mt_forward.13} parent=0
    _
  %s6 = ssub.s32 1, %s4
  %s7 = scalar_select 0, %s6, %s4
  // Predicated region
  $region2: #{prose_mt_forward.13} parent=0 // pred_check
    _
  $region3: #{prose_mt_forward.13} parent=0 // pred_check_branch
    %9 = sbr.rel (0) target = $region5
  $region4: #{prose_mt_forward.13} parent=0 // pred_region
    _
  $region5: #{prose_mt_forward.13} parent=0 // pred_fallthru
    _
  // Predicated region
  $region6: #{prose_mt_forward.13} parent=0 // pred_check
    _
  $region7: #{prose_mt_forward.13} parent=0 // pred_check_branch
    %11 = sbr.rel (0) target = $region9
  $region8: #{prose_mt_forward.13} parent=0 // pred_region
    _
  $region9: #{prose_mt_forward.13} parent=0 // pred_fallthru
    _
  // Predicated region
  $region10: #{prose_mt_forward.13} parent=0 // pred_check
    _
  $region11: #{prose_mt_forward.13} parent=0 // pred_check_branch
    %13 = sbr.rel (0) target = $region13
  $region12: #{prose_mt_forward.13} parent=0 // pred_region
    _
  $region13: #{prose_mt_forward.13} parent=0 // pred_fallthru
    _
  %v15 = vld [vmem:[%s0] sm:$0xff]
  %v16 = vld [vmem:[%s0 + $0x8] sm:$0xff]
  %v17 = vld [vmem:[%s0 + $0x10] sm:$0xff]
  %v18 = vld [vmem:[%s0 + $0x18] sm:$0xf]
  %v19 = vld [vmem:[%s0 + $0x1c] sm:$0xff]
  %v20 = vld [vmem:[%s0 + $0x24] sm:$0xff]
  %v21 = vld [vmem:[%s0 + $0x2c] sm:$0xff]
  %v22 = vld [vmem:[%s0 + $0x34] sm:$0xf]
  %v23 = vld [vmem:[%s1] sm:$0xf]
  %v24 = vld [vmem:[%s1 + $0x4] sm:$0xf]
  %v25 = vld [vmem:[%s1 + $0x8] sm:$0xf]
  %v26 = vld [vmem:[%s1 + $0xc] sm:$0xf]
  %v27 = vld [vmem:[%s1 + $0x10] sm:$0xf]
  %v28 = vld [vmem:[%s1 + $0x14] sm:$0xf]
  %v29 = vld [vmem:[%s1 + $0x18] sm:$0xf]
  %v30 = vld [vmem:[%s1 + $0x1c] sm:$0xf]
  %v31 = vld [vmem:[%s1 + $0x20] sm:$0xf]
  %v32 = vld [vmem:[%s1 + $0x24] sm:$0xf]
  %v33 = vld [vmem:[%s1 + $0x28] sm:$0xf]
  %v34 = vld [vmem:[%s1 + $0x2c] sm:$0xf]
  %v35 = vld [vmem:[%s1 + $0x30] sm:$0xf]
  %v36 = vld [vmem:[%s1 + $0x34] sm:$0xf]
  %v37 = vld [vmem:[%s1 + $0x38] sm:$0xf]
  %v38 = vld [vmem:[%s1 + $0x3c] sm:$0xf]
  %v39 = vld [vmem:[%s1 + $0x40] sm:$0xf]
  %v40 = vld [vmem:[%s1 + $0x44] sm:$0xf]
  %v41 = vld [vmem:[%s1 + $0x48] sm:$0xf]
  %v42 = vld [vmem:[%s1 + $0x4c] sm:$0xf]
  %v43 = vld [vmem:[%s1 + $0x50] sm:$0xf]
  %v44 = vld [vmem:[%s1 + $0x54] sm:$0xf]
  %v45 = vld [vmem:[%s1 + $0x58] sm:$0xf]
  %v46 = vld [vmem:[%s1 + $0x5c] sm:$0xf]
  %v47 = vld [vmem:[%s1 + $0x60] sm:$0xf]
  %v48 = vld [vmem:[%s1 + $0x64] sm:$0xf]
  %v49 = vld [vmem:[%s1 + $0x68] sm:$0xf]
  %v50 = vld [vmem:[%s1 + $0x6c] sm:$0xf]
  %v51 = vld [vmem:[%s1 + $0x70] sm:$0xf]
  %v52 = vld [vmem:[%s1 + $0x74] sm:$0xf]
  %v53 = vld [vmem:[%s1 + $0x78] sm:$0xf]
  %v54 = vld [vmem:[%s1 + $0x7c] sm:$0xf]
  %v55 = vld [vmem:[%s1 + $0x80] sm:$0xf]
  %v56 = vld [vmem:[%s1 + $0x84] sm:$0xf]
  %v57 = vld [vmem:[%s1 + $0x88] sm:$0xf]
  %v58 = vld [vmem:[%s1 + $0x8c] sm:$0xf]
  %v59 = vld [vmem:[%s1 + $0x90] sm:$0xf]
  %v60 = vld [vmem:[%s1 + $0x94] sm:$0xf]
  %v61 = vld [vmem:[%s1 + $0x98] sm:$0xf]
  %v62 = vld [vmem:[%s1 + $0x9c] sm:$0xf]
  %v63 = vld [vmem:[%s1 + $0xa0] sm:$0xf]
  %v64 = vld [vmem:[%s1 + $0xa4] sm:$0xf]
  %v65 = vld [vmem:[%s1 + $0xa8] sm:$0xf]
  %v66 = vld [vmem:[%s1 + $0xac] sm:$0xf]
  %v67 = vld [vmem:[%s1 + $0xb0] sm:$0xf]
  %v68 = vld [vmem:[%s1 + $0xb4] sm:$0xf]
  %v69 = vld [vmem:[%s1 + $0xb8] sm:$0xf]
  %v70 = vld [vmem:[%s1 + $0xbc] sm:$0xf]
  %v71 = vld [vmem:[%s1 + $0xc0] sm:$0xf]
  %v72 = vld [vmem:[%s1 + $0xc4] sm:$0xf]
  %v73 = vld [vmem:[%s1 + $0xc8] sm:$0xf]
  %v74 = vld [vmem:[%s1 + $0xcc] sm:$0xf]
  %v75 = vld [vmem:[%s1 + $0xd0] sm:$0xf]
  %v76 = vld [vmem:[%s1 + $0xd4] sm:$0xf]
  %v77 = vld [vmem:[%s1 + $0xd8] sm:$0xf]
  %v78 = vld [vmem:[%s1 + $0xdc] sm:$0xf]
  %v79 = vld [vmem:[%s1 + $0xe0] sm:$0xf]
  %v80 = vld [vmem:[%s1 + $0xe4] sm:$0xf]
  %v81 = vld [vmem:[%s1 + $0xe8] sm:$0xf]
  %v82 = vld [vmem:[%s1 + $0xec] sm:$0xf]
  %v83 = vld [vmem:[%s1 + $0xf0] sm:$0xf]
  %v84 = vld [vmem:[%s1 + $0xf4] sm:$0xf]
  %v85 = vld [vmem:[%s1 + $0xf8] sm:$0xf]
  %v86 = vld [vmem:[%s1 + $0xfc] sm:$0xf]
  %v87 = vld [vmem:[%s1 + $0x100] sm:$0xf]
  %v88 = vld [vmem:[%s1 + $0x104] sm:$0xf]
  %v89 = vld [vmem:[%s1 + $0x108] sm:$0xf]
  %v90 = vld [vmem:[%s1 + $0x10c] sm:$0xf]
  %v91 = vld [vmem:[%s1 + $0x110] sm:$0xf]
  %v92 = vld [vmem:[%s1 + $0x114] sm:$0xf]
  %v93 = vld [vmem:[%s1 + $0x118] sm:$0xf]
  %v94 = vld [vmem:[%s1 + $0x11c] sm:$0xf]
  %v95 = vld [vmem:[%s1 + $0x120] sm:$0xf]
  %v96 = vld [vmem:[%s1 + $0x124] sm:$0xf]
  %v97 = vld [vmem:[%s1 + $0x128] sm:$0xf]
  %v98 = vld [vmem:[%s1 + $0x12c] sm:$0xf]
  %v99 = vld [vmem:[%s1 + $0x130] sm:$0xf]
  %v100 = vld [vmem:[%s1 + $0x134] sm:$0xf]
  %v101 = vld [vmem:[%s1 + $0x138] sm:$0xf]
  %v102 = vld [vmem:[%s1 + $0x13c] sm:$0xf]
  %v103 = vld [vmem:[%s1 + $0x140] sm:$0xf]
  %v104 = vld [vmem:[%s1 + $0x144] sm:$0xf]
  %v105 = vld [vmem:[%s1 + $0x148] sm:$0xf]
  %v106 = vld [vmem:[%s1 + $0x14c] sm:$0xf]
  %v107 = vld [vmem:[%s1 + $0x150] sm:$0xf]
  %v108 = vld [vmem:[%s1 + $0x154] sm:$0xf]
  %v109 = vld [vmem:[%s1 + $0x158] sm:$0xf]
  %v110 = vld [vmem:[%s1 + $0x15c] sm:$0xf]
  %v111 = vld [vmem:[%s1 + $0x160] sm:$0xf]
  %v112 = vld [vmem:[%s1 + $0x164] sm:$0xf]
  %v113 = vld [vmem:[%s1 + $0x168] sm:$0xf]
  %v114 = vld [vmem:[%s1 + $0x16c] sm:$0xf]
  %v115 = vld [vmem:[%s1 + $0x170] sm:$0xf]
  %v116 = vld [vmem:[%s1 + $0x174] sm:$0xf]
  %v117 = vld [vmem:[%s1 + $0x178] sm:$0xf]
  %v118 = vld [vmem:[%s1 + $0x17c] sm:$0xf]
  %v119 = vld [vmem:[%s1 + $0x180] sm:$0xf]
  %v120 = vld [vmem:[%s1 + $0x184] sm:$0xf]
  %v121 = vld [vmem:[%s1 + $0x188] sm:$0xf]
  %v122 = vld [vmem:[%s1 + $0x18c] sm:$0xf]
  %v123 = vld [vmem:[%s1 + $0x190] sm:$0xf]
  %v124 = vld [vmem:[%s1 + $0x194] sm:$0xf]
  %v125 = vld [vmem:[%s1 + $0x198] sm:$0xf]
  %v126 = vld [vmem:[%s1 + $0x19c] sm:$0xf]
  %v127 = vld [vmem:[%s1 + $0x1a0] sm:$0xf]
  %v128 = vld [vmem:[%s1 + $0x1a4] sm:$0xf]
  %v129 = vld [vmem:[%s1 + $0x1a8] sm:$0xf]
  %v130 = vld [vmem:[%s1 + $0x1ac] sm:$0xf]
  %v131 = vld [vmem:[%s1 + $0x1b0] sm:$0xf]
  %v132 = vld [vmem:[%s1 + $0x1b4] sm:$0xf]
  %v133 = vld [vmem:[%s1 + $0x1b8] sm:$0xf]
  %v134 = vld [vmem:[%s1 + $0x1bc] sm:$0xf]
  %v135 = vld [vmem:[%s2] sm:$0x1]
  %v137 = vlaneseq
  %v138 = vshrl.u32 %v137, 7
  %v139 = vsub.s32 0, %v138
  %v140 = vrot.slane %v135, %v139
  %v150 = vunpack.c.l.b16 %v15
  %v151 = vunpack.c.h.b16 %v15
  %v152 = vunpack.c.l.b16 %v16
  %v153 = vunpack.c.h.b16 %v16
  %v154 = vunpack.c.l.b16 %v17
  %v155 = vunpack.c.h.b16 %v17
  %v156 = vunpack.c.l.b16 %v18
  %v157 = vunpack.c.l.b16 %v19
  %v158 = vunpack.c.h.b16 %v19
  %v159 = vunpack.c.l.b16 %v20
  %v160 = vunpack.c.h.b16 %v20
  %v161 = vunpack.c.l.b16 %v21
  %v162 = vunpack.c.h.b16 %v21
  %v163 = vunpack.c.l.b16 %v22
  %v164 = vpack.c.b16 %v157, %v150
  %v165 = vpack.c.b16 %v158, %v151
  %v166 = vpack.c.b16 %v159, %v152
  %v167 = vpack.c.b16 %v160, %v153
  %v168 = vpack.c.b16 %v161, %v154
  %v169 = vpack.c.b16 %v162, %v155
  %v170 = vpack.c.b16 %v163, %v156
  %v290 = vunpack.c.l.b16 %v23
  %v291 = vunpack.c.l.b16 %v24
  %v292 = vunpack.c.l.b16 %v25
  %v293 = vunpack.c.l.b16 %v26
  %v294 = vunpack.c.l.b16 %v27
  %v295 = vunpack.c.l.b16 %v28
  %v296 = vunpack.c.l.b16 %v29
  %v297 = vunpack.c.l.b16 %v30
  %v298 = vunpack.c.l.b16 %v31
  %v299 = vunpack.c.l.b16 %v32
  %v300 = vunpack.c.l.b16 %v33
  %v301 = vunpack.c.l.b16 %v34
  %v302 = vunpack.c.l.b16 %v35
  %v303 = vunpack.c.l.b16 %v36
  %v304 = vunpack.c.l.b16 %v37
  %v305 = vunpack.c.l.b16 %v38
  %v306 = vunpack.c.l.b16 %v39
  %v307 = vunpack.c.l.b16 %v40
  %v308 = vunpack.c.l.b16 %v41
  %v309 = vunpack.c.l.b16 %v42
  %v310 = vunpack.c.l.b16 %v43
  %v311 = vunpack.c.l.b16 %v44
  %v312 = vunpack.c.l.b16 %v45
  %v313 = vunpack.c.l.b16 %v46
  %v314 = vunpack.c.l.b16 %v47
  %v315 = vunpack.c.l.b16 %v48
  %v316 = vunpack.c.l.b16 %v49
  %v317 = vunpack.c.l.b16 %v50
  %v318 = vunpack.c.l.b16 %v51
  %v319 = vunpack.c.l.b16 %v52
  %v320 = vunpack.c.l.b16 %v53
  %v321 = vunpack.c.l.b16 %v54
  %v322 = vunpack.c.l.b16 %v55
  %v323 = vunpack.c.l.b16 %v56
  %v324 = vunpack.c.l.b16 %v57
  %v325 = vunpack.c.l.b16 %v58
  %v326 = vunpack.c.l.b16 %v59
  %v327 = vunpack.c.l.b16 %v60
  %v328 = vunpack.c.l.b16 %v61
  %v329 = vunpack.c.l.b16 %v62
  %v330 = vunpack.c.l.b16 %v63
  %v331 = vunpack.c.l.b16 %v64
  %v332 = vunpack.c.l.b16 %v65
  %v333 = vunpack.c.l.b16 %v66
  %v334 = vunpack.c.l.b16 %v67
  %v335 = vunpack.c.l.b16 %v68
  %v336 = vunpack.c.l.b16 %v69
  %v337 = vunpack.c.l.b16 %v70
  %v338 = vunpack.c.l.b16 %v71
  %v339 = vunpack.c.l.b16 %v72
  %v340 = vunpack.c.l.b16 %v73
  %v341 = vunpack.c.l.b16 %v74
  %v342 = vunpack.c.l.b16 %v75
  %v343 = vunpack.c.l.b16 %v76
  %v344 = vunpack.c.l.b16 %v77
  %v345 = vunpack.c.l.b16 %v78
  %v346 = vunpack.c.l.b16 %v79
  %v347 = vunpack.c.l.b16 %v80
  %v348 = vunpack.c.l.b16 %v81
  %v349 = vunpack.c.l.b16 %v82
  %v350 = vunpack.c.l.b16 %v83
  %v351 = vunpack.c.l.b16 %v84
  %v352 = vunpack.c.l.b16 %v85
  %v353 = vunpack.c.l.b16 %v86
  %v354 = vunpack.c.l.b16 %v87
  %v355 = vunpack.c.l.b16 %v88
  %v356 = vunpack.c.l.b16 %v89
  %v357 = vunpack.c.l.b16 %v90
  %v358 = vunpack.c.l.b16 %v91
  %v359 = vunpack.c.l.b16 %v92
  %v360 = vunpack.c.l.b16 %v93
  %v361 = vunpack.c.l.b16 %v94
  %v362 = vunpack.c.l.b16 %v95
  %v363 = vunpack.c.l.b16 %v96
  %v364 = vunpack.c.l.b16 %v97
  %v365 = vunpack.c.l.b16 %v98
  %v366 = vunpack.c.l.b16 %v99
  %v367 = vunpack.c.l.b16 %v100
  %v368 = vunpack.c.l.b16 %v101
  %v369 = vunpack.c.l.b16 %v102
  %v370 = vunpack.c.l.b16 %v103
  %v371 = vunpack.c.l.b16 %v104
  %v372 = vunpack.c.l.b16 %v105
  %v373 = vunpack.c.l.b16 %v106
  %v374 = vunpack.c.l.b16 %v107
  %v375 = vunpack.c.l.b16 %v108
  %v376 = vunpack.c.l.b16 %v109
  %v377 = vunpack.c.l.b16 %v110
  %v378 = vunpack.c.l.b16 %v111
  %v379 = vunpack.c.l.b16 %v112
  %v380 = vunpack.c.l.b16 %v113
  %v381 = vunpack.c.l.b16 %v114
  %v382 = vunpack.c.l.b16 %v115
  %v383 = vunpack.c.l.b16 %v116
  %v384 = vunpack.c.l.b16 %v117
  %v385 = vunpack.c.l.b16 %v118
  %v386 = vunpack.c.l.b16 %v119
  %v387 = vunpack.c.l.b16 %v120
  %v388 = vunpack.c.l.b16 %v121
  %v389 = vunpack.c.l.b16 %v122
  %v390 = vunpack.c.l.b16 %v123
  %v391 = vunpack.c.l.b16 %v124
  %v392 = vunpack.c.l.b16 %v125
  %v393 = vunpack.c.l.b16 %v126
  %v394 = vunpack.c.l.b16 %v127
  %v395 = vunpack.c.l.b16 %v128
  %v396 = vunpack.c.l.b16 %v129
  %v397 = vunpack.c.l.b16 %v130
  %v398 = vunpack.c.l.b16 %v131
  %v399 = vunpack.c.l.b16 %v132
  %v400 = vunpack.c.l.b16 %v133
  %v401 = vunpack.c.l.b16 %v134
  %v402 = vpack.c.b16 %v291, %v290
  %v403 = vpack.c.b16 %v293, %v292
  %v404 = vpack.c.b16 %v295, %v294
  %v405 = vpack.c.b16 %v297, %v296
  %v406 = vpack.c.b16 %v299, %v298
  %v407 = vpack.c.b16 %v301, %v300
  %v408 = vpack.c.b16 %v303, %v302
  %v409 = vpack.c.b16 %v305, %v304
  %v410 = vpack.c.b16 %v307, %v306
  %v411 = vpack.c.b16 %v309, %v308
  %v412 = vpack.c.b16 %v311, %v310
  %v413 = vpack.c.b16 %v313, %v312
  %v414 = vpack.c.b16 %v315, %v314
  %v415 = vpack.c.b16 %v317, %v316
  %v416 = vpack.c.b16 %v319, %v318
  %v417 = vpack.c.b16 %v321, %v320
  %v418 = vpack.c.b16 %v323, %v322
  %v419 = vpack.c.b16 %v325, %v324
  %v420 = vpack.c.b16 %v327, %v326
  %v421 = vpack.c.b16 %v329, %v328
  %v422 = vpack.c.b16 %v331, %v330
  %v423 = vpack.c.b16 %v333, %v332
  %v424 = vpack.c.b16 %v335, %v334
  %v425 = vpack.c.b16 %v337, %v336
  %v426 = vpack.c.b16 %v339, %v338
  %v427 = vpack.c.b16 %v341, %v340
  %v428 = vpack.c.b16 %v343, %v342
  %v429 = vpack.c.b16 %v345, %v344
  %v430 = vpack.c.b16 %v347, %v346
  %v431 = vpack.c.b16 %v349, %v348
  %v432 = vpack.c.b16 %v351, %v350
  %v433 = vpack.c.b16 %v353, %v352
  %v434 = vpack.c.b16 %v355, %v354
  %v435 = vpack.c.b16 %v357, %v356
  %v436 = vpack.c.b16 %v359, %v358
  %v437 = vpack.c.b16 %v361, %v360
  %v438 = vpack.c.b16 %v363, %v362
  %v439 = vpack.c.b16 %v365, %v364
  %v440 = vpack.c.b16 %v367, %v366
  %v441 = vpack.c.b16 %v369, %v368
  %v442 = vpack.c.b16 %v371, %v370
  %v443 = vpack.c.b16 %v373, %v372
  %v444 = vpack.c.b16 %v375, %v374
  %v445 = vpack.c.b16 %v377, %v376
  %v446 = vpack.c.b16 %v379, %v378
  %v447 = vpack.c.b16 %v381, %v380
  %v448 = vpack.c.b16 %v383, %v382
  %v449 = vpack.c.b16 %v385, %v384
  %v450 = vpack.c.b16 %v387, %v386
  %v451 = vpack.c.b16 %v389, %v388
  %v452 = vpack.c.b16 %v391, %v390
  %v453 = vpack.c.b16 %v393, %v392
  %v454 = vpack.c.b16 %v395, %v394
  %v455 = vpack.c.b16 %v397, %v396
  %v456 = vpack.c.b16 %v399, %v398
  %v457 = vpack.c.b16 %v401, %v400
  %514 = vmatprep.subr.bf16.mxu0 0
  %515 = vmatpush1.bf16.msra.mxu0 %v402
  %516 = vmatprep.subr.bf16.mxu0 0
  %517 = vmatpush1.bf16.msra.mxu0 %v403
  %518 = vmatprep.subr.bf16.mxu0 0
  %519 = vmatpush1.bf16.msra.mxu0 %v404
  %520 = vmatprep.subr.bf16.mxu0 0
  %521 = vmatpush1.bf16.msra.mxu0 %v405
  %522 = vmatprep.subr.bf16.mxu0 0
  %523 = vmatpush1.bf16.msra.mxu0 %v406
  %524 = vmatprep.subr.bf16.mxu0 0
  %525 = vmatpush1.bf16.msra.mxu0 %v407
  %526 = vmatprep.subr.bf16.mxu0 0
  %527 = vmatpush1.bf16.msra.mxu0 %v408
  %528 = vmatprep.subr.bf16.mxu0 0
  %529 = vmatpush1.bf16.msra.mxu0 %v409
  %530 = vmatprep.subr.bf16.mxu0 0
  %531 = vmatpush1.bf16.msra.mxu0 %v410
  %532 = vmatprep.subr.bf16.mxu0 0
  %533 = vmatpush1.bf16.msra.mxu0 %v411
  %534 = vmatprep.subr.bf16.mxu0 0
  %535 = vmatpush1.bf16.msra.mxu0 %v412
  %536 = vmatprep.subr.bf16.mxu0 0
  %537 = vmatpush1.bf16.msra.mxu0 %v413
  %538 = vmatprep.subr.bf16.mxu0 0
  %539 = vmatpush1.bf16.msra.mxu0 %v414
  %540 = vmatprep.subr.bf16.mxu0 0
  %541 = vmatpush1.bf16.msra.mxu0 %v415
  %542 = vmatprep.subr.bf16.mxu0 0
  %543 = vmatpush1.bf16.msra.mxu0 %v416
  %544 = vmatprep.subr.bf16.mxu0 0
  %545 = vmatpush1.bf16.msra.mxu0 %v417
  %546 = vmatprep.mubr.bf16.mxu0 %v165
  %547 = vmatmul.mubr.bf16.gmra.mrb[0].mxu0 %v164
  %v548 = vpop.f32.mrb[0].mxu0
  %v549 = vadd.f32 %v140, %v548
  %v550 = vpop.f32.mrb[0].mxu0
  %v551 = vpop.f32.mrb[0].mxu0
  %v552 = vadd.f32 %v140, %v551
  %v553 = vpop.f32.mrb[0].mxu0
  %554 = vdwg.mxu0
  %555 = vmatprep.subr.bf16.mxu0 0
  %556 = vmatpush1.bf16.msra.mxu0 %v418
  %557 = vmatprep.subr.bf16.mxu0 0
  %558 = vmatpush1.bf16.msra.mxu0 %v419
  %559 = vmatprep.subr.bf16.mxu0 0
  %560 = vmatpush1.bf16.msra.mxu0 %v420
  %561 = vmatprep.subr.bf16.mxu0 0
  %562 = vmatpush1.bf16.msra.mxu0 %v421
  %563 = vmatprep.subr.bf16.mxu0 0
  %564 = vmatpush1.bf16.msra.mxu0 %v422
  %565 = vmatprep.subr.bf16.mxu0 0
  %566 = vmatpush1.bf16.msra.mxu0 %v423
  %567 = vmatprep.subr.bf16.mxu0 0
  %568 = vmatpush1.bf16.msra.mxu0 %v424
  %569 = vmatprep.subr.bf16.mxu0 0
  %570 = vmatpush1.bf16.msra.mxu0 %v425
  %571 = vmatprep.subr.bf16.mxu0 0
  %572 = vmatpush1.bf16.msra.mxu0 %v426
  %573 = vmatprep.subr.bf16.mxu0 0
  %574 = vmatpush1.bf16.msra.mxu0 %v427
  %575 = vmatprep.subr.bf16.mxu0 0
  %576 = vmatpush1.bf16.msra.mxu0 %v428
  %577 = vmatprep.subr.bf16.mxu0 0
  %578 = vmatpush1.bf16.msra.mxu0 %v429
  %579 = vmatprep.subr.bf16.mxu0 0
  %580 = vmatpush1.bf16.msra.mxu0 %v430
  %581 = vmatprep.subr.bf16.mxu0 0
  %582 = vmatpush1.bf16.msra.mxu0 %v431
  %583 = vmatprep.subr.bf16.mxu0 0
  %584 = vmatpush1.bf16.msra.mxu0 %v432
  %585 = vmatprep.subr.bf16.mxu0 0
  %586 = vmatpush1.bf16.msra.mxu0 %v433
  %587 = vmatprep.mubr.bf16.mxu0 %v167
  %588 = vmatmul.mubr.bf16.gmra.mrb[0].mxu0 %v166
  %v589 = vpop.f32.mrb[0].mxu0
  %v590 = vadd.f32 %v549, %v589
  %v591 = vpop.f32.mrb[0].mxu0
  %v592 = vpop.f32.mrb[0].mxu0
  %v593 = vadd.f32 %v552, %v592
  %v594 = vpop.f32.mrb[0].mxu0
  %595 = vdwg.mxu0
  %596 = vmatprep.subr.bf16.mxu0 0
  %597 = vmatpush1.bf16.msra.mxu0 %v434
  %598 = vmatprep.subr.bf16.mxu0 0
  %599 = vmatpush1.bf16.msra.mxu0 %v435
  %600 = vmatprep.subr.bf16.mxu0 0
  %601 = vmatpush1.bf16.msra.mxu0 %v436
  %602 = vmatprep.subr.bf16.mxu0 0
  %603 = vmatpush1.bf16.msra.mxu0 %v437
  %604 = vmatprep.subr.bf16.mxu0 0
  %605 = vmatpush1.bf16.msra.mxu0 %v438
  %606 = vmatprep.subr.bf16.mxu0 0
  %607 = vmatpush1.bf16.msra.mxu0 %v439
  %608 = vmatprep.subr.bf16.mxu0 0
  %609 = vmatpush1.bf16.msra.mxu0 %v440
  %610 = vmatprep.subr.bf16.mxu0 0
  %611 = vmatpush1.bf16.msra.mxu0 %v441
  %612 = vmatprep.subr.bf16.mxu0 0
  %613 = vmatpush1.bf16.msra.mxu0 %v442
  %614 = vmatprep.subr.bf16.mxu0 0
  %615 = vmatpush1.bf16.msra.mxu0 %v443
  %616 = vmatprep.subr.bf16.mxu0 0
  %617 = vmatpush1.bf16.msra.mxu0 %v444
  %618 = vmatprep.subr.bf16.mxu0 0
  %619 = vmatpush1.bf16.msra.mxu0 %v445
  %620 = vmatprep.subr.bf16.mxu0 0
  %621 = vmatpush1.bf16.msra.mxu0 %v446
  %622 = vmatprep.subr.bf16.mxu0 0
  %623 = vmatpush1.bf16.msra.mxu0 %v447
  %624 = vmatprep.subr.bf16.mxu0 0
  %625 = vmatpush1.bf16.msra.mxu0 %v448
  %626 = vmatprep.subr.bf16.mxu0 0
  %627 = vmatpush1.bf16.msra.mxu0 %v449
  %628 = vmatprep.mubr.bf16.mxu0 %v169
  %629 = vmatmul.mubr.bf16.gmra.mrb[0].mxu0 %v168
  %v630 = vpop.f32.mrb[0].mxu0
  %v631 = vadd.f32 %v590, %v630
  %v632 = vpop.f32.mrb[0].mxu0
  %v633 = vpop.f32.mrb[0].mxu0
  %v634 = vadd.f32 %v593, %v633
  %v635 = vpop.f32.mrb[0].mxu0
  %636 = vdwg.mxu0
  %637 = vmatprep.subr.bf16.mxu0 0
  %638 = vmatpush1.bf16.msra.mxu0 %v450
  %639 = vmatprep.subr.bf16.mxu0 0
  %640 = vmatpush1.bf16.msra.mxu0 %v451
  %641 = vmatprep.subr.bf16.mxu0 0
  %642 = vmatpush1.bf16.msra.mxu0 %v452
  %643 = vmatprep.subr.bf16.mxu0 0
  %644 = vmatpush1.bf16.msra.mxu0 %v453
  %645 = vmatprep.subr.bf16.mxu0 0
  %646 = vmatpush1.bf16.msra.mxu0 %v454
  %647 = vmatprep.subr.bf16.mxu0 0
  %648 = vmatpush1.bf16.msra.mxu0 %v455
  %649 = vmatprep.subr.bf16.mxu0 0
  %650 = vmatpush1.bf16.msra.mxu0 %v456
  %651 = vmatprep.subr.bf16.mxu0 0
  %652 = vmatpush1.bf16.msra.mxu0 %v457
  %653 = vmatprep.subr.bf16.mxu0 0
  %654 = vmatpush1.bf16.msra.mxu0 0
  %655 = vmatprep.subr.bf16.mxu0 0
  %656 = vmatpush1.bf16.msra.mxu0 0
  %657 = vmatprep.subr.bf16.mxu0 0
  %658 = vmatpush1.bf16.msra.mxu0 0
  %659 = vmatprep.subr.bf16.mxu0 0
  %660 = vmatpush1.bf16.msra.mxu0 0
  %661 = vmatprep.subr.bf16.mxu0 0
  %662 = vmatpush1.bf16.msra.mxu0 0
  %663 = vmatprep.subr.bf16.mxu0 0
  %664 = vmatpush1.bf16.msra.mxu0 0
  %665 = vmatprep.subr.bf16.mxu0 0
  %666 = vmatpush1.bf16.msra.mxu0 0
  %667 = vmatprep.subr.bf16.mxu0 0
  %668 = vmatpush1.bf16.msra.mxu0 0
  %669 = vmatprep.mubr.bf16.mxu0 0
  %670 = vmatmul.mubr.bf16.gmra.mrb[0].mxu0 %v170
  %v671 = vpop.f32.mrb[0].mxu0
  %v672 = vadd.f32 %v631, %v671
  %v673 = vpop.f32.mrb[0].mxu0
  %v674 = vpop.f32.mrb[0].mxu0
  %v675 = vadd.f32 %v634, %v674
  %v676 = vpop.f32.mrb[0].mxu0
  %677 = vdwg.mxu0
  %678 = vst [vmem:[%s3] sm:$0xff] %v672
  %679 = vst [vmem:[%s3 + $0x8] sm:$0xff] %v675
  // Predicated region
  $region14: #{prose_mt_forward.13} parent=0 // pred_check
    _
  $region15: #{prose_mt_forward.13} parent=0 // pred_check_branch
    %681 = sbr.rel (0) target = $region17
  $region16: #{prose_mt_forward.13} parent=0 // pred_region
    _
  $region17: #{prose_mt_forward.13} parent=0 // pred_fallthru
    _
  // Predicated region
  $region18: #{prose_mt_forward.13} parent=0 // pred_check
    _
  $region19: #{prose_mt_forward.13} parent=0 // pred_check_branch
    %683 = sbr.rel (0) target = $region21
  $region20: #{prose_mt_forward.13} parent=0 // pred_region
    _
  $region21: #{prose_mt_forward.13} parent=0 // pred_fallthru
    _

</llo_original>
